<compile_context>
chip_gen: v7x
topology: tpu7x:2x2x1
jax: 0.10.0
libtpu: 0.0.40
codegen_flags: <defaults>
</compile_context>

<pallas_src>
import jax
import jax.numpy as jnp
from jax.experimental import pallas as pl
from jax.experimental.pallas import tpu as pltpu

# --- small, TPU-friendly stand-ins for the real sizes (2048 / 256) ----------
N = 8            # batch (8 -> dense (8,128) output tiles per grid step)
C_IN = 512       # backbone feature channels (2048 in the real model)
C_MID = 128      # local_conv_out_channels  (256 in the real model)
H = 12           # feature-map height (divisible by 6, 4 and 2)
W = 4            # feature-map width
BN_EPS = 1e-5
NUM_GROUPS = 15  # 6 + 4 + 2 stripe groups + 3 global groups


# ----------------------- kernel 1: pooling prologue --------------------------
def _pool_kernel(f_ref, p_ref):
    # f_ref: (N, H*W, C_IN) f32
    # p_ref: (15, 2*N, C_IN) bf16 ; rows [0:N]=local feature, [N:2N]=rest.
    n, hw, c = f_ref.shape
    x = f_ref[...]                                   # single read of feat
    s6 = (H // 6) * W                                # flattened rows / stripe
    s4 = (H // 4) * W

    l6 = [jnp.max(x[:, i * s6:(i + 1) * s6, :], axis=1) for i in range(6)]
    l4 = [jnp.max(x[:, i * s4:(i + 1) * s4, :], axis=1) for i in range(4)]
    # stripe_h_2 = 3 * stripe_h_6, so derive the 2-stripes from the 6-stripes.
    l2 = [jnp.maximum(jnp.maximum(l6[3 * i], l6[3 * i + 1]), l6[3 * i + 2])
          for i in range(2)]
    gmax = jnp.maximum(l2[0], l2[1])                 # global max pool

    sum6 = l6[0] + l6[1] + l6[2] + l6[3] + l6[4] + l6[5]
    sum4 = l4[0] + l4[1] + l4[2] + l4[3]
    r6 = [(sum6 - l6[i]) * (1.0 / 5.0) for i in range(6)]
    r4 = [(sum4 - l4[i]) * (1.0 / 3.0) for i in range(4)]
    r2 = [l2[1], l2[0]]
    g6r = (sum6 - gmax) * (1.0 / 5.0)
    g4r = (sum4 - gmax) * (1.0 / 3.0)
    g2r = l2[0] + l2[1] - gmax

    pairs = (list(zip(l6, r6)) + list(zip(l4, r4)) + list(zip(l2, r2))
             + [(gmax, g6r), (gmax, g4r), (gmax, g2r)])
    for g, (xl, xr) in enumerate(pairs):
        p_ref[g, :n, :] = xl.astype(jnp.bfloat16)    # cast to bf16 exactly once
        p_ref[g, n:, :] = xr.astype(jnp.bfloat16)


def relation_pool(feat_flat):
    n, hw, c = feat_flat.shape
    return pl.pallas_call(
        _pool_kernel,
        out_shape=jax.ShapeDtypeStruct((NUM_GROUPS, 2 * n, c), jnp.bfloat16),
        grid=(1,),
        in_specs=[pl.BlockSpec((n, hw, c), lambda i: (0, 0, 0))],
        out_specs=pl.BlockSpec((NUM_GROUPS, 2 * n, c), lambda i: (0, 0, 0)),
        compiler_params=pltpu.CompilerParams(
            dimension_semantics=("arbitrary",)),
    )(feat_flat)


# -------------------- kernel 2: one relation group per step ------------------
def _relation_group_kernel(p_ref, wA_ref, bA_ref, wBl_ref, wBr_ref, bB_ref,
                           o_ref):
    # p_ref : (1, 2*N, C_IN)      bf16  (this group's local/rest features)
    # wA_ref: (1, 2, C_IN, C_MID) bf16   bA_ref: (1, 2, 1, C_MID) f32
    # wBl_ref/wBr_ref: (1, C_MID, C_MID) bf16   bB_ref: (1, 1, C_MID) f32
    # o_ref : (N, C_MID) f32  (this group's final feature)
    n = o_ref.shape[0]
    xl = p_ref[0, :n, :]
    xr = p_ref[0, n:, :]

    # Family A: 1x1 Conv + folded BN + ReLU (bf16 MXU path, f32 accumulate)
    lc = jnp.maximum(
        jnp.dot(xl, wA_ref[0, 0], preferred_element_type=jnp.float32)
        + bA_ref[0, 0], 0.0)
    rc = jnp.maximum(
        jnp.dot(xr, wA_ref[0, 1], preferred_element_type=jnp.float32)
        + bA_ref[0, 1], 0.0)

    # Family B: concat-free relation/pooling conv: y = lc @ W_top + rc @ W_bot
    y = (jnp.dot(lc.astype(jnp.bfloat16), wBl_ref[0],
                 preferred_element_type=jnp.float32)
         + jnp.dot(rc.astype(jnp.bfloat16), wBr_ref[0],
                   preferred_element_type=jnp.float32)
         + bB_ref[0])

    o_ref[...] = jnp.maximum(y, 0.0) + lc            # residual add


def relation_groups(pooled, params):
    g, two_n, c = pooled.shape
    n = two_n // 2
    out = pl.pallas_call(
        _relation_group_kernel,
        out_shape=jax.ShapeDtypeStruct((NUM_GROUPS * n, C_MID), jnp.float32),
        grid=(NUM_GROUPS,),
        in_specs=[
            pl.BlockSpec((1, two_n, c), lambda i: (i, 0, 0)),
            pl.BlockSpec((1, 2, c, C_MID), lambda i: (i, 0, 0, 0)),
            pl.BlockSpec((1, 2, 1, C_MID), lambda i: (i, 0, 0, 0)),
            pl.BlockSpec((1, C_MID, C_MID), lambda i: (i, 0, 0)),
            pl.BlockSpec((1, C_MID, C_MID), lambda i: (i, 0, 0)),
            pl.BlockSpec((1, 1, C_MID), lambda i: (i, 0, 0)),
        ],
        out_specs=pl.BlockSpec((n, C_MID), lambda i: (i, 0)),
        compiler_params=pltpu.CompilerParams(
            dimension_semantics=("parallel",)),
    )(pooled, params["wA"], params["bA"], params["wBl"], params["wBr"],
      params["bB"])
    return out.reshape(NUM_GROUPS, n, C_MID)


# --------------------------- parameter setup --------------------------------
def _init_conv_bn(key, c_in, c_out):
    """Conv2d(1x1)+BN params with BN folded into the conv (eval-mode BN:
    gamma=1, beta=0, running_mean=0, running_var=1)."""
    kw, kb = jax.random.split(key)
    wt = jax.random.normal(kw, (c_out, c_in), jnp.float32) * 0.02   # (out, in)
    b = jax.random.normal(kb, (c_out,), jnp.float32) * 0.02
    scale = 1.0 / jnp.sqrt(1.0 + BN_EPS)       # gamma / sqrt(var + eps)
    w_eff = (wt * scale).T                     # (in, out) for x @ w
    b_eff = (b * scale).reshape(1, c_out)
    return w_eff, b_eff


def init_params(key):
    keys = jax.random.split(key, 45)
    a_keys, b_keys = keys[:30], keys[30:]

    # Family-A convs packed per relation group so each grid step DMAs one
    # contiguous (2, C_IN, C_MID) block:
    #   groups 0..5  : (local_6[i],  rest_6[i])
    #   groups 6..9  : (local_4[i],  rest_4[i])
    #   groups 10..11: (local_2[i],  rest_2[i])
    #   group 12     : (global_6_max, global_6_rest)
    #   group 13     : (global_4_max, global_4_rest)
    #   group 14     : (global_2_max, global_2_rest)
    wa, ba = [], []
    idx = 0
    for _ in range(NUM_GROUPS):
        wl, bl = _init_conv_bn(a_keys[idx], C_IN, C_MID); idx += 1
        wr, br = _init_conv_bn(a_keys[idx], C_IN, C_MID); idx += 1
        wa.append(jnp.stack([wl, wr]))
        ba.append(jnp.stack([bl, br]))
    wA = jnp.stack(wa).astype(jnp.bfloat16)            # (15, 2, C_IN, C_MID)
    bA = jnp.stack(ba)                                  # (15, 2, 1, C_MID) f32

    # Family-B convs: relation_6[0..5], relation_4[0..3], relation_2[0..1],
    #   global_6_pooling, global_4_pooling, global_2_pooling
    wb, bb = zip(*[_init_conv_bn(k, 2 * C_MID, C_MID) for k in b_keys])
    wB = jnp.stack(wb)                                  # (15, 2*C_MID, C_MID)
    # reference concatenates (local, rest): top K-half multiplies the local.
    wBl = wB[:, :C_MID, :].astype(jnp.bfloat16)
    wBr = wB[:, C_MID:, :].astype(jnp.bfloat16)
    bB = jnp.stack(bb)                                  # (15, 1, C_MID) f32
    return dict(wA=wA, bA=bA, wBl=wBl, wBr=wBr, bB=bB)


# --------------------------- forward pass ------------------------------------
@jax.jit
def relation_model_forward(feat_nchw, params):
    n, c, h, w = feat_nchw.shape
    # NCHW -> (N, H*W, C): channels on the 128-lane axis, dense H*W sublanes.
    feat = jnp.transpose(feat_nchw, (0, 2, 3, 1)).reshape(n, h * w, c)
    pooled = relation_pool(feat)                        # (15, 2N, C_IN) bf16
    out = relation_groups(pooled, params)               # (15, N, C_MID) f32
    return [out[i] for i in range(NUM_GROUPS)]


# --------------------- pure-JAX reference (parity check) ---------------------
def _reference_forward(feat_nchw, params):
    n, c, h, w = feat_nchw.shape
    x = jnp.transpose(feat_nchw, (0, 2, 3, 1)).reshape(n, h * w, c)
    s6, s4, s2 = (h // 6) * w, (h // 4) * w, (h // 2) * w
    l6 = [jnp.max(x[:, i * s6:(i + 1) * s6, :], axis=1) for i in range(6)]
    l4 = [jnp.max(x[:, i * s4:(i + 1) * s4, :], axis=1) for i in range(4)]
    l2 = [jnp.max(x[:, i * s2:(i + 1) * s2, :], axis=1) for i in range(2)]
    gmax = jnp.max(x, axis=1)
    sum6, sum4 = sum(l6), sum(l4)
    r6 = [(sum6 - l6[i]) / 5.0 for i in range(6)]
    r4 = [(sum4 - l4[i]) / 3.0 for i in range(4)]
    r2 = [l2[1], l2[0]]
    pairs = (list(zip(l6, r6)) + list(zip(l4, r4)) + list(zip(l2, r2))
             + [(gmax, (sum6 - gmax) / 5.0),
                (gmax, (sum4 - gmax) / 3.0),
                (gmax, l2[0] + l2[1] - gmax)])
    outs = []
    for g, (xl, xr) in enumerate(pairs):
        lc = jnp.maximum(
            jnp.dot(xl.astype(jnp.bfloat16), params["wA"][g, 0],
                    preferred_element_type=jnp.float32) + params["bA"][g, 0], 0.0)
        rc = jnp.maximum(
            jnp.dot(xr.astype(jnp.bfloat16), params["wA"][g, 1],
                    preferred_element_type=jnp.float32) + params["bA"][g, 1], 0.0)
        y = (jnp.dot(lc.astype(jnp.bfloat16), params["wBl"][g],
                     preferred_element_type=jnp.float32)
             + jnp.dot(rc.astype(jnp.bfloat16), params["wBr"][g],
                       preferred_element_type=jnp.float32) + params["bB"][g])
        outs.append(jnp.maximum(y, 0.0) + lc)
    return outs


# ------------------------------- main ----------------------------------------
if __name__ == "__main__":
    key = jax.random.PRNGKey(0)
    kx, kp = jax.random.split(key)
    x = jax.random.normal(kx, (N, C_IN, H, W), jnp.float32)  # backbone feat (NCHW)
    params = init_params(kp)

    outs = relation_model_forward(x, params)
    outs = jax.block_until_ready(outs)

    assert len(outs) == NUM_GROUPS
    for o in outs:
        assert o.shape == (N, C_MID), o.shape
        assert o.dtype == jnp.float32

    refs = _reference_forward(x, params)
    for o, r in zip(outs, refs):
        assert jnp.allclose(o, r, rtol=1e-2, atol=1e-2), float(
            jnp.max(jnp.abs(o - r)))

    print("KERNEL_OK")
</pallas_src>

<mosaic_0001>
module attributes {stable_mosaic.version = 11 : i64} {
  func.func @_pool_kernel(%arg0: i32, %arg1: memref<8x48x512xf32, #tpu.memory_space<vmem>>, %arg2: memref<15x16x512xbf16, #tpu.memory_space<vmem>>) attributes {dimension_semantics = [#tpu.dimension_semantics<arbitrary>], iteration_bounds = array<i64: 1>, scalar_prefetch = 0 : i64, scratch_operands = 0 : i64, tpu.core_type = #tpu.core_type<tc>, window_params = [{pipeline_mode = #tpu.pipeline_mode<synchronous>, transform_indices = @transform_0, window_bounds = array<i64: 8, 48, 512>}, {pipeline_mode = #tpu.pipeline_mode<synchronous>, transform_indices = @transform_1, window_bounds = array<i64: 15, 16, 512>}]} {
    %c0 = arith.constant 0 : index
    %c0_0 = arith.constant 0 : index
    %c0_1 = arith.constant 0 : index
    %0 = vector.load %arg1[%c0, %c0_0, %c0_1] : memref<8x48x512xf32, #tpu.memory_space<vmem>>, vector<8x48x512xf32>
    %1 = vector.extract_strided_slice %0 {offsets = [0, 0, 0], sizes = [8, 8, 512], strides = [1, 1, 1]} : vector<8x48x512xf32> to vector<8x8x512xf32>
    %cst = arith.constant dense<0xFF800000> : vector<8x512xf32>
    %2 = vector.multi_reduction <maximumf>, %1, %cst [1] : vector<8x8x512xf32> to vector<8x512xf32>
    %3 = vector.extract_strided_slice %0 {offsets = [0, 8, 0], sizes = [8, 8, 512], strides = [1, 1, 1]} : vector<8x48x512xf32> to vector<8x8x512xf32>
    %cst_2 = arith.constant dense<0xFF800000> : vector<8x512xf32>
    %4 = vector.multi_reduction <maximumf>, %3, %cst_2 [1] : vector<8x8x512xf32> to vector<8x512xf32>
    %5 = vector.extract_strided_slice %0 {offsets = [0, 16, 0], sizes = [8, 8, 512], strides = [1, 1, 1]} : vector<8x48x512xf32> to vector<8x8x512xf32>
    %cst_3 = arith.constant dense<0xFF800000> : vector<8x512xf32>
    %6 = vector.multi_reduction <maximumf>, %5, %cst_3 [1] : vector<8x8x512xf32> to vector<8x512xf32>
    %7 = vector.extract_strided_slice %0 {offsets = [0, 24, 0], sizes = [8, 8, 512], strides = [1, 1, 1]} : vector<8x48x512xf32> to vector<8x8x512xf32>
    %cst_4 = arith.constant dense<0xFF800000> : vector<8x512xf32>
    %8 = vector.multi_reduction <maximumf>, %7, %cst_4 [1] : vector<8x8x512xf32> to vector<8x512xf32>
    %9 = vector.extract_strided_slice %0 {offsets = [0, 32, 0], sizes = [8, 8, 512], strides = [1, 1, 1]} : vector<8x48x512xf32> to vector<8x8x512xf32>
    %cst_5 = arith.constant dense<0xFF800000> : vector<8x512xf32>
    %10 = vector.multi_reduction <maximumf>, %9, %cst_5 [1] : vector<8x8x512xf32> to vector<8x512xf32>
    %11 = vector.extract_strided_slice %0 {offsets = [0, 40, 0], sizes = [8, 8, 512], strides = [1, 1, 1]} : vector<8x48x512xf32> to vector<8x8x512xf32>
    %cst_6 = arith.constant dense<0xFF800000> : vector<8x512xf32>
    %12 = vector.multi_reduction <maximumf>, %11, %cst_6 [1] : vector<8x8x512xf32> to vector<8x512xf32>
    %13 = vector.extract_strided_slice %0 {offsets = [0, 0, 0], sizes = [8, 12, 512], strides = [1, 1, 1]} : vector<8x48x512xf32> to vector<8x12x512xf32>
    %cst_7 = arith.constant dense<0xFF800000> : vector<8x512xf32>
    %14 = vector.multi_reduction <maximumf>, %13, %cst_7 [1] : vector<8x12x512xf32> to vector<8x512xf32>
    %15 = vector.extract_strided_slice %0 {offsets = [0, 12, 0], sizes = [8, 12, 512], strides = [1, 1, 1]} : vector<8x48x512xf32> to vector<8x12x512xf32>
    %cst_8 = arith.constant dense<0xFF800000> : vector<8x512xf32>
    %16 = vector.multi_reduction <maximumf>, %15, %cst_8 [1] : vector<8x12x512xf32> to vector<8x512xf32>
    %17 = vector.extract_strided_slice %0 {offsets = [0, 24, 0], sizes = [8, 12, 512], strides = [1, 1, 1]} : vector<8x48x512xf32> to vector<8x12x512xf32>
    %cst_9 = arith.constant dense<0xFF800000> : vector<8x512xf32>
    %18 = vector.multi_reduction <maximumf>, %17, %cst_9 [1] : vector<8x12x512xf32> to vector<8x512xf32>
    %19 = vector.extract_strided_slice %0 {offsets = [0, 36, 0], sizes = [8, 12, 512], strides = [1, 1, 1]} : vector<8x48x512xf32> to vector<8x12x512xf32>
    %cst_10 = arith.constant dense<0xFF800000> : vector<8x512xf32>
    %20 = vector.multi_reduction <maximumf>, %19, %cst_10 [1] : vector<8x12x512xf32> to vector<8x512xf32>
    %21 = arith.maximumf %2, %4 : vector<8x512xf32>
    %22 = arith.maximumf %21, %6 : vector<8x512xf32>
    %23 = arith.maximumf %8, %10 : vector<8x512xf32>
    %24 = arith.maximumf %23, %12 : vector<8x512xf32>
    %25 = arith.maximumf %22, %24 : vector<8x512xf32>
    %26 = arith.addf %2, %4 : vector<8x512xf32>
    %27 = arith.addf %26, %6 : vector<8x512xf32>
    %28 = arith.addf %27, %8 : vector<8x512xf32>
    %29 = arith.addf %28, %10 : vector<8x512xf32>
    %30 = arith.addf %29, %12 : vector<8x512xf32>
    %31 = arith.addf %14, %16 : vector<8x512xf32>
    %32 = arith.addf %31, %18 : vector<8x512xf32>
    %33 = arith.addf %32, %20 : vector<8x512xf32>
    %34 = arith.subf %30, %2 : vector<8x512xf32>
    %cst_11 = arith.constant 2.000000e-01 : f32
    %35 = vector.broadcast %cst_11 : f32 to vector<8x512xf32>
    %36 = arith.mulf %34, %35 : vector<8x512xf32>
    %37 = arith.subf %30, %4 : vector<8x512xf32>
    %cst_12 = arith.constant 2.000000e-01 : f32
    %38 = vector.broadcast %cst_12 : f32 to vector<8x512xf32>
    %39 = arith.mulf %37, %38 : vector<8x512xf32>
    %40 = arith.subf %30, %6 : vector<8x512xf32>
    %cst_13 = arith.constant 2.000000e-01 : f32
    %41 = vector.broadcast %cst_13 : f32 to vector<8x512xf32>
    %42 = arith.mulf %40, %41 : vector<8x512xf32>
    %43 = arith.subf %30, %8 : vector<8x512xf32>
    %cst_14 = arith.constant 2.000000e-01 : f32
    %44 = vector.broadcast %cst_14 : f32 to vector<8x512xf32>
    %45 = arith.mulf %43, %44 : vector<8x512xf32>
    %46 = arith.subf %30, %10 : vector<8x512xf32>
    %cst_15 = arith.constant 2.000000e-01 : f32
    %47 = vector.broadcast %cst_15 : f32 to vector<8x512xf32>
    %48 = arith.mulf %46, %47 : vector<8x512xf32>
    %49 = arith.subf %30, %12 : vector<8x512xf32>
    %cst_16 = arith.constant 2.000000e-01 : f32
    %50 = vector.broadcast %cst_16 : f32 to vector<8x512xf32>
    %51 = arith.mulf %49, %50 : vector<8x512xf32>
    %52 = arith.subf %33, %14 : vector<8x512xf32>
    %cst_17 = arith.constant 0.333333343 : f32
    %53 = vector.broadcast %cst_17 : f32 to vector<8x512xf32>
    %54 = arith.mulf %52, %53 : vector<8x512xf32>
    %55 = arith.subf %33, %16 : vector<8x512xf32>
    %cst_18 = arith.constant 0.333333343 : f32
    %56 = vector.broadcast %cst_18 : f32 to vector<8x512xf32>
    %57 = arith.mulf %55, %56 : vector<8x512xf32>
    %58 = arith.subf %33, %18 : vector<8x512xf32>
    %cst_19 = arith.constant 0.333333343 : f32
    %59 = vector.broadcast %cst_19 : f32 to vector<8x512xf32>
    %60 = arith.mulf %58, %59 : vector<8x512xf32>
    %61 = arith.subf %33, %20 : vector<8x512xf32>
    %cst_20 = arith.constant 0.333333343 : f32
    %62 = vector.broadcast %cst_20 : f32 to vector<8x512xf32>
    %63 = arith.mulf %61, %62 : vector<8x512xf32>
    %64 = arith.subf %30, %25 : vector<8x512xf32>
    %cst_21 = arith.constant 2.000000e-01 : f32
    %65 = vector.broadcast %cst_21 : f32 to vector<8x512xf32>
    %66 = arith.mulf %64, %65 : vector<8x512xf32>
    %67 = arith.subf %33, %25 : vector<8x512xf32>
    %cst_22 = arith.constant 0.333333343 : f32
    %68 = vector.broadcast %cst_22 : f32 to vector<8x512xf32>
    %69 = arith.mulf %67, %68 : vector<8x512xf32>
    %70 = arith.addf %22, %24 : vector<8x512xf32>
    %71 = arith.subf %70, %25 : vector<8x512xf32>
    %72 = arith.truncf %2 : vector<8x512xf32> to vector<8x512xbf16>
    %c0_23 = arith.constant 0 : index
    %c0_24 = arith.constant 0 : index
    %c0_25 = arith.constant 0 : index
    %73 = vector.load %arg2[%c0_23, %c0_24, %c0_25] : memref<15x16x512xbf16, #tpu.memory_space<vmem>>, vector<1x8x512xbf16>
    %74 = vector.shape_cast %73 : vector<1x8x512xbf16> to vector<8x512xbf16>
    %75 = vector.shape_cast %72 : vector<8x512xbf16> to vector<1x8x512xbf16>
    tpu.vector_store %arg2[%c0_23, %c0_24, %c0_25], %75 {strides = array<i32>} : memref<15x16x512xbf16, #tpu.memory_space<vmem>>, vector<1x8x512xbf16>,
    %76 = arith.truncf %36 : vector<8x512xf32> to vector<8x512xbf16>
    %c0_26 = arith.constant 0 : index
    %c8 = arith.constant 8 : index
    %c0_27 = arith.constant 0 : index
    %77 = vector.load %arg2[%c0_26, %c8, %c0_27] : memref<15x16x512xbf16, #tpu.memory_space<vmem>>, vector<1x8x512xbf16>
    %78 = vector.shape_cast %77 : vector<1x8x512xbf16> to vector<8x512xbf16>
    %79 = vector.shape_cast %76 : vector<8x512xbf16> to vector<1x8x512xbf16>
    tpu.vector_store %arg2[%c0_26, %c8, %c0_27], %79 {strides = array<i32>} : memref<15x16x512xbf16, #tpu.memory_space<vmem>>, vector<1x8x512xbf16>,
    %80 = arith.truncf %4 : vector<8x512xf32> to vector<8x512xbf16>
    %c1 = arith.constant 1 : index
    %c0_28 = arith.constant 0 : index
    %c0_29 = arith.constant 0 : index
    %81 = vector.load %arg2[%c1, %c0_28, %c0_29] : memref<15x16x512xbf16, #tpu.memory_space<vmem>>, vector<1x8x512xbf16>
    %82 = vector.shape_cast %81 : vector<1x8x512xbf16> to vector<8x512xbf16>
    %83 = vector.shape_cast %80 : vector<8x512xbf16> to vector<1x8x512xbf16>
    tpu.vector_store %arg2[%c1, %c0_28, %c0_29], %83 {strides = array<i32>} : memref<15x16x512xbf16, #tpu.memory_space<vmem>>, vector<1x8x512xbf16>,
    %84 = arith.truncf %39 : vector<8x512xf32> to vector<8x512xbf16>
    %c1_30 = arith.constant 1 : index
    %c8_31 = arith.constant 8 : index
    %c0_32 = arith.constant 0 : index
    %85 = vector.load %arg2[%c1_30, %c8_31, %c0_32] : memref<15x16x512xbf16, #tpu.memory_space<vmem>>, vector<1x8x512xbf16>
    %86 = vector.shape_cast %85 : vector<1x8x512xbf16> to vector<8x512xbf16>
    %87 = vector.shape_cast %84 : vector<8x512xbf16> to vector<1x8x512xbf16>
    tpu.vector_store %arg2[%c1_30, %c8_31, %c0_32], %87 {strides = array<i32>} : memref<15x16x512xbf16, #tpu.memory_space<vmem>>, vector<1x8x512xbf16>,
    %88 = arith.truncf %6 : vector<8x512xf32> to vector<8x512xbf16>
    %c2 = arith.constant 2 : index
    %c0_33 = arith.constant 0 : index
    %c0_34 = arith.constant 0 : index
    %89 = vector.load %arg2[%c2, %c0_33, %c0_34] : memref<15x16x512xbf16, #tpu.memory_space<vmem>>, vector<1x8x512xbf16>
    %90 = vector.shape_cast %89 : vector<1x8x512xbf16> to vector<8x512xbf16>
    %91 = vector.shape_cast %88 : vector<8x512xbf16> to vector<1x8x512xbf16>
    tpu.vector_store %arg2[%c2, %c0_33, %c0_34], %91 {strides = array<i32>} : memref<15x16x512xbf16, #tpu.memory_space<vmem>>, vector<1x8x512xbf16>,
    %92 = arith.truncf %42 : vector<8x512xf32> to vector<8x512xbf16>
    %c2_35 = arith.constant 2 : index
    %c8_36 = arith.constant 8 : index
    %c0_37 = arith.constant 0 : index
    %93 = vector.load %arg2[%c2_35, %c8_36, %c0_37] : memref<15x16x512xbf16, #tpu.memory_space<vmem>>, vector<1x8x512xbf16>
    %94 = vector.shape_cast %93 : vector<1x8x512xbf16> to vector<8x512xbf16>
    %95 = vector.shape_cast %92 : vector<8x512xbf16> to vector<1x8x512xbf16>
    tpu.vector_store %arg2[%c2_35, %c8_36, %c0_37], %95 {strides = array<i32>} : memref<15x16x512xbf16, #tpu.memory_space<vmem>>, vector<1x8x512xbf16>,
    %96 = arith.truncf %8 : vector<8x512xf32> to vector<8x512xbf16>
    %c3 = arith.constant 3 : index
    %c0_38 = arith.constant 0 : index
    %c0_39 = arith.constant 0 : index
    %97 = vector.load %arg2[%c3, %c0_38, %c0_39] : memref<15x16x512xbf16, #tpu.memory_space<vmem>>, vector<1x8x512xbf16>
    %98 = vector.shape_cast %97 : vector<1x8x512xbf16> to vector<8x512xbf16>
    %99 = vector.shape_cast %96 : vector<8x512xbf16> to vector<1x8x512xbf16>
    tpu.vector_store %arg2[%c3, %c0_38, %c0_39], %99 {strides = array<i32>} : memref<15x16x512xbf16, #tpu.memory_space<vmem>>, vector<1x8x512xbf16>,
    %100 = arith.truncf %45 : vector<8x512xf32> to vector<8x512xbf16>
    %c3_40 = arith.constant 3 : index
    %c8_41 = arith.constant 8 : index
    %c0_42 = arith.constant 0 : index
    %101 = vector.load %arg2[%c3_40, %c8_41, %c0_42] : memref<15x16x512xbf16, #tpu.memory_space<vmem>>, vector<1x8x512xbf16>
    %102 = vector.shape_cast %101 : vector<1x8x512xbf16> to vector<8x512xbf16>
    %103 = vector.shape_cast %100 : vector<8x512xbf16> to vector<1x8x512xbf16>
    tpu.vector_store %arg2[%c3_40, %c8_41, %c0_42], %103 {strides = array<i32>} : memref<15x16x512xbf16, #tpu.memory_space<vmem>>, vector<1x8x512xbf16>,
    %104 = arith.truncf %10 : vector<8x512xf32> to vector<8x512xbf16>
    %c4 = arith.constant 4 : index
    %c0_43 = arith.constant 0 : index
    %c0_44 = arith.constant 0 : index
    %105 = vector.load %arg2[%c4, %c0_43, %c0_44] : memref<15x16x512xbf16, #tpu.memory_space<vmem>>, vector<1x8x512xbf16>
    %106 = vector.shape_cast %105 : vector<1x8x512xbf16> to vector<8x512xbf16>
    %107 = vector.shape_cast %104 : vector<8x512xbf16> to vector<1x8x512xbf16>
    tpu.vector_store %arg2[%c4, %c0_43, %c0_44], %107 {strides = array<i32>} : memref<15x16x512xbf16, #tpu.memory_space<vmem>>, vector<1x8x512xbf16>,
    %108 = arith.truncf %48 : vector<8x512xf32> to vector<8x512xbf16>
    %c4_45 = arith.constant 4 : index
    %c8_46 = arith.constant 8 : index
    %c0_47 = arith.constant 0 : index
    %109 = vector.load %arg2[%c4_45, %c8_46, %c0_47] : memref<15x16x512xbf16, #tpu.memory_space<vmem>>, vector<1x8x512xbf16>
    %110 = vector.shape_cast %109 : vector<1x8x512xbf16> to vector<8x512xbf16>
    %111 = vector.shape_cast %108 : vector<8x512xbf16> to vector<1x8x512xbf16>
    tpu.vector_store %arg2[%c4_45, %c8_46, %c0_47], %111 {strides = array<i32>} : memref<15x16x512xbf16, #tpu.memory_space<vmem>>, vector<1x8x512xbf16>,
    %112 = arith.truncf %12 : vector<8x512xf32> to vector<8x512xbf16>
    %c5 = arith.constant 5 : index
    %c0_48 = arith.constant 0 : index
    %c0_49 = arith.constant 0 : index
    %113 = vector.load %arg2[%c5, %c0_48, %c0_49] : memref<15x16x512xbf16, #tpu.memory_space<vmem>>, vector<1x8x512xbf16>
    %114 = vector.shape_cast %113 : vector<1x8x512xbf16> to vector<8x512xbf16>
    %115 = vector.shape_cast %112 : vector<8x512xbf16> to vector<1x8x512xbf16>
    tpu.vector_store %arg2[%c5, %c0_48, %c0_49], %115 {strides = array<i32>} : memref<15x16x512xbf16, #tpu.memory_space<vmem>>, vector<1x8x512xbf16>,
    %116 = arith.truncf %51 : vector<8x512xf32> to vector<8x512xbf16>
    %c5_50 = arith.constant 5 : index
    %c8_51 = arith.constant 8 : index
    %c0_52 = arith.constant 0 : index
    %117 = vector.load %arg2[%c5_50, %c8_51, %c0_52] : memref<15x16x512xbf16, #tpu.memory_space<vmem>>, vector<1x8x512xbf16>
    %118 = vector.shape_cast %117 : vector<1x8x512xbf16> to vector<8x512xbf16>
    %119 = vector.shape_cast %116 : vector<8x512xbf16> to vector<1x8x512xbf16>
    tpu.vector_store %arg2[%c5_50, %c8_51, %c0_52], %119 {strides = array<i32>} : memref<15x16x512xbf16, #tpu.memory_space<vmem>>, vector<1x8x512xbf16>,
    %120 = arith.truncf %14 : vector<8x512xf32> to vector<8x512xbf16>
    %c6 = arith.constant 6 : index
    %c0_53 = arith.constant 0 : index
    %c0_54 = arith.constant 0 : index
    %121 = vector.load %arg2[%c6, %c0_53, %c0_54] : memref<15x16x512xbf16, #tpu.memory_space<vmem>>, vector<1x8x512xbf16>
    %122 = vector.shape_cast %121 : vector<1x8x512xbf16> to vector<8x512xbf16>
    %123 = vector.shape_cast %120 : vector<8x512xbf16> to vector<1x8x512xbf16>
    tpu.vector_store %arg2[%c6, %c0_53, %c0_54], %123 {strides = array<i32>} : memref<15x16x512xbf16, #tpu.memory_space<vmem>>, vector<1x8x512xbf16>,
    %124 = arith.truncf %54 : vector<8x512xf32> to vector<8x512xbf16>
    %c6_55 = arith.constant 6 : index
    %c8_56 = arith.constant 8 : index
    %c0_57 = arith.constant 0 : index
    %125 = vector.load %arg2[%c6_55, %c8_56, %c0_57] : memref<15x16x512xbf16, #tpu.memory_space<vmem>>, vector<1x8x512xbf16>
    %126 = vector.shape_cast %125 : vector<1x8x512xbf16> to vector<8x512xbf16>
    %127 = vector.shape_cast %124 : vector<8x512xbf16> to vector<1x8x512xbf16>
    tpu.vector_store %arg2[%c6_55, %c8_56, %c0_57], %127 {strides = array<i32>} : memref<15x16x512xbf16, #tpu.memory_space<vmem>>, vector<1x8x512xbf16>,
    %128 = arith.truncf %16 : vector<8x512xf32> to vector<8x512xbf16>
    %c7 = arith.constant 7 : index
    %c0_58 = arith.constant 0 : index
    %c0_59 = arith.constant 0 : index
    %129 = vector.load %arg2[%c7, %c0_58, %c0_59] : memref<15x16x512xbf16, #tpu.memory_space<vmem>>, vector<1x8x512xbf16>
    %130 = vector.shape_cast %129 : vector<1x8x512xbf16> to vector<8x512xbf16>
    %131 = vector.shape_cast %128 : vector<8x512xbf16> to vector<1x8x512xbf16>
    tpu.vector_store %arg2[%c7, %c0_58, %c0_59], %131 {strides = array<i32>} : memref<15x16x512xbf16, #tpu.memory_space<vmem>>, vector<1x8x512xbf16>,
    %132 = arith.truncf %57 : vector<8x512xf32> to vector<8x512xbf16>
    %c7_60 = arith.constant 7 : index
    %c8_61 = arith.constant 8 : index
    %c0_62 = arith.constant 0 : index
    %133 = vector.load %arg2[%c7_60, %c8_61, %c0_62] : memref<15x16x512xbf16, #tpu.memory_space<vmem>>, vector<1x8x512xbf16>
    %134 = vector.shape_cast %133 : vector<1x8x512xbf16> to vector<8x512xbf16>
    %135 = vector.shape_cast %132 : vector<8x512xbf16> to vector<1x8x512xbf16>
    tpu.vector_store %arg2[%c7_60, %c8_61, %c0_62], %135 {strides = array<i32>} : memref<15x16x512xbf16, #tpu.memory_space<vmem>>, vector<1x8x512xbf16>,
    %136 = arith.truncf %18 : vector<8x512xf32> to vector<8x512xbf16>
    %c8_63 = arith.constant 8 : index
    %c0_64 = arith.constant 0 : index
    %c0_65 = arith.constant 0 : index
    %137 = vector.load %arg2[%c8_63, %c0_64, %c0_65] : memref<15x16x512xbf16, #tpu.memory_space<vmem>>, vector<1x8x512xbf16>
    %138 = vector.shape_cast %137 : vector<1x8x512xbf16> to vector<8x512xbf16>
    %139 = vector.shape_cast %136 : vector<8x512xbf16> to vector<1x8x512xbf16>
    tpu.vector_store %arg2[%c8_63, %c0_64, %c0_65], %139 {strides = array<i32>} : memref<15x16x512xbf16, #tpu.memory_space<vmem>>, vector<1x8x512xbf16>,
    %140 = arith.truncf %60 : vector<8x512xf32> to vector<8x512xbf16>
    %c8_66 = arith.constant 8 : index
    %c8_67 = arith.constant 8 : index
    %c0_68 = arith.constant 0 : index
    %141 = vector.load %arg2[%c8_66, %c8_67, %c0_68] : memref<15x16x512xbf16, #tpu.memory_space<vmem>>, vector<1x8x512xbf16>
    %142 = vector.shape_cast %141 : vector<1x8x512xbf16> to vector<8x512xbf16>
    %143 = vector.shape_cast %140 : vector<8x512xbf16> to vector<1x8x512xbf16>
    tpu.vector_store %arg2[%c8_66, %c8_67, %c0_68], %143 {strides = array<i32>} : memref<15x16x512xbf16, #tpu.memory_space<vmem>>, vector<1x8x512xbf16>,
    %144 = arith.truncf %20 : vector<8x512xf32> to vector<8x512xbf16>
    %c9 = arith.constant 9 : index
    %c0_69 = arith.constant 0 : index
    %c0_70 = arith.constant 0 : index
    %145 = vector.load %arg2[%c9, %c0_69, %c0_70] : memref<15x16x512xbf16, #tpu.memory_space<vmem>>, vector<1x8x512xbf16>
    %146 = vector.shape_cast %145 : vector<1x8x512xbf16> to vector<8x512xbf16>
    %147 = vector.shape_cast %144 : vector<8x512xbf16> to vector<1x8x512xbf16>
    tpu.vector_store %arg2[%c9, %c0_69, %c0_70], %147 {strides = array<i32>} : memref<15x16x512xbf16, #tpu.memory_space<vmem>>, vector<1x8x512xbf16>,
    %148 = arith.truncf %63 : vector<8x512xf32> to vector<8x512xbf16>
    %c9_71 = arith.constant 9 : index
    %c8_72 = arith.constant 8 : index
    %c0_73 = arith.constant 0 : index
    %149 = vector.load %arg2[%c9_71, %c8_72, %c0_73] : memref<15x16x512xbf16, #tpu.memory_space<vmem>>, vector<1x8x512xbf16>
    %150 = vector.shape_cast %149 : vector<1x8x512xbf16> to vector<8x512xbf16>
    %151 = vector.shape_cast %148 : vector<8x512xbf16> to vector<1x8x512xbf16>
    tpu.vector_store %arg2[%c9_71, %c8_72, %c0_73], %151 {strides = array<i32>} : memref<15x16x512xbf16, #tpu.memory_space<vmem>>, vector<1x8x512xbf16>,
    %152 = arith.truncf %22 : vector<8x512xf32> to vector<8x512xbf16>
    %c10 = arith.constant 10 : index
    %c0_74 = arith.constant 0 : index
    %c0_75 = arith.constant 0 : index
    %153 = vector.load %arg2[%c10, %c0_74, %c0_75] : memref<15x16x512xbf16, #tpu.memory_space<vmem>>, vector<1x8x512xbf16>
    %154 = vector.shape_cast %153 : vector<1x8x512xbf16> to vector<8x512xbf16>
    %155 = vector.shape_cast %152 : vector<8x512xbf16> to vector<1x8x512xbf16>
    tpu.vector_store %arg2[%c10, %c0_74, %c0_75], %155 {strides = array<i32>} : memref<15x16x512xbf16, #tpu.memory_space<vmem>>, vector<1x8x512xbf16>,
    %156 = arith.truncf %24 : vector<8x512xf32> to vector<8x512xbf16>
    %c10_76 = arith.constant 10 : index
    %c8_77 = arith.constant 8 : index
    %c0_78 = arith.constant 0 : index
    %157 = vector.load %arg2[%c10_76, %c8_77, %c0_78] : memref<15x16x512xbf16, #tpu.memory_space<vmem>>, vector<1x8x512xbf16>
    %158 = vector.shape_cast %157 : vector<1x8x512xbf16> to vector<8x512xbf16>
    %159 = vector.shape_cast %156 : vector<8x512xbf16> to vector<1x8x512xbf16>
    tpu.vector_store %arg2[%c10_76, %c8_77, %c0_78], %159 {strides = array<i32>} : memref<15x16x512xbf16, #tpu.memory_space<vmem>>, vector<1x8x512xbf16>,
    %160 = arith.truncf %24 : vector<8x512xf32> to vector<8x512xbf16>
    %c11 = arith.constant 11 : index
    %c0_79 = arith.constant 0 : index
    %c0_80 = arith.constant 0 : index
    %161 = vector.load %arg2[%c11, %c0_79, %c0_80] : memref<15x16x512xbf16, #tpu.memory_space<vmem>>, vector<1x8x512xbf16>
    %162 = vector.shape_cast %161 : vector<1x8x512xbf16> to vector<8x512xbf16>
    %163 = vector.shape_cast %160 : vector<8x512xbf16> to vector<1x8x512xbf16>
    tpu.vector_store %arg2[%c11, %c0_79, %c0_80], %163 {strides = array<i32>} : memref<15x16x512xbf16, #tpu.memory_space<vmem>>, vector<1x8x512xbf16>,
    %164 = arith.truncf %22 : vector<8x512xf32> to vector<8x512xbf16>
    %c11_81 = arith.constant 11 : index
    %c8_82 = arith.constant 8 : index
    %c0_83 = arith.constant 0 : index
    %165 = vector.load %arg2[%c11_81, %c8_82, %c0_83] : memref<15x16x512xbf16, #tpu.memory_space<vmem>>, vector<1x8x512xbf16>
    %166 = vector.shape_cast %165 : vector<1x8x512xbf16> to vector<8x512xbf16>
    %167 = vector.shape_cast %164 : vector<8x512xbf16> to vector<1x8x512xbf16>
    tpu.vector_store %arg2[%c11_81, %c8_82, %c0_83], %167 {strides = array<i32>} : memref<15x16x512xbf16, #tpu.memory_space<vmem>>, vector<1x8x512xbf16>,
    %168 = arith.truncf %25 : vector<8x512xf32> to vector<8x512xbf16>
    %c12 = arith.constant 12 : index
    %c0_84 = arith.constant 0 : index
    %c0_85 = arith.constant 0 : index
    %169 = vector.load %arg2[%c12, %c0_84, %c0_85] : memref<15x16x512xbf16, #tpu.memory_space<vmem>>, vector<1x8x512xbf16>
    %170 = vector.shape_cast %169 : vector<1x8x512xbf16> to vector<8x512xbf16>
    %171 = vector.shape_cast %168 : vector<8x512xbf16> to vector<1x8x512xbf16>
    tpu.vector_store %arg2[%c12, %c0_84, %c0_85], %171 {strides = array<i32>} : memref<15x16x512xbf16, #tpu.memory_space<vmem>>, vector<1x8x512xbf16>,
    %172 = arith.truncf %66 : vector<8x512xf32> to vector<8x512xbf16>
    %c12_86 = arith.constant 12 : index
    %c8_87 = arith.constant 8 : index
    %c0_88 = arith.constant 0 : index
    %173 = vector.load %arg2[%c12_86, %c8_87, %c0_88] : memref<15x16x512xbf16, #tpu.memory_space<vmem>>, vector<1x8x512xbf16>
    %174 = vector.shape_cast %173 : vector<1x8x512xbf16> to vector<8x512xbf16>
    %175 = vector.shape_cast %172 : vector<8x512xbf16> to vector<1x8x512xbf16>
    tpu.vector_store %arg2[%c12_86, %c8_87, %c0_88], %175 {strides = array<i32>} : memref<15x16x512xbf16, #tpu.memory_space<vmem>>, vector<1x8x512xbf16>,
    %176 = arith.truncf %25 : vector<8x512xf32> to vector<8x512xbf16>
    %c13 = arith.constant 13 : index
    %c0_89 = arith.constant 0 : index
    %c0_90 = arith.constant 0 : index
    %177 = vector.load %arg2[%c13, %c0_89, %c0_90] : memref<15x16x512xbf16, #tpu.memory_space<vmem>>, vector<1x8x512xbf16>
    %178 = vector.shape_cast %177 : vector<1x8x512xbf16> to vector<8x512xbf16>
    %179 = vector.shape_cast %176 : vector<8x512xbf16> to vector<1x8x512xbf16>
    tpu.vector_store %arg2[%c13, %c0_89, %c0_90], %179 {strides = array<i32>} : memref<15x16x512xbf16, #tpu.memory_space<vmem>>, vector<1x8x512xbf16>,
    %180 = arith.truncf %69 : vector<8x512xf32> to vector<8x512xbf16>
    %c13_91 = arith.constant 13 : index
    %c8_92 = arith.constant 8 : index
    %c0_93 = arith.constant 0 : index
    %181 = vector.load %arg2[%c13_91, %c8_92, %c0_93] : memref<15x16x512xbf16, #tpu.memory_space<vmem>>, vector<1x8x512xbf16>
    %182 = vector.shape_cast %181 : vector<1x8x512xbf16> to vector<8x512xbf16>
    %183 = vector.shape_cast %180 : vector<8x512xbf16> to vector<1x8x512xbf16>
    tpu.vector_store %arg2[%c13_91, %c8_92, %c0_93], %183 {strides = array<i32>} : memref<15x16x512xbf16, #tpu.memory_space<vmem>>, vector<1x8x512xbf16>,
    %184 = arith.truncf %25 : vector<8x512xf32> to vector<8x512xbf16>
    %c14 = arith.constant 14 : index
    %c0_94 = arith.constant 0 : index
    %c0_95 = arith.constant 0 : index
    %185 = vector.load %arg2[%c14, %c0_94, %c0_95] : memref<15x16x512xbf16, #tpu.memory_space<vmem>>, vector<1x8x512xbf16>
    %186 = vector.shape_cast %185 : vector<1x8x512xbf16> to vector<8x512xbf16>
    %187 = vector.shape_cast %184 : vector<8x512xbf16> to vector<1x8x512xbf16>
    tpu.vector_store %arg2[%c14, %c0_94, %c0_95], %187 {strides = array<i32>} : memref<15x16x512xbf16, #tpu.memory_space<vmem>>, vector<1x8x512xbf16>,
    %188 = arith.truncf %71 : vector<8x512xf32> to vector<8x512xbf16>
    %c14_96 = arith.constant 14 : index
    %c8_97 = arith.constant 8 : index
    %c0_98 = arith.constant 0 : index
    %189 = vector.load %arg2[%c14_96, %c8_97, %c0_98] : memref<15x16x512xbf16, #tpu.memory_space<vmem>>, vector<1x8x512xbf16>
    %190 = vector.shape_cast %189 : vector<1x8x512xbf16> to vector<8x512xbf16>
    %191 = vector.shape_cast %188 : vector<8x512xbf16> to vector<1x8x512xbf16>
    tpu.vector_store %arg2[%c14_96, %c8_97, %c0_98], %191 {strides = array<i32>} : memref<15x16x512xbf16, #tpu.memory_space<vmem>>, vector<1x8x512xbf16>,
    return
  }
  func.func @transform_0(%arg0: i32) -> (i32, i32, i32) {
    %c0_i32 = arith.constant 0 : i32
    %c0_i32_0 = arith.constant 0 : i32
    %c0_i32_1 = arith.constant 0 : i32
    %c0_i32_2 = arith.constant 0 : i32
    return %c0_i32, %c0_i32_0, %c0_i32_1 : i32, i32, i32
  }
  func.func @transform_1(%arg0: i32) -> (i32, i32, i32) {
    %c0_i32 = arith.constant 0 : i32
    %c0_i32_0 = arith.constant 0 : i32
    %c0_i32_1 = arith.constant 0 : i32
    %c0_i32_2 = arith.constant 0 : i32
    return %c0_i32, %c0_i32_0, %c0_i32_1 : i32, i32, i32
  }
}

module attributes {stable_mosaic.version = 11 : i64} {
  func.func @_relation_group_kernel(%arg0: i32, %arg1: memref<1x16x512xbf16, #tpu.memory_space<vmem>>, %arg2: memref<1x2x512x128xbf16, #tpu.memory_space<vmem>>, %arg3: memref<1x2x1x128xf32, #tpu.memory_space<vmem>>, %arg4: memref<1x128x128xbf16, #tpu.memory_space<vmem>>, %arg5: memref<1x128x128xbf16, #tpu.memory_space<vmem>>, %arg6: memref<1x1x128xf32, #tpu.memory_space<vmem>>, %arg7: memref<8x128xf32, #tpu.memory_space<vmem>>) attributes {dimension_semantics = [#tpu.dimension_semantics<parallel>], iteration_bounds = array<i64: 15>, scalar_prefetch = 0 : i64, scratch_operands = 0 : i64, tpu.core_type = #tpu.core_type<tc>, window_params = [{transform_indices = @transform_0, window_bounds = array<i64: 1, 16, 512>}, {transform_indices = @transform_1, window_bounds = array<i64: 1, 2, 512, 128>}, {transform_indices = @transform_2, window_bounds = array<i64: 1, 2, 1, 128>}, {transform_indices = @transform_3, window_bounds = array<i64: 1, 128, 128>}, {transform_indices = @transform_4, window_bounds = array<i64: 1, 128, 128>}, {transform_indices = @transform_5, window_bounds = array<i64: 1, 1, 128>}, {transform_indices = @transform_6, window_bounds = array<i64: 8, 128>}]} {
    %c0 = arith.constant 0 : index
    %c0_0 = arith.constant 0 : index
    %c0_1 = arith.constant 0 : index
    %0 = vector.load %arg1[%c0, %c0_0, %c0_1] : memref<1x16x512xbf16, #tpu.memory_space<vmem>>, vector<1x8x512xbf16>
    %1 = vector.shape_cast %0 : vector<1x8x512xbf16> to vector<8x512xbf16>
    %c0_2 = arith.constant 0 : index
    %c8 = arith.constant 8 : index
    %c0_3 = arith.constant 0 : index
    %2 = vector.load %arg1[%c0_2, %c8, %c0_3] : memref<1x16x512xbf16, #tpu.memory_space<vmem>>, vector<1x8x512xbf16>
    %3 = vector.shape_cast %2 : vector<1x8x512xbf16> to vector<8x512xbf16>
    %c0_4 = arith.constant 0 : index
    %c0_5 = arith.constant 0 : index
    %c0_6 = arith.constant 0 : index
    %c0_7 = arith.constant 0 : index
    %4 = vector.load %arg2[%c0_4, %c0_5, %c0_6, %c0_7] : memref<1x2x512x128xbf16, #tpu.memory_space<vmem>>, vector<1x1x512x128xbf16>
    %5 = vector.shape_cast %4 : vector<1x1x512x128xbf16> to vector<512x128xbf16>
    %cst = arith.constant dense<0.000000e+00> : vector<8x128xf32>
    %6 = tpu.matmul %1, %5, %cst {dimension_numbers = #tpu.dot_dimension_numbers<[1], [0], [0], [1], [0, 0, 1, 1], [], []>} : vector<8x512xbf16>, vector<512x128xbf16>, vector<8x128xf32> -> vector<8x128xf32>
    %c0_8 = arith.constant 0 : index
    %c0_9 = arith.constant 0 : index
    %c0_10 = arith.constant 0 : index
    %c0_11 = arith.constant 0 : index
    %7 = vector.load %arg3[%c0_8, %c0_9, %c0_10, %c0_11] : memref<1x2x1x128xf32, #tpu.memory_space<vmem>>, vector<1x1x1x128xf32>
    %8 = vector.shape_cast %7 : vector<1x1x1x128xf32> to vector<1x128xf32>
    %9 = vector.broadcast %8 : vector<1x128xf32> to vector<8x128xf32>
    %10 = arith.addf %6, %9 : vector<8x128xf32>
    %cst_12 = arith.constant 0.000000e+00 : f32
    %11 = vector.broadcast %cst_12 : f32 to vector<8x128xf32>
    %12 = arith.maximumf %10, %11 : vector<8x128xf32>
    %c0_13 = arith.constant 0 : index
    %c1 = arith.constant 1 : index
    %c0_14 = arith.constant 0 : index
    %c0_15 = arith.constant 0 : index
    %13 = vector.load %arg2[%c0_13, %c1, %c0_14, %c0_15] : memref<1x2x512x128xbf16, #tpu.memory_space<vmem>>, vector<1x1x512x128xbf16>
    %14 = vector.shape_cast %13 : vector<1x1x512x128xbf16> to vector<512x128xbf16>
    %cst_16 = arith.constant dense<0.000000e+00> : vector<8x128xf32>
    %15 = tpu.matmul %3, %14, %cst_16 {dimension_numbers = #tpu.dot_dimension_numbers<[1], [0], [0], [1], [0, 0, 1, 1], [], []>} : vector<8x512xbf16>, vector<512x128xbf16>, vector<8x128xf32> -> vector<8x128xf32>
    %c0_17 = arith.constant 0 : index
    %c1_18 = arith.constant 1 : index
    %c0_19 = arith.constant 0 : index
    %c0_20 = arith.constant 0 : index
    %16 = vector.load %arg3[%c0_17, %c1_18, %c0_19, %c0_20] : memref<1x2x1x128xf32, #tpu.memory_space<vmem>>, vector<1x1x1x128xf32>
    %17 = vector.shape_cast %16 : vector<1x1x1x128xf32> to vector<1x128xf32>
    %18 = vector.broadcast %17 : vector<1x128xf32> to vector<8x128xf32>
    %19 = arith.addf %15, %18 : vector<8x128xf32>
    %cst_21 = arith.constant 0.000000e+00 : f32
    %20 = vector.broadcast %cst_21 : f32 to vector<8x128xf32>
    %21 = arith.maximumf %19, %20 : vector<8x128xf32>
    %22 = arith.truncf %12 : vector<8x128xf32> to vector<8x128xbf16>
    %c0_22 = arith.constant 0 : index
    %c0_23 = arith.constant 0 : index
    %c0_24 = arith.constant 0 : index
    %23 = vector.load %arg4[%c0_22, %c0_23, %c0_24] : memref<1x128x128xbf16, #tpu.memory_space<vmem>>, vector<1x128x128xbf16>
    %24 = vector.shape_cast %23 : vector<1x128x128xbf16> to vector<128x128xbf16>
    %cst_25 = arith.constant dense<0.000000e+00> : vector<8x128xf32>
    %25 = tpu.matmul %22, %24, %cst_25 {dimension_numbers = #tpu.dot_dimension_numbers<[1], [0], [0], [1], [0, 0, 1, 1], [], []>} : vector<8x128xbf16>, vector<128x128xbf16>, vector<8x128xf32> -> vector<8x128xf32>
    %26 = arith.truncf %21 : vector<8x128xf32> to vector<8x128xbf16>
    %c0_26 = arith.constant 0 : index
    %c0_27 = arith.constant 0 : index
    %c0_28 = arith.constant 0 : index
    %27 = vector.load %arg5[%c0_26, %c0_27, %c0_28] : memref<1x128x128xbf16, #tpu.memory_space<vmem>>, vector<1x128x128xbf16>
    %28 = vector.shape_cast %27 : vector<1x128x128xbf16> to vector<128x128xbf16>
    %cst_29 = arith.constant dense<0.000000e+00> : vector<8x128xf32>
    %29 = tpu.matmul %26, %28, %cst_29 {dimension_numbers = #tpu.dot_dimension_numbers<[1], [0], [0], [1], [0, 0, 1, 1], [], []>} : vector<8x128xbf16>, vector<128x128xbf16>, vector<8x128xf32> -> vector<8x128xf32>
    %30 = arith.addf %25, %29 : vector<8x128xf32>
    %c0_30 = arith.constant 0 : index
    %c0_31 = arith.constant 0 : index
    %c0_32 = arith.constant 0 : index
    %31 = vector.load %arg6[%c0_30, %c0_31, %c0_32] : memref<1x1x128xf32, #tpu.memory_space<vmem>>, vector<1x1x128xf32>
    %32 = vector.shape_cast %31 : vector<1x1x128xf32> to vector<1x128xf32>
    %33 = vector.broadcast %32 : vector<1x128xf32> to vector<8x128xf32>
    %34 = arith.addf %30, %33 : vector<8x128xf32>
    %cst_33 = arith.constant 0.000000e+00 : f32
    %35 = vector.broadcast %cst_33 : f32 to vector<8x128xf32>
    %36 = arith.maximumf %34, %35 : vector<8x128xf32>
    %37 = arith.addf %36, %12 : vector<8x128xf32>
    %c0_34 = arith.constant 0 : index
    %c0_35 = arith.constant 0 : index
    %38 = vector.load %arg7[%c0_34, %c0_35] : memref<8x128xf32, #tpu.memory_space<vmem>>, vector<8x128xf32>
    tpu.vector_store %arg7[%c0_34, %c0_35], %37 {strides = array<i32>} : memref<8x128xf32, #tpu.memory_space<vmem>>, vector<8x128xf32>,
    return
  }
  func.func @transform_0(%arg0: i32) -> (i32, i32, i32) {
    %c0_i32 = arith.constant 0 : i32
    %c0_i32_0 = arith.constant 0 : i32
    %c0_i32_1 = arith.constant 0 : i32
    return %arg0, %c0_i32, %c0_i32_0 : i32, i32, i32
  }
  func.func @transform_1(%arg0: i32) -> (i32, i32, i32, i32) {
    %c0_i32 = arith.constant 0 : i32
    %c0_i32_0 = arith.constant 0 : i32
    %c0_i32_1 = arith.constant 0 : i32
    %c0_i32_2 = arith.constant 0 : i32
    return %arg0, %c0_i32, %c0_i32_0, %c0_i32_1 : i32, i32, i32, i32
  }
  func.func @transform_2(%arg0: i32) -> (i32, i32, i32, i32) {
    %c0_i32 = arith.constant 0 : i32
    %c0_i32_0 = arith.constant 0 : i32
    %c0_i32_1 = arith.constant 0 : i32
    %c0_i32_2 = arith.constant 0 : i32
    return %arg0, %c0_i32, %c0_i32_0, %c0_i32_1 : i32, i32, i32, i32
  }
  func.func @transform_3(%arg0: i32) -> (i32, i32, i32) {
    %c0_i32 = arith.constant 0 : i32
    %c0_i32_0 = arith.constant 0 : i32
    %c0_i32_1 = arith.constant 0 : i32
    return %arg0, %c0_i32, %c0_i32_0 : i32, i32, i32
  }
  func.func @transform_4(%arg0: i32) -> (i32, i32, i32) {
    %c0_i32 = arith.constant 0 : i32
    %c0_i32_0 = arith.constant 0 : i32
    %c0_i32_1 = arith.constant 0 : i32
    return %arg0, %c0_i32, %c0_i32_0 : i32, i32, i32
  }
  func.func @transform_5(%arg0: i32) -> (i32, i32, i32) {
    %c0_i32 = arith.constant 0 : i32
    %c0_i32_0 = arith.constant 0 : i32
    %c0_i32_1 = arith.constant 0 : i32
    return %arg0, %c0_i32, %c0_i32_0 : i32, i32, i32
  }
  func.func @transform_6(%arg0: i32) -> (i32, i32) {
    %c0_i32 = arith.constant 0 : i32
    %c0_i32_0 = arith.constant 0 : i32
    return %arg0, %c0_i32 : i32, i32
  }
}

</mosaic_0001>

<llo_original>
// kernel: relation_model_forward.3
$region0: #{relation_model_forward.3}
  #allocation0 [shape = 'u32[]', space=smem, size = 0x4, offset = 0x4, fixed_abs, tag = 'smem constant byte address 0x4 - core index']
  #allocation1 [shape = 'u32[144,128]{1,0:T(1,128)}', space=vmem, size = 0x12000, scoped, tag = 'internal scratch']
  %s0 = inlined_call_operand.vmem [shape: bf16[15,16,512], index: 0, kind: input, shape index: {}]
  %s1 = inlined_call_operand.hbm [shape: bf16[15,2,512,128], index: 1, kind: input, shape index: {}]
  %s2 = inlined_call_operand.hbm [shape: f32[15,2,1,128], index: 2, kind: input, shape index: {}]
  %s3 = inlined_call_operand.hbm [shape: bf16[15,128,128], index: 3, kind: input, shape index: {}]
  %s4 = inlined_call_operand.hbm [shape: bf16[15,128,128], index: 4, kind: input, shape index: {}]
  %s5 = inlined_call_operand.hbm [shape: f32[15,1,128], index: 5, kind: input, shape index: {}]
  %s6 = inlined_call_operand.vmem [shape: f32[120,128], index: 6, kind: output, shape index: {}]
  %s7 = sld [smem:[#allocation0]]
  $region77: #{relation_model_forward.3} parent=0
    _
  %s9 = ssub.s32 1, %s7
  %s10 = scalar_select 0, %s9, %s7
  $region1: #{relation_model_forward.3} parent=0
    #allocation2 [shape = 'u8[524288]{0}', space=vmem, size = 0x80000, scoped, tag = 'input window, operand 1']
    #allocation3 [shape = 's32[2]{0}', space=sflag, size = 0x8, scoped, tag = 'scoped memory for relation_model_forward.3']
    #allocation4 [shape = 'u8[2048]{0}', space=vmem, size = 0x800, scoped, tag = 'input window, operand 2']
    #allocation5 [shape = 's32[2]{0}', space=sflag, size = 0x8, scoped, tag = 'scoped memory for relation_model_forward.3']
    #allocation6 [shape = 'u8[65536]{0}', space=vmem, size = 0x10000, scoped, tag = 'input window, operand 3']
    #allocation7 [shape = 'u8[65536]{0}', space=vmem, size = 0x10000, scoped, tag = 'input window, operand 4']
    #allocation8 [shape = 's32[2]{0}', space=sflag, size = 0x8, scoped, tag = 'scoped memory for relation_model_forward.3']
    #allocation9 [shape = 'u8[1024]{0}', space=vmem, size = 0x400, scoped, tag = 'input window, operand 5']
    %11 = vsyncpa [#allocation3], 0
    %s12 = scalar_lea.sflag [#allocation3], 1
    %13 = vsyncpa %s12, 0
    %14 = vsyncpa [#allocation5], 0
    %s15 = scalar_lea.sflag [#allocation5], 1
    %16 = vsyncpa %s15, 0
    %17 = vsyncpa [#allocation8], 0
    %s18 = scalar_lea.sflag [#allocation8], 1
    %19 = vsyncpa %s18, 0
    loop: start=0, step=1, limit=17
    $region2: #{relation_model_forward.3} parent=1 // loop_pre_header
      _
    $region3: #{relation_model_forward.3} parent=1 // loop_header
      %s21 = sphi 0, %s25
      %p22 = scmp.ge.s32.totalorder %s21, 17
      %s31 = sphi 0, %s33
      %s34 = sphi 0, %s31
      %s35 = sphi 0, %s34
      %s51 = sphi 0, %s35
      %s57 = sphi 0, %s59
      %s60 = sphi 0, %s57
      %s61 = sphi 0, %s60
      %s77 = sphi 0, %s61
      %s83 = sphi 0, %s85
      %s86 = sphi 0, %s83
      %s87 = sphi 0, %s86
      %s103 = sphi 0, %s87
      %s109 = sphi 0, %s111
      %s112 = sphi 0, %s109
      %s113 = sphi 0, %s112
      %s129 = sphi 0, %s113
      %s135 = sphi 0, %s137
      %s138 = sphi 0, %s135
      %s139 = sphi 0, %s138
      %s155 = sphi 0, %s139
      %s161 = sphi 0, %s163
      %s164 = sphi 0, %s161
      %s165 = sphi 0, %s164
      %s181 = sphi 0, %s165
      %s187 = sphi 0, %s189
      %s190 = sphi 0, %s187
      %s191 = sphi 0, %s190
      %s207 = sphi 0, %s191
    $region4: #{relation_model_forward.3} parent=1 // loop_header_branch
      %24 = sbr.rel (%p22) target = $region8
    $region5: #{relation_model_forward.3} parent=1 // loop_body
      %s26 = ssub.s32 %s21, 1
      %s27 = ssub.s32 %s21, 2
      %s28 = sadd.s32 %s21, 1
      %s29 = ssub.s32 %s21, %s28
      %p30 = scmp.eq.s32.totalorder %s29, 0
      %s32 = sadd.s32 %s31, 1
      %s33 = scalar_select %p30, %s31, %s32
      %p36 = pneg %p30
      %p37 = scmp.eq.s32.totalorder %s21, 14
      %p38 = por %p36, %p37
      %p39 = scmp.ne.s32.totalorder %s31, %s34
      %p40 = scmp.eq.s32.totalorder %s21, 0
      %p41 = por %p39, %p40
      %p42 = scmp.ne.s32.totalorder %s31, %s34
      %p43 = scmp.eq.s32.totalorder %s26, 14
      %p44 = por %p42, %p43
      %p45 = scmp.ne.s32.totalorder %s34, %s35
      %p46 = scmp.eq.s32.totalorder %s26, 0
      %p47 = por %p45, %p46
      %p48 = scmp.ne.s32.totalorder %s34, %s35
      %p49 = scmp.eq.s32.totalorder %s27, 14
      %p50 = por %p48, %p49
      %p52 = scmp.ne.s32.totalorder %s35, %s51
      %p53 = scmp.eq.s32.totalorder %s27, 0
      %p54 = por %p52, %p53
      %s55 = ssub.s32 %s21, %s28
      %p56 = scmp.eq.s32.totalorder %s55, 0
      %s58 = sadd.s32 %s57, 1
      %s59 = scalar_select %p56, %s57, %s58
      %p62 = pneg %p56
      %p63 = scmp.eq.s32.totalorder %s21, 14
      %p64 = por %p62, %p63
      %p65 = scmp.ne.s32.totalorder %s57, %s60
      %p66 = scmp.eq.s32.totalorder %s21, 0
      %p67 = por %p65, %p66
      %p68 = scmp.ne.s32.totalorder %s57, %s60
      %p69 = scmp.eq.s32.totalorder %s26, 14
      %p70 = por %p68, %p69
      %p71 = scmp.ne.s32.totalorder %s60, %s61
      %p72 = scmp.eq.s32.totalorder %s26, 0
      %p73 = por %p71, %p72
      %p74 = scmp.ne.s32.totalorder %s60, %s61
      %p75 = scmp.eq.s32.totalorder %s27, 14
      %p76 = por %p74, %p75
      %p78 = scmp.ne.s32.totalorder %s61, %s77
      %p79 = scmp.eq.s32.totalorder %s27, 0
      %p80 = por %p78, %p79
      %s81 = ssub.s32 %s21, %s28
      %p82 = scmp.eq.s32.totalorder %s81, 0
      %s84 = sadd.s32 %s83, 1
      %s85 = scalar_select %p82, %s83, %s84
      %p88 = pneg %p82
      %p89 = scmp.eq.s32.totalorder %s21, 14
      %p90 = por %p88, %p89
      %p91 = scmp.ne.s32.totalorder %s83, %s86
      %p92 = scmp.eq.s32.totalorder %s21, 0
      %p93 = por %p91, %p92
      %p94 = scmp.ne.s32.totalorder %s83, %s86
      %p95 = scmp.eq.s32.totalorder %s26, 14
      %p96 = por %p94, %p95
      %p97 = scmp.ne.s32.totalorder %s86, %s87
      %p98 = scmp.eq.s32.totalorder %s26, 0
      %p99 = por %p97, %p98
      %p100 = scmp.ne.s32.totalorder %s86, %s87
      %p101 = scmp.eq.s32.totalorder %s27, 14
      %p102 = por %p100, %p101
      %p104 = scmp.ne.s32.totalorder %s87, %s103
      %p105 = scmp.eq.s32.totalorder %s27, 0
      %p106 = por %p104, %p105
      %s107 = ssub.s32 %s21, %s28
      %p108 = scmp.eq.s32.totalorder %s107, 0
      %s110 = sadd.s32 %s109, 1
      %s111 = scalar_select %p108, %s109, %s110
      %p114 = pneg %p108
      %p115 = scmp.eq.s32.totalorder %s21, 14
      %p116 = por %p114, %p115
      %p117 = scmp.ne.s32.totalorder %s109, %s112
      %p118 = scmp.eq.s32.totalorder %s21, 0
      %p119 = por %p117, %p118
      %p120 = scmp.ne.s32.totalorder %s109, %s112
      %p121 = scmp.eq.s32.totalorder %s26, 14
      %p122 = por %p120, %p121
      %p123 = scmp.ne.s32.totalorder %s112, %s113
      %p124 = scmp.eq.s32.totalorder %s26, 0
      %p125 = por %p123, %p124
      %p126 = scmp.ne.s32.totalorder %s112, %s113
      %p127 = scmp.eq.s32.totalorder %s27, 14
      %p128 = por %p126, %p127
      %p130 = scmp.ne.s32.totalorder %s113, %s129
      %p131 = scmp.eq.s32.totalorder %s27, 0
      %p132 = por %p130, %p131
      %s133 = ssub.s32 %s21, %s28
      %p134 = scmp.eq.s32.totalorder %s133, 0
      %s136 = sadd.s32 %s135, 1
      %s137 = scalar_select %p134, %s135, %s136
      %p140 = pneg %p134
      %p141 = scmp.eq.s32.totalorder %s21, 14
      %p142 = por %p140, %p141
      %p143 = scmp.ne.s32.totalorder %s135, %s138
      %p144 = scmp.eq.s32.totalorder %s21, 0
      %p145 = por %p143, %p144
      %p146 = scmp.ne.s32.totalorder %s135, %s138
      %p147 = scmp.eq.s32.totalorder %s26, 14
      %p148 = por %p146, %p147
      %p149 = scmp.ne.s32.totalorder %s138, %s139
      %p150 = scmp.eq.s32.totalorder %s26, 0
      %p151 = por %p149, %p150
      %p152 = scmp.ne.s32.totalorder %s138, %s139
      %p153 = scmp.eq.s32.totalorder %s27, 14
      %p154 = por %p152, %p153
      %p156 = scmp.ne.s32.totalorder %s139, %s155
      %p157 = scmp.eq.s32.totalorder %s27, 0
      %p158 = por %p156, %p157
      %s159 = ssub.s32 %s21, %s28
      %p160 = scmp.eq.s32.totalorder %s159, 0
      %s162 = sadd.s32 %s161, 1
      %s163 = scalar_select %p160, %s161, %s162
      %p166 = pneg %p160
      %p167 = scmp.eq.s32.totalorder %s21, 14
      %p168 = por %p166, %p167
      %p169 = scmp.ne.s32.totalorder %s161, %s164
      %p170 = scmp.eq.s32.totalorder %s21, 0
      %p171 = por %p169, %p170
      %p172 = scmp.ne.s32.totalorder %s161, %s164
      %p173 = scmp.eq.s32.totalorder %s26, 14
      %p174 = por %p172, %p173
      %p175 = scmp.ne.s32.totalorder %s164, %s165
      %p176 = scmp.eq.s32.totalorder %s26, 0
      %p177 = por %p175, %p176
      %p178 = scmp.ne.s32.totalorder %s164, %s165
      %p179 = scmp.eq.s32.totalorder %s27, 14
      %p180 = por %p178, %p179
      %p182 = scmp.ne.s32.totalorder %s165, %s181
      %p183 = scmp.eq.s32.totalorder %s27, 0
      %p184 = por %p182, %p183
      %s185 = ssub.s32 %s21, %s28
      %p186 = scmp.eq.s32.totalorder %s185, 0
      %s188 = sadd.s32 %s187, 1
      %s189 = scalar_select %p186, %s187, %s188
      %p192 = pneg %p186
      %p193 = scmp.eq.s32.totalorder %s21, 14
      %p194 = por %p192, %p193
      %p195 = scmp.ne.s32.totalorder %s187, %s190
      %p196 = scmp.eq.s32.totalorder %s21, 0
      %p197 = por %p195, %p196
      %p198 = scmp.ne.s32.totalorder %s187, %s190
      %p199 = scmp.eq.s32.totalorder %s26, 14
      %p200 = por %p198, %p199
      %p201 = scmp.ne.s32.totalorder %s190, %s191
      %p202 = scmp.eq.s32.totalorder %s26, 0
      %p203 = por %p201, %p202
      %p204 = scmp.ne.s32.totalorder %s190, %s191
      %p205 = scmp.eq.s32.totalorder %s27, 14
      %p206 = por %p204, %p205
      %p208 = scmp.ne.s32.totalorder %s191, %s207
      %p209 = scmp.eq.s32.totalorder %s27, 0
      %p210 = por %p208, %p209
      %p211 = scmp.le.s32.totalorder 1, %s21
      %p212 = scmp.lt.s32.totalorder %s21, 16
      %p213 = pnand %p211, %p212
      %p214 = pneg %p213
      // Predicated region
      $region9: #{relation_model_forward.3} parent=5 // pred_check
        _
      $region10: #{relation_model_forward.3} parent=5 // pred_check_branch
        %216 = sbr.rel (%p213) target = $region12
      $region11: #{relation_model_forward.3} parent=5 // pred_region
        %s217 = ssub.s32 %s21, 1
      $region12: #{relation_model_forward.3} parent=5 // pred_fallthru
        _
      %p218 = scmp.lt.s32.totalorder %s21, 15
      // Predicated region
      $region13: #{relation_model_forward.3} parent=5 // pred_check
        %p219 = pneg %p218
      $region14: #{relation_model_forward.3} parent=5 // pred_check_branch
        %221 = sbr.rel (%p219) target = $region16
      $region15: #{relation_model_forward.3} parent=5 // pred_region
        // Predicated region
        $region17: #{relation_model_forward.3} parent=15 // pred_check
          %p222 = pneg %p41
        $region18: #{relation_model_forward.3} parent=15 // pred_check_branch
          %224 = sbr.rel (%p222) target = $region20
        $region19: #{relation_model_forward.3} parent=15 // pred_region
          %p225 = scmp.lt.s32.totalorder %s21, 14
          %s226 = scalar_select %p225, %s21, 14
          %s227 = smul.addr %s226, 8
          %s228 = smul.addr %s227, 4
          %s229 = scalar_lea.vmem %s0, %s228
        $region20: #{relation_model_forward.3} parent=15 // pred_fallthru
          _
        // Predicated region
        $region21: #{relation_model_forward.3} parent=15 // pred_check
          %p230 = pneg %p67
        $region22: #{relation_model_forward.3} parent=15 // pred_check_branch
          %232 = sbr.rel (%p230) target = $region24
        $region23: #{relation_model_forward.3} parent=15 // pred_region
          %s233 = sand.u32 %s57, 1
          %s234 = scalar_lea.sflag [#allocation3], %s233
          %s235 = sand.u32 %s57, 1
          %s236 = smul.addr %s235, 512
          %s237 = scalar_lea.vmem [#allocation2], %s236
          %s239 = ssub.s32 8192, 8192
          %240 = vsyncadd %s234, %s239
          %s241 = smul.addr %s21, 128
          %s242 = smul.addr %s241, 64
          %s243 = scalar_lea.hbm %s1, %s242
          %s244 = sshll.u32 %s237, 4
          %s245 = int_to_ptr.vmem [resolvable:$true] %s244
          %250 = dma.hbm_to_vmem [thread:$0]  %s243, 8192, %s245, %s234, 64, 64, 4
        $region24: #{relation_model_forward.3} parent=15 // pred_fallthru
          _
        // Predicated region
        $region25: #{relation_model_forward.3} parent=15 // pred_check
          %p251 = pneg %p93
        $region26: #{relation_model_forward.3} parent=15 // pred_check_branch
          %253 = sbr.rel (%p251) target = $region28
        $region27: #{relation_model_forward.3} parent=15 // pred_region
          %s254 = sand.u32 %s21, 1
          %s255 = scalar_lea.sflag [#allocation5], %s254
          %s256 = sand.u32 %s83, 1
          %s257 = smul.addr %s256, 2
          %s258 = scalar_lea.vmem [#allocation4], %s257
          %s260 = ssub.s32 32, 32
          %261 = vsyncadd %s255, %s260
          %s262 = smul.addr %s21, 2
          %s263 = smul.addr %s262, 16
          %s264 = scalar_lea.hbm %s2, %s263
          %s265 = sshll.u32 %s258, 4
          %s266 = int_to_ptr.vmem [resolvable:$true] %s265
          %271 = dma.hbm_to_vmem [thread:$0]  %s264, 32, %s266, %s255, 16, 16, 1
        $region28: #{relation_model_forward.3} parent=15 // pred_fallthru
          _
        // Predicated region
        $region29: #{relation_model_forward.3} parent=15 // pred_check
          %p272 = pneg %p119
        $region30: #{relation_model_forward.3} parent=15 // pred_check_branch
          %274 = sbr.rel (%p272) target = $region32
        $region31: #{relation_model_forward.3} parent=15 // pred_region
          %s275 = sand.u32 %s21, 1
          %s276 = scalar_lea.sflag [#allocation5], %s275
          %s277 = sand.u32 %s109, 1
          %s278 = smul.addr %s277, 64
          %s279 = scalar_lea.vmem [#allocation6], %s278
          %s281 = ssub.s32 1024, 1024
          %282 = vsyncadd %s276, %s281
          %s283 = smul.addr %s21, 16
          %s284 = smul.addr %s283, 64
          %s285 = scalar_lea.hbm %s3, %s284
          %s286 = sshll.u32 %s279, 4
          %s287 = int_to_ptr.vmem [resolvable:$true] %s286
          %292 = dma.hbm_to_vmem [thread:$0]  %s285, 1024, %s287, %s276, 64, 64, 4
        $region32: #{relation_model_forward.3} parent=15 // pred_fallthru
          _
        // Predicated region
        $region33: #{relation_model_forward.3} parent=15 // pred_check
          %p293 = pneg %p145
        $region34: #{relation_model_forward.3} parent=15 // pred_check_branch
          %295 = sbr.rel (%p293) target = $region36
        $region35: #{relation_model_forward.3} parent=15 // pred_region
          %s296 = sand.u32 %s21, 1
          %s297 = scalar_lea.sflag [#allocation8], %s296
          %s298 = sand.u32 %s135, 1
          %s299 = smul.addr %s298, 64
          %s300 = scalar_lea.vmem [#allocation7], %s299
          %s302 = ssub.s32 1024, 1024
          %303 = vsyncadd %s297, %s302
          %s304 = smul.addr %s21, 16
          %s305 = smul.addr %s304, 64
          %s306 = scalar_lea.hbm %s4, %s305
          %s307 = sshll.u32 %s300, 4
          %s308 = int_to_ptr.vmem [resolvable:$true] %s307
          %313 = dma.hbm_to_vmem [thread:$0]  %s306, 1024, %s308, %s297, 64, 64, 4
        $region36: #{relation_model_forward.3} parent=15 // pred_fallthru
          _
        // Predicated region
        $region37: #{relation_model_forward.3} parent=15 // pred_check
          %p314 = pneg %p171
        $region38: #{relation_model_forward.3} parent=15 // pred_check_branch
          %316 = sbr.rel (%p314) target = $region40
        $region39: #{relation_model_forward.3} parent=15 // pred_region
          %s317 = sand.u32 %s21, 1
          %s318 = scalar_lea.sflag [#allocation8], %s317
          %s319 = sand.u32 %s161, 1
          %s320 = scalar_lea.vmem [#allocation9], %s319
          %s322 = ssub.s32 16, 16
          %323 = vsyncadd %s318, %s322
          %s324 = smul.addr %s21, 16
          %s325 = scalar_lea.hbm %s5, %s324
          %s327 = sshll.u32 %s320, 4
          %s328 = int_to_ptr.vmem [resolvable:$true] %s327
          %330 = dma.hbm_to_vmem [thread:$0]  %s325, 16, %s328, %s318
        $region40: #{relation_model_forward.3} parent=15 // pred_fallthru
          _
      $region16: #{relation_model_forward.3} parent=5 // pred_fallthru
        _
      %p331 = scmp.le.s32.totalorder 1, %s21
      %p332 = scmp.lt.s32.totalorder %s21, 16
      %p333 = pnand %p331, %p332
      %p334 = pneg %p333
      // Predicated region
      $region41: #{relation_model_forward.3} parent=5 // pred_check
        _
      $region42: #{relation_model_forward.3} parent=5 // pred_check_branch
        %336 = sbr.rel (%p333) target = $region44
      $region43: #{relation_model_forward.3} parent=5 // pred_region
        %s337 = ssub.s32 %s21, 1
        %s338 = sand.u32 %s60, 1
        %s339 = scalar_lea.sflag [#allocation3], %s338
        %s340 = sand.u32 %s60, 1
        %s341 = smul.addr %s340, 512
        %s342 = scalar_lea.vmem [#allocation2], %s341
        // Predicated region
        $region45: #{relation_model_forward.3} parent=43 // pred_check
          %p343 = pneg %p73
        $region46: #{relation_model_forward.3} parent=43 // pred_check_branch
          %345 = sbr.rel (%p343) target = $region48
        $region47: #{relation_model_forward.3} parent=43 // pred_region
          %346 = dma.done %s339, 8192
        $region48: #{relation_model_forward.3} parent=43 // pred_fallthru
          _
        %s347 = sand.u32 %s26, 1
        %s348 = scalar_lea.sflag [#allocation5], %s347
        %s349 = sand.u32 %s86, 1
        %s350 = smul.addr %s349, 2
        %s351 = scalar_lea.vmem [#allocation4], %s350
        // Predicated region
        $region49: #{relation_model_forward.3} parent=43 // pred_check
          %p352 = pneg %p99
        $region50: #{relation_model_forward.3} parent=43 // pred_check_branch
          %354 = sbr.rel (%p352) target = $region52
        $region51: #{relation_model_forward.3} parent=43 // pred_region
          %355 = dma.done %s348, 32
        $region52: #{relation_model_forward.3} parent=43 // pred_fallthru
          _
        %s356 = sand.u32 %s26, 1
        %s357 = scalar_lea.sflag [#allocation5], %s356
        %s358 = sand.u32 %s112, 1
        %s359 = smul.addr %s358, 64
        %s360 = scalar_lea.vmem [#allocation6], %s359
        // Predicated region
        $region53: #{relation_model_forward.3} parent=43 // pred_check
          %p361 = pneg %p125
        $region54: #{relation_model_forward.3} parent=43 // pred_check_branch
          %363 = sbr.rel (%p361) target = $region56
        $region55: #{relation_model_forward.3} parent=43 // pred_region
          %364 = dma.done %s357, 1024
        $region56: #{relation_model_forward.3} parent=43 // pred_fallthru
          _
        %s365 = sand.u32 %s26, 1
        %s366 = scalar_lea.sflag [#allocation8], %s365
        %s367 = sand.u32 %s138, 1
        %s368 = smul.addr %s367, 64
        %s369 = scalar_lea.vmem [#allocation7], %s368
        // Predicated region
        $region57: #{relation_model_forward.3} parent=43 // pred_check
          %p370 = pneg %p151
        $region58: #{relation_model_forward.3} parent=43 // pred_check_branch
          %372 = sbr.rel (%p370) target = $region60
        $region59: #{relation_model_forward.3} parent=43 // pred_region
          %373 = dma.done %s366, 1024
        $region60: #{relation_model_forward.3} parent=43 // pred_fallthru
          _
        %s374 = sand.u32 %s26, 1
        %s375 = scalar_lea.sflag [#allocation8], %s374
        %s376 = sand.u32 %s164, 1
        %s377 = scalar_lea.vmem [#allocation9], %s376
        // Predicated region
        $region61: #{relation_model_forward.3} parent=43 // pred_check
          %p378 = pneg %p177
        $region62: #{relation_model_forward.3} parent=43 // pred_check_branch
          %380 = sbr.rel (%p378) target = $region64
        $region63: #{relation_model_forward.3} parent=43 // pred_region
          %381 = dma.done %s375, 16
        $region64: #{relation_model_forward.3} parent=43 // pred_fallthru
          _
        %p382 = scmp.lt.s32.totalorder %s26, 14
        %s383 = scalar_select %p382, %s26, 14
        %s384 = smul.addr %s383, 8
        %s385 = smul.addr %s384, 4
        %s386 = scalar_lea.vmem %s0, %s385
        %p387 = pneg %p47
        %p388 = pneg %p44
        %s389 = sand.u32 %s60, 1
        %s390 = scalar_lea.sflag [#allocation3], %s389
        %s391 = sand.u32 %s60, 1
        %s392 = smul.addr %s391, 512
        %s393 = scalar_lea.vmem [#allocation2], %s392
        %p394 = pneg %p73
        %p395 = pneg %p70
        %s396 = sand.u32 %s26, 1
        %s397 = scalar_lea.sflag [#allocation5], %s396
        %s398 = sand.u32 %s86, 1
        %s399 = smul.addr %s398, 2
        %s400 = scalar_lea.vmem [#allocation4], %s399
        %p401 = pneg %p99
        %p402 = pneg %p96
        %s403 = sand.u32 %s26, 1
        %s404 = scalar_lea.sflag [#allocation5], %s403
        %s405 = sand.u32 %s112, 1
        %s406 = smul.addr %s405, 64
        %s407 = scalar_lea.vmem [#allocation6], %s406
        %p408 = pneg %p125
        %p409 = pneg %p122
        %s410 = sand.u32 %s26, 1
        %s411 = scalar_lea.sflag [#allocation8], %s410
        %s412 = sand.u32 %s138, 1
        %s413 = smul.addr %s412, 64
        %s414 = scalar_lea.vmem [#allocation7], %s413
        %p415 = pneg %p151
        %p416 = pneg %p148
        %s417 = sand.u32 %s26, 1
        %s418 = scalar_lea.sflag [#allocation8], %s417
        %s419 = sand.u32 %s164, 1
        %s420 = scalar_lea.vmem [#allocation9], %s419
        %p421 = pneg %p177
        %p422 = pneg %p174
        %p423 = pneg %p203
        %p424 = pneg %p200
        %p425 = scmp.lt.s32.totalorder %s26, 14
        %s426 = scalar_select %p425, %s26, 14
        %s427 = smul.addr %s426, 8
        %s428 = scalar_lea.vmem %s6, %s427
        %p429 = scmp.lt.s32.totalorder %s26, 14
        %s430 = scalar_select %p429, %s26, 14
        %s431 = smul.addr %s430, 8
        %s432 = smul.addr %s431, 4
        %s433 = scalar_lea.vmem %s0, %s432
        %p434 = scmp.lt.s32.totalorder %s26, 14
        %s435 = scalar_select %p434, %s26, 14
        %s436 = smul.addr %s435, 8
        %s437 = scalar_lea.vmem %s6, %s436
        %v439 = vld [vmem:[%s433] sm:$0xff]
        %v440 = vld [vmem:[%s433 + $0x8] sm:$0xff]
        %v441 = vld [vmem:[%s433 + $0x10] sm:$0xff]
        %v442 = vld [vmem:[%s433 + $0x18] sm:$0xff]
        %v443 = vld [vmem:[%s342] sm:$0xf]
        %v444 = vld [vmem:[%s342 + $0x4] sm:$0xf]
        %v445 = vld [vmem:[%s342 + $0x8] sm:$0xf]
        %v446 = vld [vmem:[%s342 + $0xc] sm:$0xf]
        %v447 = vld [vmem:[%s342 + $0x10] sm:$0xf]
        %v448 = vld [vmem:[%s342 + $0x14] sm:$0xf]
        %v449 = vld [vmem:[%s342 + $0x18] sm:$0xf]
        %v450 = vld [vmem:[%s342 + $0x1c] sm:$0xf]
        %v451 = vld [vmem:[%s342 + $0x20] sm:$0xf]
        %v452 = vld [vmem:[%s342 + $0x24] sm:$0xf]
        %v453 = vld [vmem:[%s342 + $0x28] sm:$0xf]
        %v454 = vld [vmem:[%s342 + $0x2c] sm:$0xf]
        %v455 = vld [vmem:[%s342 + $0x30] sm:$0xf]
        %v456 = vld [vmem:[%s342 + $0x34] sm:$0xf]
        %v457 = vld [vmem:[%s342 + $0x38] sm:$0xf]
        %v458 = vld [vmem:[%s342 + $0x3c] sm:$0xf]
        %v459 = vld [vmem:[%s342 + $0x40] sm:$0xf]
        %v460 = vld [vmem:[%s342 + $0x44] sm:$0xf]
        %v461 = vld [vmem:[%s342 + $0x48] sm:$0xf]
        %v462 = vld [vmem:[%s342 + $0x4c] sm:$0xf]
        %v463 = vld [vmem:[%s342 + $0x50] sm:$0xf]
        %v464 = vld [vmem:[%s342 + $0x54] sm:$0xf]
        %v465 = vld [vmem:[%s342 + $0x58] sm:$0xf]
        %v466 = vld [vmem:[%s342 + $0x5c] sm:$0xf]
        %v467 = vld [vmem:[%s342 + $0x60] sm:$0xf]
        %v468 = vld [vmem:[%s342 + $0x64] sm:$0xf]
        %v469 = vld [vmem:[%s342 + $0x68] sm:$0xf]
        %v470 = vld [vmem:[%s342 + $0x6c] sm:$0xf]
        %v471 = vld [vmem:[%s342 + $0x70] sm:$0xf]
        %v472 = vld [vmem:[%s342 + $0x74] sm:$0xf]
        %v473 = vld [vmem:[%s342 + $0x78] sm:$0xf]
        %v474 = vld [vmem:[%s342 + $0x7c] sm:$0xf]
        %v475 = vld [vmem:[%s342 + $0x80] sm:$0xf]
        %v476 = vld [vmem:[%s342 + $0x84] sm:$0xf]
        %v477 = vld [vmem:[%s342 + $0x88] sm:$0xf]
        %v478 = vld [vmem:[%s342 + $0x8c] sm:$0xf]
        %v479 = vld [vmem:[%s342 + $0x90] sm:$0xf]
        %v480 = vld [vmem:[%s342 + $0x94] sm:$0xf]
        %v481 = vld [vmem:[%s342 + $0x98] sm:$0xf]
        %v482 = vld [vmem:[%s342 + $0x9c] sm:$0xf]
        %v483 = vld [vmem:[%s342 + $0xa0] sm:$0xf]
        %v484 = vld [vmem:[%s342 + $0xa4] sm:$0xf]
        %v485 = vld [vmem:[%s342 + $0xa8] sm:$0xf]
        %v486 = vld [vmem:[%s342 + $0xac] sm:$0xf]
        %v487 = vld [vmem:[%s342 + $0xb0] sm:$0xf]
        %v488 = vld [vmem:[%s342 + $0xb4] sm:$0xf]
        %v489 = vld [vmem:[%s342 + $0xb8] sm:$0xf]
        %v490 = vld [vmem:[%s342 + $0xbc] sm:$0xf]
        %v491 = vld [vmem:[%s342 + $0xc0] sm:$0xf]
        %v492 = vld [vmem:[%s342 + $0xc4] sm:$0xf]
        %v493 = vld [vmem:[%s342 + $0xc8] sm:$0xf]
        %v494 = vld [vmem:[%s342 + $0xcc] sm:$0xf]
        %v495 = vld [vmem:[%s342 + $0xd0] sm:$0xf]
        %v496 = vld [vmem:[%s342 + $0xd4] sm:$0xf]
        %v497 = vld [vmem:[%s342 + $0xd8] sm:$0xf]
        %v498 = vld [vmem:[%s342 + $0xdc] sm:$0xf]
        %v499 = vld [vmem:[%s342 + $0xe0] sm:$0xf]
        %v500 = vld [vmem:[%s342 + $0xe4] sm:$0xf]
        %v501 = vld [vmem:[%s342 + $0xe8] sm:$0xf]
        %v502 = vld [vmem:[%s342 + $0xec] sm:$0xf]
        %v503 = vld [vmem:[%s342 + $0xf0] sm:$0xf]
        %v504 = vld [vmem:[%s342 + $0xf4] sm:$0xf]
        %v505 = vld [vmem:[%s342 + $0xf8] sm:$0xf]
        %v506 = vld [vmem:[%s342 + $0xfc] sm:$0xf]
        %v507 = vld [vmem:[%s351] sm:$0x1]
        %v509 = vlaneseq
        %v510 = vshrl.u32 %v509, 7
        %v511 = vsub.s32 0, %v510
        %v512 = vrot.slane %v507, %v511
        %v516 = vunpack.c.l.b16 %v439
        %v517 = vunpack.c.h.b16 %v439
        %v518 = vunpack.c.l.b16 %v440
        %v519 = vunpack.c.h.b16 %v440
        %v520 = vpack.c.b16 %v516, %v516
        %v521 = vpack.c.b16 %v517, %v517
        %v522 = vpack.c.b16 %v518, %v518
        %v523 = vpack.c.b16 %v519, %v519
        %v592 = vunpack.c.l.b16 %v443
        %v593 = vunpack.c.l.b16 %v444
        %v594 = vunpack.c.l.b16 %v445
        %v595 = vunpack.c.l.b16 %v446
        %v596 = vunpack.c.l.b16 %v447
        %v597 = vunpack.c.l.b16 %v448
        %v598 = vunpack.c.l.b16 %v449
        %v599 = vunpack.c.l.b16 %v450
        %v600 = vunpack.c.l.b16 %v451
        %v601 = vunpack.c.l.b16 %v452
        %v602 = vunpack.c.l.b16 %v453
        %v603 = vunpack.c.l.b16 %v454
        %v604 = vunpack.c.l.b16 %v455
        %v605 = vunpack.c.l.b16 %v456
        %v606 = vunpack.c.l.b16 %v457
        %v607 = vunpack.c.l.b16 %v458
        %v608 = vunpack.c.l.b16 %v459
        %v609 = vunpack.c.l.b16 %v460
        %v610 = vunpack.c.l.b16 %v461
        %v611 = vunpack.c.l.b16 %v462
        %v612 = vunpack.c.l.b16 %v463
        %v613 = vunpack.c.l.b16 %v464
        %v614 = vunpack.c.l.b16 %v465
        %v615 = vunpack.c.l.b16 %v466
        %v616 = vunpack.c.l.b16 %v467
        %v617 = vunpack.c.l.b16 %v468
        %v618 = vunpack.c.l.b16 %v469
        %v619 = vunpack.c.l.b16 %v470
        %v620 = vunpack.c.l.b16 %v471
        %v621 = vunpack.c.l.b16 %v472
        %v622 = vunpack.c.l.b16 %v473
        %v623 = vunpack.c.l.b16 %v474
        %v624 = vunpack.c.l.b16 %v475
        %v625 = vunpack.c.l.b16 %v476
        %v626 = vunpack.c.l.b16 %v477
        %v627 = vunpack.c.l.b16 %v478
        %v628 = vunpack.c.l.b16 %v479
        %v629 = vunpack.c.l.b16 %v480
        %v630 = vunpack.c.l.b16 %v481
        %v631 = vunpack.c.l.b16 %v482
        %v632 = vunpack.c.l.b16 %v483
        %v633 = vunpack.c.l.b16 %v484
        %v634 = vunpack.c.l.b16 %v485
        %v635 = vunpack.c.l.b16 %v486
        %v636 = vunpack.c.l.b16 %v487
        %v637 = vunpack.c.l.b16 %v488
        %v638 = vunpack.c.l.b16 %v489
        %v639 = vunpack.c.l.b16 %v490
        %v640 = vunpack.c.l.b16 %v491
        %v641 = vunpack.c.l.b16 %v492
        %v642 = vunpack.c.l.b16 %v493
        %v643 = vunpack.c.l.b16 %v494
        %v644 = vunpack.c.l.b16 %v495
        %v645 = vunpack.c.l.b16 %v496
        %v646 = vunpack.c.l.b16 %v497
        %v647 = vunpack.c.l.b16 %v498
        %v648 = vunpack.c.l.b16 %v499
        %v649 = vunpack.c.l.b16 %v500
        %v650 = vunpack.c.l.b16 %v501
        %v651 = vunpack.c.l.b16 %v502
        %v652 = vunpack.c.l.b16 %v503
        %v653 = vunpack.c.l.b16 %v504
        %v654 = vunpack.c.l.b16 %v505
        %v655 = vunpack.c.l.b16 %v506
        %v656 = vpack.c.b16 %v593, %v592
        %v657 = vpack.c.b16 %v595, %v594
        %v658 = vpack.c.b16 %v597, %v596
        %v659 = vpack.c.b16 %v599, %v598
        %v660 = vpack.c.b16 %v601, %v600
        %v661 = vpack.c.b16 %v603, %v602
        %v662 = vpack.c.b16 %v605, %v604
        %v663 = vpack.c.b16 %v607, %v606
        %v664 = vpack.c.b16 %v609, %v608
        %v665 = vpack.c.b16 %v611, %v610
        %v666 = vpack.c.b16 %v613, %v612
        %v667 = vpack.c.b16 %v615, %v614
        %v668 = vpack.c.b16 %v617, %v616
        %v669 = vpack.c.b16 %v619, %v618
        %v670 = vpack.c.b16 %v621, %v620
        %v671 = vpack.c.b16 %v623, %v622
        %v672 = vpack.c.b16 %v625, %v624
        %v673 = vpack.c.b16 %v627, %v626
        %v674 = vpack.c.b16 %v629, %v628
        %v675 = vpack.c.b16 %v631, %v630
        %v676 = vpack.c.b16 %v633, %v632
        %v677 = vpack.c.b16 %v635, %v634
        %v678 = vpack.c.b16 %v637, %v636
        %v679 = vpack.c.b16 %v639, %v638
        %v680 = vpack.c.b16 %v641, %v640
        %v681 = vpack.c.b16 %v643, %v642
        %v682 = vpack.c.b16 %v645, %v644
        %v683 = vpack.c.b16 %v647, %v646
        %v684 = vpack.c.b16 %v649, %v648
        %v685 = vpack.c.b16 %v651, %v650
        %v686 = vpack.c.b16 %v653, %v652
        %v687 = vpack.c.b16 %v655, %v654
        %720 = vmatprep.subr.bf16.mxu0 0
        %721 = vmatpush1.bf16.msra.mxu0 %v656
        %722 = vmatprep.subr.bf16.mxu0 0
        %723 = vmatpush1.bf16.msra.mxu0 %v657
        %724 = vmatprep.subr.bf16.mxu0 0
        %725 = vmatpush1.bf16.msra.mxu0 %v658
        %726 = vmatprep.subr.bf16.mxu0 0
        %727 = vmatpush1.bf16.msra.mxu0 %v659
        %728 = vmatprep.subr.bf16.mxu0 0
        %729 = vmatpush1.bf16.msra.mxu0 %v660
        %730 = vmatprep.subr.bf16.mxu0 0
        %731 = vmatpush1.bf16.msra.mxu0 %v661
        %732 = vmatprep.subr.bf16.mxu0 0
        %733 = vmatpush1.bf16.msra.mxu0 %v662
        %734 = vmatprep.subr.bf16.mxu0 0
        %735 = vmatpush1.bf16.msra.mxu0 %v663
        %736 = vmatprep.subr.bf16.mxu0 0
        %737 = vmatpush1.bf16.msra.mxu0 %v664
        %738 = vmatprep.subr.bf16.mxu0 0
        %739 = vmatpush1.bf16.msra.mxu0 %v665
        %740 = vmatprep.subr.bf16.mxu0 0
        %741 = vmatpush1.bf16.msra.mxu0 %v666
        %742 = vmatprep.subr.bf16.mxu0 0
        %743 = vmatpush1.bf16.msra.mxu0 %v667
        %744 = vmatprep.subr.bf16.mxu0 0
        %745 = vmatpush1.bf16.msra.mxu0 %v668
        %746 = vmatprep.subr.bf16.mxu0 0
        %747 = vmatpush1.bf16.msra.mxu0 %v669
        %748 = vmatprep.subr.bf16.mxu0 0
        %749 = vmatpush1.bf16.msra.mxu0 %v670
        %750 = vmatprep.subr.bf16.mxu0 0
        %751 = vmatpush1.bf16.msra.mxu0 %v671
        %752 = vmatprep.mubr.bf16.mxu0 %v521
        %753 = vmatmul.mubr.bf16.gmra.mrb[0].mxu0 %v520
        %v754 = vpop.f32.mrb[0].mxu0
        %v755 = vadd.f32 %v512, %v754
        %v756 = vpop.f32.mrb[0].mxu0
        %v757 = vpop.f32.mrb[0].mxu0
        %v758 = vpop.f32.mrb[0].mxu0
        %759 = vdwg.mxu0
        %760 = vmatprep.subr.bf16.mxu0 0
        %761 = vmatpush1.bf16.msra.mxu0 %v672
        %762 = vmatprep.subr.bf16.mxu0 0
        %763 = vmatpush1.bf16.msra.mxu0 %v673
        %764 = vmatprep.subr.bf16.mxu0 0
        %765 = vmatpush1.bf16.msra.mxu0 %v674
        %766 = vmatprep.subr.bf16.mxu0 0
        %767 = vmatpush1.bf16.msra.mxu0 %v675
        %768 = vmatprep.subr.bf16.mxu0 0
        %769 = vmatpush1.bf16.msra.mxu0 %v676
        %770 = vmatprep.subr.bf16.mxu0 0
        %771 = vmatpush1.bf16.msra.mxu0 %v677
        %772 = vmatprep.subr.bf16.mxu0 0
        %773 = vmatpush1.bf16.msra.mxu0 %v678
        %774 = vmatprep.subr.bf16.mxu0 0
        %775 = vmatpush1.bf16.msra.mxu0 %v679
        %776 = vmatprep.subr.bf16.mxu0 0
        %777 = vmatpush1.bf16.msra.mxu0 %v680
        %778 = vmatprep.subr.bf16.mxu0 0
        %779 = vmatpush1.bf16.msra.mxu0 %v681
        %780 = vmatprep.subr.bf16.mxu0 0
        %781 = vmatpush1.bf16.msra.mxu0 %v682
        %782 = vmatprep.subr.bf16.mxu0 0
        %783 = vmatpush1.bf16.msra.mxu0 %v683
        %784 = vmatprep.subr.bf16.mxu0 0
        %785 = vmatpush1.bf16.msra.mxu0 %v684
        %786 = vmatprep.subr.bf16.mxu0 0
        %787 = vmatpush1.bf16.msra.mxu0 %v685
        %788 = vmatprep.subr.bf16.mxu0 0
        %789 = vmatpush1.bf16.msra.mxu0 %v686
        %790 = vmatprep.subr.bf16.mxu0 0
        %791 = vmatpush1.bf16.msra.mxu0 %v687
        %792 = vmatprep.mubr.bf16.mxu0 %v523
        %793 = vmatmul.mubr.bf16.gmra.mrb[0].mxu0 %v522
        %v794 = vpop.f32.mrb[0].mxu0
        %v795 = vadd.f32 %v755, %v794
        %v796 = vpop.f32.mrb[0].mxu0
        %v797 = vpop.f32.mrb[0].mxu0
        %v798 = vpop.f32.mrb[0].mxu0
        %799 = vdwg.mxu0
        %v800 = vmax.f32 %v795, 0.0
        %s801 = scalar_lea.vmem %s342, 256 [#allocation2]
        %v802 = vld [vmem:[%s801] sm:$0xf]
        %v803 = vld [vmem:[%s801 + $0x4] sm:$0xf]
        %v804 = vld [vmem:[%s801 + $0x8] sm:$0xf]
        %v805 = vld [vmem:[%s801 + $0xc] sm:$0xf]
        %v806 = vld [vmem:[%s801 + $0x10] sm:$0xf]
        %v807 = vld [vmem:[%s801 + $0x14] sm:$0xf]
        %v808 = vld [vmem:[%s801 + $0x18] sm:$0xf]
        %v809 = vld [vmem:[%s801 + $0x1c] sm:$0xf]
        %v810 = vld [vmem:[%s801 + $0x20] sm:$0xf]
        %v811 = vld [vmem:[%s801 + $0x24] sm:$0xf]
        %v812 = vld [vmem:[%s801 + $0x28] sm:$0xf]
        %v813 = vld [vmem:[%s801 + $0x2c] sm:$0xf]
        %v814 = vld [vmem:[%s801 + $0x30] sm:$0xf]
        %v815 = vld [vmem:[%s801 + $0x34] sm:$0xf]
        %v816 = vld [vmem:[%s801 + $0x38] sm:$0xf]
        %v817 = vld [vmem:[%s801 + $0x3c] sm:$0xf]
        %v818 = vld [vmem:[%s801 + $0x40] sm:$0xf]
        %v819 = vld [vmem:[%s801 + $0x44] sm:$0xf]
        %v820 = vld [vmem:[%s801 + $0x48] sm:$0xf]
        %v821 = vld [vmem:[%s801 + $0x4c] sm:$0xf]
        %v822 = vld [vmem:[%s801 + $0x50] sm:$0xf]
        %v823 = vld [vmem:[%s801 + $0x54] sm:$0xf]
        %v824 = vld [vmem:[%s801 + $0x58] sm:$0xf]
        %v825 = vld [vmem:[%s801 + $0x5c] sm:$0xf]
        %v826 = vld [vmem:[%s801 + $0x60] sm:$0xf]
        %v827 = vld [vmem:[%s801 + $0x64] sm:$0xf]
        %v828 = vld [vmem:[%s801 + $0x68] sm:$0xf]
        %v829 = vld [vmem:[%s801 + $0x6c] sm:$0xf]
        %v830 = vld [vmem:[%s801 + $0x70] sm:$0xf]
        %v831 = vld [vmem:[%s801 + $0x74] sm:$0xf]
        %v832 = vld [vmem:[%s801 + $0x78] sm:$0xf]
        %v833 = vld [vmem:[%s801 + $0x7c] sm:$0xf]
        %v834 = vld [vmem:[%s801 + $0x80] sm:$0xf]
        %v835 = vld [vmem:[%s801 + $0x84] sm:$0xf]
        %v836 = vld [vmem:[%s801 + $0x88] sm:$0xf]
        %v837 = vld [vmem:[%s801 + $0x8c] sm:$0xf]
        %v838 = vld [vmem:[%s801 + $0x90] sm:$0xf]
        %v839 = vld [vmem:[%s801 + $0x94] sm:$0xf]
        %v840 = vld [vmem:[%s801 + $0x98] sm:$0xf]
        %v841 = vld [vmem:[%s801 + $0x9c] sm:$0xf]
        %v842 = vld [vmem:[%s801 + $0xa0] sm:$0xf]
        %v843 = vld [vmem:[%s801 + $0xa4] sm:$0xf]
        %v844 = vld [vmem:[%s801 + $0xa8] sm:$0xf]
        %v845 = vld [vmem:[%s801 + $0xac] sm:$0xf]
        %v846 = vld [vmem:[%s801 + $0xb0] sm:$0xf]
        %v847 = vld [vmem:[%s801 + $0xb4] sm:$0xf]
        %v848 = vld [vmem:[%s801 + $0xb8] sm:$0xf]
        %v849 = vld [vmem:[%s801 + $0xbc] sm:$0xf]
        %v850 = vld [vmem:[%s801 + $0xc0] sm:$0xf]
        %v851 = vld [vmem:[%s801 + $0xc4] sm:$0xf]
        %v852 = vld [vmem:[%s801 + $0xc8] sm:$0xf]
        %v853 = vld [vmem:[%s801 + $0xcc] sm:$0xf]
        %v854 = vld [vmem:[%s801 + $0xd0] sm:$0xf]
        %v855 = vld [vmem:[%s801 + $0xd4] sm:$0xf]
        %v856 = vld [vmem:[%s801 + $0xd8] sm:$0xf]
        %v857 = vld [vmem:[%s801 + $0xdc] sm:$0xf]
        %v858 = vld [vmem:[%s801 + $0xe0] sm:$0xf]
        %v859 = vld [vmem:[%s801 + $0xe4] sm:$0xf]
        %v860 = vld [vmem:[%s801 + $0xe8] sm:$0xf]
        %v861 = vld [vmem:[%s801 + $0xec] sm:$0xf]
        %v862 = vld [vmem:[%s801 + $0xf0] sm:$0xf]
        %v863 = vld [vmem:[%s801 + $0xf4] sm:$0xf]
        %v864 = vld [vmem:[%s801 + $0xf8] sm:$0xf]
        %v865 = vld [vmem:[%s801 + $0xfc] sm:$0xf]
        %s866 = scalar_lea.vmem %s351, 1 [#allocation4]
        %v867 = vld [vmem:[%s866] sm:$0x1]
        %v869 = vlaneseq
        %v870 = vshrl.u32 %v869, 7
        %v871 = vsub.s32 0, %v870
        %v872 = vrot.slane %v867, %v871
        %v876 = vunpack.c.l.b16 %v441
        %v877 = vunpack.c.h.b16 %v441
        %v878 = vunpack.c.l.b16 %v442
        %v879 = vunpack.c.h.b16 %v442
        %v880 = vpack.c.b16 %v876, %v876
        %v881 = vpack.c.b16 %v877, %v877
        %v882 = vpack.c.b16 %v878, %v878
        %v883 = vpack.c.b16 %v879, %v879
        %v952 = vunpack.c.l.b16 %v802
        %v953 = vunpack.c.l.b16 %v803
        %v954 = vunpack.c.l.b16 %v804
        %v955 = vunpack.c.l.b16 %v805
        %v956 = vunpack.c.l.b16 %v806
        %v957 = vunpack.c.l.b16 %v807
        %v958 = vunpack.c.l.b16 %v808
        %v959 = vunpack.c.l.b16 %v809
        %v960 = vunpack.c.l.b16 %v810
        %v961 = vunpack.c.l.b16 %v811
        %v962 = vunpack.c.l.b16 %v812
        %v963 = vunpack.c.l.b16 %v813
        %v964 = vunpack.c.l.b16 %v814
        %v965 = vunpack.c.l.b16 %v815
        %v966 = vunpack.c.l.b16 %v816
        %v967 = vunpack.c.l.b16 %v817
        %v968 = vunpack.c.l.b16 %v818
        %v969 = vunpack.c.l.b16 %v819
        %v970 = vunpack.c.l.b16 %v820
        %v971 = vunpack.c.l.b16 %v821
        %v972 = vunpack.c.l.b16 %v822
        %v973 = vunpack.c.l.b16 %v823
        %v974 = vunpack.c.l.b16 %v824
        %v975 = vunpack.c.l.b16 %v825
        %v976 = vunpack.c.l.b16 %v826
        %v977 = vunpack.c.l.b16 %v827
        %v978 = vunpack.c.l.b16 %v828
        %v979 = vunpack.c.l.b16 %v829
        %v980 = vunpack.c.l.b16 %v830
        %v981 = vunpack.c.l.b16 %v831
        %v982 = vunpack.c.l.b16 %v832
        %v983 = vunpack.c.l.b16 %v833
        %v984 = vunpack.c.l.b16 %v834
        %v985 = vunpack.c.l.b16 %v835
        %v986 = vunpack.c.l.b16 %v836
        %v987 = vunpack.c.l.b16 %v837
        %v988 = vunpack.c.l.b16 %v838
        %v989 = vunpack.c.l.b16 %v839
        %v990 = vunpack.c.l.b16 %v840
        %v991 = vunpack.c.l.b16 %v841
        %v992 = vunpack.c.l.b16 %v842
        %v993 = vunpack.c.l.b16 %v843
        %v994 = vunpack.c.l.b16 %v844
        %v995 = vunpack.c.l.b16 %v845
        %v996 = vunpack.c.l.b16 %v846
        %v997 = vunpack.c.l.b16 %v847
        %v998 = vunpack.c.l.b16 %v848
        %v999 = vunpack.c.l.b16 %v849
        %v1000 = vunpack.c.l.b16 %v850
        %v1001 = vunpack.c.l.b16 %v851
        %v1002 = vunpack.c.l.b16 %v852
        %v1003 = vunpack.c.l.b16 %v853
        %v1004 = vunpack.c.l.b16 %v854
        %v1005 = vunpack.c.l.b16 %v855
        %v1006 = vunpack.c.l.b16 %v856
        %v1007 = vunpack.c.l.b16 %v857
        %v1008 = vunpack.c.l.b16 %v858
        %v1009 = vunpack.c.l.b16 %v859
        %v1010 = vunpack.c.l.b16 %v860
        %v1011 = vunpack.c.l.b16 %v861
        %v1012 = vunpack.c.l.b16 %v862
        %v1013 = vunpack.c.l.b16 %v863
        %v1014 = vunpack.c.l.b16 %v864
        %v1015 = vunpack.c.l.b16 %v865
        %v1016 = vpack.c.b16 %v953, %v952
        %v1017 = vpack.c.b16 %v955, %v954
        %v1018 = vpack.c.b16 %v957, %v956
        %v1019 = vpack.c.b16 %v959, %v958
        %v1020 = vpack.c.b16 %v961, %v960
        %v1021 = vpack.c.b16 %v963, %v962
        %v1022 = vpack.c.b16 %v965, %v964
        %v1023 = vpack.c.b16 %v967, %v966
        %v1024 = vpack.c.b16 %v969, %v968
        %v1025 = vpack.c.b16 %v971, %v970
        %v1026 = vpack.c.b16 %v973, %v972
        %v1027 = vpack.c.b16 %v975, %v974
        %v1028 = vpack.c.b16 %v977, %v976
        %v1029 = vpack.c.b16 %v979, %v978
        %v1030 = vpack.c.b16 %v981, %v980
        %v1031 = vpack.c.b16 %v983, %v982
        %v1032 = vpack.c.b16 %v985, %v984
        %v1033 = vpack.c.b16 %v987, %v986
        %v1034 = vpack.c.b16 %v989, %v988
        %v1035 = vpack.c.b16 %v991, %v990
        %v1036 = vpack.c.b16 %v993, %v992
        %v1037 = vpack.c.b16 %v995, %v994
        %v1038 = vpack.c.b16 %v997, %v996
        %v1039 = vpack.c.b16 %v999, %v998
        %v1040 = vpack.c.b16 %v1001, %v1000
        %v1041 = vpack.c.b16 %v1003, %v1002
        %v1042 = vpack.c.b16 %v1005, %v1004
        %v1043 = vpack.c.b16 %v1007, %v1006
        %v1044 = vpack.c.b16 %v1009, %v1008
        %v1045 = vpack.c.b16 %v1011, %v1010
        %v1046 = vpack.c.b16 %v1013, %v1012
        %v1047 = vpack.c.b16 %v1015, %v1014
        %1080 = vmatprep.subr.bf16.mxu0 0
        %1081 = vmatpush1.bf16.msra.mxu0 %v1016
        %1082 = vmatprep.subr.bf16.mxu0 0
        %1083 = vmatpush1.bf16.msra.mxu0 %v1017
        %1084 = vmatprep.subr.bf16.mxu0 0
        %1085 = vmatpush1.bf16.msra.mxu0 %v1018
        %1086 = vmatprep.subr.bf16.mxu0 0
        %1087 = vmatpush1.bf16.msra.mxu0 %v1019
        %1088 = vmatprep.subr.bf16.mxu0 0
        %1089 = vmatpush1.bf16.msra.mxu0 %v1020
        %1090 = vmatprep.subr.bf16.mxu0 0
        %1091 = vmatpush1.bf16.msra.mxu0 %v1021
        %1092 = vmatprep.subr.bf16.mxu0 0
        %1093 = vmatpush1.bf16.msra.mxu0 %v1022
        %1094 = vmatprep.subr.bf16.mxu0 0
        %1095 = vmatpush1.bf16.msra.mxu0 %v1023
        %1096 = vmatprep.subr.bf16.mxu0 0
        %1097 = vmatpush1.bf16.msra.mxu0 %v1024
        %1098 = vmatprep.subr.bf16.mxu0 0
        %1099 = vmatpush1.bf16.msra.mxu0 %v1025
        %1100 = vmatprep.subr.bf16.mxu0 0
        %1101 = vmatpush1.bf16.msra.mxu0 %v1026
        %1102 = vmatprep.subr.bf16.mxu0 0
        %1103 = vmatpush1.bf16.msra.mxu0 %v1027
        %1104 = vmatprep.subr.bf16.mxu0 0
        %1105 = vmatpush1.bf16.msra.mxu0 %v1028
        %1106 = vmatprep.subr.bf16.mxu0 0
        %1107 = vmatpush1.bf16.msra.mxu0 %v1029
        %1108 = vmatprep.subr.bf16.mxu0 0
        %1109 = vmatpush1.bf16.msra.mxu0 %v1030
        %1110 = vmatprep.subr.bf16.mxu0 0
        %1111 = vmatpush1.bf16.msra.mxu0 %v1031
        %1112 = vmatprep.mubr.bf16.mxu0 %v881
        %1113 = vmatmul.mubr.bf16.gmra.mrb[0].mxu0 %v880
        %v1114 = vpop.f32.mrb[0].mxu0
        %v1115 = vadd.f32 %v872, %v1114
        %v1116 = vpop.f32.mrb[0].mxu0
        %v1117 = vpop.f32.mrb[0].mxu0
        %v1118 = vpop.f32.mrb[0].mxu0
        %1119 = vdwg.mxu0
        %1120 = vmatprep.subr.bf16.mxu0 0
        %1121 = vmatpush1.bf16.msra.mxu0 %v1032
        %1122 = vmatprep.subr.bf16.mxu0 0
        %1123 = vmatpush1.bf16.msra.mxu0 %v1033
        %1124 = vmatprep.subr.bf16.mxu0 0
        %1125 = vmatpush1.bf16.msra.mxu0 %v1034
        %1126 = vmatprep.subr.bf16.mxu0 0
        %1127 = vmatpush1.bf16.msra.mxu0 %v1035
        %1128 = vmatprep.subr.bf16.mxu0 0
        %1129 = vmatpush1.bf16.msra.mxu0 %v1036
        %1130 = vmatprep.subr.bf16.mxu0 0
        %1131 = vmatpush1.bf16.msra.mxu0 %v1037
        %1132 = vmatprep.subr.bf16.mxu0 0
        %1133 = vmatpush1.bf16.msra.mxu0 %v1038
        %1134 = vmatprep.subr.bf16.mxu0 0
        %1135 = vmatpush1.bf16.msra.mxu0 %v1039
        %1136 = vmatprep.subr.bf16.mxu0 0
        %1137 = vmatpush1.bf16.msra.mxu0 %v1040
        %1138 = vmatprep.subr.bf16.mxu0 0
        %1139 = vmatpush1.bf16.msra.mxu0 %v1041
        %1140 = vmatprep.subr.bf16.mxu0 0
        %1141 = vmatpush1.bf16.msra.mxu0 %v1042
        %1142 = vmatprep.subr.bf16.mxu0 0
        %1143 = vmatpush1.bf16.msra.mxu0 %v1043
        %1144 = vmatprep.subr.bf16.mxu0 0
        %1145 = vmatpush1.bf16.msra.mxu0 %v1044
        %1146 = vmatprep.subr.bf16.mxu0 0
        %1147 = vmatpush1.bf16.msra.mxu0 %v1045
        %1148 = vmatprep.subr.bf16.mxu0 0
        %1149 = vmatpush1.bf16.msra.mxu0 %v1046
        %1150 = vmatprep.subr.bf16.mxu0 0
        %1151 = vmatpush1.bf16.msra.mxu0 %v1047
        %1152 = vmatprep.mubr.bf16.mxu0 %v883
        %1153 = vmatmul.mubr.bf16.gmra.mrb[0].mxu0 %v882
        %v1154 = vpop.f32.mrb[0].mxu0
        %v1155 = vadd.f32 %v1115, %v1154
        %v1156 = vpop.f32.mrb[0].mxu0
        %v1157 = vpop.f32.mrb[0].mxu0
        %v1158 = vpop.f32.mrb[0].mxu0
        %1159 = vdwg.mxu0
        %v1160 = vmax.f32 %v1155, 0.0
        %v1161 = vpack.c.bf16 %v800, %v800
        %v1162 = vld [vmem:[%s360] sm:$0xf]
        %v1163 = vld [vmem:[%s360 + $0x4] sm:$0xf]
        %v1164 = vld [vmem:[%s360 + $0x8] sm:$0xf]
        %v1165 = vld [vmem:[%s360 + $0xc] sm:$0xf]
        %v1166 = vld [vmem:[%s360 + $0x10] sm:$0xf]
        %v1167 = vld [vmem:[%s360 + $0x14] sm:$0xf]
        %v1168 = vld [vmem:[%s360 + $0x18] sm:$0xf]
        %v1169 = vld [vmem:[%s360 + $0x1c] sm:$0xf]
        %v1170 = vld [vmem:[%s360 + $0x20] sm:$0xf]
        %v1171 = vld [vmem:[%s360 + $0x24] sm:$0xf]
        %v1172 = vld [vmem:[%s360 + $0x28] sm:$0xf]
        %v1173 = vld [vmem:[%s360 + $0x2c] sm:$0xf]
        %v1174 = vld [vmem:[%s360 + $0x30] sm:$0xf]
        %v1175 = vld [vmem:[%s360 + $0x34] sm:$0xf]
        %v1176 = vld [vmem:[%s360 + $0x38] sm:$0xf]
        %v1177 = vld [vmem:[%s360 + $0x3c] sm:$0xf]
        %v1178 = vpack.c.bf16 %v1160, %v1160
        %v1179 = vld [vmem:[%s369] sm:$0xf]
        %v1180 = vld [vmem:[%s369 + $0x4] sm:$0xf]
        %v1181 = vld [vmem:[%s369 + $0x8] sm:$0xf]
        %v1182 = vld [vmem:[%s369 + $0xc] sm:$0xf]
        %v1183 = vld [vmem:[%s369 + $0x10] sm:$0xf]
        %v1184 = vld [vmem:[%s369 + $0x14] sm:$0xf]
        %v1185 = vld [vmem:[%s369 + $0x18] sm:$0xf]
        %v1186 = vld [vmem:[%s369 + $0x1c] sm:$0xf]
        %v1187 = vld [vmem:[%s369 + $0x20] sm:$0xf]
        %v1188 = vld [vmem:[%s369 + $0x24] sm:$0xf]
        %v1189 = vld [vmem:[%s369 + $0x28] sm:$0xf]
        %v1190 = vld [vmem:[%s369 + $0x2c] sm:$0xf]
        %v1191 = vld [vmem:[%s369 + $0x30] sm:$0xf]
        %v1192 = vld [vmem:[%s369 + $0x34] sm:$0xf]
        %v1193 = vld [vmem:[%s369 + $0x38] sm:$0xf]
        %v1194 = vld [vmem:[%s369 + $0x3c] sm:$0xf]
        %v1211 = vunpack.c.l.b16 %v1179
        %v1212 = vunpack.c.l.b16 %v1180
        %v1213 = vunpack.c.l.b16 %v1181
        %v1214 = vunpack.c.l.b16 %v1182
        %v1215 = vunpack.c.l.b16 %v1183
        %v1216 = vunpack.c.l.b16 %v1184
        %v1217 = vunpack.c.l.b16 %v1185
        %v1218 = vunpack.c.l.b16 %v1186
        %v1219 = vunpack.c.l.b16 %v1187
        %v1220 = vunpack.c.l.b16 %v1188
        %v1221 = vunpack.c.l.b16 %v1189
        %v1222 = vunpack.c.l.b16 %v1190
        %v1223 = vunpack.c.l.b16 %v1191
        %v1224 = vunpack.c.l.b16 %v1192
        %v1225 = vunpack.c.l.b16 %v1193
        %v1226 = vunpack.c.l.b16 %v1194
        %v1227 = vpack.c.b16 %v1212, %v1211
        %v1228 = vpack.c.b16 %v1214, %v1213
        %v1229 = vpack.c.b16 %v1216, %v1215
        %v1230 = vpack.c.b16 %v1218, %v1217
        %v1231 = vpack.c.b16 %v1220, %v1219
        %v1232 = vpack.c.b16 %v1222, %v1221
        %v1233 = vpack.c.b16 %v1224, %v1223
        %v1234 = vpack.c.b16 %v1226, %v1225
        %1243 = vmatprep.subr.bf16.mxu0 0
        %1244 = vmatpush1.bf16.msra.mxu0 %v1227
        %1245 = vmatprep.subr.bf16.mxu0 0
        %1246 = vmatpush1.bf16.msra.mxu0 %v1228
        %1247 = vmatprep.subr.bf16.mxu0 0
        %1248 = vmatpush1.bf16.msra.mxu0 %v1229
        %1249 = vmatprep.subr.bf16.mxu0 0
        %1250 = vmatpush1.bf16.msra.mxu0 %v1230
        %1251 = vmatprep.subr.bf16.mxu0 0
        %1252 = vmatpush1.bf16.msra.mxu0 %v1231
        %1253 = vmatprep.subr.bf16.mxu0 0
        %1254 = vmatpush1.bf16.msra.mxu0 %v1232
        %1255 = vmatprep.subr.bf16.mxu0 0
        %1256 = vmatpush1.bf16.msra.mxu0 %v1233
        %1257 = vmatprep.subr.bf16.mxu0 0
        %1258 = vmatpush1.bf16.msra.mxu0 %v1234
        %1259 = vmatprep.subr.bf16.mxu0 0
        %1260 = vmatpush1.bf16.msra.mxu0 0
        %1261 = vmatprep.subr.bf16.mxu0 0
        %1262 = vmatpush1.bf16.msra.mxu0 0
        %1263 = vmatprep.subr.bf16.mxu0 0
        %1264 = vmatpush1.bf16.msra.mxu0 0
        %1265 = vmatprep.subr.bf16.mxu0 0
        %1266 = vmatpush1.bf16.msra.mxu0 0
        %1267 = vmatprep.subr.bf16.mxu0 0
        %1268 = vmatpush1.bf16.msra.mxu0 0
        %1269 = vmatprep.subr.bf16.mxu0 0
        %1270 = vmatpush1.bf16.msra.mxu0 0
        %1271 = vmatprep.subr.bf16.mxu0 0
        %1272 = vmatpush1.bf16.msra.mxu0 0
        %1273 = vmatprep.subr.bf16.mxu0 0
        %1274 = vmatpush1.bf16.msra.mxu0 0
        %1275 = vmatprep.mubr.bf16.mxu0 0
        %1276 = vmatmul.mubr.bf16.gmra.mrb[0].mxu0 %v1178
        %v1277 = vpop.f32.mrb[0].mxu0
        %v1278 = vadd.f32 0.0, %v1277
        %v1279 = vpop.f32.mrb[0].mxu0
        %v1280 = vpop.f32.mrb[0].mxu0
        %v1281 = vpop.f32.mrb[0].mxu0
        %1282 = vdwg.mxu0
        %v1299 = vunpack.c.l.b16 %v1162
        %v1300 = vunpack.c.l.b16 %v1163
        %v1301 = vunpack.c.l.b16 %v1164
        %v1302 = vunpack.c.l.b16 %v1165
        %v1303 = vunpack.c.l.b16 %v1166
        %v1304 = vunpack.c.l.b16 %v1167
        %v1305 = vunpack.c.l.b16 %v1168
        %v1306 = vunpack.c.l.b16 %v1169
        %v1307 = vunpack.c.l.b16 %v1170
        %v1308 = vunpack.c.l.b16 %v1171
        %v1309 = vunpack.c.l.b16 %v1172
        %v1310 = vunpack.c.l.b16 %v1173
        %v1311 = vunpack.c.l.b16 %v1174
        %v1312 = vunpack.c.l.b16 %v1175
        %v1313 = vunpack.c.l.b16 %v1176
        %v1314 = vunpack.c.l.b16 %v1177
        %v1315 = vpack.c.b16 %v1300, %v1299
        %v1316 = vpack.c.b16 %v1302, %v1301
        %v1317 = vpack.c.b16 %v1304, %v1303
        %v1318 = vpack.c.b16 %v1306, %v1305
        %v1319 = vpack.c.b16 %v1308, %v1307
        %v1320 = vpack.c.b16 %v1310, %v1309
        %v1321 = vpack.c.b16 %v1312, %v1311
        %v1322 = vpack.c.b16 %v1314, %v1313
        %1331 = vmatprep.subr.bf16.mxu0 0
        %1332 = vmatpush1.bf16.msra.mxu0 %v1315
        %1333 = vmatprep.subr.bf16.mxu0 0
        %1334 = vmatpush1.bf16.msra.mxu0 %v1316
        %1335 = vmatprep.subr.bf16.mxu0 0
        %1336 = vmatpush1.bf16.msra.mxu0 %v1317
        %1337 = vmatprep.subr.bf16.mxu0 0
        %1338 = vmatpush1.bf16.msra.mxu0 %v1318
        %1339 = vmatprep.subr.bf16.mxu0 0
        %1340 = vmatpush1.bf16.msra.mxu0 %v1319
        %1341 = vmatprep.subr.bf16.mxu0 0
        %1342 = vmatpush1.bf16.msra.mxu0 %v1320
        %1343 = vmatprep.subr.bf16.mxu0 0
        %1344 = vmatpush1.bf16.msra.mxu0 %v1321
        %1345 = vmatprep.subr.bf16.mxu0 0
        %1346 = vmatpush1.bf16.msra.mxu0 %v1322
        %1347 = vmatprep.subr.bf16.mxu0 0
        %1348 = vmatpush1.bf16.msra.mxu0 0
        %1349 = vmatprep.subr.bf16.mxu0 0
        %1350 = vmatpush1.bf16.msra.mxu0 0
        %1351 = vmatprep.subr.bf16.mxu0 0
        %1352 = vmatpush1.bf16.msra.mxu0 0
        %1353 = vmatprep.subr.bf16.mxu0 0
        %1354 = vmatpush1.bf16.msra.mxu0 0
        %1355 = vmatprep.subr.bf16.mxu0 0
        %1356 = vmatpush1.bf16.msra.mxu0 0
        %1357 = vmatprep.subr.bf16.mxu0 0
        %1358 = vmatpush1.bf16.msra.mxu0 0
        %1359 = vmatprep.subr.bf16.mxu0 0
        %1360 = vmatpush1.bf16.msra.mxu0 0
        %1361 = vmatprep.subr.bf16.mxu0 0
        %1362 = vmatpush1.bf16.msra.mxu0 0
        %1363 = vmatprep.mubr.bf16.mxu0 0
        %1364 = vmatmul.mubr.bf16.gmra.mrb[0].mxu0 %v1161
        %v1365 = vpop.f32.mrb[0].mxu0
        %v1366 = vadd.f32 %v1278, %v1365
        %v1367 = vpop.f32.mrb[0].mxu0
        %v1368 = vpop.f32.mrb[0].mxu0
        %v1369 = vpop.f32.mrb[0].mxu0
        %1370 = vdwg.mxu0
        %v1371 = vld [vmem:[%s377] sm:$0x1]
        %v1373 = vlaneseq
        %v1374 = vshrl.u32 %v1373, 7
        %v1375 = vsub.s32 0, %v1374
        %v1376 = vrot.slane %v1371, %v1375
        %v1378 = vadd.f32 %v1366, %v1376
        %v1379 = vmax.f32 %v1378, 0.0
        %v1380 = vadd.f32 %v1379, %v800
        %1381 = vst [vmem:[%s437] sm:$0xff] %v1380
        %p1382 = scmp.lt.s32.totalorder %s26, 14
        %s1383 = scalar_select %p1382, %s26, 14
        %s1384 = smul.addr %s1383, 8
        %s1385 = scalar_lea.vmem %s6, %s1384
        // Predicated region
        $region65: #{relation_model_forward.3} parent=43 // pred_check
          %p1386 = pneg %p200
        $region66: #{relation_model_forward.3} parent=43 // pred_check_branch
          %1388 = sbr.rel (%p1386) target = $region68
        $region67: #{relation_model_forward.3} parent=43 // pred_region
          _
        $region68: #{relation_model_forward.3} parent=43 // pred_fallthru
          _
      $region44: #{relation_model_forward.3} parent=5 // pred_fallthru
        _
      %p1389 = scmp.le.s32.totalorder 2, %s21
      // Predicated region
      $region69: #{relation_model_forward.3} parent=5 // pred_check
        %p1390 = pneg %p1389
      $region70: #{relation_model_forward.3} parent=5 // pred_check_branch
        %1392 = sbr.rel (%p1390) target = $region72
      $region71: #{relation_model_forward.3} parent=5 // pred_region
        %s1393 = ssub.s32 %s21, 2
        // Predicated region
        $region73: #{relation_model_forward.3} parent=71 // pred_check
          %p1394 = pneg %p206
        $region74: #{relation_model_forward.3} parent=71 // pred_check_branch
          %1396 = sbr.rel (%p1394) target = $region76
        $region75: #{relation_model_forward.3} parent=71 // pred_region
          %p1397 = scmp.lt.s32.totalorder %s27, 14
          %s1398 = scalar_select %p1397, %s27, 14
          %s1399 = smul.addr %s1398, 8
          %s1400 = scalar_lea.vmem %s6, %s1399
        $region76: #{relation_model_forward.3} parent=71 // pred_fallthru
          _
      $region72: #{relation_model_forward.3} parent=5 // pred_fallthru
        _
    $region6: #{relation_model_forward.3} parent=1 // loop_footer
      %s25 = sadd.s32 1, %s21
    $region7: #{relation_model_forward.3} parent=1 // loop_footer_branch
      %20 = sbr.rel target = $region3
    $region8: #{relation_model_forward.3} parent=1 // loop_exit
      _
    %1401 = vsyncpa [#allocation3], 1
    %s1402 = scalar_lea.sflag [#allocation3], 1
    %1403 = vsyncpa %s1402, 1
    %1404 = vsyncpa [#allocation5], 1
    %s1405 = scalar_lea.sflag [#allocation5], 1
    %1406 = vsyncpa %s1405, 1
    %1407 = vsyncpa [#allocation8], 1
    %s1408 = scalar_lea.sflag [#allocation8], 1
    %1409 = vsyncpa %s1408, 1

// kernel: relation_model_forward.2
$region0: #{relation_model_forward.2}
  #allocation0 [shape = 'u32[]', space=smem, size = 0x4, offset = 0x4, fixed_abs, tag = 'smem constant byte address 0x4 - core index']
  #allocation1 [shape = 'u32[144,128]{1,0:T(1,128)}', space=vmem, size = 0x12000, scoped, tag = 'internal scratch']
  %s0 = inlined_call_operand.vmem [shape: f32[8,48,512], index: 0, kind: input, shape index: {}]
  %s1 = inlined_call_operand.vmem [shape: bf16[15,16,512], index: 1, kind: output, shape index: {}]
  %s2 = sld [smem:[#allocation0]]
  $region14: #{relation_model_forward.2} parent=0
    _
  %s4 = ssub.s32 1, %s2
  %s5 = scalar_select 0, %s4, %s2
  // Predicated region
  $region2: #{relation_model_forward.2} parent=0 // pred_check
    _
  $region3: #{relation_model_forward.2} parent=0 // pred_check_branch
    %7 = sbr.rel (0) target = $region5
  $region4: #{relation_model_forward.2} parent=0 // pred_region
    _
  $region5: #{relation_model_forward.2} parent=0 // pred_fallthru
    _
  %v8 = vld [vmem:[%s0] sm:$0xff]
  %v9 = vld [vmem:[%s0 + $0x8] sm:$0xff]
  %v10 = vld [vmem:[%s0 + $0x10] sm:$0xff]
  %v11 = vld [vmem:[%s0 + $0x18] sm:$0xff]
  %v12 = vld [vmem:[%s0 + $0x20] sm:$0xff]
  %v13 = vld [vmem:[%s0 + $0x28] sm:$0xff]
  %v14 = vld [vmem:[%s0 + $0x30] sm:$0xff]
  %v15 = vld [vmem:[%s0 + $0x38] sm:$0xff]
  %v16 = vld [vmem:[%s0 + $0x40] sm:$0xff]
  %v17 = vld [vmem:[%s0 + $0x48] sm:$0xff]
  %v18 = vld [vmem:[%s0 + $0x50] sm:$0xff]
  %v19 = vld [vmem:[%s0 + $0x58] sm:$0xff]
  %v20 = vld [vmem:[%s0 + $0x60] sm:$0xff]
  %v21 = vld [vmem:[%s0 + $0x68] sm:$0xff]
  %v22 = vld [vmem:[%s0 + $0x70] sm:$0xff]
  %v23 = vld [vmem:[%s0 + $0x78] sm:$0xff]
  %v24 = vld [vmem:[%s0 + $0x80] sm:$0xff]
  %v25 = vld [vmem:[%s0 + $0x88] sm:$0xff]
  %v26 = vld [vmem:[%s0 + $0x90] sm:$0xff]
  %v27 = vld [vmem:[%s0 + $0x98] sm:$0xff]
  %v28 = vld [vmem:[%s0 + $0xa0] sm:$0xff]
  %v29 = vld [vmem:[%s0 + $0xa8] sm:$0xff]
  %v30 = vld [vmem:[%s0 + $0xb0] sm:$0xff]
  %v31 = vld [vmem:[%s0 + $0xb8] sm:$0xff]
  %v32 = vld [vmem:[%s0 + $0xc0] sm:$0xff]
  %v33 = vld [vmem:[%s0 + $0xc8] sm:$0xff]
  %v34 = vld [vmem:[%s0 + $0xd0] sm:$0xff]
  %v35 = vld [vmem:[%s0 + $0xd8] sm:$0xff]
  %v36 = vld [vmem:[%s0 + $0xe0] sm:$0xff]
  %v37 = vld [vmem:[%s0 + $0xe8] sm:$0xff]
  %v38 = vld [vmem:[%s0 + $0xf0] sm:$0xff]
  %v39 = vld [vmem:[%s0 + $0xf8] sm:$0xff]
  %v40 = vld [vmem:[%s0 + $0x100] sm:$0xff]
  %v41 = vld [vmem:[%s0 + $0x108] sm:$0xff]
  %v42 = vld [vmem:[%s0 + $0x110] sm:$0xff]
  %v43 = vld [vmem:[%s0 + $0x118] sm:$0xff]
  %v44 = vld [vmem:[%s0 + $0x120] sm:$0xff]
  %v45 = vld [vmem:[%s0 + $0x128] sm:$0xff]
  %v46 = vld [vmem:[%s0 + $0x130] sm:$0xff]
  %v47 = vld [vmem:[%s0 + $0x138] sm:$0xff]
  %v48 = vld [vmem:[%s0 + $0x140] sm:$0xff]
  %v49 = vld [vmem:[%s0 + $0x148] sm:$0xff]
  %v50 = vld [vmem:[%s0 + $0x150] sm:$0xff]
  %v51 = vld [vmem:[%s0 + $0x158] sm:$0xff]
  %v52 = vld [vmem:[%s0 + $0x160] sm:$0xff]
  %v53 = vld [vmem:[%s0 + $0x168] sm:$0xff]
  %v54 = vld [vmem:[%s0 + $0x170] sm:$0xff]
  %v55 = vld [vmem:[%s0 + $0x178] sm:$0xff]
  %v56 = vld [vmem:[%s0 + $0x180] sm:$0xff]
  %v57 = vld [vmem:[%s0 + $0x188] sm:$0xff]
  %v58 = vld [vmem:[%s0 + $0x190] sm:$0xff]
  %v59 = vld [vmem:[%s0 + $0x198] sm:$0xff]
  %v60 = vld [vmem:[%s0 + $0x1a0] sm:$0xff]
  %v61 = vld [vmem:[%s0 + $0x1a8] sm:$0xff]
  %v62 = vld [vmem:[%s0 + $0x1b0] sm:$0xff]
  %v63 = vld [vmem:[%s0 + $0x1b8] sm:$0xff]
  %v64 = vld [vmem:[%s0 + $0x1c0] sm:$0xff]
  %v65 = vld [vmem:[%s0 + $0x1c8] sm:$0xff]
  %v66 = vld [vmem:[%s0 + $0x1d0] sm:$0xff]
  %v67 = vld [vmem:[%s0 + $0x1d8] sm:$0xff]
  %v68 = vld [vmem:[%s0 + $0x1e0] sm:$0xff]
  %v69 = vld [vmem:[%s0 + $0x1e8] sm:$0xff]
  %v70 = vld [vmem:[%s0 + $0x1f0] sm:$0xff]
  %v71 = vld [vmem:[%s0 + $0x1f8] sm:$0xff]
  %v72 = vld [vmem:[%s0 + $0x200] sm:$0xff]
  %v73 = vld [vmem:[%s0 + $0x208] sm:$0xff]
  %v74 = vld [vmem:[%s0 + $0x210] sm:$0xff]
  %v75 = vld [vmem:[%s0 + $0x218] sm:$0xff]
  %v76 = vld [vmem:[%s0 + $0x220] sm:$0xff]
  %v77 = vld [vmem:[%s0 + $0x228] sm:$0xff]
  %v78 = vld [vmem:[%s0 + $0x230] sm:$0xff]
  %v79 = vld [vmem:[%s0 + $0x238] sm:$0xff]
  %v80 = vld [vmem:[%s0 + $0x240] sm:$0xff]
  %v81 = vld [vmem:[%s0 + $0x248] sm:$0xff]
  %v82 = vld [vmem:[%s0 + $0x250] sm:$0xff]
  %v83 = vld [vmem:[%s0 + $0x258] sm:$0xff]
  %v84 = vld [vmem:[%s0 + $0x260] sm:$0xff]
  %v85 = vld [vmem:[%s0 + $0x268] sm:$0xff]
  %v86 = vld [vmem:[%s0 + $0x270] sm:$0xff]
  %v87 = vld [vmem:[%s0 + $0x278] sm:$0xff]
  %v88 = vld [vmem:[%s0 + $0x280] sm:$0xff]
  %v89 = vld [vmem:[%s0 + $0x288] sm:$0xff]
  %v90 = vld [vmem:[%s0 + $0x290] sm:$0xff]
  %v91 = vld [vmem:[%s0 + $0x298] sm:$0xff]
  %v92 = vld [vmem:[%s0 + $0x2a0] sm:$0xff]
  %v93 = vld [vmem:[%s0 + $0x2a8] sm:$0xff]
  %v94 = vld [vmem:[%s0 + $0x2b0] sm:$0xff]
  %v95 = vld [vmem:[%s0 + $0x2b8] sm:$0xff]
  %v96 = vld [vmem:[%s0 + $0x2c0] sm:$0xff]
  %v97 = vld [vmem:[%s0 + $0x2c8] sm:$0xff]
  %v98 = vld [vmem:[%s0 + $0x2d0] sm:$0xff]
  %v99 = vld [vmem:[%s0 + $0x2d8] sm:$0xff]
  %v100 = vld [vmem:[%s0 + $0x2e0] sm:$0xff]
  %v101 = vld [vmem:[%s0 + $0x2e8] sm:$0xff]
  %v102 = vld [vmem:[%s0 + $0x2f0] sm:$0xff]
  %v103 = vld [vmem:[%s0 + $0x2f8] sm:$0xff]
  %v104 = vld [vmem:[%s0 + $0x300] sm:$0xff]
  %v105 = vld [vmem:[%s0 + $0x308] sm:$0xff]
  %v106 = vld [vmem:[%s0 + $0x310] sm:$0xff]
  %v107 = vld [vmem:[%s0 + $0x318] sm:$0xff]
  %v108 = vld [vmem:[%s0 + $0x320] sm:$0xff]
  %v109 = vld [vmem:[%s0 + $0x328] sm:$0xff]
  %v110 = vld [vmem:[%s0 + $0x330] sm:$0xff]
  %v111 = vld [vmem:[%s0 + $0x338] sm:$0xff]
  %v112 = vld [vmem:[%s0 + $0x340] sm:$0xff]
  %v113 = vld [vmem:[%s0 + $0x348] sm:$0xff]
  %v114 = vld [vmem:[%s0 + $0x350] sm:$0xff]
  %v115 = vld [vmem:[%s0 + $0x358] sm:$0xff]
  %v116 = vld [vmem:[%s0 + $0x360] sm:$0xff]
  %v117 = vld [vmem:[%s0 + $0x368] sm:$0xff]
  %v118 = vld [vmem:[%s0 + $0x370] sm:$0xff]
  %v119 = vld [vmem:[%s0 + $0x378] sm:$0xff]
  %v120 = vld [vmem:[%s0 + $0x380] sm:$0xff]
  %v121 = vld [vmem:[%s0 + $0x388] sm:$0xff]
  %v122 = vld [vmem:[%s0 + $0x390] sm:$0xff]
  %v123 = vld [vmem:[%s0 + $0x398] sm:$0xff]
  %v124 = vld [vmem:[%s0 + $0x3a0] sm:$0xff]
  %v125 = vld [vmem:[%s0 + $0x3a8] sm:$0xff]
  %v126 = vld [vmem:[%s0 + $0x3b0] sm:$0xff]
  %v127 = vld [vmem:[%s0 + $0x3b8] sm:$0xff]
  %v128 = vld [vmem:[%s0 + $0x3c0] sm:$0xff]
  %v129 = vld [vmem:[%s0 + $0x3c8] sm:$0xff]
  %v130 = vld [vmem:[%s0 + $0x3d0] sm:$0xff]
  %v131 = vld [vmem:[%s0 + $0x3d8] sm:$0xff]
  %v132 = vld [vmem:[%s0 + $0x3e0] sm:$0xff]
  %v133 = vld [vmem:[%s0 + $0x3e8] sm:$0xff]
  %v134 = vld [vmem:[%s0 + $0x3f0] sm:$0xff]
  %v135 = vld [vmem:[%s0 + $0x3f8] sm:$0xff]
  %v136 = vld [vmem:[%s0 + $0x400] sm:$0xff]
  %v137 = vld [vmem:[%s0 + $0x408] sm:$0xff]
  %v138 = vld [vmem:[%s0 + $0x410] sm:$0xff]
  %v139 = vld [vmem:[%s0 + $0x418] sm:$0xff]
  %v140 = vld [vmem:[%s0 + $0x420] sm:$0xff]
  %v141 = vld [vmem:[%s0 + $0x428] sm:$0xff]
  %v142 = vld [vmem:[%s0 + $0x430] sm:$0xff]
  %v143 = vld [vmem:[%s0 + $0x438] sm:$0xff]
  %v144 = vld [vmem:[%s0 + $0x440] sm:$0xff]
  %v145 = vld [vmem:[%s0 + $0x448] sm:$0xff]
  %v146 = vld [vmem:[%s0 + $0x450] sm:$0xff]
  %v147 = vld [vmem:[%s0 + $0x458] sm:$0xff]
  %v148 = vld [vmem:[%s0 + $0x460] sm:$0xff]
  %v149 = vld [vmem:[%s0 + $0x468] sm:$0xff]
  %v150 = vld [vmem:[%s0 + $0x470] sm:$0xff]
  %v151 = vld [vmem:[%s0 + $0x478] sm:$0xff]
  %v152 = vld [vmem:[%s0 + $0x480] sm:$0xff]
  %v153 = vld [vmem:[%s0 + $0x488] sm:$0xff]
  %v154 = vld [vmem:[%s0 + $0x490] sm:$0xff]
  %v155 = vld [vmem:[%s0 + $0x498] sm:$0xff]
  %v156 = vld [vmem:[%s0 + $0x4a0] sm:$0xff]
  %v157 = vld [vmem:[%s0 + $0x4a8] sm:$0xff]
  %v158 = vld [vmem:[%s0 + $0x4b0] sm:$0xff]
  %v159 = vld [vmem:[%s0 + $0x4b8] sm:$0xff]
  %v160 = vld [vmem:[%s0 + $0x4c0] sm:$0xff]
  %v161 = vld [vmem:[%s0 + $0x4c8] sm:$0xff]
  %v162 = vld [vmem:[%s0 + $0x4d0] sm:$0xff]
  %v163 = vld [vmem:[%s0 + $0x4d8] sm:$0xff]
  %v164 = vld [vmem:[%s0 + $0x4e0] sm:$0xff]
  %v165 = vld [vmem:[%s0 + $0x4e8] sm:$0xff]
  %v166 = vld [vmem:[%s0 + $0x4f0] sm:$0xff]
  %v167 = vld [vmem:[%s0 + $0x4f8] sm:$0xff]
  %v168 = vld [vmem:[%s0 + $0x500] sm:$0xff]
  %v169 = vld [vmem:[%s0 + $0x508] sm:$0xff]
  %v170 = vld [vmem:[%s0 + $0x510] sm:$0xff]
  %v171 = vld [vmem:[%s0 + $0x518] sm:$0xff]
  %v172 = vld [vmem:[%s0 + $0x520] sm:$0xff]
  %v173 = vld [vmem:[%s0 + $0x528] sm:$0xff]
  %v174 = vld [vmem:[%s0 + $0x530] sm:$0xff]
  %v175 = vld [vmem:[%s0 + $0x538] sm:$0xff]
  %v176 = vld [vmem:[%s0 + $0x540] sm:$0xff]
  %v177 = vld [vmem:[%s0 + $0x548] sm:$0xff]
  %v178 = vld [vmem:[%s0 + $0x550] sm:$0xff]
  %v179 = vld [vmem:[%s0 + $0x558] sm:$0xff]
  %v180 = vld [vmem:[%s0 + $0x560] sm:$0xff]
  %v181 = vld [vmem:[%s0 + $0x568] sm:$0xff]
  %v182 = vld [vmem:[%s0 + $0x570] sm:$0xff]
  %v183 = vld [vmem:[%s0 + $0x578] sm:$0xff]
  %v184 = vld [vmem:[%s0 + $0x580] sm:$0xff]
  %v185 = vld [vmem:[%s0 + $0x588] sm:$0xff]
  %v186 = vld [vmem:[%s0 + $0x590] sm:$0xff]
  %v187 = vld [vmem:[%s0 + $0x598] sm:$0xff]
  %v188 = vld [vmem:[%s0 + $0x5a0] sm:$0xff]
  %v189 = vld [vmem:[%s0 + $0x5a8] sm:$0xff]
  %v190 = vld [vmem:[%s0 + $0x5b0] sm:$0xff]
  %v191 = vld [vmem:[%s0 + $0x5b8] sm:$0xff]
  %v192 = vld [vmem:[%s0 + $0x5c0] sm:$0xff]
  %v193 = vld [vmem:[%s0 + $0x5c8] sm:$0xff]
  %v194 = vld [vmem:[%s0 + $0x5d0] sm:$0xff]
  %v195 = vld [vmem:[%s0 + $0x5d8] sm:$0xff]
  %v196 = vld [vmem:[%s0 + $0x5e0] sm:$0xff]
  %v197 = vld [vmem:[%s0 + $0x5e8] sm:$0xff]
  %v198 = vld [vmem:[%s0 + $0x5f0] sm:$0xff]
  %v199 = vld [vmem:[%s0 + $0x5f8] sm:$0xff]
  %v200 = vrot.slane %v8, 4
  %v201 = vmax.f32 %v8, %v200
  %v202 = vrot.slane %v201, 2
  %v203 = vmax.f32 %v201, %v202
  %v204 = vrot.slane %v203, 1
  %v205 = vmax.f32 %v203, %v204
  %v206 = vrot.slane %v9, 4
  %v207 = vmax.f32 %v9, %v206
  %v208 = vrot.slane %v207, 2
  %v209 = vmax.f32 %v207, %v208
  %v210 = vrot.slane %v209, 1
  %v211 = vmax.f32 %v209, %v210
  %v212 = vrot.slane %v10, 4
  %v213 = vmax.f32 %v10, %v212
  %v214 = vrot.slane %v213, 2
  %v215 = vmax.f32 %v213, %v214
  %v216 = vrot.slane %v215, 1
  %v217 = vmax.f32 %v215, %v216
  %v218 = vrot.slane %v11, 4
  %v219 = vmax.f32 %v11, %v218
  %v220 = vrot.slane %v219, 2
  %v221 = vmax.f32 %v219, %v220
  %v222 = vrot.slane %v221, 1
  %v223 = vmax.f32 %v221, %v222
  %v224 = vrot.slane %v32, 4
  %v225 = vmax.f32 %v32, %v224
  %v226 = vrot.slane %v225, 2
  %v227 = vmax.f32 %v225, %v226
  %v228 = vrot.slane %v227, 1
  %v229 = vmax.f32 %v227, %v228
  %v230 = vrot.slane %v33, 4
  %v231 = vmax.f32 %v33, %v230
  %v232 = vrot.slane %v231, 2
  %v233 = vmax.f32 %v231, %v232
  %v234 = vrot.slane %v233, 1
  %v235 = vmax.f32 %v233, %v234
  %v236 = vrot.slane %v34, 4
  %v237 = vmax.f32 %v34, %v236
  %v238 = vrot.slane %v237, 2
  %v239 = vmax.f32 %v237, %v238
  %v240 = vrot.slane %v239, 1
  %v241 = vmax.f32 %v239, %v240
  %v242 = vrot.slane %v35, 4
  %v243 = vmax.f32 %v35, %v242
  %v244 = vrot.slane %v243, 2
  %v245 = vmax.f32 %v243, %v244
  %v246 = vrot.slane %v245, 1
  %v247 = vmax.f32 %v245, %v246
  %v248 = vrot.slane %v56, 4
  %v249 = vmax.f32 %v56, %v248
  %v250 = vrot.slane %v249, 2
  %v251 = vmax.f32 %v249, %v250
  %v252 = vrot.slane %v251, 1
  %v253 = vmax.f32 %v251, %v252
  %v254 = vrot.slane %v57, 4
  %v255 = vmax.f32 %v57, %v254
  %v256 = vrot.slane %v255, 2
  %v257 = vmax.f32 %v255, %v256
  %v258 = vrot.slane %v257, 1
  %v259 = vmax.f32 %v257, %v258
  %v260 = vrot.slane %v58, 4
  %v261 = vmax.f32 %v58, %v260
  %v262 = vrot.slane %v261, 2
  %v263 = vmax.f32 %v261, %v262
  %v264 = vrot.slane %v263, 1
  %v265 = vmax.f32 %v263, %v264
  %v266 = vrot.slane %v59, 4
  %v267 = vmax.f32 %v59, %v266
  %v268 = vrot.slane %v267, 2
  %v269 = vmax.f32 %v267, %v268
  %v270 = vrot.slane %v269, 1
  %v271 = vmax.f32 %v269, %v270
  %v272 = vrot.slane %v80, 4
  %v273 = vmax.f32 %v80, %v272
  %v274 = vrot.slane %v273, 2
  %v275 = vmax.f32 %v273, %v274
  %v276 = vrot.slane %v275, 1
  %v277 = vmax.f32 %v275, %v276
  %v278 = vrot.slane %v81, 4
  %v279 = vmax.f32 %v81, %v278
  %v280 = vrot.slane %v279, 2
  %v281 = vmax.f32 %v279, %v280
  %v282 = vrot.slane %v281, 1
  %v283 = vmax.f32 %v281, %v282
  %v284 = vrot.slane %v82, 4
  %v285 = vmax.f32 %v82, %v284
  %v286 = vrot.slane %v285, 2
  %v287 = vmax.f32 %v285, %v286
  %v288 = vrot.slane %v287, 1
  %v289 = vmax.f32 %v287, %v288
  %v290 = vrot.slane %v83, 4
  %v291 = vmax.f32 %v83, %v290
  %v292 = vrot.slane %v291, 2
  %v293 = vmax.f32 %v291, %v292
  %v294 = vrot.slane %v293, 1
  %v295 = vmax.f32 %v293, %v294
  %v296 = vrot.slane %v104, 4
  %v297 = vmax.f32 %v104, %v296
  %v298 = vrot.slane %v297, 2
  %v299 = vmax.f32 %v297, %v298
  %v300 = vrot.slane %v299, 1
  %v301 = vmax.f32 %v299, %v300
  %v302 = vrot.slane %v105, 4
  %v303 = vmax.f32 %v105, %v302
  %v304 = vrot.slane %v303, 2
  %v305 = vmax.f32 %v303, %v304
  %v306 = vrot.slane %v305, 1
  %v307 = vmax.f32 %v305, %v306
  %v308 = vrot.slane %v106, 4
  %v309 = vmax.f32 %v106, %v308
  %v310 = vrot.slane %v309, 2
  %v311 = vmax.f32 %v309, %v310
  %v312 = vrot.slane %v311, 1
  %v313 = vmax.f32 %v311, %v312
  %v314 = vrot.slane %v107, 4
  %v315 = vmax.f32 %v107, %v314
  %v316 = vrot.slane %v315, 2
  %v317 = vmax.f32 %v315, %v316
  %v318 = vrot.slane %v317, 1
  %v319 = vmax.f32 %v317, %v318
  %v320 = vrot.slane %v128, 4
  %v321 = vmax.f32 %v128, %v320
  %v322 = vrot.slane %v321, 2
  %v323 = vmax.f32 %v321, %v322
  %v324 = vrot.slane %v323, 1
  %v325 = vmax.f32 %v323, %v324
  %v326 = vrot.slane %v129, 4
  %v327 = vmax.f32 %v129, %v326
  %v328 = vrot.slane %v327, 2
  %v329 = vmax.f32 %v327, %v328
  %v330 = vrot.slane %v329, 1
  %v331 = vmax.f32 %v329, %v330
  %v332 = vrot.slane %v130, 4
  %v333 = vmax.f32 %v130, %v332
  %v334 = vrot.slane %v333, 2
  %v335 = vmax.f32 %v333, %v334
  %v336 = vrot.slane %v335, 1
  %v337 = vmax.f32 %v335, %v336
  %v338 = vrot.slane %v131, 4
  %v339 = vmax.f32 %v131, %v338
  %v340 = vrot.slane %v339, 2
  %v341 = vmax.f32 %v339, %v340
  %v342 = vrot.slane %v341, 1
  %v343 = vmax.f32 %v341, %v342
  %v344 = vrot.slane %v152, 4
  %v345 = vmax.f32 %v152, %v344
  %v346 = vrot.slane %v345, 2
  %v347 = vmax.f32 %v345, %v346
  %v348 = vrot.slane %v347, 1
  %v349 = vmax.f32 %v347, %v348
  %v350 = vrot.slane %v153, 4
  %v351 = vmax.f32 %v153, %v350
  %v352 = vrot.slane %v351, 2
  %v353 = vmax.f32 %v351, %v352
  %v354 = vrot.slane %v353, 1
  %v355 = vmax.f32 %v353, %v354
  %v356 = vrot.slane %v154, 4
  %v357 = vmax.f32 %v154, %v356
  %v358 = vrot.slane %v357, 2
  %v359 = vmax.f32 %v357, %v358
  %v360 = vrot.slane %v359, 1
  %v361 = vmax.f32 %v359, %v360
  %v362 = vrot.slane %v155, 4
  %v363 = vmax.f32 %v155, %v362
  %v364 = vrot.slane %v363, 2
  %v365 = vmax.f32 %v363, %v364
  %v366 = vrot.slane %v365, 1
  %v367 = vmax.f32 %v365, %v366
  %v368 = vrot.slane %v176, 4
  %v369 = vmax.f32 %v176, %v368
  %v370 = vrot.slane %v369, 2
  %v371 = vmax.f32 %v369, %v370
  %v372 = vrot.slane %v371, 1
  %v373 = vmax.f32 %v371, %v372
  %v374 = vrot.slane %v177, 4
  %v375 = vmax.f32 %v177, %v374
  %v376 = vrot.slane %v375, 2
  %v377 = vmax.f32 %v375, %v376
  %v378 = vrot.slane %v377, 1
  %v379 = vmax.f32 %v377, %v378
  %v380 = vrot.slane %v178, 4
  %v381 = vmax.f32 %v178, %v380
  %v382 = vrot.slane %v381, 2
  %v383 = vmax.f32 %v381, %v382
  %v384 = vrot.slane %v383, 1
  %v385 = vmax.f32 %v383, %v384
  %v386 = vrot.slane %v179, 4
  %v387 = vmax.f32 %v179, %v386
  %v388 = vrot.slane %v387, 2
  %v389 = vmax.f32 %v387, %v388
  %v390 = vrot.slane %v389, 1
  %v391 = vmax.f32 %v389, %v390
  %v392 = vrot.slane %v12, 4
  %v393 = vmax.f32 %v12, %v392
  %v394 = vrot.slane %v393, 2
  %v395 = vmax.f32 %v393, %v394
  %v396 = vrot.slane %v395, 1
  %v397 = vmax.f32 %v395, %v396
  %v398 = vrot.slane %v13, 4
  %v399 = vmax.f32 %v13, %v398
  %v400 = vrot.slane %v399, 2
  %v401 = vmax.f32 %v399, %v400
  %v402 = vrot.slane %v401, 1
  %v403 = vmax.f32 %v401, %v402
  %v404 = vrot.slane %v14, 4
  %v405 = vmax.f32 %v14, %v404
  %v406 = vrot.slane %v405, 2
  %v407 = vmax.f32 %v405, %v406
  %v408 = vrot.slane %v407, 1
  %v409 = vmax.f32 %v407, %v408
  %v410 = vrot.slane %v15, 4
  %v411 = vmax.f32 %v15, %v410
  %v412 = vrot.slane %v411, 2
  %v413 = vmax.f32 %v411, %v412
  %v414 = vrot.slane %v413, 1
  %v415 = vmax.f32 %v413, %v414
  %v416 = vrot.slane %v36, 4
  %v417 = vmax.f32 %v36, %v416
  %v418 = vrot.slane %v417, 2
  %v419 = vmax.f32 %v417, %v418
  %v420 = vrot.slane %v419, 1
  %v421 = vmax.f32 %v419, %v420
  %v422 = vrot.slane %v37, 4
  %v423 = vmax.f32 %v37, %v422
  %v424 = vrot.slane %v423, 2
  %v425 = vmax.f32 %v423, %v424
  %v426 = vrot.slane %v425, 1
  %v427 = vmax.f32 %v425, %v426
  %v428 = vrot.slane %v38, 4
  %v429 = vmax.f32 %v38, %v428
  %v430 = vrot.slane %v429, 2
  %v431 = vmax.f32 %v429, %v430
  %v432 = vrot.slane %v431, 1
  %v433 = vmax.f32 %v431, %v432
  %v434 = vrot.slane %v39, 4
  %v435 = vmax.f32 %v39, %v434
  %v436 = vrot.slane %v435, 2
  %v437 = vmax.f32 %v435, %v436
  %v438 = vrot.slane %v437, 1
  %v439 = vmax.f32 %v437, %v438
  %v440 = vrot.slane %v60, 4
  %v441 = vmax.f32 %v60, %v440
  %v442 = vrot.slane %v441, 2
  %v443 = vmax.f32 %v441, %v442
  %v444 = vrot.slane %v443, 1
  %v445 = vmax.f32 %v443, %v444
  %v446 = vrot.slane %v61, 4
  %v447 = vmax.f32 %v61, %v446
  %v448 = vrot.slane %v447, 2
  %v449 = vmax.f32 %v447, %v448
  %v450 = vrot.slane %v449, 1
  %v451 = vmax.f32 %v449, %v450
  %v452 = vrot.slane %v62, 4
  %v453 = vmax.f32 %v62, %v452
  %v454 = vrot.slane %v453, 2
  %v455 = vmax.f32 %v453, %v454
  %v456 = vrot.slane %v455, 1
  %v457 = vmax.f32 %v455, %v456
  %v458 = vrot.slane %v63, 4
  %v459 = vmax.f32 %v63, %v458
  %v460 = vrot.slane %v459, 2
  %v461 = vmax.f32 %v459, %v460
  %v462 = vrot.slane %v461, 1
  %v463 = vmax.f32 %v461, %v462
  %v464 = vrot.slane %v84, 4
  %v465 = vmax.f32 %v84, %v464
  %v466 = vrot.slane %v465, 2
  %v467 = vmax.f32 %v465, %v466
  %v468 = vrot.slane %v467, 1
  %v469 = vmax.f32 %v467, %v468
  %v470 = vrot.slane %v85, 4
  %v471 = vmax.f32 %v85, %v470
  %v472 = vrot.slane %v471, 2
  %v473 = vmax.f32 %v471, %v472
  %v474 = vrot.slane %v473, 1
  %v475 = vmax.f32 %v473, %v474
  %v476 = vrot.slane %v86, 4
  %v477 = vmax.f32 %v86, %v476
  %v478 = vrot.slane %v477, 2
  %v479 = vmax.f32 %v477, %v478
  %v480 = vrot.slane %v479, 1
  %v481 = vmax.f32 %v479, %v480
  %v482 = vrot.slane %v87, 4
  %v483 = vmax.f32 %v87, %v482
  %v484 = vrot.slane %v483, 2
  %v485 = vmax.f32 %v483, %v484
  %v486 = vrot.slane %v485, 1
  %v487 = vmax.f32 %v485, %v486
  %v488 = vrot.slane %v108, 4
  %v489 = vmax.f32 %v108, %v488
  %v490 = vrot.slane %v489, 2
  %v491 = vmax.f32 %v489, %v490
  %v492 = vrot.slane %v491, 1
  %v493 = vmax.f32 %v491, %v492
  %v494 = vrot.slane %v109, 4
  %v495 = vmax.f32 %v109, %v494
  %v496 = vrot.slane %v495, 2
  %v497 = vmax.f32 %v495, %v496
  %v498 = vrot.slane %v497, 1
  %v499 = vmax.f32 %v497, %v498
  %v500 = vrot.slane %v110, 4
  %v501 = vmax.f32 %v110, %v500
  %v502 = vrot.slane %v501, 2
  %v503 = vmax.f32 %v501, %v502
  %v504 = vrot.slane %v503, 1
  %v505 = vmax.f32 %v503, %v504
  %v506 = vrot.slane %v111, 4
  %v507 = vmax.f32 %v111, %v506
  %v508 = vrot.slane %v507, 2
  %v509 = vmax.f32 %v507, %v508
  %v510 = vrot.slane %v509, 1
  %v511 = vmax.f32 %v509, %v510
  %v512 = vrot.slane %v132, 4
  %v513 = vmax.f32 %v132, %v512
  %v514 = vrot.slane %v513, 2
  %v515 = vmax.f32 %v513, %v514
  %v516 = vrot.slane %v515, 1
  %v517 = vmax.f32 %v515, %v516
  %v518 = vrot.slane %v133, 4
  %v519 = vmax.f32 %v133, %v518
  %v520 = vrot.slane %v519, 2
  %v521 = vmax.f32 %v519, %v520
  %v522 = vrot.slane %v521, 1
  %v523 = vmax.f32 %v521, %v522
  %v524 = vrot.slane %v134, 4
  %v525 = vmax.f32 %v134, %v524
  %v526 = vrot.slane %v525, 2
  %v527 = vmax.f32 %v525, %v526
  %v528 = vrot.slane %v527, 1
  %v529 = vmax.f32 %v527, %v528
  %v530 = vrot.slane %v135, 4
  %v531 = vmax.f32 %v135, %v530
  %v532 = vrot.slane %v531, 2
  %v533 = vmax.f32 %v531, %v532
  %v534 = vrot.slane %v533, 1
  %v535 = vmax.f32 %v533, %v534
  %v536 = vrot.slane %v156, 4
  %v537 = vmax.f32 %v156, %v536
  %v538 = vrot.slane %v537, 2
  %v539 = vmax.f32 %v537, %v538
  %v540 = vrot.slane %v539, 1
  %v541 = vmax.f32 %v539, %v540
  %v542 = vrot.slane %v157, 4
  %v543 = vmax.f32 %v157, %v542
  %v544 = vrot.slane %v543, 2
  %v545 = vmax.f32 %v543, %v544
  %v546 = vrot.slane %v545, 1
  %v547 = vmax.f32 %v545, %v546
  %v548 = vrot.slane %v158, 4
  %v549 = vmax.f32 %v158, %v548
  %v550 = vrot.slane %v549, 2
  %v551 = vmax.f32 %v549, %v550
  %v552 = vrot.slane %v551, 1
  %v553 = vmax.f32 %v551, %v552
  %v554 = vrot.slane %v159, 4
  %v555 = vmax.f32 %v159, %v554
  %v556 = vrot.slane %v555, 2
  %v557 = vmax.f32 %v555, %v556
  %v558 = vrot.slane %v557, 1
  %v559 = vmax.f32 %v557, %v558
  %v560 = vrot.slane %v180, 4
  %v561 = vmax.f32 %v180, %v560
  %v562 = vrot.slane %v561, 2
  %v563 = vmax.f32 %v561, %v562
  %v564 = vrot.slane %v563, 1
  %v565 = vmax.f32 %v563, %v564
  %v566 = vrot.slane %v181, 4
  %v567 = vmax.f32 %v181, %v566
  %v568 = vrot.slane %v567, 2
  %v569 = vmax.f32 %v567, %v568
  %v570 = vrot.slane %v569, 1
  %v571 = vmax.f32 %v569, %v570
  %v572 = vrot.slane %v182, 4
  %v573 = vmax.f32 %v182, %v572
  %v574 = vrot.slane %v573, 2
  %v575 = vmax.f32 %v573, %v574
  %v576 = vrot.slane %v575, 1
  %v577 = vmax.f32 %v575, %v576
  %v578 = vrot.slane %v183, 4
  %v579 = vmax.f32 %v183, %v578
  %v580 = vrot.slane %v579, 2
  %v581 = vmax.f32 %v579, %v580
  %v582 = vrot.slane %v581, 1
  %v583 = vmax.f32 %v581, %v582
  %v584 = vrot.slane %v16, 4
  %v585 = vmax.f32 %v16, %v584
  %v586 = vrot.slane %v585, 2
  %v587 = vmax.f32 %v585, %v586
  %v588 = vrot.slane %v587, 1
  %v589 = vmax.f32 %v587, %v588
  %v590 = vrot.slane %v17, 4
  %v591 = vmax.f32 %v17, %v590
  %v592 = vrot.slane %v591, 2
  %v593 = vmax.f32 %v591, %v592
  %v594 = vrot.slane %v593, 1
  %v595 = vmax.f32 %v593, %v594
  %v596 = vrot.slane %v18, 4
  %v597 = vmax.f32 %v18, %v596
  %v598 = vrot.slane %v597, 2
  %v599 = vmax.f32 %v597, %v598
  %v600 = vrot.slane %v599, 1
  %v601 = vmax.f32 %v599, %v600
  %v602 = vrot.slane %v19, 4
  %v603 = vmax.f32 %v19, %v602
  %v604 = vrot.slane %v603, 2
  %v605 = vmax.f32 %v603, %v604
  %v606 = vrot.slane %v605, 1
  %v607 = vmax.f32 %v605, %v606
  %v608 = vrot.slane %v40, 4
  %v609 = vmax.f32 %v40, %v608
  %v610 = vrot.slane %v609, 2
  %v611 = vmax.f32 %v609, %v610
  %v612 = vrot.slane %v611, 1
  %v613 = vmax.f32 %v611, %v612
  %v614 = vrot.slane %v41, 4
  %v615 = vmax.f32 %v41, %v614
  %v616 = vrot.slane %v615, 2
  %v617 = vmax.f32 %v615, %v616
  %v618 = vrot.slane %v617, 1
  %v619 = vmax.f32 %v617, %v618
  %v620 = vrot.slane %v42, 4
  %v621 = vmax.f32 %v42, %v620
  %v622 = vrot.slane %v621, 2
  %v623 = vmax.f32 %v621, %v622
  %v624 = vrot.slane %v623, 1
  %v625 = vmax.f32 %v623, %v624
  %v626 = vrot.slane %v43, 4
  %v627 = vmax.f32 %v43, %v626
  %v628 = vrot.slane %v627, 2
  %v629 = vmax.f32 %v627, %v628
  %v630 = vrot.slane %v629, 1
  %v631 = vmax.f32 %v629, %v630
  %v632 = vrot.slane %v64, 4
  %v633 = vmax.f32 %v64, %v632
  %v634 = vrot.slane %v633, 2
  %v635 = vmax.f32 %v633, %v634
  %v636 = vrot.slane %v635, 1
  %v637 = vmax.f32 %v635, %v636
  %v638 = vrot.slane %v65, 4
  %v639 = vmax.f32 %v65, %v638
  %v640 = vrot.slane %v639, 2
  %v641 = vmax.f32 %v639, %v640
  %v642 = vrot.slane %v641, 1
  %v643 = vmax.f32 %v641, %v642
  %v644 = vrot.slane %v66, 4
  %v645 = vmax.f32 %v66, %v644
  %v646 = vrot.slane %v645, 2
  %v647 = vmax.f32 %v645, %v646
  %v648 = vrot.slane %v647, 1
  %v649 = vmax.f32 %v647, %v648
  %v650 = vrot.slane %v67, 4
  %v651 = vmax.f32 %v67, %v650
  %v652 = vrot.slane %v651, 2
  %v653 = vmax.f32 %v651, %v652
  %v654 = vrot.slane %v653, 1
  %v655 = vmax.f32 %v653, %v654
  %v656 = vrot.slane %v88, 4
  %v657 = vmax.f32 %v88, %v656
  %v658 = vrot.slane %v657, 2
  %v659 = vmax.f32 %v657, %v658
  %v660 = vrot.slane %v659, 1
  %v661 = vmax.f32 %v659, %v660
  %v662 = vrot.slane %v89, 4
  %v663 = vmax.f32 %v89, %v662
  %v664 = vrot.slane %v663, 2
  %v665 = vmax.f32 %v663, %v664
  %v666 = vrot.slane %v665, 1
  %v667 = vmax.f32 %v665, %v666
  %v668 = vrot.slane %v90, 4
  %v669 = vmax.f32 %v90, %v668
  %v670 = vrot.slane %v669, 2
  %v671 = vmax.f32 %v669, %v670
  %v672 = vrot.slane %v671, 1
  %v673 = vmax.f32 %v671, %v672
  %v674 = vrot.slane %v91, 4
  %v675 = vmax.f32 %v91, %v674
  %v676 = vrot.slane %v675, 2
  %v677 = vmax.f32 %v675, %v676
  %v678 = vrot.slane %v677, 1
  %v679 = vmax.f32 %v677, %v678
  %v680 = vrot.slane %v112, 4
  %v681 = vmax.f32 %v112, %v680
  %v682 = vrot.slane %v681, 2
  %v683 = vmax.f32 %v681, %v682
  %v684 = vrot.slane %v683, 1
  %v685 = vmax.f32 %v683, %v684
  %v686 = vrot.slane %v113, 4
  %v687 = vmax.f32 %v113, %v686
  %v688 = vrot.slane %v687, 2
  %v689 = vmax.f32 %v687, %v688
  %v690 = vrot.slane %v689, 1
  %v691 = vmax.f32 %v689, %v690
  %v692 = vrot.slane %v114, 4
  %v693 = vmax.f32 %v114, %v692
  %v694 = vrot.slane %v693, 2
  %v695 = vmax.f32 %v693, %v694
  %v696 = vrot.slane %v695, 1
  %v697 = vmax.f32 %v695, %v696
  %v698 = vrot.slane %v115, 4
  %v699 = vmax.f32 %v115, %v698
  %v700 = vrot.slane %v699, 2
  %v701 = vmax.f32 %v699, %v700
  %v702 = vrot.slane %v701, 1
  %v703 = vmax.f32 %v701, %v702
  %v704 = vrot.slane %v136, 4
  %v705 = vmax.f32 %v136, %v704
  %v706 = vrot.slane %v705, 2
  %v707 = vmax.f32 %v705, %v706
  %v708 = vrot.slane %v707, 1
  %v709 = vmax.f32 %v707, %v708
  %v710 = vrot.slane %v137, 4
  %v711 = vmax.f32 %v137, %v710
  %v712 = vrot.slane %v711, 2
  %v713 = vmax.f32 %v711, %v712
  %v714 = vrot.slane %v713, 1
  %v715 = vmax.f32 %v713, %v714
  %v716 = vrot.slane %v138, 4
  %v717 = vmax.f32 %v138, %v716
  %v718 = vrot.slane %v717, 2
  %v719 = vmax.f32 %v717, %v718
  %v720 = vrot.slane %v719, 1
  %v721 = vmax.f32 %v719, %v720
  %v722 = vrot.slane %v139, 4
  %v723 = vmax.f32 %v139, %v722
  %v724 = vrot.slane %v723, 2
  %v725 = vmax.f32 %v723, %v724
  %v726 = vrot.slane %v725, 1
  %v727 = vmax.f32 %v725, %v726
  %v728 = vrot.slane %v160, 4
  %v729 = vmax.f32 %v160, %v728
  %v730 = vrot.slane %v729, 2
  %v731 = vmax.f32 %v729, %v730
  %v732 = vrot.slane %v731, 1
  %v733 = vmax.f32 %v731, %v732
  %v734 = vrot.slane %v161, 4
  %v735 = vmax.f32 %v161, %v734
  %v736 = vrot.slane %v735, 2
  %v737 = vmax.f32 %v735, %v736
  %v738 = vrot.slane %v737, 1
  %v739 = vmax.f32 %v737, %v738
  %v740 = vrot.slane %v162, 4
  %v741 = vmax.f32 %v162, %v740
  %v742 = vrot.slane %v741, 2
  %v743 = vmax.f32 %v741, %v742
  %v744 = vrot.slane %v743, 1
  %v745 = vmax.f32 %v743, %v744
  %v746 = vrot.slane %v163, 4
  %v747 = vmax.f32 %v163, %v746
  %v748 = vrot.slane %v747, 2
  %v749 = vmax.f32 %v747, %v748
  %v750 = vrot.slane %v749, 1
  %v751 = vmax.f32 %v749, %v750
  %v752 = vrot.slane %v184, 4
  %v753 = vmax.f32 %v184, %v752
  %v754 = vrot.slane %v753, 2
  %v755 = vmax.f32 %v753, %v754
  %v756 = vrot.slane %v755, 1
  %v757 = vmax.f32 %v755, %v756
  %v758 = vrot.slane %v185, 4
  %v759 = vmax.f32 %v185, %v758
  %v760 = vrot.slane %v759, 2
  %v761 = vmax.f32 %v759, %v760
  %v762 = vrot.slane %v761, 1
  %v763 = vmax.f32 %v761, %v762
  %v764 = vrot.slane %v186, 4
  %v765 = vmax.f32 %v186, %v764
  %v766 = vrot.slane %v765, 2
  %v767 = vmax.f32 %v765, %v766
  %v768 = vrot.slane %v767, 1
  %v769 = vmax.f32 %v767, %v768
  %v770 = vrot.slane %v187, 4
  %v771 = vmax.f32 %v187, %v770
  %v772 = vrot.slane %v771, 2
  %v773 = vmax.f32 %v771, %v772
  %v774 = vrot.slane %v773, 1
  %v775 = vmax.f32 %v773, %v774
  %v776 = vrot.slane %v20, 4
  %v777 = vmax.f32 %v20, %v776
  %v778 = vrot.slane %v777, 2
  %v779 = vmax.f32 %v777, %v778
  %v780 = vrot.slane %v779, 1
  %v781 = vmax.f32 %v779, %v780
  %v782 = vrot.slane %v21, 4
  %v783 = vmax.f32 %v21, %v782
  %v784 = vrot.slane %v783, 2
  %v785 = vmax.f32 %v783, %v784
  %v786 = vrot.slane %v785, 1
  %v787 = vmax.f32 %v785, %v786
  %v788 = vrot.slane %v22, 4
  %v789 = vmax.f32 %v22, %v788
  %v790 = vrot.slane %v789, 2
  %v791 = vmax.f32 %v789, %v790
  %v792 = vrot.slane %v791, 1
  %v793 = vmax.f32 %v791, %v792
  %v794 = vrot.slane %v23, 4
  %v795 = vmax.f32 %v23, %v794
  %v796 = vrot.slane %v795, 2
  %v797 = vmax.f32 %v795, %v796
  %v798 = vrot.slane %v797, 1
  %v799 = vmax.f32 %v797, %v798
  %v800 = vrot.slane %v44, 4
  %v801 = vmax.f32 %v44, %v800
  %v802 = vrot.slane %v801, 2
  %v803 = vmax.f32 %v801, %v802
  %v804 = vrot.slane %v803, 1
  %v805 = vmax.f32 %v803, %v804
  %v806 = vrot.slane %v45, 4
  %v807 = vmax.f32 %v45, %v806
  %v808 = vrot.slane %v807, 2
  %v809 = vmax.f32 %v807, %v808
  %v810 = vrot.slane %v809, 1
  %v811 = vmax.f32 %v809, %v810
  %v812 = vrot.slane %v46, 4
  %v813 = vmax.f32 %v46, %v812
  %v814 = vrot.slane %v813, 2
  %v815 = vmax.f32 %v813, %v814
  %v816 = vrot.slane %v815, 1
  %v817 = vmax.f32 %v815, %v816
  %v818 = vrot.slane %v47, 4
  %v819 = vmax.f32 %v47, %v818
  %v820 = vrot.slane %v819, 2
  %v821 = vmax.f32 %v819, %v820
  %v822 = vrot.slane %v821, 1
  %v823 = vmax.f32 %v821, %v822
  %v824 = vrot.slane %v68, 4
  %v825 = vmax.f32 %v68, %v824
  %v826 = vrot.slane %v825, 2
  %v827 = vmax.f32 %v825, %v826
  %v828 = vrot.slane %v827, 1
  %v829 = vmax.f32 %v827, %v828
  %v830 = vrot.slane %v69, 4
  %v831 = vmax.f32 %v69, %v830
  %v832 = vrot.slane %v831, 2
  %v833 = vmax.f32 %v831, %v832
  %v834 = vrot.slane %v833, 1
  %v835 = vmax.f32 %v833, %v834
  %v836 = vrot.slane %v70, 4
  %v837 = vmax.f32 %v70, %v836
  %v838 = vrot.slane %v837, 2
  %v839 = vmax.f32 %v837, %v838
  %v840 = vrot.slane %v839, 1
  %v841 = vmax.f32 %v839, %v840
  %v842 = vrot.slane %v71, 4
  %v843 = vmax.f32 %v71, %v842
  %v844 = vrot.slane %v843, 2
  %v845 = vmax.f32 %v843, %v844
  %v846 = vrot.slane %v845, 1
  %v847 = vmax.f32 %v845, %v846
  %v848 = vrot.slane %v92, 4
  %v849 = vmax.f32 %v92, %v848
  %v850 = vrot.slane %v849, 2
  %v851 = vmax.f32 %v849, %v850
  %v852 = vrot.slane %v851, 1
  %v853 = vmax.f32 %v851, %v852
  %v854 = vrot.slane %v93, 4
  %v855 = vmax.f32 %v93, %v854
  %v856 = vrot.slane %v855, 2
  %v857 = vmax.f32 %v855, %v856
  %v858 = vrot.slane %v857, 1
  %v859 = vmax.f32 %v857, %v858
  %v860 = vrot.slane %v94, 4
  %v861 = vmax.f32 %v94, %v860
  %v862 = vrot.slane %v861, 2
  %v863 = vmax.f32 %v861, %v862
  %v864 = vrot.slane %v863, 1
  %v865 = vmax.f32 %v863, %v864
  %v866 = vrot.slane %v95, 4
  %v867 = vmax.f32 %v95, %v866
  %v868 = vrot.slane %v867, 2
  %v869 = vmax.f32 %v867, %v868
  %v870 = vrot.slane %v869, 1
  %v871 = vmax.f32 %v869, %v870
  %v872 = vrot.slane %v116, 4
  %v873 = vmax.f32 %v116, %v872
  %v874 = vrot.slane %v873, 2
  %v875 = vmax.f32 %v873, %v874
  %v876 = vrot.slane %v875, 1
  %v877 = vmax.f32 %v875, %v876
  %v878 = vrot.slane %v117, 4
  %v879 = vmax.f32 %v117, %v878
  %v880 = vrot.slane %v879, 2
  %v881 = vmax.f32 %v879, %v880
  %v882 = vrot.slane %v881, 1
  %v883 = vmax.f32 %v881, %v882
  %v884 = vrot.slane %v118, 4
  %v885 = vmax.f32 %v118, %v884
  %v886 = vrot.slane %v885, 2
  %v887 = vmax.f32 %v885, %v886
  %v888 = vrot.slane %v887, 1
  %v889 = vmax.f32 %v887, %v888
  %v890 = vrot.slane %v119, 4
  %v891 = vmax.f32 %v119, %v890
  %v892 = vrot.slane %v891, 2
  %v893 = vmax.f32 %v891, %v892
  %v894 = vrot.slane %v893, 1
  %v895 = vmax.f32 %v893, %v894
  %v896 = vrot.slane %v140, 4
  %v897 = vmax.f32 %v140, %v896
  %v898 = vrot.slane %v897, 2
  %v899 = vmax.f32 %v897, %v898
  %v900 = vrot.slane %v899, 1
  %v901 = vmax.f32 %v899, %v900
  %v902 = vrot.slane %v141, 4
  %v903 = vmax.f32 %v141, %v902
  %v904 = vrot.slane %v903, 2
  %v905 = vmax.f32 %v903, %v904
  %v906 = vrot.slane %v905, 1
  %v907 = vmax.f32 %v905, %v906
  %v908 = vrot.slane %v142, 4
  %v909 = vmax.f32 %v142, %v908
  %v910 = vrot.slane %v909, 2
  %v911 = vmax.f32 %v909, %v910
  %v912 = vrot.slane %v911, 1
  %v913 = vmax.f32 %v911, %v912
  %v914 = vrot.slane %v143, 4
  %v915 = vmax.f32 %v143, %v914
  %v916 = vrot.slane %v915, 2
  %v917 = vmax.f32 %v915, %v916
  %v918 = vrot.slane %v917, 1
  %v919 = vmax.f32 %v917, %v918
  %v920 = vrot.slane %v164, 4
  %v921 = vmax.f32 %v164, %v920
  %v922 = vrot.slane %v921, 2
  %v923 = vmax.f32 %v921, %v922
  %v924 = vrot.slane %v923, 1
  %v925 = vmax.f32 %v923, %v924
  %v926 = vrot.slane %v165, 4
  %v927 = vmax.f32 %v165, %v926
  %v928 = vrot.slane %v927, 2
  %v929 = vmax.f32 %v927, %v928
  %v930 = vrot.slane %v929, 1
  %v931 = vmax.f32 %v929, %v930
  %v932 = vrot.slane %v166, 4
  %v933 = vmax.f32 %v166, %v932
  %v934 = vrot.slane %v933, 2
  %v935 = vmax.f32 %v933, %v934
  %v936 = vrot.slane %v935, 1
  %v937 = vmax.f32 %v935, %v936
  %v938 = vrot.slane %v167, 4
  %v939 = vmax.f32 %v167, %v938
  %v940 = vrot.slane %v939, 2
  %v941 = vmax.f32 %v939, %v940
  %v942 = vrot.slane %v941, 1
  %v943 = vmax.f32 %v941, %v942
  %v944 = vrot.slane %v188, 4
  %v945 = vmax.f32 %v188, %v944
  %v946 = vrot.slane %v945, 2
  %v947 = vmax.f32 %v945, %v946
  %v948 = vrot.slane %v947, 1
  %v949 = vmax.f32 %v947, %v948
  %v950 = vrot.slane %v189, 4
  %v951 = vmax.f32 %v189, %v950
  %v952 = vrot.slane %v951, 2
  %v953 = vmax.f32 %v951, %v952
  %v954 = vrot.slane %v953, 1
  %v955 = vmax.f32 %v953, %v954
  %v956 = vrot.slane %v190, 4
  %v957 = vmax.f32 %v190, %v956
  %v958 = vrot.slane %v957, 2
  %v959 = vmax.f32 %v957, %v958
  %v960 = vrot.slane %v959, 1
  %v961 = vmax.f32 %v959, %v960
  %v962 = vrot.slane %v191, 4
  %v963 = vmax.f32 %v191, %v962
  %v964 = vrot.slane %v963, 2
  %v965 = vmax.f32 %v963, %v964
  %v966 = vrot.slane %v965, 1
  %v967 = vmax.f32 %v965, %v966
  %v968 = vrot.slane %v24, 4
  %v969 = vmax.f32 %v24, %v968
  %v970 = vrot.slane %v969, 2
  %v971 = vmax.f32 %v969, %v970
  %v972 = vrot.slane %v971, 1
  %v973 = vmax.f32 %v971, %v972
  %v974 = vrot.slane %v25, 4
  %v975 = vmax.f32 %v25, %v974
  %v976 = vrot.slane %v975, 2
  %v977 = vmax.f32 %v975, %v976
  %v978 = vrot.slane %v977, 1
  %v979 = vmax.f32 %v977, %v978
  %v980 = vrot.slane %v26, 4
  %v981 = vmax.f32 %v26, %v980
  %v982 = vrot.slane %v981, 2
  %v983 = vmax.f32 %v981, %v982
  %v984 = vrot.slane %v983, 1
  %v985 = vmax.f32 %v983, %v984
  %v986 = vrot.slane %v27, 4
  %v987 = vmax.f32 %v27, %v986
  %v988 = vrot.slane %v987, 2
  %v989 = vmax.f32 %v987, %v988
  %v990 = vrot.slane %v989, 1
  %v991 = vmax.f32 %v989, %v990
  %v992 = vrot.slane %v48, 4
  %v993 = vmax.f32 %v48, %v992
  %v994 = vrot.slane %v993, 2
  %v995 = vmax.f32 %v993, %v994
  %v996 = vrot.slane %v995, 1
  %v997 = vmax.f32 %v995, %v996
  %v998 = vrot.slane %v49, 4
  %v999 = vmax.f32 %v49, %v998
  %v1000 = vrot.slane %v999, 2
  %v1001 = vmax.f32 %v999, %v1000
  %v1002 = vrot.slane %v1001, 1
  %v1003 = vmax.f32 %v1001, %v1002
  %v1004 = vrot.slane %v50, 4
  %v1005 = vmax.f32 %v50, %v1004
  %v1006 = vrot.slane %v1005, 2
  %v1007 = vmax.f32 %v1005, %v1006
  %v1008 = vrot.slane %v1007, 1
  %v1009 = vmax.f32 %v1007, %v1008
  %v1010 = vrot.slane %v51, 4
  %v1011 = vmax.f32 %v51, %v1010
  %v1012 = vrot.slane %v1011, 2
  %v1013 = vmax.f32 %v1011, %v1012
  %v1014 = vrot.slane %v1013, 1
  %v1015 = vmax.f32 %v1013, %v1014
  %v1016 = vrot.slane %v72, 4
  %v1017 = vmax.f32 %v72, %v1016
  %v1018 = vrot.slane %v1017, 2
  %v1019 = vmax.f32 %v1017, %v1018
  %v1020 = vrot.slane %v1019, 1
  %v1021 = vmax.f32 %v1019, %v1020
  %v1022 = vrot.slane %v73, 4
  %v1023 = vmax.f32 %v73, %v1022
  %v1024 = vrot.slane %v1023, 2
  %v1025 = vmax.f32 %v1023, %v1024
  %v1026 = vrot.slane %v1025, 1
  %v1027 = vmax.f32 %v1025, %v1026
  %v1028 = vrot.slane %v74, 4
  %v1029 = vmax.f32 %v74, %v1028
  %v1030 = vrot.slane %v1029, 2
  %v1031 = vmax.f32 %v1029, %v1030
  %v1032 = vrot.slane %v1031, 1
  %v1033 = vmax.f32 %v1031, %v1032
  %v1034 = vrot.slane %v75, 4
  %v1035 = vmax.f32 %v75, %v1034
  %v1036 = vrot.slane %v1035, 2
  %v1037 = vmax.f32 %v1035, %v1036
  %v1038 = vrot.slane %v1037, 1
  %v1039 = vmax.f32 %v1037, %v1038
  %v1040 = vrot.slane %v96, 4
  %v1041 = vmax.f32 %v96, %v1040
  %v1042 = vrot.slane %v1041, 2
  %v1043 = vmax.f32 %v1041, %v1042
  %v1044 = vrot.slane %v1043, 1
  %v1045 = vmax.f32 %v1043, %v1044
  %v1046 = vrot.slane %v97, 4
  %v1047 = vmax.f32 %v97, %v1046
  %v1048 = vrot.slane %v1047, 2
  %v1049 = vmax.f32 %v1047, %v1048
  %v1050 = vrot.slane %v1049, 1
  %v1051 = vmax.f32 %v1049, %v1050
  %v1052 = vrot.slane %v98, 4
  %v1053 = vmax.f32 %v98, %v1052
  %v1054 = vrot.slane %v1053, 2
  %v1055 = vmax.f32 %v1053, %v1054
  %v1056 = vrot.slane %v1055, 1
  %v1057 = vmax.f32 %v1055, %v1056
  %v1058 = vrot.slane %v99, 4
  %v1059 = vmax.f32 %v99, %v1058
  %v1060 = vrot.slane %v1059, 2
  %v1061 = vmax.f32 %v1059, %v1060
  %v1062 = vrot.slane %v1061, 1
  %v1063 = vmax.f32 %v1061, %v1062
  %v1064 = vrot.slane %v120, 4
  %v1065 = vmax.f32 %v120, %v1064
  %v1066 = vrot.slane %v1065, 2
  %v1067 = vmax.f32 %v1065, %v1066
  %v1068 = vrot.slane %v1067, 1
  %v1069 = vmax.f32 %v1067, %v1068
  %v1070 = vrot.slane %v121, 4
  %v1071 = vmax.f32 %v121, %v1070
  %v1072 = vrot.slane %v1071, 2
  %v1073 = vmax.f32 %v1071, %v1072
  %v1074 = vrot.slane %v1073, 1
  %v1075 = vmax.f32 %v1073, %v1074
  %v1076 = vrot.slane %v122, 4
  %v1077 = vmax.f32 %v122, %v1076
  %v1078 = vrot.slane %v1077, 2
  %v1079 = vmax.f32 %v1077, %v1078
  %v1080 = vrot.slane %v1079, 1
  %v1081 = vmax.f32 %v1079, %v1080
  %v1082 = vrot.slane %v123, 4
  %v1083 = vmax.f32 %v123, %v1082
  %v1084 = vrot.slane %v1083, 2
  %v1085 = vmax.f32 %v1083, %v1084
  %v1086 = vrot.slane %v1085, 1
  %v1087 = vmax.f32 %v1085, %v1086
  %v1088 = vrot.slane %v144, 4
  %v1089 = vmax.f32 %v144, %v1088
  %v1090 = vrot.slane %v1089, 2
  %v1091 = vmax.f32 %v1089, %v1090
  %v1092 = vrot.slane %v1091, 1
  %v1093 = vmax.f32 %v1091, %v1092
  %v1094 = vrot.slane %v145, 4
  %v1095 = vmax.f32 %v145, %v1094
  %v1096 = vrot.slane %v1095, 2
  %v1097 = vmax.f32 %v1095, %v1096
  %v1098 = vrot.slane %v1097, 1
  %v1099 = vmax.f32 %v1097, %v1098
  %v1100 = vrot.slane %v146, 4
  %v1101 = vmax.f32 %v146, %v1100
  %v1102 = vrot.slane %v1101, 2
  %v1103 = vmax.f32 %v1101, %v1102
  %v1104 = vrot.slane %v1103, 1
  %v1105 = vmax.f32 %v1103, %v1104
  %v1106 = vrot.slane %v147, 4
  %v1107 = vmax.f32 %v147, %v1106
  %v1108 = vrot.slane %v1107, 2
  %v1109 = vmax.f32 %v1107, %v1108
  %v1110 = vrot.slane %v1109, 1
  %v1111 = vmax.f32 %v1109, %v1110
  %v1112 = vrot.slane %v168, 4
  %v1113 = vmax.f32 %v168, %v1112
  %v1114 = vrot.slane %v1113, 2
  %v1115 = vmax.f32 %v1113, %v1114
  %v1116 = vrot.slane %v1115, 1
  %v1117 = vmax.f32 %v1115, %v1116
  %v1118 = vrot.slane %v169, 4
  %v1119 = vmax.f32 %v169, %v1118
  %v1120 = vrot.slane %v1119, 2
  %v1121 = vmax.f32 %v1119, %v1120
  %v1122 = vrot.slane %v1121, 1
  %v1123 = vmax.f32 %v1121, %v1122
  %v1124 = vrot.slane %v170, 4
  %v1125 = vmax.f32 %v170, %v1124
  %v1126 = vrot.slane %v1125, 2
  %v1127 = vmax.f32 %v1125, %v1126
  %v1128 = vrot.slane %v1127, 1
  %v1129 = vmax.f32 %v1127, %v1128
  %v1130 = vrot.slane %v171, 4
  %v1131 = vmax.f32 %v171, %v1130
  %v1132 = vrot.slane %v1131, 2
  %v1133 = vmax.f32 %v1131, %v1132
  %v1134 = vrot.slane %v1133, 1
  %v1135 = vmax.f32 %v1133, %v1134
  %v1136 = vrot.slane %v192, 4
  %v1137 = vmax.f32 %v192, %v1136
  %v1138 = vrot.slane %v1137, 2
  %v1139 = vmax.f32 %v1137, %v1138
  %v1140 = vrot.slane %v1139, 1
  %v1141 = vmax.f32 %v1139, %v1140
  %v1142 = vrot.slane %v193, 4
  %v1143 = vmax.f32 %v193, %v1142
  %v1144 = vrot.slane %v1143, 2
  %v1145 = vmax.f32 %v1143, %v1144
  %v1146 = vrot.slane %v1145, 1
  %v1147 = vmax.f32 %v1145, %v1146
  %v1148 = vrot.slane %v194, 4
  %v1149 = vmax.f32 %v194, %v1148
  %v1150 = vrot.slane %v1149, 2
  %v1151 = vmax.f32 %v1149, %v1150
  %v1152 = vrot.slane %v1151, 1
  %v1153 = vmax.f32 %v1151, %v1152
  %v1154 = vrot.slane %v195, 4
  %v1155 = vmax.f32 %v195, %v1154
  %v1156 = vrot.slane %v1155, 2
  %v1157 = vmax.f32 %v1155, %v1156
  %v1158 = vrot.slane %v1157, 1
  %v1159 = vmax.f32 %v1157, %v1158
  %v1160 = vrot.slane %v28, 4
  %v1161 = vmax.f32 %v28, %v1160
  %v1162 = vrot.slane %v1161, 2
  %v1163 = vmax.f32 %v1161, %v1162
  %v1164 = vrot.slane %v1163, 1
  %v1165 = vmax.f32 %v1163, %v1164
  %v1166 = vrot.slane %v29, 4
  %v1167 = vmax.f32 %v29, %v1166
  %v1168 = vrot.slane %v1167, 2
  %v1169 = vmax.f32 %v1167, %v1168
  %v1170 = vrot.slane %v1169, 1
  %v1171 = vmax.f32 %v1169, %v1170
  %v1172 = vrot.slane %v30, 4
  %v1173 = vmax.f32 %v30, %v1172
  %v1174 = vrot.slane %v1173, 2
  %v1175 = vmax.f32 %v1173, %v1174
  %v1176 = vrot.slane %v1175, 1
  %v1177 = vmax.f32 %v1175, %v1176
  %v1178 = vrot.slane %v31, 4
  %v1179 = vmax.f32 %v31, %v1178
  %v1180 = vrot.slane %v1179, 2
  %v1181 = vmax.f32 %v1179, %v1180
  %v1182 = vrot.slane %v1181, 1
  %v1183 = vmax.f32 %v1181, %v1182
  %v1184 = vrot.slane %v52, 4
  %v1185 = vmax.f32 %v52, %v1184
  %v1186 = vrot.slane %v1185, 2
  %v1187 = vmax.f32 %v1185, %v1186
  %v1188 = vrot.slane %v1187, 1
  %v1189 = vmax.f32 %v1187, %v1188
  %v1190 = vrot.slane %v53, 4
  %v1191 = vmax.f32 %v53, %v1190
  %v1192 = vrot.slane %v1191, 2
  %v1193 = vmax.f32 %v1191, %v1192
  %v1194 = vrot.slane %v1193, 1
  %v1195 = vmax.f32 %v1193, %v1194
  %v1196 = vrot.slane %v54, 4
  %v1197 = vmax.f32 %v54, %v1196
  %v1198 = vrot.slane %v1197, 2
  %v1199 = vmax.f32 %v1197, %v1198
  %v1200 = vrot.slane %v1199, 1
  %v1201 = vmax.f32 %v1199, %v1200
  %v1202 = vrot.slane %v55, 4
  %v1203 = vmax.f32 %v55, %v1202
  %v1204 = vrot.slane %v1203, 2
  %v1205 = vmax.f32 %v1203, %v1204
  %v1206 = vrot.slane %v1205, 1
  %v1207 = vmax.f32 %v1205, %v1206
  %v1208 = vrot.slane %v76, 4
  %v1209 = vmax.f32 %v76, %v1208
  %v1210 = vrot.slane %v1209, 2
  %v1211 = vmax.f32 %v1209, %v1210
  %v1212 = vrot.slane %v1211, 1
  %v1213 = vmax.f32 %v1211, %v1212
  %v1214 = vrot.slane %v77, 4
  %v1215 = vmax.f32 %v77, %v1214
  %v1216 = vrot.slane %v1215, 2
  %v1217 = vmax.f32 %v1215, %v1216
  %v1218 = vrot.slane %v1217, 1
  %v1219 = vmax.f32 %v1217, %v1218
  %v1220 = vrot.slane %v78, 4
  %v1221 = vmax.f32 %v78, %v1220
  %v1222 = vrot.slane %v1221, 2
  %v1223 = vmax.f32 %v1221, %v1222
  %v1224 = vrot.slane %v1223, 1
  %v1225 = vmax.f32 %v1223, %v1224
  %v1226 = vrot.slane %v79, 4
  %v1227 = vmax.f32 %v79, %v1226
  %v1228 = vrot.slane %v1227, 2
  %v1229 = vmax.f32 %v1227, %v1228
  %v1230 = vrot.slane %v1229, 1
  %v1231 = vmax.f32 %v1229, %v1230
  %v1232 = vrot.slane %v100, 4
  %v1233 = vmax.f32 %v100, %v1232
  %v1234 = vrot.slane %v1233, 2
  %v1235 = vmax.f32 %v1233, %v1234
  %v1236 = vrot.slane %v1235, 1
  %v1237 = vmax.f32 %v1235, %v1236
  %v1238 = vrot.slane %v101, 4
  %v1239 = vmax.f32 %v101, %v1238
  %v1240 = vrot.slane %v1239, 2
  %v1241 = vmax.f32 %v1239, %v1240
  %v1242 = vrot.slane %v1241, 1
  %v1243 = vmax.f32 %v1241, %v1242
  %v1244 = vrot.slane %v102, 4
  %v1245 = vmax.f32 %v102, %v1244
  %v1246 = vrot.slane %v1245, 2
  %v1247 = vmax.f32 %v1245, %v1246
  %v1248 = vrot.slane %v1247, 1
  %v1249 = vmax.f32 %v1247, %v1248
  %v1250 = vrot.slane %v103, 4
  %v1251 = vmax.f32 %v103, %v1250
  %v1252 = vrot.slane %v1251, 2
  %v1253 = vmax.f32 %v1251, %v1252
  %v1254 = vrot.slane %v1253, 1
  %v1255 = vmax.f32 %v1253, %v1254
  %v1256 = vrot.slane %v124, 4
  %v1257 = vmax.f32 %v124, %v1256
  %v1258 = vrot.slane %v1257, 2
  %v1259 = vmax.f32 %v1257, %v1258
  %v1260 = vrot.slane %v1259, 1
  %v1261 = vmax.f32 %v1259, %v1260
  %v1262 = vrot.slane %v125, 4
  %v1263 = vmax.f32 %v125, %v1262
  %v1264 = vrot.slane %v1263, 2
  %v1265 = vmax.f32 %v1263, %v1264
  %v1266 = vrot.slane %v1265, 1
  %v1267 = vmax.f32 %v1265, %v1266
  %v1268 = vrot.slane %v126, 4
  %v1269 = vmax.f32 %v126, %v1268
  %v1270 = vrot.slane %v1269, 2
  %v1271 = vmax.f32 %v1269, %v1270
  %v1272 = vrot.slane %v1271, 1
  %v1273 = vmax.f32 %v1271, %v1272
  %v1274 = vrot.slane %v127, 4
  %v1275 = vmax.f32 %v127, %v1274
  %v1276 = vrot.slane %v1275, 2
  %v1277 = vmax.f32 %v1275, %v1276
  %v1278 = vrot.slane %v1277, 1
  %v1279 = vmax.f32 %v1277, %v1278
  %v1280 = vrot.slane %v148, 4
  %v1281 = vmax.f32 %v148, %v1280
  %v1282 = vrot.slane %v1281, 2
  %v1283 = vmax.f32 %v1281, %v1282
  %v1284 = vrot.slane %v1283, 1
  %v1285 = vmax.f32 %v1283, %v1284
  %v1286 = vrot.slane %v149, 4
  %v1287 = vmax.f32 %v149, %v1286
  %v1288 = vrot.slane %v1287, 2
  %v1289 = vmax.f32 %v1287, %v1288
  %v1290 = vrot.slane %v1289, 1
  %v1291 = vmax.f32 %v1289, %v1290
  %v1292 = vrot.slane %v150, 4
  %v1293 = vmax.f32 %v150, %v1292
  %v1294 = vrot.slane %v1293, 2
  %v1295 = vmax.f32 %v1293, %v1294
  %v1296 = vrot.slane %v1295, 1
  %v1297 = vmax.f32 %v1295, %v1296
  %v1298 = vrot.slane %v151, 4
  %v1299 = vmax.f32 %v151, %v1298
  %v1300 = vrot.slane %v1299, 2
  %v1301 = vmax.f32 %v1299, %v1300
  %v1302 = vrot.slane %v1301, 1
  %v1303 = vmax.f32 %v1301, %v1302
  %v1304 = vrot.slane %v172, 4
  %v1305 = vmax.f32 %v172, %v1304
  %v1306 = vrot.slane %v1305, 2
  %v1307 = vmax.f32 %v1305, %v1306
  %v1308 = vrot.slane %v1307, 1
  %v1309 = vmax.f32 %v1307, %v1308
  %v1310 = vrot.slane %v173, 4
  %v1311 = vmax.f32 %v173, %v1310
  %v1312 = vrot.slane %v1311, 2
  %v1313 = vmax.f32 %v1311, %v1312
  %v1314 = vrot.slane %v1313, 1
  %v1315 = vmax.f32 %v1313, %v1314
  %v1316 = vrot.slane %v174, 4
  %v1317 = vmax.f32 %v174, %v1316
  %v1318 = vrot.slane %v1317, 2
  %v1319 = vmax.f32 %v1317, %v1318
  %v1320 = vrot.slane %v1319, 1
  %v1321 = vmax.f32 %v1319, %v1320
  %v1322 = vrot.slane %v175, 4
  %v1323 = vmax.f32 %v175, %v1322
  %v1324 = vrot.slane %v1323, 2
  %v1325 = vmax.f32 %v1323, %v1324
  %v1326 = vrot.slane %v1325, 1
  %v1327 = vmax.f32 %v1325, %v1326
  %v1328 = vrot.slane %v196, 4
  %v1329 = vmax.f32 %v196, %v1328
  %v1330 = vrot.slane %v1329, 2
  %v1331 = vmax.f32 %v1329, %v1330
  %v1332 = vrot.slane %v1331, 1
  %v1333 = vmax.f32 %v1331, %v1332
  %v1334 = vrot.slane %v197, 4
  %v1335 = vmax.f32 %v197, %v1334
  %v1336 = vrot.slane %v1335, 2
  %v1337 = vmax.f32 %v1335, %v1336
  %v1338 = vrot.slane %v1337, 1
  %v1339 = vmax.f32 %v1337, %v1338
  %v1340 = vrot.slane %v198, 4
  %v1341 = vmax.f32 %v198, %v1340
  %v1342 = vrot.slane %v1341, 2
  %v1343 = vmax.f32 %v1341, %v1342
  %v1344 = vrot.slane %v1343, 1
  %v1345 = vmax.f32 %v1343, %v1344
  %v1346 = vrot.slane %v199, 4
  %v1347 = vmax.f32 %v199, %v1346
  %v1348 = vrot.slane %v1347, 2
  %v1349 = vmax.f32 %v1347, %v1348
  %v1350 = vrot.slane %v1349, 1
  %v1351 = vmax.f32 %v1349, %v1350
  %vm1352 = vcmask 1043456
  %v1353 = vsel %vm1352, %v12, -inf
  %v1354 = vmax.f32 %v8, %v1353
  %v1355 = vrot.slane %v1354, 4
  %v1356 = vmax.f32 %v1354, %v1355
  %v1357 = vrot.slane %v1356, 2
  %v1358 = vmax.f32 %v1356, %v1357
  %v1359 = vrot.slane %v1358, 1
  %v1360 = vmax.f32 %v1358, %v1359
  %v1361 = vsel %vm1352, %v13, -inf
  %v1362 = vmax.f32 %v9, %v1361
  %v1363 = vrot.slane %v1362, 4
  %v1364 = vmax.f32 %v1362, %v1363
  %v1365 = vrot.slane %v1364, 2
  %v1366 = vmax.f32 %v1364, %v1365
  %v1367 = vrot.slane %v1366, 1
  %v1368 = vmax.f32 %v1366, %v1367
  %v1369 = vsel %vm1352, %v14, -inf
  %v1370 = vmax.f32 %v10, %v1369
  %v1371 = vrot.slane %v1370, 4
  %v1372 = vmax.f32 %v1370, %v1371
  %v1373 = vrot.slane %v1372, 2
  %v1374 = vmax.f32 %v1372, %v1373
  %v1375 = vrot.slane %v1374, 1
  %v1376 = vmax.f32 %v1374, %v1375
  %v1377 = vsel %vm1352, %v15, -inf
  %v1378 = vmax.f32 %v11, %v1377
  %v1379 = vrot.slane %v1378, 4
  %v1380 = vmax.f32 %v1378, %v1379
  %v1381 = vrot.slane %v1380, 2
  %v1382 = vmax.f32 %v1380, %v1381
  %v1383 = vrot.slane %v1382, 1
  %v1384 = vmax.f32 %v1382, %v1383
  %v1385 = vsel %vm1352, %v36, -inf
  %v1386 = vmax.f32 %v32, %v1385
  %v1387 = vrot.slane %v1386, 4
  %v1388 = vmax.f32 %v1386, %v1387
  %v1389 = vrot.slane %v1388, 2
  %v1390 = vmax.f32 %v1388, %v1389
  %v1391 = vrot.slane %v1390, 1
  %v1392 = vmax.f32 %v1390, %v1391
  %v1393 = vsel %vm1352, %v37, -inf
  %v1394 = vmax.f32 %v33, %v1393
  %v1395 = vrot.slane %v1394, 4
  %v1396 = vmax.f32 %v1394, %v1395
  %v1397 = vrot.slane %v1396, 2
  %v1398 = vmax.f32 %v1396, %v1397
  %v1399 = vrot.slane %v1398, 1
  %v1400 = vmax.f32 %v1398, %v1399
  %v1401 = vsel %vm1352, %v38, -inf
  %v1402 = vmax.f32 %v34, %v1401
  %v1403 = vrot.slane %v1402, 4
  %v1404 = vmax.f32 %v1402, %v1403
  %v1405 = vrot.slane %v1404, 2
  %v1406 = vmax.f32 %v1404, %v1405
  %v1407 = vrot.slane %v1406, 1
  %v1408 = vmax.f32 %v1406, %v1407
  %v1409 = vsel %vm1352, %v39, -inf
  %v1410 = vmax.f32 %v35, %v1409
  %v1411 = vrot.slane %v1410, 4
  %v1412 = vmax.f32 %v1410, %v1411
  %v1413 = vrot.slane %v1412, 2
  %v1414 = vmax.f32 %v1412, %v1413
  %v1415 = vrot.slane %v1414, 1
  %v1416 = vmax.f32 %v1414, %v1415
  %v1417 = vsel %vm1352, %v60, -inf
  %v1418 = vmax.f32 %v56, %v1417
  %v1419 = vrot.slane %v1418, 4
  %v1420 = vmax.f32 %v1418, %v1419
  %v1421 = vrot.slane %v1420, 2
  %v1422 = vmax.f32 %v1420, %v1421
  %v1423 = vrot.slane %v1422, 1
  %v1424 = vmax.f32 %v1422, %v1423
  %v1425 = vsel %vm1352, %v61, -inf
  %v1426 = vmax.f32 %v57, %v1425
  %v1427 = vrot.slane %v1426, 4
  %v1428 = vmax.f32 %v1426, %v1427
  %v1429 = vrot.slane %v1428, 2
  %v1430 = vmax.f32 %v1428, %v1429
  %v1431 = vrot.slane %v1430, 1
  %v1432 = vmax.f32 %v1430, %v1431
  %v1433 = vsel %vm1352, %v62, -inf
  %v1434 = vmax.f32 %v58, %v1433
  %v1435 = vrot.slane %v1434, 4
  %v1436 = vmax.f32 %v1434, %v1435
  %v1437 = vrot.slane %v1436, 2
  %v1438 = vmax.f32 %v1436, %v1437
  %v1439 = vrot.slane %v1438, 1
  %v1440 = vmax.f32 %v1438, %v1439
  %v1441 = vsel %vm1352, %v63, -inf
  %v1442 = vmax.f32 %v59, %v1441
  %v1443 = vrot.slane %v1442, 4
  %v1444 = vmax.f32 %v1442, %v1443
  %v1445 = vrot.slane %v1444, 2
  %v1446 = vmax.f32 %v1444, %v1445
  %v1447 = vrot.slane %v1446, 1
  %v1448 = vmax.f32 %v1446, %v1447
  %v1449 = vsel %vm1352, %v84, -inf
  %v1450 = vmax.f32 %v80, %v1449
  %v1451 = vrot.slane %v1450, 4
  %v1452 = vmax.f32 %v1450, %v1451
  %v1453 = vrot.slane %v1452, 2
  %v1454 = vmax.f32 %v1452, %v1453
  %v1455 = vrot.slane %v1454, 1
  %v1456 = vmax.f32 %v1454, %v1455
  %v1457 = vsel %vm1352, %v85, -inf
  %v1458 = vmax.f32 %v81, %v1457
  %v1459 = vrot.slane %v1458, 4
  %v1460 = vmax.f32 %v1458, %v1459
  %v1461 = vrot.slane %v1460, 2
  %v1462 = vmax.f32 %v1460, %v1461
  %v1463 = vrot.slane %v1462, 1
  %v1464 = vmax.f32 %v1462, %v1463
  %v1465 = vsel %vm1352, %v86, -inf
  %v1466 = vmax.f32 %v82, %v1465
  %v1467 = vrot.slane %v1466, 4
  %v1468 = vmax.f32 %v1466, %v1467
  %v1469 = vrot.slane %v1468, 2
  %v1470 = vmax.f32 %v1468, %v1469
  %v1471 = vrot.slane %v1470, 1
  %v1472 = vmax.f32 %v1470, %v1471
  %v1473 = vsel %vm1352, %v87, -inf
  %v1474 = vmax.f32 %v83, %v1473
  %v1475 = vrot.slane %v1474, 4
  %v1476 = vmax.f32 %v1474, %v1475
  %v1477 = vrot.slane %v1476, 2
  %v1478 = vmax.f32 %v1476, %v1477
  %v1479 = vrot.slane %v1478, 1
  %v1480 = vmax.f32 %v1478, %v1479
  %v1481 = vsel %vm1352, %v108, -inf
  %v1482 = vmax.f32 %v104, %v1481
  %v1483 = vrot.slane %v1482, 4
  %v1484 = vmax.f32 %v1482, %v1483
  %v1485 = vrot.slane %v1484, 2
  %v1486 = vmax.f32 %v1484, %v1485
  %v1487 = vrot.slane %v1486, 1
  %v1488 = vmax.f32 %v1486, %v1487
  %v1489 = vsel %vm1352, %v109, -inf
  %v1490 = vmax.f32 %v105, %v1489
  %v1491 = vrot.slane %v1490, 4
  %v1492 = vmax.f32 %v1490, %v1491
  %v1493 = vrot.slane %v1492, 2
  %v1494 = vmax.f32 %v1492, %v1493
  %v1495 = vrot.slane %v1494, 1
  %v1496 = vmax.f32 %v1494, %v1495
  %v1497 = vsel %vm1352, %v110, -inf
  %v1498 = vmax.f32 %v106, %v1497
  %v1499 = vrot.slane %v1498, 4
  %v1500 = vmax.f32 %v1498, %v1499
  %v1501 = vrot.slane %v1500, 2
  %v1502 = vmax.f32 %v1500, %v1501
  %v1503 = vrot.slane %v1502, 1
  %v1504 = vmax.f32 %v1502, %v1503
  %v1505 = vsel %vm1352, %v111, -inf
  %v1506 = vmax.f32 %v107, %v1505
  %v1507 = vrot.slane %v1506, 4
  %v1508 = vmax.f32 %v1506, %v1507
  %v1509 = vrot.slane %v1508, 2
  %v1510 = vmax.f32 %v1508, %v1509
  %v1511 = vrot.slane %v1510, 1
  %v1512 = vmax.f32 %v1510, %v1511
  %v1513 = vsel %vm1352, %v132, -inf
  %v1514 = vmax.f32 %v128, %v1513
  %v1515 = vrot.slane %v1514, 4
  %v1516 = vmax.f32 %v1514, %v1515
  %v1517 = vrot.slane %v1516, 2
  %v1518 = vmax.f32 %v1516, %v1517
  %v1519 = vrot.slane %v1518, 1
  %v1520 = vmax.f32 %v1518, %v1519
  %v1521 = vsel %vm1352, %v133, -inf
  %v1522 = vmax.f32 %v129, %v1521
  %v1523 = vrot.slane %v1522, 4
  %v1524 = vmax.f32 %v1522, %v1523
  %v1525 = vrot.slane %v1524, 2
  %v1526 = vmax.f32 %v1524, %v1525
  %v1527 = vrot.slane %v1526, 1
  %v1528 = vmax.f32 %v1526, %v1527
  %v1529 = vsel %vm1352, %v134, -inf
  %v1530 = vmax.f32 %v130, %v1529
  %v1531 = vrot.slane %v1530, 4
  %v1532 = vmax.f32 %v1530, %v1531
  %v1533 = vrot.slane %v1532, 2
  %v1534 = vmax.f32 %v1532, %v1533
  %v1535 = vrot.slane %v1534, 1
  %v1536 = vmax.f32 %v1534, %v1535
  %v1537 = vsel %vm1352, %v135, -inf
  %v1538 = vmax.f32 %v131, %v1537
  %v1539 = vrot.slane %v1538, 4
  %v1540 = vmax.f32 %v1538, %v1539
  %v1541 = vrot.slane %v1540, 2
  %v1542 = vmax.f32 %v1540, %v1541
  %v1543 = vrot.slane %v1542, 1
  %v1544 = vmax.f32 %v1542, %v1543
  %v1545 = vsel %vm1352, %v156, -inf
  %v1546 = vmax.f32 %v152, %v1545
  %v1547 = vrot.slane %v1546, 4
  %v1548 = vmax.f32 %v1546, %v1547
  %v1549 = vrot.slane %v1548, 2
  %v1550 = vmax.f32 %v1548, %v1549
  %v1551 = vrot.slane %v1550, 1
  %v1552 = vmax.f32 %v1550, %v1551
  %v1553 = vsel %vm1352, %v157, -inf
  %v1554 = vmax.f32 %v153, %v1553
  %v1555 = vrot.slane %v1554, 4
  %v1556 = vmax.f32 %v1554, %v1555
  %v1557 = vrot.slane %v1556, 2
  %v1558 = vmax.f32 %v1556, %v1557
  %v1559 = vrot.slane %v1558, 1
  %v1560 = vmax.f32 %v1558, %v1559
  %v1561 = vsel %vm1352, %v158, -inf
  %v1562 = vmax.f32 %v154, %v1561
  %v1563 = vrot.slane %v1562, 4
  %v1564 = vmax.f32 %v1562, %v1563
  %v1565 = vrot.slane %v1564, 2
  %v1566 = vmax.f32 %v1564, %v1565
  %v1567 = vrot.slane %v1566, 1
  %v1568 = vmax.f32 %v1566, %v1567
  %v1569 = vsel %vm1352, %v159, -inf
  %v1570 = vmax.f32 %v155, %v1569
  %v1571 = vrot.slane %v1570, 4
  %v1572 = vmax.f32 %v1570, %v1571
  %v1573 = vrot.slane %v1572, 2
  %v1574 = vmax.f32 %v1572, %v1573
  %v1575 = vrot.slane %v1574, 1
  %v1576 = vmax.f32 %v1574, %v1575
  %v1577 = vsel %vm1352, %v180, -inf
  %v1578 = vmax.f32 %v176, %v1577
  %v1579 = vrot.slane %v1578, 4
  %v1580 = vmax.f32 %v1578, %v1579
  %v1581 = vrot.slane %v1580, 2
  %v1582 = vmax.f32 %v1580, %v1581
  %v1583 = vrot.slane %v1582, 1
  %v1584 = vmax.f32 %v1582, %v1583
  %v1585 = vsel %vm1352, %v181, -inf
  %v1586 = vmax.f32 %v177, %v1585
  %v1587 = vrot.slane %v1586, 4
  %v1588 = vmax.f32 %v1586, %v1587
  %v1589 = vrot.slane %v1588, 2
  %v1590 = vmax.f32 %v1588, %v1589
  %v1591 = vrot.slane %v1590, 1
  %v1592 = vmax.f32 %v1590, %v1591
  %v1593 = vsel %vm1352, %v182, -inf
  %v1594 = vmax.f32 %v178, %v1593
  %v1595 = vrot.slane %v1594, 4
  %v1596 = vmax.f32 %v1594, %v1595
  %v1597 = vrot.slane %v1596, 2
  %v1598 = vmax.f32 %v1596, %v1597
  %v1599 = vrot.slane %v1598, 1
  %v1600 = vmax.f32 %v1598, %v1599
  %v1601 = vsel %vm1352, %v183, -inf
  %v1602 = vmax.f32 %v179, %v1601
  %v1603 = vrot.slane %v1602, 4
  %v1604 = vmax.f32 %v1602, %v1603
  %v1605 = vrot.slane %v1604, 2
  %v1606 = vmax.f32 %v1604, %v1605
  %v1607 = vrot.slane %v1606, 1
  %v1608 = vmax.f32 %v1606, %v1607
  %vm1609 = vcmask 1047556
  %v1610 = vsel %vm1609, %v12, -inf
  %v1611 = vmax.f32 %v1610, %v16
  %v1612 = vrot.slane %v1611, 4
  %v1613 = vmax.f32 %v1611, %v1612
  %v1614 = vrot.slane %v1613, 2
  %v1615 = vmax.f32 %v1613, %v1614
  %v1616 = vrot.slane %v1615, 1
  %v1617 = vmax.f32 %v1615, %v1616
  %v1618 = vsel %vm1609, %v13, -inf
  %v1619 = vmax.f32 %v1618, %v17
  %v1620 = vrot.slane %v1619, 4
  %v1621 = vmax.f32 %v1619, %v1620
  %v1622 = vrot.slane %v1621, 2
  %v1623 = vmax.f32 %v1621, %v1622
  %v1624 = vrot.slane %v1623, 1
  %v1625 = vmax.f32 %v1623, %v1624
  %v1626 = vsel %vm1609, %v14, -inf
  %v1627 = vmax.f32 %v1626, %v18
  %v1628 = vrot.slane %v1627, 4
  %v1629 = vmax.f32 %v1627, %v1628
  %v1630 = vrot.slane %v1629, 2
  %v1631 = vmax.f32 %v1629, %v1630
  %v1632 = vrot.slane %v1631, 1
  %v1633 = vmax.f32 %v1631, %v1632
  %v1634 = vsel %vm1609, %v15, -inf
  %v1635 = vmax.f32 %v1634, %v19
  %v1636 = vrot.slane %v1635, 4
  %v1637 = vmax.f32 %v1635, %v1636
  %v1638 = vrot.slane %v1637, 2
  %v1639 = vmax.f32 %v1637, %v1638
  %v1640 = vrot.slane %v1639, 1
  %v1641 = vmax.f32 %v1639, %v1640
  %v1642 = vsel %vm1609, %v36, -inf
  %v1643 = vmax.f32 %v1642, %v40
  %v1644 = vrot.slane %v1643, 4
  %v1645 = vmax.f32 %v1643, %v1644
  %v1646 = vrot.slane %v1645, 2
  %v1647 = vmax.f32 %v1645, %v1646
  %v1648 = vrot.slane %v1647, 1
  %v1649 = vmax.f32 %v1647, %v1648
  %v1650 = vsel %vm1609, %v37, -inf
  %v1651 = vmax.f32 %v1650, %v41
  %v1652 = vrot.slane %v1651, 4
  %v1653 = vmax.f32 %v1651, %v1652
  %v1654 = vrot.slane %v1653, 2
  %v1655 = vmax.f32 %v1653, %v1654
  %v1656 = vrot.slane %v1655, 1
  %v1657 = vmax.f32 %v1655, %v1656
  %v1658 = vsel %vm1609, %v38, -inf
  %v1659 = vmax.f32 %v1658, %v42
  %v1660 = vrot.slane %v1659, 4
  %v1661 = vmax.f32 %v1659, %v1660
  %v1662 = vrot.slane %v1661, 2
  %v1663 = vmax.f32 %v1661, %v1662
  %v1664 = vrot.slane %v1663, 1
  %v1665 = vmax.f32 %v1663, %v1664
  %v1666 = vsel %vm1609, %v39, -inf
  %v1667 = vmax.f32 %v1666, %v43
  %v1668 = vrot.slane %v1667, 4
  %v1669 = vmax.f32 %v1667, %v1668
  %v1670 = vrot.slane %v1669, 2
  %v1671 = vmax.f32 %v1669, %v1670
  %v1672 = vrot.slane %v1671, 1
  %v1673 = vmax.f32 %v1671, %v1672
  %v1674 = vsel %vm1609, %v60, -inf
  %v1675 = vmax.f32 %v1674, %v64
  %v1676 = vrot.slane %v1675, 4
  %v1677 = vmax.f32 %v1675, %v1676
  %v1678 = vrot.slane %v1677, 2
  %v1679 = vmax.f32 %v1677, %v1678
  %v1680 = vrot.slane %v1679, 1
  %v1681 = vmax.f32 %v1679, %v1680
  %v1682 = vsel %vm1609, %v61, -inf
  %v1683 = vmax.f32 %v1682, %v65
  %v1684 = vrot.slane %v1683, 4
  %v1685 = vmax.f32 %v1683, %v1684
  %v1686 = vrot.slane %v1685, 2
  %v1687 = vmax.f32 %v1685, %v1686
  %v1688 = vrot.slane %v1687, 1
  %v1689 = vmax.f32 %v1687, %v1688
  %v1690 = vsel %vm1609, %v62, -inf
  %v1691 = vmax.f32 %v1690, %v66
  %v1692 = vrot.slane %v1691, 4
  %v1693 = vmax.f32 %v1691, %v1692
  %v1694 = vrot.slane %v1693, 2
  %v1695 = vmax.f32 %v1693, %v1694
  %v1696 = vrot.slane %v1695, 1
  %v1697 = vmax.f32 %v1695, %v1696
  %v1698 = vsel %vm1609, %v63, -inf
  %v1699 = vmax.f32 %v1698, %v67
  %v1700 = vrot.slane %v1699, 4
  %v1701 = vmax.f32 %v1699, %v1700
  %v1702 = vrot.slane %v1701, 2
  %v1703 = vmax.f32 %v1701, %v1702
  %v1704 = vrot.slane %v1703, 1
  %v1705 = vmax.f32 %v1703, %v1704
  %v1706 = vsel %vm1609, %v84, -inf
  %v1707 = vmax.f32 %v1706, %v88
  %v1708 = vrot.slane %v1707, 4
  %v1709 = vmax.f32 %v1707, %v1708
  %v1710 = vrot.slane %v1709, 2
  %v1711 = vmax.f32 %v1709, %v1710
  %v1712 = vrot.slane %v1711, 1
  %v1713 = vmax.f32 %v1711, %v1712
  %v1714 = vsel %vm1609, %v85, -inf
  %v1715 = vmax.f32 %v1714, %v89
  %v1716 = vrot.slane %v1715, 4
  %v1717 = vmax.f32 %v1715, %v1716
  %v1718 = vrot.slane %v1717, 2
  %v1719 = vmax.f32 %v1717, %v1718
  %v1720 = vrot.slane %v1719, 1
  %v1721 = vmax.f32 %v1719, %v1720
  %v1722 = vsel %vm1609, %v86, -inf
  %v1723 = vmax.f32 %v1722, %v90
  %v1724 = vrot.slane %v1723, 4
  %v1725 = vmax.f32 %v1723, %v1724
  %v1726 = vrot.slane %v1725, 2
  %v1727 = vmax.f32 %v1725, %v1726
  %v1728 = vrot.slane %v1727, 1
  %v1729 = vmax.f32 %v1727, %v1728
  %v1730 = vsel %vm1609, %v87, -inf
  %v1731 = vmax.f32 %v1730, %v91
  %v1732 = vrot.slane %v1731, 4
  %v1733 = vmax.f32 %v1731, %v1732
  %v1734 = vrot.slane %v1733, 2
  %v1735 = vmax.f32 %v1733, %v1734
  %v1736 = vrot.slane %v1735, 1
  %v1737 = vmax.f32 %v1735, %v1736
  %v1738 = vsel %vm1609, %v108, -inf
  %v1739 = vmax.f32 %v1738, %v112
  %v1740 = vrot.slane %v1739, 4
  %v1741 = vmax.f32 %v1739, %v1740
  %v1742 = vrot.slane %v1741, 2
  %v1743 = vmax.f32 %v1741, %v1742
  %v1744 = vrot.slane %v1743, 1
  %v1745 = vmax.f32 %v1743, %v1744
  %v1746 = vsel %vm1609, %v109, -inf
  %v1747 = vmax.f32 %v1746, %v113
  %v1748 = vrot.slane %v1747, 4
  %v1749 = vmax.f32 %v1747, %v1748
  %v1750 = vrot.slane %v1749, 2
  %v1751 = vmax.f32 %v1749, %v1750
  %v1752 = vrot.slane %v1751, 1
  %v1753 = vmax.f32 %v1751, %v1752
  %v1754 = vsel %vm1609, %v110, -inf
  %v1755 = vmax.f32 %v1754, %v114
  %v1756 = vrot.slane %v1755, 4
  %v1757 = vmax.f32 %v1755, %v1756
  %v1758 = vrot.slane %v1757, 2
  %v1759 = vmax.f32 %v1757, %v1758
  %v1760 = vrot.slane %v1759, 1
  %v1761 = vmax.f32 %v1759, %v1760
  %v1762 = vsel %vm1609, %v111, -inf
  %v1763 = vmax.f32 %v1762, %v115
  %v1764 = vrot.slane %v1763, 4
  %v1765 = vmax.f32 %v1763, %v1764
  %v1766 = vrot.slane %v1765, 2
  %v1767 = vmax.f32 %v1765, %v1766
  %v1768 = vrot.slane %v1767, 1
  %v1769 = vmax.f32 %v1767, %v1768
  %v1770 = vsel %vm1609, %v132, -inf
  %v1771 = vmax.f32 %v1770, %v136
  %v1772 = vrot.slane %v1771, 4
  %v1773 = vmax.f32 %v1771, %v1772
  %v1774 = vrot.slane %v1773, 2
  %v1775 = vmax.f32 %v1773, %v1774
  %v1776 = vrot.slane %v1775, 1
  %v1777 = vmax.f32 %v1775, %v1776
  %v1778 = vsel %vm1609, %v133, -inf
  %v1779 = vmax.f32 %v1778, %v137
  %v1780 = vrot.slane %v1779, 4
  %v1781 = vmax.f32 %v1779, %v1780
  %v1782 = vrot.slane %v1781, 2
  %v1783 = vmax.f32 %v1781, %v1782
  %v1784 = vrot.slane %v1783, 1
  %v1785 = vmax.f32 %v1783, %v1784
  %v1786 = vsel %vm1609, %v134, -inf
  %v1787 = vmax.f32 %v1786, %v138
  %v1788 = vrot.slane %v1787, 4
  %v1789 = vmax.f32 %v1787, %v1788
  %v1790 = vrot.slane %v1789, 2
  %v1791 = vmax.f32 %v1789, %v1790
  %v1792 = vrot.slane %v1791, 1
  %v1793 = vmax.f32 %v1791, %v1792
  %v1794 = vsel %vm1609, %v135, -inf
  %v1795 = vmax.f32 %v1794, %v139
  %v1796 = vrot.slane %v1795, 4
  %v1797 = vmax.f32 %v1795, %v1796
  %v1798 = vrot.slane %v1797, 2
  %v1799 = vmax.f32 %v1797, %v1798
  %v1800 = vrot.slane %v1799, 1
  %v1801 = vmax.f32 %v1799, %v1800
  %v1802 = vsel %vm1609, %v156, -inf
  %v1803 = vmax.f32 %v1802, %v160
  %v1804 = vrot.slane %v1803, 4
  %v1805 = vmax.f32 %v1803, %v1804
  %v1806 = vrot.slane %v1805, 2
  %v1807 = vmax.f32 %v1805, %v1806
  %v1808 = vrot.slane %v1807, 1
  %v1809 = vmax.f32 %v1807, %v1808
  %v1810 = vsel %vm1609, %v157, -inf
  %v1811 = vmax.f32 %v1810, %v161
  %v1812 = vrot.slane %v1811, 4
  %v1813 = vmax.f32 %v1811, %v1812
  %v1814 = vrot.slane %v1813, 2
  %v1815 = vmax.f32 %v1813, %v1814
  %v1816 = vrot.slane %v1815, 1
  %v1817 = vmax.f32 %v1815, %v1816
  %v1818 = vsel %vm1609, %v158, -inf
  %v1819 = vmax.f32 %v1818, %v162
  %v1820 = vrot.slane %v1819, 4
  %v1821 = vmax.f32 %v1819, %v1820
  %v1822 = vrot.slane %v1821, 2
  %v1823 = vmax.f32 %v1821, %v1822
  %v1824 = vrot.slane %v1823, 1
  %v1825 = vmax.f32 %v1823, %v1824
  %v1826 = vsel %vm1609, %v159, -inf
  %v1827 = vmax.f32 %v1826, %v163
  %v1828 = vrot.slane %v1827, 4
  %v1829 = vmax.f32 %v1827, %v1828
  %v1830 = vrot.slane %v1829, 2
  %v1831 = vmax.f32 %v1829, %v1830
  %v1832 = vrot.slane %v1831, 1
  %v1833 = vmax.f32 %v1831, %v1832
  %v1834 = vsel %vm1609, %v180, -inf
  %v1835 = vmax.f32 %v1834, %v184
  %v1836 = vrot.slane %v1835, 4
  %v1837 = vmax.f32 %v1835, %v1836
  %v1838 = vrot.slane %v1837, 2
  %v1839 = vmax.f32 %v1837, %v1838
  %v1840 = vrot.slane %v1839, 1
  %v1841 = vmax.f32 %v1839, %v1840
  %v1842 = vsel %vm1609, %v181, -inf
  %v1843 = vmax.f32 %v1842, %v185
  %v1844 = vrot.slane %v1843, 4
  %v1845 = vmax.f32 %v1843, %v1844
  %v1846 = vrot.slane %v1845, 2
  %v1847 = vmax.f32 %v1845, %v1846
  %v1848 = vrot.slane %v1847, 1
  %v1849 = vmax.f32 %v1847, %v1848
  %v1850 = vsel %vm1609, %v182, -inf
  %v1851 = vmax.f32 %v1850, %v186
  %v1852 = vrot.slane %v1851, 4
  %v1853 = vmax.f32 %v1851, %v1852
  %v1854 = vrot.slane %v1853, 2
  %v1855 = vmax.f32 %v1853, %v1854
  %v1856 = vrot.slane %v1855, 1
  %v1857 = vmax.f32 %v1855, %v1856
  %v1858 = vsel %vm1609, %v183, -inf
  %v1859 = vmax.f32 %v1858, %v187
  %v1860 = vrot.slane %v1859, 4
  %v1861 = vmax.f32 %v1859, %v1860
  %v1862 = vrot.slane %v1861, 2
  %v1863 = vmax.f32 %v1861, %v1862
  %v1864 = vrot.slane %v1863, 1
  %v1865 = vmax.f32 %v1863, %v1864
  %v1866 = vsel %vm1352, %v24, -inf
  %v1867 = vmax.f32 %v20, %v1866
  %v1868 = vrot.slane %v1867, 4
  %v1869 = vmax.f32 %v1867, %v1868
  %v1870 = vrot.slane %v1869, 2
  %v1871 = vmax.f32 %v1869, %v1870
  %v1872 = vrot.slane %v1871, 1
  %v1873 = vmax.f32 %v1871, %v1872
  %v1874 = vsel %vm1352, %v25, -inf
  %v1875 = vmax.f32 %v21, %v1874
  %v1876 = vrot.slane %v1875, 4
  %v1877 = vmax.f32 %v1875, %v1876
  %v1878 = vrot.slane %v1877, 2
  %v1879 = vmax.f32 %v1877, %v1878
  %v1880 = vrot.slane %v1879, 1
  %v1881 = vmax.f32 %v1879, %v1880
  %v1882 = vsel %vm1352, %v26, -inf
  %v1883 = vmax.f32 %v22, %v1882
  %v1884 = vrot.slane %v1883, 4
  %v1885 = vmax.f32 %v1883, %v1884
  %v1886 = vrot.slane %v1885, 2
  %v1887 = vmax.f32 %v1885, %v1886
  %v1888 = vrot.slane %v1887, 1
  %v1889 = vmax.f32 %v1887, %v1888
  %v1890 = vsel %vm1352, %v27, -inf
  %v1891 = vmax.f32 %v23, %v1890
  %v1892 = vrot.slane %v1891, 4
  %v1893 = vmax.f32 %v1891, %v1892
  %v1894 = vrot.slane %v1893, 2
  %v1895 = vmax.f32 %v1893, %v1894
  %v1896 = vrot.slane %v1895, 1
  %v1897 = vmax.f32 %v1895, %v1896
  %v1898 = vsel %vm1352, %v48, -inf
  %v1899 = vmax.f32 %v44, %v1898
  %v1900 = vrot.slane %v1899, 4
  %v1901 = vmax.f32 %v1899, %v1900
  %v1902 = vrot.slane %v1901, 2
  %v1903 = vmax.f32 %v1901, %v1902
  %v1904 = vrot.slane %v1903, 1
  %v1905 = vmax.f32 %v1903, %v1904
  %v1906 = vsel %vm1352, %v49, -inf
  %v1907 = vmax.f32 %v45, %v1906
  %v1908 = vrot.slane %v1907, 4
  %v1909 = vmax.f32 %v1907, %v1908
  %v1910 = vrot.slane %v1909, 2
  %v1911 = vmax.f32 %v1909, %v1910
  %v1912 = vrot.slane %v1911, 1
  %v1913 = vmax.f32 %v1911, %v1912
  %v1914 = vsel %vm1352, %v50, -inf
  %v1915 = vmax.f32 %v46, %v1914
  %v1916 = vrot.slane %v1915, 4
  %v1917 = vmax.f32 %v1915, %v1916
  %v1918 = vrot.slane %v1917, 2
  %v1919 = vmax.f32 %v1917, %v1918
  %v1920 = vrot.slane %v1919, 1
  %v1921 = vmax.f32 %v1919, %v1920
  %v1922 = vsel %vm1352, %v51, -inf
  %v1923 = vmax.f32 %v47, %v1922
  %v1924 = vrot.slane %v1923, 4
  %v1925 = vmax.f32 %v1923, %v1924
  %v1926 = vrot.slane %v1925, 2
  %v1927 = vmax.f32 %v1925, %v1926
  %v1928 = vrot.slane %v1927, 1
  %v1929 = vmax.f32 %v1927, %v1928
  %v1930 = vsel %vm1352, %v72, -inf
  %v1931 = vmax.f32 %v68, %v1930
  %v1932 = vrot.slane %v1931, 4
  %v1933 = vmax.f32 %v1931, %v1932
  %v1934 = vrot.slane %v1933, 2
  %v1935 = vmax.f32 %v1933, %v1934
  %v1936 = vrot.slane %v1935, 1
  %v1937 = vmax.f32 %v1935, %v1936
  %v1938 = vsel %vm1352, %v73, -inf
  %v1939 = vmax.f32 %v69, %v1938
  %v1940 = vrot.slane %v1939, 4
  %v1941 = vmax.f32 %v1939, %v1940
  %v1942 = vrot.slane %v1941, 2
  %v1943 = vmax.f32 %v1941, %v1942
  %v1944 = vrot.slane %v1943, 1
  %v1945 = vmax.f32 %v1943, %v1944
  %v1946 = vsel %vm1352, %v74, -inf
  %v1947 = vmax.f32 %v70, %v1946
  %v1948 = vrot.slane %v1947, 4
  %v1949 = vmax.f32 %v1947, %v1948
  %v1950 = vrot.slane %v1949, 2
  %v1951 = vmax.f32 %v1949, %v1950
  %v1952 = vrot.slane %v1951, 1
  %v1953 = vmax.f32 %v1951, %v1952
  %v1954 = vsel %vm1352, %v75, -inf
  %v1955 = vmax.f32 %v71, %v1954
  %v1956 = vrot.slane %v1955, 4
  %v1957 = vmax.f32 %v1955, %v1956
  %v1958 = vrot.slane %v1957, 2
  %v1959 = vmax.f32 %v1957, %v1958
  %v1960 = vrot.slane %v1959, 1
  %v1961 = vmax.f32 %v1959, %v1960
  %v1962 = vsel %vm1352, %v96, -inf
  %v1963 = vmax.f32 %v92, %v1962
  %v1964 = vrot.slane %v1963, 4
  %v1965 = vmax.f32 %v1963, %v1964
  %v1966 = vrot.slane %v1965, 2
  %v1967 = vmax.f32 %v1965, %v1966
  %v1968 = vrot.slane %v1967, 1
  %v1969 = vmax.f32 %v1967, %v1968
  %v1970 = vsel %vm1352, %v97, -inf
  %v1971 = vmax.f32 %v93, %v1970
  %v1972 = vrot.slane %v1971, 4
  %v1973 = vmax.f32 %v1971, %v1972
  %v1974 = vrot.slane %v1973, 2
  %v1975 = vmax.f32 %v1973, %v1974
  %v1976 = vrot.slane %v1975, 1
  %v1977 = vmax.f32 %v1975, %v1976
  %v1978 = vsel %vm1352, %v98, -inf
  %v1979 = vmax.f32 %v94, %v1978
  %v1980 = vrot.slane %v1979, 4
  %v1981 = vmax.f32 %v1979, %v1980
  %v1982 = vrot.slane %v1981, 2
  %v1983 = vmax.f32 %v1981, %v1982
  %v1984 = vrot.slane %v1983, 1
  %v1985 = vmax.f32 %v1983, %v1984
  %v1986 = vsel %vm1352, %v99, -inf
  %v1987 = vmax.f32 %v95, %v1986
  %v1988 = vrot.slane %v1987, 4
  %v1989 = vmax.f32 %v1987, %v1988
  %v1990 = vrot.slane %v1989, 2
  %v1991 = vmax.f32 %v1989, %v1990
  %v1992 = vrot.slane %v1991, 1
  %v1993 = vmax.f32 %v1991, %v1992
  %v1994 = vsel %vm1352, %v120, -inf
  %v1995 = vmax.f32 %v116, %v1994
  %v1996 = vrot.slane %v1995, 4
  %v1997 = vmax.f32 %v1995, %v1996
  %v1998 = vrot.slane %v1997, 2
  %v1999 = vmax.f32 %v1997, %v1998
  %v2000 = vrot.slane %v1999, 1
  %v2001 = vmax.f32 %v1999, %v2000
  %v2002 = vsel %vm1352, %v121, -inf
  %v2003 = vmax.f32 %v117, %v2002
  %v2004 = vrot.slane %v2003, 4
  %v2005 = vmax.f32 %v2003, %v2004
  %v2006 = vrot.slane %v2005, 2
  %v2007 = vmax.f32 %v2005, %v2006
  %v2008 = vrot.slane %v2007, 1
  %v2009 = vmax.f32 %v2007, %v2008
  %v2010 = vsel %vm1352, %v122, -inf
  %v2011 = vmax.f32 %v118, %v2010
  %v2012 = vrot.slane %v2011, 4
  %v2013 = vmax.f32 %v2011, %v2012
  %v2014 = vrot.slane %v2013, 2
  %v2015 = vmax.f32 %v2013, %v2014
  %v2016 = vrot.slane %v2015, 1
  %v2017 = vmax.f32 %v2015, %v2016
  %v2018 = vsel %vm1352, %v123, -inf
  %v2019 = vmax.f32 %v119, %v2018
  %v2020 = vrot.slane %v2019, 4
  %v2021 = vmax.f32 %v2019, %v2020
  %v2022 = vrot.slane %v2021, 2
  %v2023 = vmax.f32 %v2021, %v2022
  %v2024 = vrot.slane %v2023, 1
  %v2025 = vmax.f32 %v2023, %v2024
  %v2026 = vsel %vm1352, %v144, -inf
  %v2027 = vmax.f32 %v140, %v2026
  %v2028 = vrot.slane %v2027, 4
  %v2029 = vmax.f32 %v2027, %v2028
  %v2030 = vrot.slane %v2029, 2
  %v2031 = vmax.f32 %v2029, %v2030
  %v2032 = vrot.slane %v2031, 1
  %v2033 = vmax.f32 %v2031, %v2032
  %v2034 = vsel %vm1352, %v145, -inf
  %v2035 = vmax.f32 %v141, %v2034
  %v2036 = vrot.slane %v2035, 4
  %v2037 = vmax.f32 %v2035, %v2036
  %v2038 = vrot.slane %v2037, 2
  %v2039 = vmax.f32 %v2037, %v2038
  %v2040 = vrot.slane %v2039, 1
  %v2041 = vmax.f32 %v2039, %v2040
  %v2042 = vsel %vm1352, %v146, -inf
  %v2043 = vmax.f32 %v142, %v2042
  %v2044 = vrot.slane %v2043, 4
  %v2045 = vmax.f32 %v2043, %v2044
  %v2046 = vrot.slane %v2045, 2
  %v2047 = vmax.f32 %v2045, %v2046
  %v2048 = vrot.slane %v2047, 1
  %v2049 = vmax.f32 %v2047, %v2048
  %v2050 = vsel %vm1352, %v147, -inf
  %v2051 = vmax.f32 %v143, %v2050
  %v2052 = vrot.slane %v2051, 4
  %v2053 = vmax.f32 %v2051, %v2052
  %v2054 = vrot.slane %v2053, 2
  %v2055 = vmax.f32 %v2053, %v2054
  %v2056 = vrot.slane %v2055, 1
  %v2057 = vmax.f32 %v2055, %v2056
  %v2058 = vsel %vm1352, %v168, -inf
  %v2059 = vmax.f32 %v164, %v2058
  %v2060 = vrot.slane %v2059, 4
  %v2061 = vmax.f32 %v2059, %v2060
  %v2062 = vrot.slane %v2061, 2
  %v2063 = vmax.f32 %v2061, %v2062
  %v2064 = vrot.slane %v2063, 1
  %v2065 = vmax.f32 %v2063, %v2064
  %v2066 = vsel %vm1352, %v169, -inf
  %v2067 = vmax.f32 %v165, %v2066
  %v2068 = vrot.slane %v2067, 4
  %v2069 = vmax.f32 %v2067, %v2068
  %v2070 = vrot.slane %v2069, 2
  %v2071 = vmax.f32 %v2069, %v2070
  %v2072 = vrot.slane %v2071, 1
  %v2073 = vmax.f32 %v2071, %v2072
  %v2074 = vsel %vm1352, %v170, -inf
  %v2075 = vmax.f32 %v166, %v2074
  %v2076 = vrot.slane %v2075, 4
  %v2077 = vmax.f32 %v2075, %v2076
  %v2078 = vrot.slane %v2077, 2
  %v2079 = vmax.f32 %v2077, %v2078
  %v2080 = vrot.slane %v2079, 1
  %v2081 = vmax.f32 %v2079, %v2080
  %v2082 = vsel %vm1352, %v171, -inf
  %v2083 = vmax.f32 %v167, %v2082
  %v2084 = vrot.slane %v2083, 4
  %v2085 = vmax.f32 %v2083, %v2084
  %v2086 = vrot.slane %v2085, 2
  %v2087 = vmax.f32 %v2085, %v2086
  %v2088 = vrot.slane %v2087, 1
  %v2089 = vmax.f32 %v2087, %v2088
  %v2090 = vsel %vm1352, %v192, -inf
  %v2091 = vmax.f32 %v188, %v2090
  %v2092 = vrot.slane %v2091, 4
  %v2093 = vmax.f32 %v2091, %v2092
  %v2094 = vrot.slane %v2093, 2
  %v2095 = vmax.f32 %v2093, %v2094
  %v2096 = vrot.slane %v2095, 1
  %v2097 = vmax.f32 %v2095, %v2096
  %v2098 = vsel %vm1352, %v193, -inf
  %v2099 = vmax.f32 %v189, %v2098
  %v2100 = vrot.slane %v2099, 4
  %v2101 = vmax.f32 %v2099, %v2100
  %v2102 = vrot.slane %v2101, 2
  %v2103 = vmax.f32 %v2101, %v2102
  %v2104 = vrot.slane %v2103, 1
  %v2105 = vmax.f32 %v2103, %v2104
  %v2106 = vsel %vm1352, %v194, -inf
  %v2107 = vmax.f32 %v190, %v2106
  %v2108 = vrot.slane %v2107, 4
  %v2109 = vmax.f32 %v2107, %v2108
  %v2110 = vrot.slane %v2109, 2
  %v2111 = vmax.f32 %v2109, %v2110
  %v2112 = vrot.slane %v2111, 1
  %v2113 = vmax.f32 %v2111, %v2112
  %v2114 = vsel %vm1352, %v195, -inf
  %v2115 = vmax.f32 %v191, %v2114
  %v2116 = vrot.slane %v2115, 4
  %v2117 = vmax.f32 %v2115, %v2116
  %v2118 = vrot.slane %v2117, 2
  %v2119 = vmax.f32 %v2117, %v2118
  %v2120 = vrot.slane %v2119, 1
  %v2121 = vmax.f32 %v2119, %v2120
  %v2122 = vsel %vm1609, %v24, -inf
  %v2123 = vmax.f32 %v2122, %v28
  %v2124 = vrot.slane %v2123, 4
  %v2125 = vmax.f32 %v2123, %v2124
  %v2126 = vrot.slane %v2125, 2
  %v2127 = vmax.f32 %v2125, %v2126
  %v2128 = vrot.slane %v2127, 1
  %v2129 = vmax.f32 %v2127, %v2128
  %v2130 = vsel %vm1609, %v25, -inf
  %v2131 = vmax.f32 %v2130, %v29
  %v2132 = vrot.slane %v2131, 4
  %v2133 = vmax.f32 %v2131, %v2132
  %v2134 = vrot.slane %v2133, 2
  %v2135 = vmax.f32 %v2133, %v2134
  %v2136 = vrot.slane %v2135, 1
  %v2137 = vmax.f32 %v2135, %v2136
  %v2138 = vsel %vm1609, %v26, -inf
  %v2139 = vmax.f32 %v2138, %v30
  %v2140 = vrot.slane %v2139, 4
  %v2141 = vmax.f32 %v2139, %v2140
  %v2142 = vrot.slane %v2141, 2
  %v2143 = vmax.f32 %v2141, %v2142
  %v2144 = vrot.slane %v2143, 1
  %v2145 = vmax.f32 %v2143, %v2144
  %v2146 = vsel %vm1609, %v27, -inf
  %v2147 = vmax.f32 %v2146, %v31
  %v2148 = vrot.slane %v2147, 4
  %v2149 = vmax.f32 %v2147, %v2148
  %v2150 = vrot.slane %v2149, 2
  %v2151 = vmax.f32 %v2149, %v2150
  %v2152 = vrot.slane %v2151, 1
  %v2153 = vmax.f32 %v2151, %v2152
  %v2154 = vsel %vm1609, %v48, -inf
  %v2155 = vmax.f32 %v2154, %v52
  %v2156 = vrot.slane %v2155, 4
  %v2157 = vmax.f32 %v2155, %v2156
  %v2158 = vrot.slane %v2157, 2
  %v2159 = vmax.f32 %v2157, %v2158
  %v2160 = vrot.slane %v2159, 1
  %v2161 = vmax.f32 %v2159, %v2160
  %v2162 = vsel %vm1609, %v49, -inf
  %v2163 = vmax.f32 %v2162, %v53
  %v2164 = vrot.slane %v2163, 4
  %v2165 = vmax.f32 %v2163, %v2164
  %v2166 = vrot.slane %v2165, 2
  %v2167 = vmax.f32 %v2165, %v2166
  %v2168 = vrot.slane %v2167, 1
  %v2169 = vmax.f32 %v2167, %v2168
  %v2170 = vsel %vm1609, %v50, -inf
  %v2171 = vmax.f32 %v2170, %v54
  %v2172 = vrot.slane %v2171, 4
  %v2173 = vmax.f32 %v2171, %v2172
  %v2174 = vrot.slane %v2173, 2
  %v2175 = vmax.f32 %v2173, %v2174
  %v2176 = vrot.slane %v2175, 1
  %v2177 = vmax.f32 %v2175, %v2176
  %v2178 = vsel %vm1609, %v51, -inf
  %v2179 = vmax.f32 %v2178, %v55
  %v2180 = vrot.slane %v2179, 4
  %v2181 = vmax.f32 %v2179, %v2180
  %v2182 = vrot.slane %v2181, 2
  %v2183 = vmax.f32 %v2181, %v2182
  %v2184 = vrot.slane %v2183, 1
  %v2185 = vmax.f32 %v2183, %v2184
  %v2186 = vsel %vm1609, %v72, -inf
  %v2187 = vmax.f32 %v2186, %v76
  %v2188 = vrot.slane %v2187, 4
  %v2189 = vmax.f32 %v2187, %v2188
  %v2190 = vrot.slane %v2189, 2
  %v2191 = vmax.f32 %v2189, %v2190
  %v2192 = vrot.slane %v2191, 1
  %v2193 = vmax.f32 %v2191, %v2192
  %v2194 = vsel %vm1609, %v73, -inf
  %v2195 = vmax.f32 %v2194, %v77
  %v2196 = vrot.slane %v2195, 4
  %v2197 = vmax.f32 %v2195, %v2196
  %v2198 = vrot.slane %v2197, 2
  %v2199 = vmax.f32 %v2197, %v2198
  %v2200 = vrot.slane %v2199, 1
  %v2201 = vmax.f32 %v2199, %v2200
  %v2202 = vsel %vm1609, %v74, -inf
  %v2203 = vmax.f32 %v2202, %v78
  %v2204 = vrot.slane %v2203, 4
  %v2205 = vmax.f32 %v2203, %v2204
  %v2206 = vrot.slane %v2205, 2
  %v2207 = vmax.f32 %v2205, %v2206
  %v2208 = vrot.slane %v2207, 1
  %v2209 = vmax.f32 %v2207, %v2208
  %v2210 = vsel %vm1609, %v75, -inf
  %v2211 = vmax.f32 %v2210, %v79
  %v2212 = vrot.slane %v2211, 4
  %v2213 = vmax.f32 %v2211, %v2212
  %v2214 = vrot.slane %v2213, 2
  %v2215 = vmax.f32 %v2213, %v2214
  %v2216 = vrot.slane %v2215, 1
  %v2217 = vmax.f32 %v2215, %v2216
  %v2218 = vsel %vm1609, %v96, -inf
  %v2219 = vmax.f32 %v2218, %v100
  %v2220 = vrot.slane %v2219, 4
  %v2221 = vmax.f32 %v2219, %v2220
  %v2222 = vrot.slane %v2221, 2
  %v2223 = vmax.f32 %v2221, %v2222
  %v2224 = vrot.slane %v2223, 1
  %v2225 = vmax.f32 %v2223, %v2224
  %v2226 = vsel %vm1609, %v97, -inf
  %v2227 = vmax.f32 %v2226, %v101
  %v2228 = vrot.slane %v2227, 4
  %v2229 = vmax.f32 %v2227, %v2228
  %v2230 = vrot.slane %v2229, 2
  %v2231 = vmax.f32 %v2229, %v2230
  %v2232 = vrot.slane %v2231, 1
  %v2233 = vmax.f32 %v2231, %v2232
  %v2234 = vsel %vm1609, %v98, -inf
  %v2235 = vmax.f32 %v2234, %v102
  %v2236 = vrot.slane %v2235, 4
  %v2237 = vmax.f32 %v2235, %v2236
  %v2238 = vrot.slane %v2237, 2
  %v2239 = vmax.f32 %v2237, %v2238
  %v2240 = vrot.slane %v2239, 1
  %v2241 = vmax.f32 %v2239, %v2240
  %v2242 = vsel %vm1609, %v99, -inf
  %v2243 = vmax.f32 %v2242, %v103
  %v2244 = vrot.slane %v2243, 4
  %v2245 = vmax.f32 %v2243, %v2244
  %v2246 = vrot.slane %v2245, 2
  %v2247 = vmax.f32 %v2245, %v2246
  %v2248 = vrot.slane %v2247, 1
  %v2249 = vmax.f32 %v2247, %v2248
  %v2250 = vsel %vm1609, %v120, -inf
  %v2251 = vmax.f32 %v2250, %v124
  %v2252 = vrot.slane %v2251, 4
  %v2253 = vmax.f32 %v2251, %v2252
  %v2254 = vrot.slane %v2253, 2
  %v2255 = vmax.f32 %v2253, %v2254
  %v2256 = vrot.slane %v2255, 1
  %v2257 = vmax.f32 %v2255, %v2256
  %v2258 = vsel %vm1609, %v121, -inf
  %v2259 = vmax.f32 %v2258, %v125
  %v2260 = vrot.slane %v2259, 4
  %v2261 = vmax.f32 %v2259, %v2260
  %v2262 = vrot.slane %v2261, 2
  %v2263 = vmax.f32 %v2261, %v2262
  %v2264 = vrot.slane %v2263, 1
  %v2265 = vmax.f32 %v2263, %v2264
  %v2266 = vsel %vm1609, %v122, -inf
  %v2267 = vmax.f32 %v2266, %v126
  %v2268 = vrot.slane %v2267, 4
  %v2269 = vmax.f32 %v2267, %v2268
  %v2270 = vrot.slane %v2269, 2
  %v2271 = vmax.f32 %v2269, %v2270
  %v2272 = vrot.slane %v2271, 1
  %v2273 = vmax.f32 %v2271, %v2272
  %v2274 = vsel %vm1609, %v123, -inf
  %v2275 = vmax.f32 %v2274, %v127
  %v2276 = vrot.slane %v2275, 4
  %v2277 = vmax.f32 %v2275, %v2276
  %v2278 = vrot.slane %v2277, 2
  %v2279 = vmax.f32 %v2277, %v2278
  %v2280 = vrot.slane %v2279, 1
  %v2281 = vmax.f32 %v2279, %v2280
  %v2282 = vsel %vm1609, %v144, -inf
  %v2283 = vmax.f32 %v2282, %v148
  %v2284 = vrot.slane %v2283, 4
  %v2285 = vmax.f32 %v2283, %v2284
  %v2286 = vrot.slane %v2285, 2
  %v2287 = vmax.f32 %v2285, %v2286
  %v2288 = vrot.slane %v2287, 1
  %v2289 = vmax.f32 %v2287, %v2288
  %v2290 = vsel %vm1609, %v145, -inf
  %v2291 = vmax.f32 %v2290, %v149
  %v2292 = vrot.slane %v2291, 4
  %v2293 = vmax.f32 %v2291, %v2292
  %v2294 = vrot.slane %v2293, 2
  %v2295 = vmax.f32 %v2293, %v2294
  %v2296 = vrot.slane %v2295, 1
  %v2297 = vmax.f32 %v2295, %v2296
  %v2298 = vsel %vm1609, %v146, -inf
  %v2299 = vmax.f32 %v2298, %v150
  %v2300 = vrot.slane %v2299, 4
  %v2301 = vmax.f32 %v2299, %v2300
  %v2302 = vrot.slane %v2301, 2
  %v2303 = vmax.f32 %v2301, %v2302
  %v2304 = vrot.slane %v2303, 1
  %v2305 = vmax.f32 %v2303, %v2304
  %v2306 = vsel %vm1609, %v147, -inf
  %v2307 = vmax.f32 %v2306, %v151
  %v2308 = vrot.slane %v2307, 4
  %v2309 = vmax.f32 %v2307, %v2308
  %v2310 = vrot.slane %v2309, 2
  %v2311 = vmax.f32 %v2309, %v2310
  %v2312 = vrot.slane %v2311, 1
  %v2313 = vmax.f32 %v2311, %v2312
  %v2314 = vsel %vm1609, %v168, -inf
  %v2315 = vmax.f32 %v2314, %v172
  %v2316 = vrot.slane %v2315, 4
  %v2317 = vmax.f32 %v2315, %v2316
  %v2318 = vrot.slane %v2317, 2
  %v2319 = vmax.f32 %v2317, %v2318
  %v2320 = vrot.slane %v2319, 1
  %v2321 = vmax.f32 %v2319, %v2320
  %v2322 = vsel %vm1609, %v169, -inf
  %v2323 = vmax.f32 %v2322, %v173
  %v2324 = vrot.slane %v2323, 4
  %v2325 = vmax.f32 %v2323, %v2324
  %v2326 = vrot.slane %v2325, 2
  %v2327 = vmax.f32 %v2325, %v2326
  %v2328 = vrot.slane %v2327, 1
  %v2329 = vmax.f32 %v2327, %v2328
  %v2330 = vsel %vm1609, %v170, -inf
  %v2331 = vmax.f32 %v2330, %v174
  %v2332 = vrot.slane %v2331, 4
  %v2333 = vmax.f32 %v2331, %v2332
  %v2334 = vrot.slane %v2333, 2
  %v2335 = vmax.f32 %v2333, %v2334
  %v2336 = vrot.slane %v2335, 1
  %v2337 = vmax.f32 %v2335, %v2336
  %v2338 = vsel %vm1609, %v171, -inf
  %v2339 = vmax.f32 %v2338, %v175
  %v2340 = vrot.slane %v2339, 4
  %v2341 = vmax.f32 %v2339, %v2340
  %v2342 = vrot.slane %v2341, 2
  %v2343 = vmax.f32 %v2341, %v2342
  %v2344 = vrot.slane %v2343, 1
  %v2345 = vmax.f32 %v2343, %v2344
  %v2346 = vsel %vm1609, %v192, -inf
  %v2347 = vmax.f32 %v2346, %v196
  %v2348 = vrot.slane %v2347, 4
  %v2349 = vmax.f32 %v2347, %v2348
  %v2350 = vrot.slane %v2349, 2
  %v2351 = vmax.f32 %v2349, %v2350
  %v2352 = vrot.slane %v2351, 1
  %v2353 = vmax.f32 %v2351, %v2352
  %v2354 = vsel %vm1609, %v193, -inf
  %v2355 = vmax.f32 %v2354, %v197
  %v2356 = vrot.slane %v2355, 4
  %v2357 = vmax.f32 %v2355, %v2356
  %v2358 = vrot.slane %v2357, 2
  %v2359 = vmax.f32 %v2357, %v2358
  %v2360 = vrot.slane %v2359, 1
  %v2361 = vmax.f32 %v2359, %v2360
  %v2362 = vsel %vm1609, %v194, -inf
  %v2363 = vmax.f32 %v2362, %v198
  %v2364 = vrot.slane %v2363, 4
  %v2365 = vmax.f32 %v2363, %v2364
  %v2366 = vrot.slane %v2365, 2
  %v2367 = vmax.f32 %v2365, %v2366
  %v2368 = vrot.slane %v2367, 1
  %v2369 = vmax.f32 %v2367, %v2368
  %v2370 = vsel %vm1609, %v195, -inf
  %v2371 = vmax.f32 %v2370, %v199
  %v2372 = vrot.slane %v2371, 4
  %v2373 = vmax.f32 %v2371, %v2372
  %v2374 = vrot.slane %v2373, 2
  %v2375 = vmax.f32 %v2373, %v2374
  %v2376 = vrot.slane %v2375, 1
  %v2377 = vmax.f32 %v2375, %v2376
  %v2378 = vmax.f32 %v205, %v397
  %v2379 = vmax.f32 %v211, %v403
  %v2380 = vmax.f32 %v217, %v409
  %v2381 = vmax.f32 %v223, %v415
  %v2382 = vmax.f32 %v229, %v421
  %v2383 = vmax.f32 %v235, %v427
  %v2384 = vmax.f32 %v241, %v433
  %v2385 = vmax.f32 %v247, %v439
  %v2386 = vmax.f32 %v253, %v445
  %v2387 = vmax.f32 %v259, %v451
  %v2388 = vmax.f32 %v265, %v457
  %v2389 = vmax.f32 %v271, %v463
  %v2390 = vmax.f32 %v277, %v469
  %v2391 = vmax.f32 %v283, %v475
  %v2392 = vmax.f32 %v289, %v481
  %v2393 = vmax.f32 %v295, %v487
  %v2394 = vmax.f32 %v301, %v493
  %v2395 = vmax.f32 %v307, %v499
  %v2396 = vmax.f32 %v313, %v505
  %v2397 = vmax.f32 %v319, %v511
  %v2398 = vmax.f32 %v325, %v517
  %v2399 = vmax.f32 %v331, %v523
  %v2400 = vmax.f32 %v337, %v529
  %v2401 = vmax.f32 %v343, %v535
  %v2402 = vmax.f32 %v349, %v541
  %v2403 = vmax.f32 %v355, %v547
  %v2404 = vmax.f32 %v361, %v553
  %v2405 = vmax.f32 %v367, %v559
  %v2406 = vmax.f32 %v373, %v565
  %v2407 = vmax.f32 %v379, %v571
  %v2408 = vmax.f32 %v385, %v577
  %v2409 = vmax.f32 %v391, %v583
  %v2410 = vmax.f32 %v2378, %v589
  %v2411 = vmax.f32 %v2379, %v595
  %v2412 = vmax.f32 %v2380, %v601
  %v2413 = vmax.f32 %v2381, %v607
  %v2414 = vmax.f32 %v2382, %v613
  %v2415 = vmax.f32 %v2383, %v619
  %v2416 = vmax.f32 %v2384, %v625
  %v2417 = vmax.f32 %v2385, %v631
  %v2418 = vmax.f32 %v2386, %v637
  %v2419 = vmax.f32 %v2387, %v643
  %v2420 = vmax.f32 %v2388, %v649
  %v2421 = vmax.f32 %v2389, %v655
  %v2422 = vmax.f32 %v2390, %v661
  %v2423 = vmax.f32 %v2391, %v667
  %v2424 = vmax.f32 %v2392, %v673
  %v2425 = vmax.f32 %v2393, %v679
  %v2426 = vmax.f32 %v2394, %v685
  %v2427 = vmax.f32 %v2395, %v691
  %v2428 = vmax.f32 %v2396, %v697
  %v2429 = vmax.f32 %v2397, %v703
  %v2430 = vmax.f32 %v2398, %v709
  %v2431 = vmax.f32 %v2399, %v715
  %v2432 = vmax.f32 %v2400, %v721
  %v2433 = vmax.f32 %v2401, %v727
  %v2434 = vmax.f32 %v2402, %v733
  %v2435 = vmax.f32 %v2403, %v739
  %v2436 = vmax.f32 %v2404, %v745
  %v2437 = vmax.f32 %v2405, %v751
  %v2438 = vmax.f32 %v2406, %v757
  %v2439 = vmax.f32 %v2407, %v763
  %v2440 = vmax.f32 %v2408, %v769
  %v2441 = vmax.f32 %v2409, %v775
  %v2442 = vmax.f32 %v781, %v973
  %v2443 = vmax.f32 %v787, %v979
  %v2444 = vmax.f32 %v793, %v985
  %v2445 = vmax.f32 %v799, %v991
  %v2446 = vmax.f32 %v805, %v997
  %v2447 = vmax.f32 %v811, %v1003
  %v2448 = vmax.f32 %v817, %v1009
  %v2449 = vmax.f32 %v823, %v1015
  %v2450 = vmax.f32 %v829, %v1021
  %v2451 = vmax.f32 %v835, %v1027
  %v2452 = vmax.f32 %v841, %v1033
  %v2453 = vmax.f32 %v847, %v1039
  %v2454 = vmax.f32 %v853, %v1045
  %v2455 = vmax.f32 %v859, %v1051
  %v2456 = vmax.f32 %v865, %v1057
  %v2457 = vmax.f32 %v871, %v1063
  %v2458 = vmax.f32 %v877, %v1069
  %v2459 = vmax.f32 %v883, %v1075
  %v2460 = vmax.f32 %v889, %v1081
  %v2461 = vmax.f32 %v895, %v1087
  %v2462 = vmax.f32 %v901, %v1093
  %v2463 = vmax.f32 %v907, %v1099
  %v2464 = vmax.f32 %v913, %v1105
  %v2465 = vmax.f32 %v919, %v1111
  %v2466 = vmax.f32 %v925, %v1117
  %v2467 = vmax.f32 %v931, %v1123
  %v2468 = vmax.f32 %v937, %v1129
  %v2469 = vmax.f32 %v943, %v1135
  %v2470 = vmax.f32 %v949, %v1141
  %v2471 = vmax.f32 %v955, %v1147
  %v2472 = vmax.f32 %v961, %v1153
  %v2473 = vmax.f32 %v967, %v1159
  %v2474 = vmax.f32 %v2442, %v1165
  %v2475 = vmax.f32 %v2443, %v1171
  %v2476 = vmax.f32 %v2444, %v1177
  %v2477 = vmax.f32 %v2445, %v1183
  %v2478 = vmax.f32 %v2446, %v1189
  %v2479 = vmax.f32 %v2447, %v1195
  %v2480 = vmax.f32 %v2448, %v1201
  %v2481 = vmax.f32 %v2449, %v1207
  %v2482 = vmax.f32 %v2450, %v1213
  %v2483 = vmax.f32 %v2451, %v1219
  %v2484 = vmax.f32 %v2452, %v1225
  %v2485 = vmax.f32 %v2453, %v1231
  %v2486 = vmax.f32 %v2454, %v1237
  %v2487 = vmax.f32 %v2455, %v1243
  %v2488 = vmax.f32 %v2456, %v1249
  %v2489 = vmax.f32 %v2457, %v1255
  %v2490 = vmax.f32 %v2458, %v1261
  %v2491 = vmax.f32 %v2459, %v1267
  %v2492 = vmax.f32 %v2460, %v1273
  %v2493 = vmax.f32 %v2461, %v1279
  %v2494 = vmax.f32 %v2462, %v1285
  %v2495 = vmax.f32 %v2463, %v1291
  %v2496 = vmax.f32 %v2464, %v1297
  %v2497 = vmax.f32 %v2465, %v1303
  %v2498 = vmax.f32 %v2466, %v1309
  %v2499 = vmax.f32 %v2467, %v1315
  %v2500 = vmax.f32 %v2468, %v1321
  %v2501 = vmax.f32 %v2469, %v1327
  %v2502 = vmax.f32 %v2470, %v1333
  %v2503 = vmax.f32 %v2471, %v1339
  %v2504 = vmax.f32 %v2472, %v1345
  %v2505 = vmax.f32 %v2473, %v1351
  %v2506 = vmax.f32 %v2410, %v2474
  %v2507 = vmax.f32 %v2411, %v2475
  %v2508 = vmax.f32 %v2412, %v2476
  %v2509 = vmax.f32 %v2413, %v2477
  %v2510 = vmax.f32 %v2414, %v2478
  %v2511 = vmax.f32 %v2415, %v2479
  %v2512 = vmax.f32 %v2416, %v2480
  %v2513 = vmax.f32 %v2417, %v2481
  %v2514 = vmax.f32 %v2418, %v2482
  %v2515 = vmax.f32 %v2419, %v2483
  %v2516 = vmax.f32 %v2420, %v2484
  %v2517 = vmax.f32 %v2421, %v2485
  %v2518 = vmax.f32 %v2422, %v2486
  %v2519 = vmax.f32 %v2423, %v2487
  %v2520 = vmax.f32 %v2424, %v2488
  %v2521 = vmax.f32 %v2425, %v2489
  %v2522 = vmax.f32 %v2426, %v2490
  %v2523 = vmax.f32 %v2427, %v2491
  %v2524 = vmax.f32 %v2428, %v2492
  %v2525 = vmax.f32 %v2429, %v2493
  %v2526 = vmax.f32 %v2430, %v2494
  %v2527 = vmax.f32 %v2431, %v2495
  %v2528 = vmax.f32 %v2432, %v2496
  %v2529 = vmax.f32 %v2433, %v2497
  %v2530 = vmax.f32 %v2434, %v2498
  %v2531 = vmax.f32 %v2435, %v2499
  %v2532 = vmax.f32 %v2436, %v2500
  %v2533 = vmax.f32 %v2437, %v2501
  %v2534 = vmax.f32 %v2438, %v2502
  %v2535 = vmax.f32 %v2439, %v2503
  %v2536 = vmax.f32 %v2440, %v2504
  %v2537 = vmax.f32 %v2441, %v2505
  %v2538 = vadd.f32 %v205, %v397
  %v2539 = vadd.f32 %v211, %v403
  %v2540 = vadd.f32 %v217, %v409
  %v2541 = vadd.f32 %v223, %v415
  %v2542 = vadd.f32 %v229, %v421
  %v2543 = vadd.f32 %v235, %v427
  %v2544 = vadd.f32 %v241, %v433
  %v2545 = vadd.f32 %v247, %v439
  %v2546 = vadd.f32 %v253, %v445
  %v2547 = vadd.f32 %v259, %v451
  %v2548 = vadd.f32 %v265, %v457
  %v2549 = vadd.f32 %v271, %v463
  %v2550 = vadd.f32 %v277, %v469
  %v2551 = vadd.f32 %v283, %v475
  %v2552 = vadd.f32 %v289, %v481
  %v2553 = vadd.f32 %v295, %v487
  %v2554 = vadd.f32 %v301, %v493
  %v2555 = vadd.f32 %v307, %v499
  %v2556 = vadd.f32 %v313, %v505
  %v2557 = vadd.f32 %v319, %v511
  %v2558 = vadd.f32 %v325, %v517
  %v2559 = vadd.f32 %v331, %v523
  %v2560 = vadd.f32 %v337, %v529
  %v2561 = vadd.f32 %v343, %v535
  %v2562 = vadd.f32 %v349, %v541
  %v2563 = vadd.f32 %v355, %v547
  %v2564 = vadd.f32 %v361, %v553
  %v2565 = vadd.f32 %v367, %v559
  %v2566 = vadd.f32 %v373, %v565
  %v2567 = vadd.f32 %v379, %v571
  %v2568 = vadd.f32 %v385, %v577
  %v2569 = vadd.f32 %v391, %v583
  %v2570 = vadd.f32 %v2538, %v589
  %v2571 = vadd.f32 %v2539, %v595
  %v2572 = vadd.f32 %v2540, %v601
  %v2573 = vadd.f32 %v2541, %v607
  %v2574 = vadd.f32 %v2542, %v613
  %v2575 = vadd.f32 %v2543, %v619
  %v2576 = vadd.f32 %v2544, %v625
  %v2577 = vadd.f32 %v2545, %v631
  %v2578 = vadd.f32 %v2546, %v637
  %v2579 = vadd.f32 %v2547, %v643
  %v2580 = vadd.f32 %v2548, %v649
  %v2581 = vadd.f32 %v2549, %v655
  %v2582 = vadd.f32 %v2550, %v661
  %v2583 = vadd.f32 %v2551, %v667
  %v2584 = vadd.f32 %v2552, %v673
  %v2585 = vadd.f32 %v2553, %v679
  %v2586 = vadd.f32 %v2554, %v685
  %v2587 = vadd.f32 %v2555, %v691
  %v2588 = vadd.f32 %v2556, %v697
  %v2589 = vadd.f32 %v2557, %v703
  %v2590 = vadd.f32 %v2558, %v709
  %v2591 = vadd.f32 %v2559, %v715
  %v2592 = vadd.f32 %v2560, %v721
  %v2593 = vadd.f32 %v2561, %v727
  %v2594 = vadd.f32 %v2562, %v733
  %v2595 = vadd.f32 %v2563, %v739
  %v2596 = vadd.f32 %v2564, %v745
  %v2597 = vadd.f32 %v2565, %v751
  %v2598 = vadd.f32 %v2566, %v757
  %v2599 = vadd.f32 %v2567, %v763
  %v2600 = vadd.f32 %v2568, %v769
  %v2601 = vadd.f32 %v2569, %v775
  %v2602 = vadd.f32 %v2570, %v781
  %v2603 = vadd.f32 %v2571, %v787
  %v2604 = vadd.f32 %v2572, %v793
  %v2605 = vadd.f32 %v2573, %v799
  %v2606 = vadd.f32 %v2574, %v805
  %v2607 = vadd.f32 %v2575, %v811
  %v2608 = vadd.f32 %v2576, %v817
  %v2609 = vadd.f32 %v2577, %v823
  %v2610 = vadd.f32 %v2578, %v829
  %v2611 = vadd.f32 %v2579, %v835
  %v2612 = vadd.f32 %v2580, %v841
  %v2613 = vadd.f32 %v2581, %v847
  %v2614 = vadd.f32 %v2582, %v853
  %v2615 = vadd.f32 %v2583, %v859
  %v2616 = vadd.f32 %v2584, %v865
  %v2617 = vadd.f32 %v2585, %v871
  %v2618 = vadd.f32 %v2586, %v877
  %v2619 = vadd.f32 %v2587, %v883
  %v2620 = vadd.f32 %v2588, %v889
  %v2621 = vadd.f32 %v2589, %v895
  %v2622 = vadd.f32 %v2590, %v901
  %v2623 = vadd.f32 %v2591, %v907
  %v2624 = vadd.f32 %v2592, %v913
  %v2625 = vadd.f32 %v2593, %v919
  %v2626 = vadd.f32 %v2594, %v925
  %v2627 = vadd.f32 %v2595, %v931
  %v2628 = vadd.f32 %v2596, %v937
  %v2629 = vadd.f32 %v2597, %v943
  %v2630 = vadd.f32 %v2598, %v949
  %v2631 = vadd.f32 %v2599, %v955
  %v2632 = vadd.f32 %v2600, %v961
  %v2633 = vadd.f32 %v2601, %v967
  %v2634 = vadd.f32 %v2602, %v973
  %v2635 = vadd.f32 %v2603, %v979
  %v2636 = vadd.f32 %v2604, %v985
  %v2637 = vadd.f32 %v2605, %v991
  %v2638 = vadd.f32 %v2606, %v997
  %v2639 = vadd.f32 %v2607, %v1003
  %v2640 = vadd.f32 %v2608, %v1009
  %v2641 = vadd.f32 %v2609, %v1015
  %v2642 = vadd.f32 %v2610, %v1021
  %v2643 = vadd.f32 %v2611, %v1027
  %v2644 = vadd.f32 %v2612, %v1033
  %v2645 = vadd.f32 %v2613, %v1039
  %v2646 = vadd.f32 %v2614, %v1045
  %v2647 = vadd.f32 %v2615, %v1051
  %v2648 = vadd.f32 %v2616, %v1057
  %v2649 = vadd.f32 %v2617, %v1063
  %v2650 = vadd.f32 %v2618, %v1069
  %v2651 = vadd.f32 %v2619, %v1075
  %v2652 = vadd.f32 %v2620, %v1081
  %v2653 = vadd.f32 %v2621, %v1087
  %v2654 = vadd.f32 %v2622, %v1093
  %v2655 = vadd.f32 %v2623, %v1099
  %v2656 = vadd.f32 %v2624, %v1105
  %v2657 = vadd.f32 %v2625, %v1111
  %v2658 = vadd.f32 %v2626, %v1117
  %v2659 = vadd.f32 %v2627, %v1123
  %v2660 = vadd.f32 %v2628, %v1129
  %v2661 = vadd.f32 %v2629, %v1135
  %v2662 = vadd.f32 %v2630, %v1141
  %v2663 = vadd.f32 %v2631, %v1147
  %v2664 = vadd.f32 %v2632, %v1153
  %v2665 = vadd.f32 %v2633, %v1159
  %v2666 = vadd.f32 %v2634, %v1165
  %v2667 = vadd.f32 %v2635, %v1171
  %v2668 = vadd.f32 %v2636, %v1177
  %v2669 = vadd.f32 %v2637, %v1183
  %v2670 = vadd.f32 %v2638, %v1189
  %v2671 = vadd.f32 %v2639, %v1195
  %v2672 = vadd.f32 %v2640, %v1201
  %v2673 = vadd.f32 %v2641, %v1207
  %v2674 = vadd.f32 %v2642, %v1213
  %v2675 = vadd.f32 %v2643, %v1219
  %v2676 = vadd.f32 %v2644, %v1225
  %v2677 = vadd.f32 %v2645, %v1231
  %v2678 = vadd.f32 %v2646, %v1237
  %v2679 = vadd.f32 %v2647, %v1243
  %v2680 = vadd.f32 %v2648, %v1249
  %v2681 = vadd.f32 %v2649, %v1255
  %v2682 = vadd.f32 %v2650, %v1261
  %v2683 = vadd.f32 %v2651, %v1267
  %v2684 = vadd.f32 %v2652, %v1273
  %v2685 = vadd.f32 %v2653, %v1279
  %v2686 = vadd.f32 %v2654, %v1285
  %v2687 = vadd.f32 %v2655, %v1291
  %v2688 = vadd.f32 %v2656, %v1297
  %v2689 = vadd.f32 %v2657, %v1303
  %v2690 = vadd.f32 %v2658, %v1309
  %v2691 = vadd.f32 %v2659, %v1315
  %v2692 = vadd.f32 %v2660, %v1321
  %v2693 = vadd.f32 %v2661, %v1327
  %v2694 = vadd.f32 %v2662, %v1333
  %v2695 = vadd.f32 %v2663, %v1339
  %v2696 = vadd.f32 %v2664, %v1345
  %v2697 = vadd.f32 %v2665, %v1351
  %v2698 = vadd.f32 %v1360, %v1617
  %v2699 = vadd.f32 %v1368, %v1625
  %v2700 = vadd.f32 %v1376, %v1633
  %v2701 = vadd.f32 %v1384, %v1641
  %v2702 = vadd.f32 %v1392, %v1649
  %v2703 = vadd.f32 %v1400, %v1657
  %v2704 = vadd.f32 %v1408, %v1665
  %v2705 = vadd.f32 %v1416, %v1673
  %v2706 = vadd.f32 %v1424, %v1681
  %v2707 = vadd.f32 %v1432, %v1689
  %v2708 = vadd.f32 %v1440, %v1697
  %v2709 = vadd.f32 %v1448, %v1705
  %v2710 = vadd.f32 %v1456, %v1713
  %v2711 = vadd.f32 %v1464, %v1721
  %v2712 = vadd.f32 %v1472, %v1729
  %v2713 = vadd.f32 %v1480, %v1737
  %v2714 = vadd.f32 %v1488, %v1745
  %v2715 = vadd.f32 %v1496, %v1753
  %v2716 = vadd.f32 %v1504, %v1761
  %v2717 = vadd.f32 %v1512, %v1769
  %v2718 = vadd.f32 %v1520, %v1777
  %v2719 = vadd.f32 %v1528, %v1785
  %v2720 = vadd.f32 %v1536, %v1793
  %v2721 = vadd.f32 %v1544, %v1801
  %v2722 = vadd.f32 %v1552, %v1809
  %v2723 = vadd.f32 %v1560, %v1817
  %v2724 = vadd.f32 %v1568, %v1825
  %v2725 = vadd.f32 %v1576, %v1833
  %v2726 = vadd.f32 %v1584, %v1841
  %v2727 = vadd.f32 %v1592, %v1849
  %v2728 = vadd.f32 %v1600, %v1857
  %v2729 = vadd.f32 %v1608, %v1865
  %v2730 = vadd.f32 %v2698, %v1873
  %v2731 = vadd.f32 %v2699, %v1881
  %v2732 = vadd.f32 %v2700, %v1889
  %v2733 = vadd.f32 %v2701, %v1897
  %v2734 = vadd.f32 %v2702, %v1905
  %v2735 = vadd.f32 %v2703, %v1913
  %v2736 = vadd.f32 %v2704, %v1921
  %v2737 = vadd.f32 %v2705, %v1929
  %v2738 = vadd.f32 %v2706, %v1937
  %v2739 = vadd.f32 %v2707, %v1945
  %v2740 = vadd.f32 %v2708, %v1953
  %v2741 = vadd.f32 %v2709, %v1961
  %v2742 = vadd.f32 %v2710, %v1969
  %v2743 = vadd.f32 %v2711, %v1977
  %v2744 = vadd.f32 %v2712, %v1985
  %v2745 = vadd.f32 %v2713, %v1993
  %v2746 = vadd.f32 %v2714, %v2001
  %v2747 = vadd.f32 %v2715, %v2009
  %v2748 = vadd.f32 %v2716, %v2017
  %v2749 = vadd.f32 %v2717, %v2025
  %v2750 = vadd.f32 %v2718, %v2033
  %v2751 = vadd.f32 %v2719, %v2041
  %v2752 = vadd.f32 %v2720, %v2049
  %v2753 = vadd.f32 %v2721, %v2057
  %v2754 = vadd.f32 %v2722, %v2065
  %v2755 = vadd.f32 %v2723, %v2073
  %v2756 = vadd.f32 %v2724, %v2081
  %v2757 = vadd.f32 %v2725, %v2089
  %v2758 = vadd.f32 %v2726, %v2097
  %v2759 = vadd.f32 %v2727, %v2105
  %v2760 = vadd.f32 %v2728, %v2113
  %v2761 = vadd.f32 %v2729, %v2121
  %v2762 = vadd.f32 %v2730, %v2129
  %v2763 = vadd.f32 %v2731, %v2137
  %v2764 = vadd.f32 %v2732, %v2145
  %v2765 = vadd.f32 %v2733, %v2153
  %v2766 = vadd.f32 %v2734, %v2161
  %v2767 = vadd.f32 %v2735, %v2169
  %v2768 = vadd.f32 %v2736, %v2177
  %v2769 = vadd.f32 %v2737, %v2185
  %v2770 = vadd.f32 %v2738, %v2193
  %v2771 = vadd.f32 %v2739, %v2201
  %v2772 = vadd.f32 %v2740, %v2209
  %v2773 = vadd.f32 %v2741, %v2217
  %v2774 = vadd.f32 %v2742, %v2225
  %v2775 = vadd.f32 %v2743, %v2233
  %v2776 = vadd.f32 %v2744, %v2241
  %v2777 = vadd.f32 %v2745, %v2249
  %v2778 = vadd.f32 %v2746, %v2257
  %v2779 = vadd.f32 %v2747, %v2265
  %v2780 = vadd.f32 %v2748, %v2273
  %v2781 = vadd.f32 %v2749, %v2281
  %v2782 = vadd.f32 %v2750, %v2289
  %v2783 = vadd.f32 %v2751, %v2297
  %v2784 = vadd.f32 %v2752, %v2305
  %v2785 = vadd.f32 %v2753, %v2313
  %v2786 = vadd.f32 %v2754, %v2321
  %v2787 = vadd.f32 %v2755, %v2329
  %v2788 = vadd.f32 %v2756, %v2337
  %v2789 = vadd.f32 %v2757, %v2345
  %v2790 = vadd.f32 %v2758, %v2353
  %v2791 = vadd.f32 %v2759, %v2361
  %v2792 = vadd.f32 %v2760, %v2369
  %v2793 = vadd.f32 %v2761, %v2377
  %v2794 = vsub.f32 %v2666, %v205
  %v2795 = vsub.f32 %v2667, %v211
  %v2796 = vsub.f32 %v2668, %v217
  %v2797 = vsub.f32 %v2669, %v223
  %v2798 = vsub.f32 %v2670, %v229
  %v2799 = vsub.f32 %v2671, %v235
  %v2800 = vsub.f32 %v2672, %v241
  %v2801 = vsub.f32 %v2673, %v247
  %v2802 = vsub.f32 %v2674, %v253
  %v2803 = vsub.f32 %v2675, %v259
  %v2804 = vsub.f32 %v2676, %v265
  %v2805 = vsub.f32 %v2677, %v271
  %v2806 = vsub.f32 %v2678, %v277
  %v2807 = vsub.f32 %v2679, %v283
  %v2808 = vsub.f32 %v2680, %v289
  %v2809 = vsub.f32 %v2681, %v295
  %v2810 = vsub.f32 %v2682, %v301
  %v2811 = vsub.f32 %v2683, %v307
  %v2812 = vsub.f32 %v2684, %v313
  %v2813 = vsub.f32 %v2685, %v319
  %v2814 = vsub.f32 %v2686, %v325
  %v2815 = vsub.f32 %v2687, %v331
  %v2816 = vsub.f32 %v2688, %v337
  %v2817 = vsub.f32 %v2689, %v343
  %v2818 = vsub.f32 %v2690, %v349
  %v2819 = vsub.f32 %v2691, %v355
  %v2820 = vsub.f32 %v2692, %v361
  %v2821 = vsub.f32 %v2693, %v367
  %v2822 = vsub.f32 %v2694, %v373
  %v2823 = vsub.f32 %v2695, %v379
  %v2824 = vsub.f32 %v2696, %v385
  %v2825 = vsub.f32 %v2697, %v391
  %v2826 = vmul.f32 %v2794, 0.2
  %v2827 = vmul.f32 %v2795, 0.2
  %v2828 = vmul.f32 %v2796, 0.2
  %v2829 = vmul.f32 %v2797, 0.2
  %v2830 = vmul.f32 %v2798, 0.2
  %v2831 = vmul.f32 %v2799, 0.2
  %v2832 = vmul.f32 %v2800, 0.2
  %v2833 = vmul.f32 %v2801, 0.2
  %v2834 = vmul.f32 %v2802, 0.2
  %v2835 = vmul.f32 %v2803, 0.2
  %v2836 = vmul.f32 %v2804, 0.2
  %v2837 = vmul.f32 %v2805, 0.2
  %v2838 = vmul.f32 %v2806, 0.2
  %v2839 = vmul.f32 %v2807, 0.2
  %v2840 = vmul.f32 %v2808, 0.2
  %v2841 = vmul.f32 %v2809, 0.2
  %v2842 = vmul.f32 %v2810, 0.2
  %v2843 = vmul.f32 %v2811, 0.2
  %v2844 = vmul.f32 %v2812, 0.2
  %v2845 = vmul.f32 %v2813, 0.2
  %v2846 = vmul.f32 %v2814, 0.2
  %v2847 = vmul.f32 %v2815, 0.2
  %v2848 = vmul.f32 %v2816, 0.2
  %v2849 = vmul.f32 %v2817, 0.2
  %v2850 = vmul.f32 %v2818, 0.2
  %v2851 = vmul.f32 %v2819, 0.2
  %v2852 = vmul.f32 %v2820, 0.2
  %v2853 = vmul.f32 %v2821, 0.2
  %v2854 = vmul.f32 %v2822, 0.2
  %v2855 = vmul.f32 %v2823, 0.2
  %v2856 = vmul.f32 %v2824, 0.2
  %v2857 = vmul.f32 %v2825, 0.2
  %v2858 = vsub.f32 %v2666, %v397
  %v2859 = vsub.f32 %v2667, %v403
  %v2860 = vsub.f32 %v2668, %v409
  %v2861 = vsub.f32 %v2669, %v415
  %v2862 = vsub.f32 %v2670, %v421
  %v2863 = vsub.f32 %v2671, %v427
  %v2864 = vsub.f32 %v2672, %v433
  %v2865 = vsub.f32 %v2673, %v439
  %v2866 = vsub.f32 %v2674, %v445
  %v2867 = vsub.f32 %v2675, %v451
  %v2868 = vsub.f32 %v2676, %v457
  %v2869 = vsub.f32 %v2677, %v463
  %v2870 = vsub.f32 %v2678, %v469
  %v2871 = vsub.f32 %v2679, %v475
  %v2872 = vsub.f32 %v2680, %v481
  %v2873 = vsub.f32 %v2681, %v487
  %v2874 = vsub.f32 %v2682, %v493
  %v2875 = vsub.f32 %v2683, %v499
  %v2876 = vsub.f32 %v2684, %v505
  %v2877 = vsub.f32 %v2685, %v511
  %v2878 = vsub.f32 %v2686, %v517
  %v2879 = vsub.f32 %v2687, %v523
  %v2880 = vsub.f32 %v2688, %v529
  %v2881 = vsub.f32 %v2689, %v535
  %v2882 = vsub.f32 %v2690, %v541
  %v2883 = vsub.f32 %v2691, %v547
  %v2884 = vsub.f32 %v2692, %v553
  %v2885 = vsub.f32 %v2693, %v559
  %v2886 = vsub.f32 %v2694, %v565
  %v2887 = vsub.f32 %v2695, %v571
  %v2888 = vsub.f32 %v2696, %v577
  %v2889 = vsub.f32 %v2697, %v583
  %v2890 = vmul.f32 %v2858, 0.2
  %v2891 = vmul.f32 %v2859, 0.2
  %v2892 = vmul.f32 %v2860, 0.2
  %v2893 = vmul.f32 %v2861, 0.2
  %v2894 = vmul.f32 %v2862, 0.2
  %v2895 = vmul.f32 %v2863, 0.2
  %v2896 = vmul.f32 %v2864, 0.2
  %v2897 = vmul.f32 %v2865, 0.2
  %v2898 = vmul.f32 %v2866, 0.2
  %v2899 = vmul.f32 %v2867, 0.2
  %v2900 = vmul.f32 %v2868, 0.2
  %v2901 = vmul.f32 %v2869, 0.2
  %v2902 = vmul.f32 %v2870, 0.2
  %v2903 = vmul.f32 %v2871, 0.2
  %v2904 = vmul.f32 %v2872, 0.2
  %v2905 = vmul.f32 %v2873, 0.2
  %v2906 = vmul.f32 %v2874, 0.2
  %v2907 = vmul.f32 %v2875, 0.2
  %v2908 = vmul.f32 %v2876, 0.2
  %v2909 = vmul.f32 %v2877, 0.2
  %v2910 = vmul.f32 %v2878, 0.2
  %v2911 = vmul.f32 %v2879, 0.2
  %v2912 = vmul.f32 %v2880, 0.2
  %v2913 = vmul.f32 %v2881, 0.2
  %v2914 = vmul.f32 %v2882, 0.2
  %v2915 = vmul.f32 %v2883, 0.2
  %v2916 = vmul.f32 %v2884, 0.2
  %v2917 = vmul.f32 %v2885, 0.2
  %v2918 = vmul.f32 %v2886, 0.2
  %v2919 = vmul.f32 %v2887, 0.2
  %v2920 = vmul.f32 %v2888, 0.2
  %v2921 = vmul.f32 %v2889, 0.2
  %v2922 = vsub.f32 %v2666, %v589
  %v2923 = vsub.f32 %v2667, %v595
  %v2924 = vsub.f32 %v2668, %v601
  %v2925 = vsub.f32 %v2669, %v607
  %v2926 = vsub.f32 %v2670, %v613
  %v2927 = vsub.f32 %v2671, %v619
  %v2928 = vsub.f32 %v2672, %v625
  %v2929 = vsub.f32 %v2673, %v631
  %v2930 = vsub.f32 %v2674, %v637
  %v2931 = vsub.f32 %v2675, %v643
  %v2932 = vsub.f32 %v2676, %v649
  %v2933 = vsub.f32 %v2677, %v655
  %v2934 = vsub.f32 %v2678, %v661
  %v2935 = vsub.f32 %v2679, %v667
  %v2936 = vsub.f32 %v2680, %v673
  %v2937 = vsub.f32 %v2681, %v679
  %v2938 = vsub.f32 %v2682, %v685
  %v2939 = vsub.f32 %v2683, %v691
  %v2940 = vsub.f32 %v2684, %v697
  %v2941 = vsub.f32 %v2685, %v703
  %v2942 = vsub.f32 %v2686, %v709
  %v2943 = vsub.f32 %v2687, %v715
  %v2944 = vsub.f32 %v2688, %v721
  %v2945 = vsub.f32 %v2689, %v727
  %v2946 = vsub.f32 %v2690, %v733
  %v2947 = vsub.f32 %v2691, %v739
  %v2948 = vsub.f32 %v2692, %v745
  %v2949 = vsub.f32 %v2693, %v751
  %v2950 = vsub.f32 %v2694, %v757
  %v2951 = vsub.f32 %v2695, %v763
  %v2952 = vsub.f32 %v2696, %v769
  %v2953 = vsub.f32 %v2697, %v775
  %v2954 = vmul.f32 %v2922, 0.2
  %v2955 = vmul.f32 %v2923, 0.2
  %v2956 = vmul.f32 %v2924, 0.2
  %v2957 = vmul.f32 %v2925, 0.2
  %v2958 = vmul.f32 %v2926, 0.2
  %v2959 = vmul.f32 %v2927, 0.2
  %v2960 = vmul.f32 %v2928, 0.2
  %v2961 = vmul.f32 %v2929, 0.2
  %v2962 = vmul.f32 %v2930, 0.2
  %v2963 = vmul.f32 %v2931, 0.2
  %v2964 = vmul.f32 %v2932, 0.2
  %v2965 = vmul.f32 %v2933, 0.2
  %v2966 = vmul.f32 %v2934, 0.2
  %v2967 = vmul.f32 %v2935, 0.2
  %v2968 = vmul.f32 %v2936, 0.2
  %v2969 = vmul.f32 %v2937, 0.2
  %v2970 = vmul.f32 %v2938, 0.2
  %v2971 = vmul.f32 %v2939, 0.2
  %v2972 = vmul.f32 %v2940, 0.2
  %v2973 = vmul.f32 %v2941, 0.2
  %v2974 = vmul.f32 %v2942, 0.2
  %v2975 = vmul.f32 %v2943, 0.2
  %v2976 = vmul.f32 %v2944, 0.2
  %v2977 = vmul.f32 %v2945, 0.2
  %v2978 = vmul.f32 %v2946, 0.2
  %v2979 = vmul.f32 %v2947, 0.2
  %v2980 = vmul.f32 %v2948, 0.2
  %v2981 = vmul.f32 %v2949, 0.2
  %v2982 = vmul.f32 %v2950, 0.2
  %v2983 = vmul.f32 %v2951, 0.2
  %v2984 = vmul.f32 %v2952, 0.2
  %v2985 = vmul.f32 %v2953, 0.2
  %v2986 = vsub.f32 %v2666, %v781
  %v2987 = vsub.f32 %v2667, %v787
  %v2988 = vsub.f32 %v2668, %v793
  %v2989 = vsub.f32 %v2669, %v799
  %v2990 = vsub.f32 %v2670, %v805
  %v2991 = vsub.f32 %v2671, %v811
  %v2992 = vsub.f32 %v2672, %v817
  %v2993 = vsub.f32 %v2673, %v823
  %v2994 = vsub.f32 %v2674, %v829
  %v2995 = vsub.f32 %v2675, %v835
  %v2996 = vsub.f32 %v2676, %v841
  %v2997 = vsub.f32 %v2677, %v847
  %v2998 = vsub.f32 %v2678, %v853
  %v2999 = vsub.f32 %v2679, %v859
  %v3000 = vsub.f32 %v2680, %v865
  %v3001 = vsub.f32 %v2681, %v871
  %v3002 = vsub.f32 %v2682, %v877
  %v3003 = vsub.f32 %v2683, %v883
  %v3004 = vsub.f32 %v2684, %v889
  %v3005 = vsub.f32 %v2685, %v895
  %v3006 = vsub.f32 %v2686, %v901
  %v3007 = vsub.f32 %v2687, %v907
  %v3008 = vsub.f32 %v2688, %v913
  %v3009 = vsub.f32 %v2689, %v919
  %v3010 = vsub.f32 %v2690, %v925
  %v3011 = vsub.f32 %v2691, %v931
  %v3012 = vsub.f32 %v2692, %v937
  %v3013 = vsub.f32 %v2693, %v943
  %v3014 = vsub.f32 %v2694, %v949
  %v3015 = vsub.f32 %v2695, %v955
  %v3016 = vsub.f32 %v2696, %v961
  %v3017 = vsub.f32 %v2697, %v967
  %v3018 = vmul.f32 %v2986, 0.2
  %v3019 = vmul.f32 %v2987, 0.2
  %v3020 = vmul.f32 %v2988, 0.2
  %v3021 = vmul.f32 %v2989, 0.2
  %v3022 = vmul.f32 %v2990, 0.2
  %v3023 = vmul.f32 %v2991, 0.2
  %v3024 = vmul.f32 %v2992, 0.2
  %v3025 = vmul.f32 %v2993, 0.2
  %v3026 = vmul.f32 %v2994, 0.2
  %v3027 = vmul.f32 %v2995, 0.2
  %v3028 = vmul.f32 %v2996, 0.2
  %v3029 = vmul.f32 %v2997, 0.2
  %v3030 = vmul.f32 %v2998, 0.2
  %v3031 = vmul.f32 %v2999, 0.2
  %v3032 = vmul.f32 %v3000, 0.2
  %v3033 = vmul.f32 %v3001, 0.2
  %v3034 = vmul.f32 %v3002, 0.2
  %v3035 = vmul.f32 %v3003, 0.2
  %v3036 = vmul.f32 %v3004, 0.2
  %v3037 = vmul.f32 %v3005, 0.2
  %v3038 = vmul.f32 %v3006, 0.2
  %v3039 = vmul.f32 %v3007, 0.2
  %v3040 = vmul.f32 %v3008, 0.2
  %v3041 = vmul.f32 %v3009, 0.2
  %v3042 = vmul.f32 %v3010, 0.2
  %v3043 = vmul.f32 %v3011, 0.2
  %v3044 = vmul.f32 %v3012, 0.2
  %v3045 = vmul.f32 %v3013, 0.2
  %v3046 = vmul.f32 %v3014, 0.2
  %v3047 = vmul.f32 %v3015, 0.2
  %v3048 = vmul.f32 %v3016, 0.2
  %v3049 = vmul.f32 %v3017, 0.2
  %v3050 = vsub.f32 %v2666, %v973
  %v3051 = vsub.f32 %v2667, %v979
  %v3052 = vsub.f32 %v2668, %v985
  %v3053 = vsub.f32 %v2669, %v991
  %v3054 = vsub.f32 %v2670, %v997
  %v3055 = vsub.f32 %v2671, %v1003
  %v3056 = vsub.f32 %v2672, %v1009
  %v3057 = vsub.f32 %v2673, %v1015
  %v3058 = vsub.f32 %v2674, %v1021
  %v3059 = vsub.f32 %v2675, %v1027
  %v3060 = vsub.f32 %v2676, %v1033
  %v3061 = vsub.f32 %v2677, %v1039
  %v3062 = vsub.f32 %v2678, %v1045
  %v3063 = vsub.f32 %v2679, %v1051
  %v3064 = vsub.f32 %v2680, %v1057
  %v3065 = vsub.f32 %v2681, %v1063
  %v3066 = vsub.f32 %v2682, %v1069
  %v3067 = vsub.f32 %v2683, %v1075
  %v3068 = vsub.f32 %v2684, %v1081
  %v3069 = vsub.f32 %v2685, %v1087
  %v3070 = vsub.f32 %v2686, %v1093
  %v3071 = vsub.f32 %v2687, %v1099
  %v3072 = vsub.f32 %v2688, %v1105
  %v3073 = vsub.f32 %v2689, %v1111
  %v3074 = vsub.f32 %v2690, %v1117
  %v3075 = vsub.f32 %v2691, %v1123
  %v3076 = vsub.f32 %v2692, %v1129
  %v3077 = vsub.f32 %v2693, %v1135
  %v3078 = vsub.f32 %v2694, %v1141
  %v3079 = vsub.f32 %v2695, %v1147
  %v3080 = vsub.f32 %v2696, %v1153
  %v3081 = vsub.f32 %v2697, %v1159
  %v3082 = vmul.f32 %v3050, 0.2
  %v3083 = vmul.f32 %v3051, 0.2
  %v3084 = vmul.f32 %v3052, 0.2
  %v3085 = vmul.f32 %v3053, 0.2
  %v3086 = vmul.f32 %v3054, 0.2
  %v3087 = vmul.f32 %v3055, 0.2
  %v3088 = vmul.f32 %v3056, 0.2
  %v3089 = vmul.f32 %v3057, 0.2
  %v3090 = vmul.f32 %v3058, 0.2
  %v3091 = vmul.f32 %v3059, 0.2
  %v3092 = vmul.f32 %v3060, 0.2
  %v3093 = vmul.f32 %v3061, 0.2
  %v3094 = vmul.f32 %v3062, 0.2
  %v3095 = vmul.f32 %v3063, 0.2
  %v3096 = vmul.f32 %v3064, 0.2
  %v3097 = vmul.f32 %v3065, 0.2
  %v3098 = vmul.f32 %v3066, 0.2
  %v3099 = vmul.f32 %v3067, 0.2
  %v3100 = vmul.f32 %v3068, 0.2
  %v3101 = vmul.f32 %v3069, 0.2
  %v3102 = vmul.f32 %v3070, 0.2
  %v3103 = vmul.f32 %v3071, 0.2
  %v3104 = vmul.f32 %v3072, 0.2
  %v3105 = vmul.f32 %v3073, 0.2
  %v3106 = vmul.f32 %v3074, 0.2
  %v3107 = vmul.f32 %v3075, 0.2
  %v3108 = vmul.f32 %v3076, 0.2
  %v3109 = vmul.f32 %v3077, 0.2
  %v3110 = vmul.f32 %v3078, 0.2
  %v3111 = vmul.f32 %v3079, 0.2
  %v3112 = vmul.f32 %v3080, 0.2
  %v3113 = vmul.f32 %v3081, 0.2
  %v3114 = vsub.f32 %v2666, %v1165
  %v3115 = vsub.f32 %v2667, %v1171
  %v3116 = vsub.f32 %v2668, %v1177
  %v3117 = vsub.f32 %v2669, %v1183
  %v3118 = vsub.f32 %v2670, %v1189
  %v3119 = vsub.f32 %v2671, %v1195
  %v3120 = vsub.f32 %v2672, %v1201
  %v3121 = vsub.f32 %v2673, %v1207
  %v3122 = vsub.f32 %v2674, %v1213
  %v3123 = vsub.f32 %v2675, %v1219
  %v3124 = vsub.f32 %v2676, %v1225
  %v3125 = vsub.f32 %v2677, %v1231
  %v3126 = vsub.f32 %v2678, %v1237
  %v3127 = vsub.f32 %v2679, %v1243
  %v3128 = vsub.f32 %v2680, %v1249
  %v3129 = vsub.f32 %v2681, %v1255
  %v3130 = vsub.f32 %v2682, %v1261
  %v3131 = vsub.f32 %v2683, %v1267
  %v3132 = vsub.f32 %v2684, %v1273
  %v3133 = vsub.f32 %v2685, %v1279
  %v3134 = vsub.f32 %v2686, %v1285
  %v3135 = vsub.f32 %v2687, %v1291
  %v3136 = vsub.f32 %v2688, %v1297
  %v3137 = vsub.f32 %v2689, %v1303
  %v3138 = vsub.f32 %v2690, %v1309
  %v3139 = vsub.f32 %v2691, %v1315
  %v3140 = vsub.f32 %v2692, %v1321
  %v3141 = vsub.f32 %v2693, %v1327
  %v3142 = vsub.f32 %v2694, %v1333
  %v3143 = vsub.f32 %v2695, %v1339
  %v3144 = vsub.f32 %v2696, %v1345
  %v3145 = vsub.f32 %v2697, %v1351
  %v3146 = vmul.f32 %v3114, 0.2
  %v3147 = vmul.f32 %v3115, 0.2
  %v3148 = vmul.f32 %v3116, 0.2
  %v3149 = vmul.f32 %v3117, 0.2
  %v3150 = vmul.f32 %v3118, 0.2
  %v3151 = vmul.f32 %v3119, 0.2
  %v3152 = vmul.f32 %v3120, 0.2
  %v3153 = vmul.f32 %v3121, 0.2
  %v3154 = vmul.f32 %v3122, 0.2
  %v3155 = vmul.f32 %v3123, 0.2
  %v3156 = vmul.f32 %v3124, 0.2
  %v3157 = vmul.f32 %v3125, 0.2
  %v3158 = vmul.f32 %v3126, 0.2
  %v3159 = vmul.f32 %v3127, 0.2
  %v3160 = vmul.f32 %v3128, 0.2
  %v3161 = vmul.f32 %v3129, 0.2
  %v3162 = vmul.f32 %v3130, 0.2
  %v3163 = vmul.f32 %v3131, 0.2
  %v3164 = vmul.f32 %v3132, 0.2
  %v3165 = vmul.f32 %v3133, 0.2
  %v3166 = vmul.f32 %v3134, 0.2
  %v3167 = vmul.f32 %v3135, 0.2
  %v3168 = vmul.f32 %v3136, 0.2
  %v3169 = vmul.f32 %v3137, 0.2
  %v3170 = vmul.f32 %v3138, 0.2
  %v3171 = vmul.f32 %v3139, 0.2
  %v3172 = vmul.f32 %v3140, 0.2
  %v3173 = vmul.f32 %v3141, 0.2
  %v3174 = vmul.f32 %v3142, 0.2
  %v3175 = vmul.f32 %v3143, 0.2
  %v3176 = vmul.f32 %v3144, 0.2
  %v3177 = vmul.f32 %v3145, 0.2
  %v3178 = vsub.f32 %v2762, %v1360
  %v3179 = vsub.f32 %v2763, %v1368
  %v3180 = vsub.f32 %v2764, %v1376
  %v3181 = vsub.f32 %v2765, %v1384
  %v3182 = vsub.f32 %v2766, %v1392
  %v3183 = vsub.f32 %v2767, %v1400
  %v3184 = vsub.f32 %v2768, %v1408
  %v3185 = vsub.f32 %v2769, %v1416
  %v3186 = vsub.f32 %v2770, %v1424
  %v3187 = vsub.f32 %v2771, %v1432
  %v3188 = vsub.f32 %v2772, %v1440
  %v3189 = vsub.f32 %v2773, %v1448
  %v3190 = vsub.f32 %v2774, %v1456
  %v3191 = vsub.f32 %v2775, %v1464
  %v3192 = vsub.f32 %v2776, %v1472
  %v3193 = vsub.f32 %v2777, %v1480
  %v3194 = vsub.f32 %v2778, %v1488
  %v3195 = vsub.f32 %v2779, %v1496
  %v3196 = vsub.f32 %v2780, %v1504
  %v3197 = vsub.f32 %v2781, %v1512
  %v3198 = vsub.f32 %v2782, %v1520
  %v3199 = vsub.f32 %v2783, %v1528
  %v3200 = vsub.f32 %v2784, %v1536
  %v3201 = vsub.f32 %v2785, %v1544
  %v3202 = vsub.f32 %v2786, %v1552
  %v3203 = vsub.f32 %v2787, %v1560
  %v3204 = vsub.f32 %v2788, %v1568
  %v3205 = vsub.f32 %v2789, %v1576
  %v3206 = vsub.f32 %v2790, %v1584
  %v3207 = vsub.f32 %v2791, %v1592
  %v3208 = vsub.f32 %v2792, %v1600
  %v3209 = vsub.f32 %v2793, %v1608
  %v3210 = vmul.f32 %v3178, 0.33333334
  %v3211 = vmul.f32 %v3179, 0.33333334
  %v3212 = vmul.f32 %v3180, 0.33333334
  %v3213 = vmul.f32 %v3181, 0.33333334
  %v3214 = vmul.f32 %v3182, 0.33333334
  %v3215 = vmul.f32 %v3183, 0.33333334
  %v3216 = vmul.f32 %v3184, 0.33333334
  %v3217 = vmul.f32 %v3185, 0.33333334
  %v3218 = vmul.f32 %v3186, 0.33333334
  %v3219 = vmul.f32 %v3187, 0.33333334
  %v3220 = vmul.f32 %v3188, 0.33333334
  %v3221 = vmul.f32 %v3189, 0.33333334
  %v3222 = vmul.f32 %v3190, 0.33333334
  %v3223 = vmul.f32 %v3191, 0.33333334
  %v3224 = vmul.f32 %v3192, 0.33333334
  %v3225 = vmul.f32 %v3193, 0.33333334
  %v3226 = vmul.f32 %v3194, 0.33333334
  %v3227 = vmul.f32 %v3195, 0.33333334
  %v3228 = vmul.f32 %v3196, 0.33333334
  %v3229 = vmul.f32 %v3197, 0.33333334
  %v3230 = vmul.f32 %v3198, 0.33333334
  %v3231 = vmul.f32 %v3199, 0.33333334
  %v3232 = vmul.f32 %v3200, 0.33333334
  %v3233 = vmul.f32 %v3201, 0.33333334
  %v3234 = vmul.f32 %v3202, 0.33333334
  %v3235 = vmul.f32 %v3203, 0.33333334
  %v3236 = vmul.f32 %v3204, 0.33333334
  %v3237 = vmul.f32 %v3205, 0.33333334
  %v3238 = vmul.f32 %v3206, 0.33333334
  %v3239 = vmul.f32 %v3207, 0.33333334
  %v3240 = vmul.f32 %v3208, 0.33333334
  %v3241 = vmul.f32 %v3209, 0.33333334
  %v3242 = vsub.f32 %v2762, %v1617
  %v3243 = vsub.f32 %v2763, %v1625
  %v3244 = vsub.f32 %v2764, %v1633
  %v3245 = vsub.f32 %v2765, %v1641
  %v3246 = vsub.f32 %v2766, %v1649
  %v3247 = vsub.f32 %v2767, %v1657
  %v3248 = vsub.f32 %v2768, %v1665
  %v3249 = vsub.f32 %v2769, %v1673
  %v3250 = vsub.f32 %v2770, %v1681
  %v3251 = vsub.f32 %v2771, %v1689
  %v3252 = vsub.f32 %v2772, %v1697
  %v3253 = vsub.f32 %v2773, %v1705
  %v3254 = vsub.f32 %v2774, %v1713
  %v3255 = vsub.f32 %v2775, %v1721
  %v3256 = vsub.f32 %v2776, %v1729
  %v3257 = vsub.f32 %v2777, %v1737
  %v3258 = vsub.f32 %v2778, %v1745
  %v3259 = vsub.f32 %v2779, %v1753
  %v3260 = vsub.f32 %v2780, %v1761
  %v3261 = vsub.f32 %v2781, %v1769
  %v3262 = vsub.f32 %v2782, %v1777
  %v3263 = vsub.f32 %v2783, %v1785
  %v3264 = vsub.f32 %v2784, %v1793
  %v3265 = vsub.f32 %v2785, %v1801
  %v3266 = vsub.f32 %v2786, %v1809
  %v3267 = vsub.f32 %v2787, %v1817
  %v3268 = vsub.f32 %v2788, %v1825
  %v3269 = vsub.f32 %v2789, %v1833
  %v3270 = vsub.f32 %v2790, %v1841
  %v3271 = vsub.f32 %v2791, %v1849
  %v3272 = vsub.f32 %v2792, %v1857
  %v3273 = vsub.f32 %v2793, %v1865
  %v3274 = vmul.f32 %v3242, 0.33333334
  %v3275 = vmul.f32 %v3243, 0.33333334
  %v3276 = vmul.f32 %v3244, 0.33333334
  %v3277 = vmul.f32 %v3245, 0.33333334
  %v3278 = vmul.f32 %v3246, 0.33333334
  %v3279 = vmul.f32 %v3247, 0.33333334
  %v3280 = vmul.f32 %v3248, 0.33333334
  %v3281 = vmul.f32 %v3249, 0.33333334
  %v3282 = vmul.f32 %v3250, 0.33333334
  %v3283 = vmul.f32 %v3251, 0.33333334
  %v3284 = vmul.f32 %v3252, 0.33333334
  %v3285 = vmul.f32 %v3253, 0.33333334
  %v3286 = vmul.f32 %v3254, 0.33333334
  %v3287 = vmul.f32 %v3255, 0.33333334
  %v3288 = vmul.f32 %v3256, 0.33333334
  %v3289 = vmul.f32 %v3257, 0.33333334
  %v3290 = vmul.f32 %v3258, 0.33333334
  %v3291 = vmul.f32 %v3259, 0.33333334
  %v3292 = vmul.f32 %v3260, 0.33333334
  %v3293 = vmul.f32 %v3261, 0.33333334
  %v3294 = vmul.f32 %v3262, 0.33333334
  %v3295 = vmul.f32 %v3263, 0.33333334
  %v3296 = vmul.f32 %v3264, 0.33333334
  %v3297 = vmul.f32 %v3265, 0.33333334
  %v3298 = vmul.f32 %v3266, 0.33333334
  %v3299 = vmul.f32 %v3267, 0.33333334
  %v3300 = vmul.f32 %v3268, 0.33333334
  %v3301 = vmul.f32 %v3269, 0.33333334
  %v3302 = vmul.f32 %v3270, 0.33333334
  %v3303 = vmul.f32 %v3271, 0.33333334
  %v3304 = vmul.f32 %v3272, 0.33333334
  %v3305 = vmul.f32 %v3273, 0.33333334
  %v3306 = vsub.f32 %v2762, %v1873
  %v3307 = vsub.f32 %v2763, %v1881
  %v3308 = vsub.f32 %v2764, %v1889
  %v3309 = vsub.f32 %v2765, %v1897
  %v3310 = vsub.f32 %v2766, %v1905
  %v3311 = vsub.f32 %v2767, %v1913
  %v3312 = vsub.f32 %v2768, %v1921
  %v3313 = vsub.f32 %v2769, %v1929
  %v3314 = vsub.f32 %v2770, %v1937
  %v3315 = vsub.f32 %v2771, %v1945
  %v3316 = vsub.f32 %v2772, %v1953
  %v3317 = vsub.f32 %v2773, %v1961
  %v3318 = vsub.f32 %v2774, %v1969
  %v3319 = vsub.f32 %v2775, %v1977
  %v3320 = vsub.f32 %v2776, %v1985
  %v3321 = vsub.f32 %v2777, %v1993
  %v3322 = vsub.f32 %v2778, %v2001
  %v3323 = vsub.f32 %v2779, %v2009
  %v3324 = vsub.f32 %v2780, %v2017
  %v3325 = vsub.f32 %v2781, %v2025
  %v3326 = vsub.f32 %v2782, %v2033
  %v3327 = vsub.f32 %v2783, %v2041
  %v3328 = vsub.f32 %v2784, %v2049
  %v3329 = vsub.f32 %v2785, %v2057
  %v3330 = vsub.f32 %v2786, %v2065
  %v3331 = vsub.f32 %v2787, %v2073
  %v3332 = vsub.f32 %v2788, %v2081
  %v3333 = vsub.f32 %v2789, %v2089
  %v3334 = vsub.f32 %v2790, %v2097
  %v3335 = vsub.f32 %v2791, %v2105
  %v3336 = vsub.f32 %v2792, %v2113
  %v3337 = vsub.f32 %v2793, %v2121
  %v3338 = vmul.f32 %v3306, 0.33333334
  %v3339 = vmul.f32 %v3307, 0.33333334
  %v3340 = vmul.f32 %v3308, 0.33333334
  %v3341 = vmul.f32 %v3309, 0.33333334
  %v3342 = vmul.f32 %v3310, 0.33333334
  %v3343 = vmul.f32 %v3311, 0.33333334
  %v3344 = vmul.f32 %v3312, 0.33333334
  %v3345 = vmul.f32 %v3313, 0.33333334
  %v3346 = vmul.f32 %v3314, 0.33333334
  %v3347 = vmul.f32 %v3315, 0.33333334
  %v3348 = vmul.f32 %v3316, 0.33333334
  %v3349 = vmul.f32 %v3317, 0.33333334
  %v3350 = vmul.f32 %v3318, 0.33333334
  %v3351 = vmul.f32 %v3319, 0.33333334
  %v3352 = vmul.f32 %v3320, 0.33333334
  %v3353 = vmul.f32 %v3321, 0.33333334
  %v3354 = vmul.f32 %v3322, 0.33333334
  %v3355 = vmul.f32 %v3323, 0.33333334
  %v3356 = vmul.f32 %v3324, 0.33333334
  %v3357 = vmul.f32 %v3325, 0.33333334
  %v3358 = vmul.f32 %v3326, 0.33333334
  %v3359 = vmul.f32 %v3327, 0.33333334
  %v3360 = vmul.f32 %v3328, 0.33333334
  %v3361 = vmul.f32 %v3329, 0.33333334
  %v3362 = vmul.f32 %v3330, 0.33333334
  %v3363 = vmul.f32 %v3331, 0.33333334
  %v3364 = vmul.f32 %v3332, 0.33333334
  %v3365 = vmul.f32 %v3333, 0.33333334
  %v3366 = vmul.f32 %v3334, 0.33333334
  %v3367 = vmul.f32 %v3335, 0.33333334
  %v3368 = vmul.f32 %v3336, 0.33333334
  %v3369 = vmul.f32 %v3337, 0.33333334
  %v3370 = vsub.f32 %v2762, %v2129
  %v3371 = vsub.f32 %v2763, %v2137
  %v3372 = vsub.f32 %v2764, %v2145
  %v3373 = vsub.f32 %v2765, %v2153
  %v3374 = vsub.f32 %v2766, %v2161
  %v3375 = vsub.f32 %v2767, %v2169
  %v3376 = vsub.f32 %v2768, %v2177
  %v3377 = vsub.f32 %v2769, %v2185
  %v3378 = vsub.f32 %v2770, %v2193
  %v3379 = vsub.f32 %v2771, %v2201
  %v3380 = vsub.f32 %v2772, %v2209
  %v3381 = vsub.f32 %v2773, %v2217
  %v3382 = vsub.f32 %v2774, %v2225
  %v3383 = vsub.f32 %v2775, %v2233
  %v3384 = vsub.f32 %v2776, %v2241
  %v3385 = vsub.f32 %v2777, %v2249
  %v3386 = vsub.f32 %v2778, %v2257
  %v3387 = vsub.f32 %v2779, %v2265
  %v3388 = vsub.f32 %v2780, %v2273
  %v3389 = vsub.f32 %v2781, %v2281
  %v3390 = vsub.f32 %v2782, %v2289
  %v3391 = vsub.f32 %v2783, %v2297
  %v3392 = vsub.f32 %v2784, %v2305
  %v3393 = vsub.f32 %v2785, %v2313
  %v3394 = vsub.f32 %v2786, %v2321
  %v3395 = vsub.f32 %v2787, %v2329
  %v3396 = vsub.f32 %v2788, %v2337
  %v3397 = vsub.f32 %v2789, %v2345
  %v3398 = vsub.f32 %v2790, %v2353
  %v3399 = vsub.f32 %v2791, %v2361
  %v3400 = vsub.f32 %v2792, %v2369
  %v3401 = vsub.f32 %v2793, %v2377
  %v3402 = vmul.f32 %v3370, 0.33333334
  %v3403 = vmul.f32 %v3371, 0.33333334
  %v3404 = vmul.f32 %v3372, 0.33333334
  %v3405 = vmul.f32 %v3373, 0.33333334
  %v3406 = vmul.f32 %v3374, 0.33333334
  %v3407 = vmul.f32 %v3375, 0.33333334
  %v3408 = vmul.f32 %v3376, 0.33333334
  %v3409 = vmul.f32 %v3377, 0.33333334
  %v3410 = vmul.f32 %v3378, 0.33333334
  %v3411 = vmul.f32 %v3379, 0.33333334
  %v3412 = vmul.f32 %v3380, 0.33333334
  %v3413 = vmul.f32 %v3381, 0.33333334
  %v3414 = vmul.f32 %v3382, 0.33333334
  %v3415 = vmul.f32 %v3383, 0.33333334
  %v3416 = vmul.f32 %v3384, 0.33333334
  %v3417 = vmul.f32 %v3385, 0.33333334
  %v3418 = vmul.f32 %v3386, 0.33333334
  %v3419 = vmul.f32 %v3387, 0.33333334
  %v3420 = vmul.f32 %v3388, 0.33333334
  %v3421 = vmul.f32 %v3389, 0.33333334
  %v3422 = vmul.f32 %v3390, 0.33333334
  %v3423 = vmul.f32 %v3391, 0.33333334
  %v3424 = vmul.f32 %v3392, 0.33333334
  %v3425 = vmul.f32 %v3393, 0.33333334
  %v3426 = vmul.f32 %v3394, 0.33333334
  %v3427 = vmul.f32 %v3395, 0.33333334
  %v3428 = vmul.f32 %v3396, 0.33333334
  %v3429 = vmul.f32 %v3397, 0.33333334
  %v3430 = vmul.f32 %v3398, 0.33333334
  %v3431 = vmul.f32 %v3399, 0.33333334
  %v3432 = vmul.f32 %v3400, 0.33333334
  %v3433 = vmul.f32 %v3401, 0.33333334
  %v3434 = vsub.f32 %v2666, %v2506
  %v3435 = vsub.f32 %v2667, %v2507
  %v3436 = vsub.f32 %v2668, %v2508
  %v3437 = vsub.f32 %v2669, %v2509
  %v3438 = vsub.f32 %v2670, %v2510
  %v3439 = vsub.f32 %v2671, %v2511
  %v3440 = vsub.f32 %v2672, %v2512
  %v3441 = vsub.f32 %v2673, %v2513
  %v3442 = vsub.f32 %v2674, %v2514
  %v3443 = vsub.f32 %v2675, %v2515
  %v3444 = vsub.f32 %v2676, %v2516
  %v3445 = vsub.f32 %v2677, %v2517
  %v3446 = vsub.f32 %v2678, %v2518
  %v3447 = vsub.f32 %v2679, %v2519
  %v3448 = vsub.f32 %v2680, %v2520
  %v3449 = vsub.f32 %v2681, %v2521
  %v3450 = vsub.f32 %v2682, %v2522
  %v3451 = vsub.f32 %v2683, %v2523
  %v3452 = vsub.f32 %v2684, %v2524
  %v3453 = vsub.f32 %v2685, %v2525
  %v3454 = vsub.f32 %v2686, %v2526
  %v3455 = vsub.f32 %v2687, %v2527
  %v3456 = vsub.f32 %v2688, %v2528
  %v3457 = vsub.f32 %v2689, %v2529
  %v3458 = vsub.f32 %v2690, %v2530
  %v3459 = vsub.f32 %v2691, %v2531
  %v3460 = vsub.f32 %v2692, %v2532
  %v3461 = vsub.f32 %v2693, %v2533
  %v3462 = vsub.f32 %v2694, %v2534
  %v3463 = vsub.f32 %v2695, %v2535
  %v3464 = vsub.f32 %v2696, %v2536
  %v3465 = vsub.f32 %v2697, %v2537
  %v3466 = vmul.f32 %v3434, 0.2
  %v3467 = vmul.f32 %v3435, 0.2
  %v3468 = vmul.f32 %v3436, 0.2
  %v3469 = vmul.f32 %v3437, 0.2
  %v3470 = vmul.f32 %v3438, 0.2
  %v3471 = vmul.f32 %v3439, 0.2
  %v3472 = vmul.f32 %v3440, 0.2
  %v3473 = vmul.f32 %v3441, 0.2
  %v3474 = vmul.f32 %v3442, 0.2
  %v3475 = vmul.f32 %v3443, 0.2
  %v3476 = vmul.f32 %v3444, 0.2
  %v3477 = vmul.f32 %v3445, 0.2
  %v3478 = vmul.f32 %v3446, 0.2
  %v3479 = vmul.f32 %v3447, 0.2
  %v3480 = vmul.f32 %v3448, 0.2
  %v3481 = vmul.f32 %v3449, 0.2
  %v3482 = vmul.f32 %v3450, 0.2
  %v3483 = vmul.f32 %v3451, 0.2
  %v3484 = vmul.f32 %v3452, 0.2
  %v3485 = vmul.f32 %v3453, 0.2
  %v3486 = vmul.f32 %v3454, 0.2
  %v3487 = vmul.f32 %v3455, 0.2
  %v3488 = vmul.f32 %v3456, 0.2
  %v3489 = vmul.f32 %v3457, 0.2
  %v3490 = vmul.f32 %v3458, 0.2
  %v3491 = vmul.f32 %v3459, 0.2
  %v3492 = vmul.f32 %v3460, 0.2
  %v3493 = vmul.f32 %v3461, 0.2
  %v3494 = vmul.f32 %v3462, 0.2
  %v3495 = vmul.f32 %v3463, 0.2
  %v3496 = vmul.f32 %v3464, 0.2
  %v3497 = vmul.f32 %v3465, 0.2
  %v3498 = vsub.f32 %v2762, %v2506
  %v3499 = vsub.f32 %v2763, %v2507
  %v3500 = vsub.f32 %v2764, %v2508
  %v3501 = vsub.f32 %v2765, %v2509
  %v3502 = vsub.f32 %v2766, %v2510
  %v3503 = vsub.f32 %v2767, %v2511
  %v3504 = vsub.f32 %v2768, %v2512
  %v3505 = vsub.f32 %v2769, %v2513
  %v3506 = vsub.f32 %v2770, %v2514
  %v3507 = vsub.f32 %v2771, %v2515
  %v3508 = vsub.f32 %v2772, %v2516
  %v3509 = vsub.f32 %v2773, %v2517
  %v3510 = vsub.f32 %v2774, %v2518
  %v3511 = vsub.f32 %v2775, %v2519
  %v3512 = vsub.f32 %v2776, %v2520
  %v3513 = vsub.f32 %v2777, %v2521
  %v3514 = vsub.f32 %v2778, %v2522
  %v3515 = vsub.f32 %v2779, %v2523
  %v3516 = vsub.f32 %v2780, %v2524
  %v3517 = vsub.f32 %v2781, %v2525
  %v3518 = vsub.f32 %v2782, %v2526
  %v3519 = vsub.f32 %v2783, %v2527
  %v3520 = vsub.f32 %v2784, %v2528
  %v3521 = vsub.f32 %v2785, %v2529
  %v3522 = vsub.f32 %v2786, %v2530
  %v3523 = vsub.f32 %v2787, %v2531
  %v3524 = vsub.f32 %v2788, %v2532
  %v3525 = vsub.f32 %v2789, %v2533
  %v3526 = vsub.f32 %v2790, %v2534
  %v3527 = vsub.f32 %v2791, %v2535
  %v3528 = vsub.f32 %v2792, %v2536
  %v3529 = vsub.f32 %v2793, %v2537
  %v3530 = vmul.f32 %v3498, 0.33333334
  %v3531 = vmul.f32 %v3499, 0.33333334
  %v3532 = vmul.f32 %v3500, 0.33333334
  %v3533 = vmul.f32 %v3501, 0.33333334
  %v3534 = vmul.f32 %v3502, 0.33333334
  %v3535 = vmul.f32 %v3503, 0.33333334
  %v3536 = vmul.f32 %v3504, 0.33333334
  %v3537 = vmul.f32 %v3505, 0.33333334
  %v3538 = vmul.f32 %v3506, 0.33333334
  %v3539 = vmul.f32 %v3507, 0.33333334
  %v3540 = vmul.f32 %v3508, 0.33333334
  %v3541 = vmul.f32 %v3509, 0.33333334
  %v3542 = vmul.f32 %v3510, 0.33333334
  %v3543 = vmul.f32 %v3511, 0.33333334
  %v3544 = vmul.f32 %v3512, 0.33333334
  %v3545 = vmul.f32 %v3513, 0.33333334
  %v3546 = vmul.f32 %v3514, 0.33333334
  %v3547 = vmul.f32 %v3515, 0.33333334
  %v3548 = vmul.f32 %v3516, 0.33333334
  %v3549 = vmul.f32 %v3517, 0.33333334
  %v3550 = vmul.f32 %v3518, 0.33333334
  %v3551 = vmul.f32 %v3519, 0.33333334
  %v3552 = vmul.f32 %v3520, 0.33333334
  %v3553 = vmul.f32 %v3521, 0.33333334
  %v3554 = vmul.f32 %v3522, 0.33333334
  %v3555 = vmul.f32 %v3523, 0.33333334
  %v3556 = vmul.f32 %v3524, 0.33333334
  %v3557 = vmul.f32 %v3525, 0.33333334
  %v3558 = vmul.f32 %v3526, 0.33333334
  %v3559 = vmul.f32 %v3527, 0.33333334
  %v3560 = vmul.f32 %v3528, 0.33333334
  %v3561 = vmul.f32 %v3529, 0.33333334
  %v3562 = vadd.f32 %v2410, %v2474
  %v3563 = vadd.f32 %v2411, %v2475
  %v3564 = vadd.f32 %v2412, %v2476
  %v3565 = vadd.f32 %v2413, %v2477
  %v3566 = vadd.f32 %v2414, %v2478
  %v3567 = vadd.f32 %v2415, %v2479
  %v3568 = vadd.f32 %v2416, %v2480
  %v3569 = vadd.f32 %v2417, %v2481
  %v3570 = vadd.f32 %v2418, %v2482
  %v3571 = vadd.f32 %v2419, %v2483
  %v3572 = vadd.f32 %v2420, %v2484
  %v3573 = vadd.f32 %v2421, %v2485
  %v3574 = vadd.f32 %v2422, %v2486
  %v3575 = vadd.f32 %v2423, %v2487
  %v3576 = vadd.f32 %v2424, %v2488
  %v3577 = vadd.f32 %v2425, %v2489
  %v3578 = vadd.f32 %v2426, %v2490
  %v3579 = vadd.f32 %v2427, %v2491
  %v3580 = vadd.f32 %v2428, %v2492
  %v3581 = vadd.f32 %v2429, %v2493
  %v3582 = vadd.f32 %v2430, %v2494
  %v3583 = vadd.f32 %v2431, %v2495
  %v3584 = vadd.f32 %v2432, %v2496
  %v3585 = vadd.f32 %v2433, %v2497
  %v3586 = vadd.f32 %v2434, %v2498
  %v3587 = vadd.f32 %v2435, %v2499
  %v3588 = vadd.f32 %v2436, %v2500
  %v3589 = vadd.f32 %v2437, %v2501
  %v3590 = vadd.f32 %v2438, %v2502
  %v3591 = vadd.f32 %v2439, %v2503
  %v3592 = vadd.f32 %v2440, %v2504
  %v3593 = vadd.f32 %v2441, %v2505
  %v3594 = vsub.f32 %v3562, %v2506
  %v3595 = vsub.f32 %v3563, %v2507
  %v3596 = vsub.f32 %v3564, %v2508
  %v3597 = vsub.f32 %v3565, %v2509
  %v3598 = vsub.f32 %v3566, %v2510
  %v3599 = vsub.f32 %v3567, %v2511
  %v3600 = vsub.f32 %v3568, %v2512
  %v3601 = vsub.f32 %v3569, %v2513
  %v3602 = vsub.f32 %v3570, %v2514
  %v3603 = vsub.f32 %v3571, %v2515
  %v3604 = vsub.f32 %v3572, %v2516
  %v3605 = vsub.f32 %v3573, %v2517
  %v3606 = vsub.f32 %v3574, %v2518
  %v3607 = vsub.f32 %v3575, %v2519
  %v3608 = vsub.f32 %v3576, %v2520
  %v3609 = vsub.f32 %v3577, %v2521
  %v3610 = vsub.f32 %v3578, %v2522
  %v3611 = vsub.f32 %v3579, %v2523
  %v3612 = vsub.f32 %v3580, %v2524
  %v3613 = vsub.f32 %v3581, %v2525
  %v3614 = vsub.f32 %v3582, %v2526
  %v3615 = vsub.f32 %v3583, %v2527
  %v3616 = vsub.f32 %v3584, %v2528
  %v3617 = vsub.f32 %v3585, %v2529
  %v3618 = vsub.f32 %v3586, %v2530
  %v3619 = vsub.f32 %v3587, %v2531
  %v3620 = vsub.f32 %v3588, %v2532
  %v3621 = vsub.f32 %v3589, %v2533
  %v3622 = vsub.f32 %v3590, %v2534
  %v3623 = vsub.f32 %v3591, %v2535
  %v3624 = vsub.f32 %v3592, %v2536
  %v3625 = vsub.f32 %v3593, %v2537
  %v3626 = vpack.c.bf16 %v205, %v205
  %v3627 = vpack.c.bf16 %v211, %v211
  %v3628 = vpack.c.bf16 %v217, %v217
  %v3629 = vpack.c.bf16 %v223, %v223
  %v3630 = vpack.c.bf16 %v229, %v229
  %v3631 = vpack.c.bf16 %v235, %v235
  %v3632 = vpack.c.bf16 %v241, %v241
  %v3633 = vpack.c.bf16 %v247, %v247
  %v3634 = vpack.c.bf16 %v253, %v253
  %v3635 = vpack.c.bf16 %v259, %v259
  %v3636 = vpack.c.bf16 %v265, %v265
  %v3637 = vpack.c.bf16 %v271, %v271
  %v3638 = vpack.c.bf16 %v277, %v277
  %v3639 = vpack.c.bf16 %v283, %v283
  %v3640 = vpack.c.bf16 %v289, %v289
  %v3641 = vpack.c.bf16 %v295, %v295
  %v3642 = vpack.c.bf16 %v301, %v301
  %v3643 = vpack.c.bf16 %v307, %v307
  %v3644 = vpack.c.bf16 %v313, %v313
  %v3645 = vpack.c.bf16 %v319, %v319
  %v3646 = vpack.c.bf16 %v325, %v325
  %v3647 = vpack.c.bf16 %v331, %v331
  %v3648 = vpack.c.bf16 %v337, %v337
  %v3649 = vpack.c.bf16 %v343, %v343
  %v3650 = vpack.c.bf16 %v349, %v349
  %v3651 = vpack.c.bf16 %v355, %v355
  %v3652 = vpack.c.bf16 %v361, %v361
  %v3653 = vpack.c.bf16 %v367, %v367
  %v3654 = vpack.c.bf16 %v373, %v373
  %v3655 = vpack.c.bf16 %v379, %v379
  %v3656 = vpack.c.bf16 %v385, %v385
  %v3657 = vpack.c.bf16 %v391, %v391
  %v3690 = vunpack.c.l.b16 %v3626
  %v3691 = vunpack.c.l.b16 %v3627
  %v3692 = vunpack.c.l.b16 %v3628
  %v3693 = vunpack.c.l.b16 %v3629
  %v3694 = vunpack.c.l.b16 %v3630
  %v3695 = vunpack.c.l.b16 %v3631
  %v3696 = vunpack.c.l.b16 %v3632
  %v3697 = vunpack.c.l.b16 %v3633
  %v3698 = vunpack.c.l.b16 %v3634
  %v3699 = vunpack.c.l.b16 %v3635
  %v3700 = vunpack.c.l.b16 %v3636
  %v3701 = vunpack.c.l.b16 %v3637
  %v3702 = vunpack.c.l.b16 %v3638
  %v3703 = vunpack.c.l.b16 %v3639
  %v3704 = vunpack.c.l.b16 %v3640
  %v3705 = vunpack.c.l.b16 %v3641
  %v3706 = vunpack.c.l.b16 %v3642
  %v3707 = vunpack.c.l.b16 %v3643
  %v3708 = vunpack.c.l.b16 %v3644
  %v3709 = vunpack.c.l.b16 %v3645
  %v3710 = vunpack.c.l.b16 %v3646
  %v3711 = vunpack.c.l.b16 %v3647
  %v3712 = vunpack.c.l.b16 %v3648
  %v3713 = vunpack.c.l.b16 %v3649
  %v3714 = vunpack.c.l.b16 %v3650
  %v3715 = vunpack.c.l.b16 %v3651
  %v3716 = vunpack.c.l.b16 %v3652
  %v3717 = vunpack.c.l.b16 %v3653
  %v3718 = vunpack.c.l.b16 %v3654
  %v3719 = vunpack.c.l.b16 %v3655
  %v3720 = vunpack.c.l.b16 %v3656
  %v3721 = vunpack.c.l.b16 %v3657
  %v3722 = vpack.c.b16 %v3691, %v3690
  %v3723 = vpack.c.b16 %v3693, %v3692
  %v3724 = vpack.c.b16 %v3695, %v3694
  %v3725 = vpack.c.b16 %v3697, %v3696
  %v3726 = vpack.c.b16 %v3699, %v3698
  %v3727 = vpack.c.b16 %v3701, %v3700
  %v3728 = vpack.c.b16 %v3703, %v3702
  %v3729 = vpack.c.b16 %v3705, %v3704
  %v3730 = vpack.c.b16 %v3707, %v3706
  %v3731 = vpack.c.b16 %v3709, %v3708
  %v3732 = vpack.c.b16 %v3711, %v3710
  %v3733 = vpack.c.b16 %v3713, %v3712
  %v3734 = vpack.c.b16 %v3715, %v3714
  %v3735 = vpack.c.b16 %v3717, %v3716
  %v3736 = vpack.c.b16 %v3719, %v3718
  %v3737 = vpack.c.b16 %v3721, %v3720
  %v3738 = vunpack.c.l.b16 %v3722
  %v3739 = vunpack.c.h.b16 %v3722
  %v3740 = vunpack.c.l.b16 %v3723
  %v3741 = vunpack.c.h.b16 %v3723
  %v3742 = vunpack.c.l.b16 %v3724
  %v3743 = vunpack.c.h.b16 %v3724
  %v3744 = vunpack.c.l.b16 %v3725
  %v3745 = vunpack.c.h.b16 %v3725
  %v3746 = vunpack.c.l.b16 %v3726
  %v3747 = vunpack.c.h.b16 %v3726
  %v3748 = vunpack.c.l.b16 %v3727
  %v3749 = vunpack.c.h.b16 %v3727
  %v3750 = vunpack.c.l.b16 %v3728
  %v3751 = vunpack.c.h.b16 %v3728
  %v3752 = vunpack.c.l.b16 %v3729
  %v3753 = vunpack.c.h.b16 %v3729
  %v3754 = vunpack.c.l.b16 %v3730
  %v3755 = vunpack.c.h.b16 %v3730
  %v3756 = vunpack.c.l.b16 %v3731
  %v3757 = vunpack.c.h.b16 %v3731
  %v3758 = vunpack.c.l.b16 %v3732
  %v3759 = vunpack.c.h.b16 %v3732
  %v3760 = vunpack.c.l.b16 %v3733
  %v3761 = vunpack.c.h.b16 %v3733
  %v3762 = vunpack.c.l.b16 %v3734
  %v3763 = vunpack.c.h.b16 %v3734
  %v3764 = vunpack.c.l.b16 %v3735
  %v3765 = vunpack.c.h.b16 %v3735
  %v3766 = vunpack.c.l.b16 %v3736
  %v3767 = vunpack.c.h.b16 %v3736
  %v3768 = vunpack.c.l.b16 %v3737
  %v3769 = vunpack.c.h.b16 %v3737
  %vm3770 = vcmask 1041409
  %v3771 = vsel %vm3770, %v3742, %v3738
  %vm3772 = vcmask 1042434
  %v3773 = vsel %vm3772, %v3746, %v3771
  %vm3774 = vcmask 1043459
  %v3775 = vsel %vm3774, %v3750, %v3773
  %vm3776 = vcmask 1044484
  %v3777 = vsel %vm3776, %v3754, %v3775
  %vm3778 = vcmask 1045509
  %v3779 = vsel %vm3778, %v3758, %v3777
  %vm3780 = vcmask 1046534
  %v3781 = vsel %vm3780, %v3762, %v3779
  %vm3782 = vcmask 1047559
  %v3783 = vsel %vm3782, %v3766, %v3781
  %v3784 = vsel %vm3770, %v3743, %v3739
  %v3785 = vsel %vm3772, %v3747, %v3784
  %v3786 = vsel %vm3774, %v3751, %v3785
  %v3787 = vsel %vm3776, %v3755, %v3786
  %v3788 = vsel %vm3778, %v3759, %v3787
  %v3789 = vsel %vm3780, %v3763, %v3788
  %v3790 = vsel %vm3782, %v3767, %v3789
  %v3791 = vsel %vm3770, %v3744, %v3740
  %v3792 = vsel %vm3772, %v3748, %v3791
  %v3793 = vsel %vm3774, %v3752, %v3792
  %v3794 = vsel %vm3776, %v3756, %v3793
  %v3795 = vsel %vm3778, %v3760, %v3794
  %v3796 = vsel %vm3780, %v3764, %v3795
  %v3797 = vsel %vm3782, %v3768, %v3796
  %v3798 = vsel %vm3770, %v3745, %v3741
  %v3799 = vsel %vm3772, %v3749, %v3798
  %v3800 = vsel %vm3774, %v3753, %v3799
  %v3801 = vsel %vm3776, %v3757, %v3800
  %v3802 = vsel %vm3778, %v3761, %v3801
  %v3803 = vsel %vm3780, %v3765, %v3802
  %v3804 = vsel %vm3782, %v3769, %v3803
  %v3805 = vpack.c.b16 %v3790, %v3783
  %v3806 = vpack.c.b16 %v3804, %v3797
  %3809 = vst [vmem:[%s1] sm:$0xff] %v3805
  %3810 = vst [vmem:[%s1 + $0x8] sm:$0xff] %v3806
  %v3811 = vpack.c.bf16 %v2826, %v2826
  %v3812 = vpack.c.bf16 %v2827, %v2827
  %v3813 = vpack.c.bf16 %v2828, %v2828
  %v3814 = vpack.c.bf16 %v2829, %v2829
  %v3815 = vpack.c.bf16 %v2830, %v2830
  %v3816 = vpack.c.bf16 %v2831, %v2831
  %v3817 = vpack.c.bf16 %v2832, %v2832
  %v3818 = vpack.c.bf16 %v2833, %v2833
  %v3819 = vpack.c.bf16 %v2834, %v2834
  %v3820 = vpack.c.bf16 %v2835, %v2835
  %v3821 = vpack.c.bf16 %v2836, %v2836
  %v3822 = vpack.c.bf16 %v2837, %v2837
  %v3823 = vpack.c.bf16 %v2838, %v2838
  %v3824 = vpack.c.bf16 %v2839, %v2839
  %v3825 = vpack.c.bf16 %v2840, %v2840
  %v3826 = vpack.c.bf16 %v2841, %v2841
  %v3827 = vpack.c.bf16 %v2842, %v2842
  %v3828 = vpack.c.bf16 %v2843, %v2843
  %v3829 = vpack.c.bf16 %v2844, %v2844
  %v3830 = vpack.c.bf16 %v2845, %v2845
  %v3831 = vpack.c.bf16 %v2846, %v2846
  %v3832 = vpack.c.bf16 %v2847, %v2847
  %v3833 = vpack.c.bf16 %v2848, %v2848
  %v3834 = vpack.c.bf16 %v2849, %v2849
  %v3835 = vpack.c.bf16 %v2850, %v2850
  %v3836 = vpack.c.bf16 %v2851, %v2851
  %v3837 = vpack.c.bf16 %v2852, %v2852
  %v3838 = vpack.c.bf16 %v2853, %v2853
  %v3839 = vpack.c.bf16 %v2854, %v2854
  %v3840 = vpack.c.bf16 %v2855, %v2855
  %v3841 = vpack.c.bf16 %v2856, %v2856
  %v3842 = vpack.c.bf16 %v2857, %v2857
  %v3875 = vunpack.c.l.b16 %v3811
  %v3876 = vunpack.c.l.b16 %v3812
  %v3877 = vunpack.c.l.b16 %v3813
  %v3878 = vunpack.c.l.b16 %v3814
  %v3879 = vunpack.c.l.b16 %v3815
  %v3880 = vunpack.c.l.b16 %v3816
  %v3881 = vunpack.c.l.b16 %v3817
  %v3882 = vunpack.c.l.b16 %v3818
  %v3883 = vunpack.c.l.b16 %v3819
  %v3884 = vunpack.c.l.b16 %v3820
  %v3885 = vunpack.c.l.b16 %v3821
  %v3886 = vunpack.c.l.b16 %v3822
  %v3887 = vunpack.c.l.b16 %v3823
  %v3888 = vunpack.c.l.b16 %v3824
  %v3889 = vunpack.c.l.b16 %v3825
  %v3890 = vunpack.c.l.b16 %v3826
  %v3891 = vunpack.c.l.b16 %v3827
  %v3892 = vunpack.c.l.b16 %v3828
  %v3893 = vunpack.c.l.b16 %v3829
  %v3894 = vunpack.c.l.b16 %v3830
  %v3895 = vunpack.c.l.b16 %v3831
  %v3896 = vunpack.c.l.b16 %v3832
  %v3897 = vunpack.c.l.b16 %v3833
  %v3898 = vunpack.c.l.b16 %v3834
  %v3899 = vunpack.c.l.b16 %v3835
  %v3900 = vunpack.c.l.b16 %v3836
  %v3901 = vunpack.c.l.b16 %v3837
  %v3902 = vunpack.c.l.b16 %v3838
  %v3903 = vunpack.c.l.b16 %v3839
  %v3904 = vunpack.c.l.b16 %v3840
  %v3905 = vunpack.c.l.b16 %v3841
  %v3906 = vunpack.c.l.b16 %v3842
  %v3907 = vpack.c.b16 %v3876, %v3875
  %v3908 = vpack.c.b16 %v3878, %v3877
  %v3909 = vpack.c.b16 %v3880, %v3879
  %v3910 = vpack.c.b16 %v3882, %v3881
  %v3911 = vpack.c.b16 %v3884, %v3883
  %v3912 = vpack.c.b16 %v3886, %v3885
  %v3913 = vpack.c.b16 %v3888, %v3887
  %v3914 = vpack.c.b16 %v3890, %v3889
  %v3915 = vpack.c.b16 %v3892, %v3891
  %v3916 = vpack.c.b16 %v3894, %v3893
  %v3917 = vpack.c.b16 %v3896, %v3895
  %v3918 = vpack.c.b16 %v3898, %v3897
  %v3919 = vpack.c.b16 %v3900, %v3899
  %v3920 = vpack.c.b16 %v3902, %v3901
  %v3921 = vpack.c.b16 %v3904, %v3903
  %v3922 = vpack.c.b16 %v3906, %v3905
  %v3923 = vunpack.c.l.b16 %v3907
  %v3924 = vunpack.c.h.b16 %v3907
  %v3925 = vunpack.c.l.b16 %v3908
  %v3926 = vunpack.c.h.b16 %v3908
  %v3927 = vunpack.c.l.b16 %v3909
  %v3928 = vunpack.c.h.b16 %v3909
  %v3929 = vunpack.c.l.b16 %v3910
  %v3930 = vunpack.c.h.b16 %v3910
  %v3931 = vunpack.c.l.b16 %v3911
  %v3932 = vunpack.c.h.b16 %v3911
  %v3933 = vunpack.c.l.b16 %v3912
  %v3934 = vunpack.c.h.b16 %v3912
  %v3935 = vunpack.c.l.b16 %v3913
  %v3936 = vunpack.c.h.b16 %v3913
  %v3937 = vunpack.c.l.b16 %v3914
  %v3938 = vunpack.c.h.b16 %v3914
  %v3939 = vunpack.c.l.b16 %v3915
  %v3940 = vunpack.c.h.b16 %v3915
  %v3941 = vunpack.c.l.b16 %v3916
  %v3942 = vunpack.c.h.b16 %v3916
  %v3943 = vunpack.c.l.b16 %v3917
  %v3944 = vunpack.c.h.b16 %v3917
  %v3945 = vunpack.c.l.b16 %v3918
  %v3946 = vunpack.c.h.b16 %v3918
  %v3947 = vunpack.c.l.b16 %v3919
  %v3948 = vunpack.c.h.b16 %v3919
  %v3949 = vunpack.c.l.b16 %v3920
  %v3950 = vunpack.c.h.b16 %v3920
  %v3951 = vunpack.c.l.b16 %v3921
  %v3952 = vunpack.c.h.b16 %v3921
  %v3953 = vunpack.c.l.b16 %v3922
  %v3954 = vunpack.c.h.b16 %v3922
  %v3955 = vsel %vm3770, %v3927, %v3923
  %v3956 = vsel %vm3772, %v3931, %v3955
  %v3957 = vsel %vm3774, %v3935, %v3956
  %v3958 = vsel %vm3776, %v3939, %v3957
  %v3959 = vsel %vm3778, %v3943, %v3958
  %v3960 = vsel %vm3780, %v3947, %v3959
  %v3961 = vsel %vm3782, %v3951, %v3960
  %v3962 = vsel %vm3770, %v3928, %v3924
  %v3963 = vsel %vm3772, %v3932, %v3962
  %v3964 = vsel %vm3774, %v3936, %v3963
  %v3965 = vsel %vm3776, %v3940, %v3964
  %v3966 = vsel %vm3778, %v3944, %v3965
  %v3967 = vsel %vm3780, %v3948, %v3966
  %v3968 = vsel %vm3782, %v3952, %v3967
  %v3969 = vsel %vm3770, %v3929, %v3925
  %v3970 = vsel %vm3772, %v3933, %v3969
  %v3971 = vsel %vm3774, %v3937, %v3970
  %v3972 = vsel %vm3776, %v3941, %v3971
  %v3973 = vsel %vm3778, %v3945, %v3972
  %v3974 = vsel %vm3780, %v3949, %v3973
  %v3975 = vsel %vm3782, %v3953, %v3974
  %v3976 = vsel %vm3770, %v3930, %v3926
  %v3977 = vsel %vm3772, %v3934, %v3976
  %v3978 = vsel %vm3774, %v3938, %v3977
  %v3979 = vsel %vm3776, %v3942, %v3978
  %v3980 = vsel %vm3778, %v3946, %v3979
  %v3981 = vsel %vm3780, %v3950, %v3980
  %v3982 = vsel %vm3782, %v3954, %v3981
  %v3983 = vpack.c.b16 %v3968, %v3961
  %v3984 = vpack.c.b16 %v3982, %v3975
  %3987 = vst [vmem:[%s1 + $0x10] sm:$0xff] %v3983
  %3988 = vst [vmem:[%s1 + $0x18] sm:$0xff] %v3984
  %v3989 = vpack.c.bf16 %v397, %v397
  %v3990 = vpack.c.bf16 %v403, %v403
  %v3991 = vpack.c.bf16 %v409, %v409
  %v3992 = vpack.c.bf16 %v415, %v415
  %v3993 = vpack.c.bf16 %v421, %v421
  %v3994 = vpack.c.bf16 %v427, %v427
  %v3995 = vpack.c.bf16 %v433, %v433
  %v3996 = vpack.c.bf16 %v439, %v439
  %v3997 = vpack.c.bf16 %v445, %v445
  %v3998 = vpack.c.bf16 %v451, %v451
  %v3999 = vpack.c.bf16 %v457, %v457
  %v4000 = vpack.c.bf16 %v463, %v463
  %v4001 = vpack.c.bf16 %v469, %v469
  %v4002 = vpack.c.bf16 %v475, %v475
  %v4003 = vpack.c.bf16 %v481, %v481
  %v4004 = vpack.c.bf16 %v487, %v487
  %v4005 = vpack.c.bf16 %v493, %v493
  %v4006 = vpack.c.bf16 %v499, %v499
  %v4007 = vpack.c.bf16 %v505, %v505
  %v4008 = vpack.c.bf16 %v511, %v511
  %v4009 = vpack.c.bf16 %v517, %v517
  %v4010 = vpack.c.bf16 %v523, %v523
  %v4011 = vpack.c.bf16 %v529, %v529
  %v4012 = vpack.c.bf16 %v535, %v535
  %v4013 = vpack.c.bf16 %v541, %v541
  %v4014 = vpack.c.bf16 %v547, %v547
  %v4015 = vpack.c.bf16 %v553, %v553
  %v4016 = vpack.c.bf16 %v559, %v559
  %v4017 = vpack.c.bf16 %v565, %v565
  %v4018 = vpack.c.bf16 %v571, %v571
  %v4019 = vpack.c.bf16 %v577, %v577
  %v4020 = vpack.c.bf16 %v583, %v583
  %v4053 = vunpack.c.l.b16 %v3989
  %v4054 = vunpack.c.l.b16 %v3990
  %v4055 = vunpack.c.l.b16 %v3991
  %v4056 = vunpack.c.l.b16 %v3992
  %v4057 = vunpack.c.l.b16 %v3993
  %v4058 = vunpack.c.l.b16 %v3994
  %v4059 = vunpack.c.l.b16 %v3995
  %v4060 = vunpack.c.l.b16 %v3996
  %v4061 = vunpack.c.l.b16 %v3997
  %v4062 = vunpack.c.l.b16 %v3998
  %v4063 = vunpack.c.l.b16 %v3999
  %v4064 = vunpack.c.l.b16 %v4000
  %v4065 = vunpack.c.l.b16 %v4001
  %v4066 = vunpack.c.l.b16 %v4002
  %v4067 = vunpack.c.l.b16 %v4003
  %v4068 = vunpack.c.l.b16 %v4004
  %v4069 = vunpack.c.l.b16 %v4005
  %v4070 = vunpack.c.l.b16 %v4006
  %v4071 = vunpack.c.l.b16 %v4007
  %v4072 = vunpack.c.l.b16 %v4008
  %v4073 = vunpack.c.l.b16 %v4009
  %v4074 = vunpack.c.l.b16 %v4010
  %v4075 = vunpack.c.l.b16 %v4011
  %v4076 = vunpack.c.l.b16 %v4012
  %v4077 = vunpack.c.l.b16 %v4013
  %v4078 = vunpack.c.l.b16 %v4014
  %v4079 = vunpack.c.l.b16 %v4015
  %v4080 = vunpack.c.l.b16 %v4016
  %v4081 = vunpack.c.l.b16 %v4017
  %v4082 = vunpack.c.l.b16 %v4018
  %v4083 = vunpack.c.l.b16 %v4019
  %v4084 = vunpack.c.l.b16 %v4020
  %v4085 = vpack.c.b16 %v4054, %v4053
  %v4086 = vpack.c.b16 %v4056, %v4055
  %v4087 = vpack.c.b16 %v4058, %v4057
  %v4088 = vpack.c.b16 %v4060, %v4059
  %v4089 = vpack.c.b16 %v4062, %v4061
  %v4090 = vpack.c.b16 %v4064, %v4063
  %v4091 = vpack.c.b16 %v4066, %v4065
  %v4092 = vpack.c.b16 %v4068, %v4067
  %v4093 = vpack.c.b16 %v4070, %v4069
  %v4094 = vpack.c.b16 %v4072, %v4071
  %v4095 = vpack.c.b16 %v4074, %v4073
  %v4096 = vpack.c.b16 %v4076, %v4075
  %v4097 = vpack.c.b16 %v4078, %v4077
  %v4098 = vpack.c.b16 %v4080, %v4079
  %v4099 = vpack.c.b16 %v4082, %v4081
  %v4100 = vpack.c.b16 %v4084, %v4083
  %v4101 = vunpack.c.l.b16 %v4085
  %v4102 = vunpack.c.h.b16 %v4085
  %v4103 = vunpack.c.l.b16 %v4086
  %v4104 = vunpack.c.h.b16 %v4086
  %v4105 = vunpack.c.l.b16 %v4087
  %v4106 = vunpack.c.h.b16 %v4087
  %v4107 = vunpack.c.l.b16 %v4088
  %v4108 = vunpack.c.h.b16 %v4088
  %v4109 = vunpack.c.l.b16 %v4089
  %v4110 = vunpack.c.h.b16 %v4089
  %v4111 = vunpack.c.l.b16 %v4090
  %v4112 = vunpack.c.h.b16 %v4090
  %v4113 = vunpack.c.l.b16 %v4091
  %v4114 = vunpack.c.h.b16 %v4091
  %v4115 = vunpack.c.l.b16 %v4092
  %v4116 = vunpack.c.h.b16 %v4092
  %v4117 = vunpack.c.l.b16 %v4093
  %v4118 = vunpack.c.h.b16 %v4093
  %v4119 = vunpack.c.l.b16 %v4094
  %v4120 = vunpack.c.h.b16 %v4094
  %v4121 = vunpack.c.l.b16 %v4095
  %v4122 = vunpack.c.h.b16 %v4095
  %v4123 = vunpack.c.l.b16 %v4096
  %v4124 = vunpack.c.h.b16 %v4096
  %v4125 = vunpack.c.l.b16 %v4097
  %v4126 = vunpack.c.h.b16 %v4097
  %v4127 = vunpack.c.l.b16 %v4098
  %v4128 = vunpack.c.h.b16 %v4098
  %v4129 = vunpack.c.l.b16 %v4099
  %v4130 = vunpack.c.h.b16 %v4099
  %v4131 = vunpack.c.l.b16 %v4100
  %v4132 = vunpack.c.h.b16 %v4100
  %v4133 = vsel %vm3770, %v4105, %v4101
  %v4134 = vsel %vm3772, %v4109, %v4133
  %v4135 = vsel %vm3774, %v4113, %v4134
  %v4136 = vsel %vm3776, %v4117, %v4135
  %v4137 = vsel %vm3778, %v4121, %v4136
  %v4138 = vsel %vm3780, %v4125, %v4137
  %v4139 = vsel %vm3782, %v4129, %v4138
  %v4140 = vsel %vm3770, %v4106, %v4102
  %v4141 = vsel %vm3772, %v4110, %v4140
  %v4142 = vsel %vm3774, %v4114, %v4141
  %v4143 = vsel %vm3776, %v4118, %v4142
  %v4144 = vsel %vm3778, %v4122, %v4143
  %v4145 = vsel %vm3780, %v4126, %v4144
  %v4146 = vsel %vm3782, %v4130, %v4145
  %v4147 = vsel %vm3770, %v4107, %v4103
  %v4148 = vsel %vm3772, %v4111, %v4147
  %v4149 = vsel %vm3774, %v4115, %v4148
  %v4150 = vsel %vm3776, %v4119, %v4149
  %v4151 = vsel %vm3778, %v4123, %v4150
  %v4152 = vsel %vm3780, %v4127, %v4151
  %v4153 = vsel %vm3782, %v4131, %v4152
  %v4154 = vsel %vm3770, %v4108, %v4104
  %v4155 = vsel %vm3772, %v4112, %v4154
  %v4156 = vsel %vm3774, %v4116, %v4155
  %v4157 = vsel %vm3776, %v4120, %v4156
  %v4158 = vsel %vm3778, %v4124, %v4157
  %v4159 = vsel %vm3780, %v4128, %v4158
  %v4160 = vsel %vm3782, %v4132, %v4159
  %v4161 = vpack.c.b16 %v4146, %v4139
  %v4162 = vpack.c.b16 %v4160, %v4153
  %s4165 = scalar_lea.vmem %s1, 32
  %4166 = vst [vmem:[%s4165] sm:$0xff] %v4161
  %4167 = vst [vmem:[%s4165 + $0x8] sm:$0xff] %v4162
  %v4168 = vpack.c.bf16 %v2890, %v2890
  %v4169 = vpack.c.bf16 %v2891, %v2891
  %v4170 = vpack.c.bf16 %v2892, %v2892
  %v4171 = vpack.c.bf16 %v2893, %v2893
  %v4172 = vpack.c.bf16 %v2894, %v2894
  %v4173 = vpack.c.bf16 %v2895, %v2895
  %v4174 = vpack.c.bf16 %v2896, %v2896
  %v4175 = vpack.c.bf16 %v2897, %v2897
  %v4176 = vpack.c.bf16 %v2898, %v2898
  %v4177 = vpack.c.bf16 %v2899, %v2899
  %v4178 = vpack.c.bf16 %v2900, %v2900
  %v4179 = vpack.c.bf16 %v2901, %v2901
  %v4180 = vpack.c.bf16 %v2902, %v2902
  %v4181 = vpack.c.bf16 %v2903, %v2903
  %v4182 = vpack.c.bf16 %v2904, %v2904
  %v4183 = vpack.c.bf16 %v2905, %v2905
  %v4184 = vpack.c.bf16 %v2906, %v2906
  %v4185 = vpack.c.bf16 %v2907, %v2907
  %v4186 = vpack.c.bf16 %v2908, %v2908
  %v4187 = vpack.c.bf16 %v2909, %v2909
  %v4188 = vpack.c.bf16 %v2910, %v2910
  %v4189 = vpack.c.bf16 %v2911, %v2911
  %v4190 = vpack.c.bf16 %v2912, %v2912
  %v4191 = vpack.c.bf16 %v2913, %v2913
  %v4192 = vpack.c.bf16 %v2914, %v2914
  %v4193 = vpack.c.bf16 %v2915, %v2915
  %v4194 = vpack.c.bf16 %v2916, %v2916
  %v4195 = vpack.c.bf16 %v2917, %v2917
  %v4196 = vpack.c.bf16 %v2918, %v2918
  %v4197 = vpack.c.bf16 %v2919, %v2919
  %v4198 = vpack.c.bf16 %v2920, %v2920
  %v4199 = vpack.c.bf16 %v2921, %v2921
  %v4232 = vunpack.c.l.b16 %v4168
  %v4233 = vunpack.c.l.b16 %v4169
  %v4234 = vunpack.c.l.b16 %v4170
  %v4235 = vunpack.c.l.b16 %v4171
  %v4236 = vunpack.c.l.b16 %v4172
  %v4237 = vunpack.c.l.b16 %v4173
  %v4238 = vunpack.c.l.b16 %v4174
  %v4239 = vunpack.c.l.b16 %v4175
  %v4240 = vunpack.c.l.b16 %v4176
  %v4241 = vunpack.c.l.b16 %v4177
  %v4242 = vunpack.c.l.b16 %v4178
  %v4243 = vunpack.c.l.b16 %v4179
  %v4244 = vunpack.c.l.b16 %v4180
  %v4245 = vunpack.c.l.b16 %v4181
  %v4246 = vunpack.c.l.b16 %v4182
  %v4247 = vunpack.c.l.b16 %v4183
  %v4248 = vunpack.c.l.b16 %v4184
  %v4249 = vunpack.c.l.b16 %v4185
  %v4250 = vunpack.c.l.b16 %v4186
  %v4251 = vunpack.c.l.b16 %v4187
  %v4252 = vunpack.c.l.b16 %v4188
  %v4253 = vunpack.c.l.b16 %v4189
  %v4254 = vunpack.c.l.b16 %v4190
  %v4255 = vunpack.c.l.b16 %v4191
  %v4256 = vunpack.c.l.b16 %v4192
  %v4257 = vunpack.c.l.b16 %v4193
  %v4258 = vunpack.c.l.b16 %v4194
  %v4259 = vunpack.c.l.b16 %v4195
  %v4260 = vunpack.c.l.b16 %v4196
  %v4261 = vunpack.c.l.b16 %v4197
  %v4262 = vunpack.c.l.b16 %v4198
  %v4263 = vunpack.c.l.b16 %v4199
  %v4264 = vpack.c.b16 %v4233, %v4232
  %v4265 = vpack.c.b16 %v4235, %v4234
  %v4266 = vpack.c.b16 %v4237, %v4236
  %v4267 = vpack.c.b16 %v4239, %v4238
  %v4268 = vpack.c.b16 %v4241, %v4240
  %v4269 = vpack.c.b16 %v4243, %v4242
  %v4270 = vpack.c.b16 %v4245, %v4244
  %v4271 = vpack.c.b16 %v4247, %v4246
  %v4272 = vpack.c.b16 %v4249, %v4248
  %v4273 = vpack.c.b16 %v4251, %v4250
  %v4274 = vpack.c.b16 %v4253, %v4252
  %v4275 = vpack.c.b16 %v4255, %v4254
  %v4276 = vpack.c.b16 %v4257, %v4256
  %v4277 = vpack.c.b16 %v4259, %v4258
  %v4278 = vpack.c.b16 %v4261, %v4260
  %v4279 = vpack.c.b16 %v4263, %v4262
  %v4280 = vunpack.c.l.b16 %v4264
  %v4281 = vunpack.c.h.b16 %v4264
  %v4282 = vunpack.c.l.b16 %v4265
  %v4283 = vunpack.c.h.b16 %v4265
  %v4284 = vunpack.c.l.b16 %v4266
  %v4285 = vunpack.c.h.b16 %v4266
  %v4286 = vunpack.c.l.b16 %v4267
  %v4287 = vunpack.c.h.b16 %v4267
  %v4288 = vunpack.c.l.b16 %v4268
  %v4289 = vunpack.c.h.b16 %v4268
  %v4290 = vunpack.c.l.b16 %v4269
  %v4291 = vunpack.c.h.b16 %v4269
  %v4292 = vunpack.c.l.b16 %v4270
  %v4293 = vunpack.c.h.b16 %v4270
  %v4294 = vunpack.c.l.b16 %v4271
  %v4295 = vunpack.c.h.b16 %v4271
  %v4296 = vunpack.c.l.b16 %v4272
  %v4297 = vunpack.c.h.b16 %v4272
  %v4298 = vunpack.c.l.b16 %v4273
  %v4299 = vunpack.c.h.b16 %v4273
  %v4300 = vunpack.c.l.b16 %v4274
  %v4301 = vunpack.c.h.b16 %v4274
  %v4302 = vunpack.c.l.b16 %v4275
  %v4303 = vunpack.c.h.b16 %v4275
  %v4304 = vunpack.c.l.b16 %v4276
  %v4305 = vunpack.c.h.b16 %v4276
  %v4306 = vunpack.c.l.b16 %v4277
  %v4307 = vunpack.c.h.b16 %v4277
  %v4308 = vunpack.c.l.b16 %v4278
  %v4309 = vunpack.c.h.b16 %v4278
  %v4310 = vunpack.c.l.b16 %v4279
  %v4311 = vunpack.c.h.b16 %v4279
  %v4312 = vsel %vm3770, %v4284, %v4280
  %v4313 = vsel %vm3772, %v4288, %v4312
  %v4314 = vsel %vm3774, %v4292, %v4313
  %v4315 = vsel %vm3776, %v4296, %v4314
  %v4316 = vsel %vm3778, %v4300, %v4315
  %v4317 = vsel %vm3780, %v4304, %v4316
  %v4318 = vsel %vm3782, %v4308, %v4317
  %v4319 = vsel %vm3770, %v4285, %v4281
  %v4320 = vsel %vm3772, %v4289, %v4319
  %v4321 = vsel %vm3774, %v4293, %v4320
  %v4322 = vsel %vm3776, %v4297, %v4321
  %v4323 = vsel %vm3778, %v4301, %v4322
  %v4324 = vsel %vm3780, %v4305, %v4323
  %v4325 = vsel %vm3782, %v4309, %v4324
  %v4326 = vsel %vm3770, %v4286, %v4282
  %v4327 = vsel %vm3772, %v4290, %v4326
  %v4328 = vsel %vm3774, %v4294, %v4327
  %v4329 = vsel %vm3776, %v4298, %v4328
  %v4330 = vsel %vm3778, %v4302, %v4329
  %v4331 = vsel %vm3780, %v4306, %v4330
  %v4332 = vsel %vm3782, %v4310, %v4331
  %v4333 = vsel %vm3770, %v4287, %v4283
  %v4334 = vsel %vm3772, %v4291, %v4333
  %v4335 = vsel %vm3774, %v4295, %v4334
  %v4336 = vsel %vm3776, %v4299, %v4335
  %v4337 = vsel %vm3778, %v4303, %v4336
  %v4338 = vsel %vm3780, %v4307, %v4337
  %v4339 = vsel %vm3782, %v4311, %v4338
  %v4340 = vpack.c.b16 %v4325, %v4318
  %v4341 = vpack.c.b16 %v4339, %v4332
  %4344 = vst [vmem:[%s4165 + $0x10] sm:$0xff] %v4340
  %4345 = vst [vmem:[%s4165 + $0x18] sm:$0xff] %v4341
  %v4346 = vpack.c.bf16 %v589, %v589
  %v4347 = vpack.c.bf16 %v595, %v595
  %v4348 = vpack.c.bf16 %v601, %v601
  %v4349 = vpack.c.bf16 %v607, %v607
  %v4350 = vpack.c.bf16 %v613, %v613
  %v4351 = vpack.c.bf16 %v619, %v619
  %v4352 = vpack.c.bf16 %v625, %v625
  %v4353 = vpack.c.bf16 %v631, %v631
  %v4354 = vpack.c.bf16 %v637, %v637
  %v4355 = vpack.c.bf16 %v643, %v643
  %v4356 = vpack.c.bf16 %v649, %v649
  %v4357 = vpack.c.bf16 %v655, %v655
  %v4358 = vpack.c.bf16 %v661, %v661
  %v4359 = vpack.c.bf16 %v667, %v667
  %v4360 = vpack.c.bf16 %v673, %v673
  %v4361 = vpack.c.bf16 %v679, %v679
  %v4362 = vpack.c.bf16 %v685, %v685
  %v4363 = vpack.c.bf16 %v691, %v691
  %v4364 = vpack.c.bf16 %v697, %v697
  %v4365 = vpack.c.bf16 %v703, %v703
  %v4366 = vpack.c.bf16 %v709, %v709
  %v4367 = vpack.c.bf16 %v715, %v715
  %v4368 = vpack.c.bf16 %v721, %v721
  %v4369 = vpack.c.bf16 %v727, %v727
  %v4370 = vpack.c.bf16 %v733, %v733
  %v4371 = vpack.c.bf16 %v739, %v739
  %v4372 = vpack.c.bf16 %v745, %v745
  %v4373 = vpack.c.bf16 %v751, %v751
  %v4374 = vpack.c.bf16 %v757, %v757
  %v4375 = vpack.c.bf16 %v763, %v763
  %v4376 = vpack.c.bf16 %v769, %v769
  %v4377 = vpack.c.bf16 %v775, %v775
  %v4410 = vunpack.c.l.b16 %v4346
  %v4411 = vunpack.c.l.b16 %v4347
  %v4412 = vunpack.c.l.b16 %v4348
  %v4413 = vunpack.c.l.b16 %v4349
  %v4414 = vunpack.c.l.b16 %v4350
  %v4415 = vunpack.c.l.b16 %v4351
  %v4416 = vunpack.c.l.b16 %v4352
  %v4417 = vunpack.c.l.b16 %v4353
  %v4418 = vunpack.c.l.b16 %v4354
  %v4419 = vunpack.c.l.b16 %v4355
  %v4420 = vunpack.c.l.b16 %v4356
  %v4421 = vunpack.c.l.b16 %v4357
  %v4422 = vunpack.c.l.b16 %v4358
  %v4423 = vunpack.c.l.b16 %v4359
  %v4424 = vunpack.c.l.b16 %v4360
  %v4425 = vunpack.c.l.b16 %v4361
  %v4426 = vunpack.c.l.b16 %v4362
  %v4427 = vunpack.c.l.b16 %v4363
  %v4428 = vunpack.c.l.b16 %v4364
  %v4429 = vunpack.c.l.b16 %v4365
  %v4430 = vunpack.c.l.b16 %v4366
  %v4431 = vunpack.c.l.b16 %v4367
  %v4432 = vunpack.c.l.b16 %v4368
  %v4433 = vunpack.c.l.b16 %v4369
  %v4434 = vunpack.c.l.b16 %v4370
  %v4435 = vunpack.c.l.b16 %v4371
  %v4436 = vunpack.c.l.b16 %v4372
  %v4437 = vunpack.c.l.b16 %v4373
  %v4438 = vunpack.c.l.b16 %v4374
  %v4439 = vunpack.c.l.b16 %v4375
  %v4440 = vunpack.c.l.b16 %v4376
  %v4441 = vunpack.c.l.b16 %v4377
  %v4442 = vpack.c.b16 %v4411, %v4410
  %v4443 = vpack.c.b16 %v4413, %v4412
  %v4444 = vpack.c.b16 %v4415, %v4414
  %v4445 = vpack.c.b16 %v4417, %v4416
  %v4446 = vpack.c.b16 %v4419, %v4418
  %v4447 = vpack.c.b16 %v4421, %v4420
  %v4448 = vpack.c.b16 %v4423, %v4422
  %v4449 = vpack.c.b16 %v4425, %v4424
  %v4450 = vpack.c.b16 %v4427, %v4426
  %v4451 = vpack.c.b16 %v4429, %v4428
  %v4452 = vpack.c.b16 %v4431, %v4430
  %v4453 = vpack.c.b16 %v4433, %v4432
  %v4454 = vpack.c.b16 %v4435, %v4434
  %v4455 = vpack.c.b16 %v4437, %v4436
  %v4456 = vpack.c.b16 %v4439, %v4438
  %v4457 = vpack.c.b16 %v4441, %v4440
  %v4458 = vunpack.c.l.b16 %v4442
  %v4459 = vunpack.c.h.b16 %v4442
  %v4460 = vunpack.c.l.b16 %v4443
  %v4461 = vunpack.c.h.b16 %v4443
  %v4462 = vunpack.c.l.b16 %v4444
  %v4463 = vunpack.c.h.b16 %v4444
  %v4464 = vunpack.c.l.b16 %v4445
  %v4465 = vunpack.c.h.b16 %v4445
  %v4466 = vunpack.c.l.b16 %v4446
  %v4467 = vunpack.c.h.b16 %v4446
  %v4468 = vunpack.c.l.b16 %v4447
  %v4469 = vunpack.c.h.b16 %v4447
  %v4470 = vunpack.c.l.b16 %v4448
  %v4471 = vunpack.c.h.b16 %v4448
  %v4472 = vunpack.c.l.b16 %v4449
  %v4473 = vunpack.c.h.b16 %v4449
  %v4474 = vunpack.c.l.b16 %v4450
  %v4475 = vunpack.c.h.b16 %v4450
  %v4476 = vunpack.c.l.b16 %v4451
  %v4477 = vunpack.c.h.b16 %v4451
  %v4478 = vunpack.c.l.b16 %v4452
  %v4479 = vunpack.c.h.b16 %v4452
  %v4480 = vunpack.c.l.b16 %v4453
  %v4481 = vunpack.c.h.b16 %v4453
  %v4482 = vunpack.c.l.b16 %v4454
  %v4483 = vunpack.c.h.b16 %v4454
  %v4484 = vunpack.c.l.b16 %v4455
  %v4485 = vunpack.c.h.b16 %v4455
  %v4486 = vunpack.c.l.b16 %v4456
  %v4487 = vunpack.c.h.b16 %v4456
  %v4488 = vunpack.c.l.b16 %v4457
  %v4489 = vunpack.c.h.b16 %v4457
  %v4490 = vsel %vm3770, %v4462, %v4458
  %v4491 = vsel %vm3772, %v4466, %v4490
  %v4492 = vsel %vm3774, %v4470, %v4491
  %v4493 = vsel %vm3776, %v4474, %v4492
  %v4494 = vsel %vm3778, %v4478, %v4493
  %v4495 = vsel %vm3780, %v4482, %v4494
  %v4496 = vsel %vm3782, %v4486, %v4495
  %v4497 = vsel %vm3770, %v4463, %v4459
  %v4498 = vsel %vm3772, %v4467, %v4497
  %v4499 = vsel %vm3774, %v4471, %v4498
  %v4500 = vsel %vm3776, %v4475, %v4499
  %v4501 = vsel %vm3778, %v4479, %v4500
  %v4502 = vsel %vm3780, %v4483, %v4501
  %v4503 = vsel %vm3782, %v4487, %v4502
  %v4504 = vsel %vm3770, %v4464, %v4460
  %v4505 = vsel %vm3772, %v4468, %v4504
  %v4506 = vsel %vm3774, %v4472, %v4505
  %v4507 = vsel %vm3776, %v4476, %v4506
  %v4508 = vsel %vm3778, %v4480, %v4507
  %v4509 = vsel %vm3780, %v4484, %v4508
  %v4510 = vsel %vm3782, %v4488, %v4509
  %v4511 = vsel %vm3770, %v4465, %v4461
  %v4512 = vsel %vm3772, %v4469, %v4511
  %v4513 = vsel %vm3774, %v4473, %v4512
  %v4514 = vsel %vm3776, %v4477, %v4513
  %v4515 = vsel %vm3778, %v4481, %v4514
  %v4516 = vsel %vm3780, %v4485, %v4515
  %v4517 = vsel %vm3782, %v4489, %v4516
  %v4518 = vpack.c.b16 %v4503, %v4496
  %v4519 = vpack.c.b16 %v4517, %v4510
  %s4522 = scalar_lea.vmem %s1, 64
  %4523 = vst [vmem:[%s4522] sm:$0xff] %v4518
  %4524 = vst [vmem:[%s4522 + $0x8] sm:$0xff] %v4519
  %v4525 = vpack.c.bf16 %v2954, %v2954
  %v4526 = vpack.c.bf16 %v2955, %v2955
  %v4527 = vpack.c.bf16 %v2956, %v2956
  %v4528 = vpack.c.bf16 %v2957, %v2957
  %v4529 = vpack.c.bf16 %v2958, %v2958
  %v4530 = vpack.c.bf16 %v2959, %v2959
  %v4531 = vpack.c.bf16 %v2960, %v2960
  %v4532 = vpack.c.bf16 %v2961, %v2961
  %v4533 = vpack.c.bf16 %v2962, %v2962
  %v4534 = vpack.c.bf16 %v2963, %v2963
  %v4535 = vpack.c.bf16 %v2964, %v2964
  %v4536 = vpack.c.bf16 %v2965, %v2965
  %v4537 = vpack.c.bf16 %v2966, %v2966
  %v4538 = vpack.c.bf16 %v2967, %v2967
  %v4539 = vpack.c.bf16 %v2968, %v2968
  %v4540 = vpack.c.bf16 %v2969, %v2969
  %v4541 = vpack.c.bf16 %v2970, %v2970
  %v4542 = vpack.c.bf16 %v2971, %v2971
  %v4543 = vpack.c.bf16 %v2972, %v2972
  %v4544 = vpack.c.bf16 %v2973, %v2973
  %v4545 = vpack.c.bf16 %v2974, %v2974
  %v4546 = vpack.c.bf16 %v2975, %v2975
  %v4547 = vpack.c.bf16 %v2976, %v2976
  %v4548 = vpack.c.bf16 %v2977, %v2977
  %v4549 = vpack.c.bf16 %v2978, %v2978
  %v4550 = vpack.c.bf16 %v2979, %v2979
  %v4551 = vpack.c.bf16 %v2980, %v2980
  %v4552 = vpack.c.bf16 %v2981, %v2981
  %v4553 = vpack.c.bf16 %v2982, %v2982
  %v4554 = vpack.c.bf16 %v2983, %v2983
  %v4555 = vpack.c.bf16 %v2984, %v2984
  %v4556 = vpack.c.bf16 %v2985, %v2985
  %v4589 = vunpack.c.l.b16 %v4525
  %v4590 = vunpack.c.l.b16 %v4526
  %v4591 = vunpack.c.l.b16 %v4527
  %v4592 = vunpack.c.l.b16 %v4528
  %v4593 = vunpack.c.l.b16 %v4529
  %v4594 = vunpack.c.l.b16 %v4530
  %v4595 = vunpack.c.l.b16 %v4531
  %v4596 = vunpack.c.l.b16 %v4532
  %v4597 = vunpack.c.l.b16 %v4533
  %v4598 = vunpack.c.l.b16 %v4534
  %v4599 = vunpack.c.l.b16 %v4535
  %v4600 = vunpack.c.l.b16 %v4536
  %v4601 = vunpack.c.l.b16 %v4537
  %v4602 = vunpack.c.l.b16 %v4538
  %v4603 = vunpack.c.l.b16 %v4539
  %v4604 = vunpack.c.l.b16 %v4540
  %v4605 = vunpack.c.l.b16 %v4541
  %v4606 = vunpack.c.l.b16 %v4542
  %v4607 = vunpack.c.l.b16 %v4543
  %v4608 = vunpack.c.l.b16 %v4544
  %v4609 = vunpack.c.l.b16 %v4545
  %v4610 = vunpack.c.l.b16 %v4546
  %v4611 = vunpack.c.l.b16 %v4547
  %v4612 = vunpack.c.l.b16 %v4548
  %v4613 = vunpack.c.l.b16 %v4549
  %v4614 = vunpack.c.l.b16 %v4550
  %v4615 = vunpack.c.l.b16 %v4551
  %v4616 = vunpack.c.l.b16 %v4552
  %v4617 = vunpack.c.l.b16 %v4553
  %v4618 = vunpack.c.l.b16 %v4554
  %v4619 = vunpack.c.l.b16 %v4555
  %v4620 = vunpack.c.l.b16 %v4556
  %v4621 = vpack.c.b16 %v4590, %v4589
  %v4622 = vpack.c.b16 %v4592, %v4591
  %v4623 = vpack.c.b16 %v4594, %v4593
  %v4624 = vpack.c.b16 %v4596, %v4595
  %v4625 = vpack.c.b16 %v4598, %v4597
  %v4626 = vpack.c.b16 %v4600, %v4599
  %v4627 = vpack.c.b16 %v4602, %v4601
  %v4628 = vpack.c.b16 %v4604, %v4603
  %v4629 = vpack.c.b16 %v4606, %v4605
  %v4630 = vpack.c.b16 %v4608, %v4607
  %v4631 = vpack.c.b16 %v4610, %v4609
  %v4632 = vpack.c.b16 %v4612, %v4611
  %v4633 = vpack.c.b16 %v4614, %v4613
  %v4634 = vpack.c.b16 %v4616, %v4615
  %v4635 = vpack.c.b16 %v4618, %v4617
  %v4636 = vpack.c.b16 %v4620, %v4619
  %v4637 = vunpack.c.l.b16 %v4621
  %v4638 = vunpack.c.h.b16 %v4621
  %v4639 = vunpack.c.l.b16 %v4622
  %v4640 = vunpack.c.h.b16 %v4622
  %v4641 = vunpack.c.l.b16 %v4623
  %v4642 = vunpack.c.h.b16 %v4623
  %v4643 = vunpack.c.l.b16 %v4624
  %v4644 = vunpack.c.h.b16 %v4624
  %v4645 = vunpack.c.l.b16 %v4625
  %v4646 = vunpack.c.h.b16 %v4625
  %v4647 = vunpack.c.l.b16 %v4626
  %v4648 = vunpack.c.h.b16 %v4626
  %v4649 = vunpack.c.l.b16 %v4627
  %v4650 = vunpack.c.h.b16 %v4627
  %v4651 = vunpack.c.l.b16 %v4628
  %v4652 = vunpack.c.h.b16 %v4628
  %v4653 = vunpack.c.l.b16 %v4629
  %v4654 = vunpack.c.h.b16 %v4629
  %v4655 = vunpack.c.l.b16 %v4630
  %v4656 = vunpack.c.h.b16 %v4630
  %v4657 = vunpack.c.l.b16 %v4631
  %v4658 = vunpack.c.h.b16 %v4631
  %v4659 = vunpack.c.l.b16 %v4632
  %v4660 = vunpack.c.h.b16 %v4632
  %v4661 = vunpack.c.l.b16 %v4633
  %v4662 = vunpack.c.h.b16 %v4633
  %v4663 = vunpack.c.l.b16 %v4634
  %v4664 = vunpack.c.h.b16 %v4634
  %v4665 = vunpack.c.l.b16 %v4635
  %v4666 = vunpack.c.h.b16 %v4635
  %v4667 = vunpack.c.l.b16 %v4636
  %v4668 = vunpack.c.h.b16 %v4636
  %v4669 = vsel %vm3770, %v4641, %v4637
  %v4670 = vsel %vm3772, %v4645, %v4669
  %v4671 = vsel %vm3774, %v4649, %v4670
  %v4672 = vsel %vm3776, %v4653, %v4671
  %v4673 = vsel %vm3778, %v4657, %v4672
  %v4674 = vsel %vm3780, %v4661, %v4673
  %v4675 = vsel %vm3782, %v4665, %v4674
  %v4676 = vsel %vm3770, %v4642, %v4638
  %v4677 = vsel %vm3772, %v4646, %v4676
  %v4678 = vsel %vm3774, %v4650, %v4677
  %v4679 = vsel %vm3776, %v4654, %v4678
  %v4680 = vsel %vm3778, %v4658, %v4679
  %v4681 = vsel %vm3780, %v4662, %v4680
  %v4682 = vsel %vm3782, %v4666, %v4681
  %v4683 = vsel %vm3770, %v4643, %v4639
  %v4684 = vsel %vm3772, %v4647, %v4683
  %v4685 = vsel %vm3774, %v4651, %v4684
  %v4686 = vsel %vm3776, %v4655, %v4685
  %v4687 = vsel %vm3778, %v4659, %v4686
  %v4688 = vsel %vm3780, %v4663, %v4687
  %v4689 = vsel %vm3782, %v4667, %v4688
  %v4690 = vsel %vm3770, %v4644, %v4640
  %v4691 = vsel %vm3772, %v4648, %v4690
  %v4692 = vsel %vm3774, %v4652, %v4691
  %v4693 = vsel %vm3776, %v4656, %v4692
  %v4694 = vsel %vm3778, %v4660, %v4693
  %v4695 = vsel %vm3780, %v4664, %v4694
  %v4696 = vsel %vm3782, %v4668, %v4695
  %v4697 = vpack.c.b16 %v4682, %v4675
  %v4698 = vpack.c.b16 %v4696, %v4689
  %4701 = vst [vmem:[%s4522 + $0x10] sm:$0xff] %v4697
  %4702 = vst [vmem:[%s4522 + $0x18] sm:$0xff] %v4698
  %v4703 = vpack.c.bf16 %v781, %v781
  %v4704 = vpack.c.bf16 %v787, %v787
  %v4705 = vpack.c.bf16 %v793, %v793
  %v4706 = vpack.c.bf16 %v799, %v799
  %v4707 = vpack.c.bf16 %v805, %v805
  %v4708 = vpack.c.bf16 %v811, %v811
  %v4709 = vpack.c.bf16 %v817, %v817
  %v4710 = vpack.c.bf16 %v823, %v823
  %v4711 = vpack.c.bf16 %v829, %v829
  %v4712 = vpack.c.bf16 %v835, %v835
  %v4713 = vpack.c.bf16 %v841, %v841
  %v4714 = vpack.c.bf16 %v847, %v847
  %v4715 = vpack.c.bf16 %v853, %v853
  %v4716 = vpack.c.bf16 %v859, %v859
  %v4717 = vpack.c.bf16 %v865, %v865
  %v4718 = vpack.c.bf16 %v871, %v871
  %v4719 = vpack.c.bf16 %v877, %v877
  %v4720 = vpack.c.bf16 %v883, %v883
  %v4721 = vpack.c.bf16 %v889, %v889
  %v4722 = vpack.c.bf16 %v895, %v895
  %v4723 = vpack.c.bf16 %v901, %v901
  %v4724 = vpack.c.bf16 %v907, %v907
  %v4725 = vpack.c.bf16 %v913, %v913
  %v4726 = vpack.c.bf16 %v919, %v919
  %v4727 = vpack.c.bf16 %v925, %v925
  %v4728 = vpack.c.bf16 %v931, %v931
  %v4729 = vpack.c.bf16 %v937, %v937
  %v4730 = vpack.c.bf16 %v943, %v943
  %v4731 = vpack.c.bf16 %v949, %v949
  %v4732 = vpack.c.bf16 %v955, %v955
  %v4733 = vpack.c.bf16 %v961, %v961
  %v4734 = vpack.c.bf16 %v967, %v967
  %v4767 = vunpack.c.l.b16 %v4703
  %v4768 = vunpack.c.l.b16 %v4704
  %v4769 = vunpack.c.l.b16 %v4705
  %v4770 = vunpack.c.l.b16 %v4706
  %v4771 = vunpack.c.l.b16 %v4707
  %v4772 = vunpack.c.l.b16 %v4708
  %v4773 = vunpack.c.l.b16 %v4709
  %v4774 = vunpack.c.l.b16 %v4710
  %v4775 = vunpack.c.l.b16 %v4711
  %v4776 = vunpack.c.l.b16 %v4712
  %v4777 = vunpack.c.l.b16 %v4713
  %v4778 = vunpack.c.l.b16 %v4714
  %v4779 = vunpack.c.l.b16 %v4715
  %v4780 = vunpack.c.l.b16 %v4716
  %v4781 = vunpack.c.l.b16 %v4717
  %v4782 = vunpack.c.l.b16 %v4718
  %v4783 = vunpack.c.l.b16 %v4719
  %v4784 = vunpack.c.l.b16 %v4720
  %v4785 = vunpack.c.l.b16 %v4721
  %v4786 = vunpack.c.l.b16 %v4722
  %v4787 = vunpack.c.l.b16 %v4723
  %v4788 = vunpack.c.l.b16 %v4724
  %v4789 = vunpack.c.l.b16 %v4725
  %v4790 = vunpack.c.l.b16 %v4726
  %v4791 = vunpack.c.l.b16 %v4727
  %v4792 = vunpack.c.l.b16 %v4728
  %v4793 = vunpack.c.l.b16 %v4729
  %v4794 = vunpack.c.l.b16 %v4730
  %v4795 = vunpack.c.l.b16 %v4731
  %v4796 = vunpack.c.l.b16 %v4732
  %v4797 = vunpack.c.l.b16 %v4733
  %v4798 = vunpack.c.l.b16 %v4734
  %v4799 = vpack.c.b16 %v4768, %v4767
  %v4800 = vpack.c.b16 %v4770, %v4769
  %v4801 = vpack.c.b16 %v4772, %v4771
  %v4802 = vpack.c.b16 %v4774, %v4773
  %v4803 = vpack.c.b16 %v4776, %v4775
  %v4804 = vpack.c.b16 %v4778, %v4777
  %v4805 = vpack.c.b16 %v4780, %v4779
  %v4806 = vpack.c.b16 %v4782, %v4781
  %v4807 = vpack.c.b16 %v4784, %v4783
  %v4808 = vpack.c.b16 %v4786, %v4785
  %v4809 = vpack.c.b16 %v4788, %v4787
  %v4810 = vpack.c.b16 %v4790, %v4789
  %v4811 = vpack.c.b16 %v4792, %v4791
  %v4812 = vpack.c.b16 %v4794, %v4793
  %v4813 = vpack.c.b16 %v4796, %v4795
  %v4814 = vpack.c.b16 %v4798, %v4797
  %v4815 = vunpack.c.l.b16 %v4799
  %v4816 = vunpack.c.h.b16 %v4799
  %v4817 = vunpack.c.l.b16 %v4800
  %v4818 = vunpack.c.h.b16 %v4800
  %v4819 = vunpack.c.l.b16 %v4801
  %v4820 = vunpack.c.h.b16 %v4801
  %v4821 = vunpack.c.l.b16 %v4802
  %v4822 = vunpack.c.h.b16 %v4802
  %v4823 = vunpack.c.l.b16 %v4803
  %v4824 = vunpack.c.h.b16 %v4803
  %v4825 = vunpack.c.l.b16 %v4804
  %v4826 = vunpack.c.h.b16 %v4804
  %v4827 = vunpack.c.l.b16 %v4805
  %v4828 = vunpack.c.h.b16 %v4805
  %v4829 = vunpack.c.l.b16 %v4806
  %v4830 = vunpack.c.h.b16 %v4806
  %v4831 = vunpack.c.l.b16 %v4807
  %v4832 = vunpack.c.h.b16 %v4807
  %v4833 = vunpack.c.l.b16 %v4808
  %v4834 = vunpack.c.h.b16 %v4808
  %v4835 = vunpack.c.l.b16 %v4809
  %v4836 = vunpack.c.h.b16 %v4809
  %v4837 = vunpack.c.l.b16 %v4810
  %v4838 = vunpack.c.h.b16 %v4810
  %v4839 = vunpack.c.l.b16 %v4811
  %v4840 = vunpack.c.h.b16 %v4811
  %v4841 = vunpack.c.l.b16 %v4812
  %v4842 = vunpack.c.h.b16 %v4812
  %v4843 = vunpack.c.l.b16 %v4813
  %v4844 = vunpack.c.h.b16 %v4813
  %v4845 = vunpack.c.l.b16 %v4814
  %v4846 = vunpack.c.h.b16 %v4814
  %v4847 = vsel %vm3770, %v4819, %v4815
  %v4848 = vsel %vm3772, %v4823, %v4847
  %v4849 = vsel %vm3774, %v4827, %v4848
  %v4850 = vsel %vm3776, %v4831, %v4849
  %v4851 = vsel %vm3778, %v4835, %v4850
  %v4852 = vsel %vm3780, %v4839, %v4851
  %v4853 = vsel %vm3782, %v4843, %v4852
  %v4854 = vsel %vm3770, %v4820, %v4816
  %v4855 = vsel %vm3772, %v4824, %v4854
  %v4856 = vsel %vm3774, %v4828, %v4855
  %v4857 = vsel %vm3776, %v4832, %v4856
  %v4858 = vsel %vm3778, %v4836, %v4857
  %v4859 = vsel %vm3780, %v4840, %v4858
  %v4860 = vsel %vm3782, %v4844, %v4859
  %v4861 = vsel %vm3770, %v4821, %v4817
  %v4862 = vsel %vm3772, %v4825, %v4861
  %v4863 = vsel %vm3774, %v4829, %v4862
  %v4864 = vsel %vm3776, %v4833, %v4863
  %v4865 = vsel %vm3778, %v4837, %v4864
  %v4866 = vsel %vm3780, %v4841, %v4865
  %v4867 = vsel %vm3782, %v4845, %v4866
  %v4868 = vsel %vm3770, %v4822, %v4818
  %v4869 = vsel %vm3772, %v4826, %v4868
  %v4870 = vsel %vm3774, %v4830, %v4869
  %v4871 = vsel %vm3776, %v4834, %v4870
  %v4872 = vsel %vm3778, %v4838, %v4871
  %v4873 = vsel %vm3780, %v4842, %v4872
  %v4874 = vsel %vm3782, %v4846, %v4873
  %v4875 = vpack.c.b16 %v4860, %v4853
  %v4876 = vpack.c.b16 %v4874, %v4867
  %s4879 = scalar_lea.vmem %s1, 96
  %4880 = vst [vmem:[%s4879] sm:$0xff] %v4875
  %4881 = vst [vmem:[%s4879 + $0x8] sm:$0xff] %v4876
  %v4882 = vpack.c.bf16 %v3018, %v3018
  %v4883 = vpack.c.bf16 %v3019, %v3019
  %v4884 = vpack.c.bf16 %v3020, %v3020
  %v4885 = vpack.c.bf16 %v3021, %v3021
  %v4886 = vpack.c.bf16 %v3022, %v3022
  %v4887 = vpack.c.bf16 %v3023, %v3023
  %v4888 = vpack.c.bf16 %v3024, %v3024
  %v4889 = vpack.c.bf16 %v3025, %v3025
  %v4890 = vpack.c.bf16 %v3026, %v3026
  %v4891 = vpack.c.bf16 %v3027, %v3027
  %v4892 = vpack.c.bf16 %v3028, %v3028
  %v4893 = vpack.c.bf16 %v3029, %v3029
  %v4894 = vpack.c.bf16 %v3030, %v3030
  %v4895 = vpack.c.bf16 %v3031, %v3031
  %v4896 = vpack.c.bf16 %v3032, %v3032
  %v4897 = vpack.c.bf16 %v3033, %v3033
  %v4898 = vpack.c.bf16 %v3034, %v3034
  %v4899 = vpack.c.bf16 %v3035, %v3035
  %v4900 = vpack.c.bf16 %v3036, %v3036
  %v4901 = vpack.c.bf16 %v3037, %v3037
  %v4902 = vpack.c.bf16 %v3038, %v3038
  %v4903 = vpack.c.bf16 %v3039, %v3039
  %v4904 = vpack.c.bf16 %v3040, %v3040
  %v4905 = vpack.c.bf16 %v3041, %v3041
  %v4906 = vpack.c.bf16 %v3042, %v3042
  %v4907 = vpack.c.bf16 %v3043, %v3043
  %v4908 = vpack.c.bf16 %v3044, %v3044
  %v4909 = vpack.c.bf16 %v3045, %v3045
  %v4910 = vpack.c.bf16 %v3046, %v3046
  %v4911 = vpack.c.bf16 %v3047, %v3047
  %v4912 = vpack.c.bf16 %v3048, %v3048
  %v4913 = vpack.c.bf16 %v3049, %v3049
  %v4946 = vunpack.c.l.b16 %v4882
  %v4947 = vunpack.c.l.b16 %v4883
  %v4948 = vunpack.c.l.b16 %v4884
  %v4949 = vunpack.c.l.b16 %v4885
  %v4950 = vunpack.c.l.b16 %v4886
  %v4951 = vunpack.c.l.b16 %v4887
  %v4952 = vunpack.c.l.b16 %v4888
  %v4953 = vunpack.c.l.b16 %v4889
  %v4954 = vunpack.c.l.b16 %v4890
  %v4955 = vunpack.c.l.b16 %v4891
  %v4956 = vunpack.c.l.b16 %v4892
  %v4957 = vunpack.c.l.b16 %v4893
  %v4958 = vunpack.c.l.b16 %v4894
  %v4959 = vunpack.c.l.b16 %v4895
  %v4960 = vunpack.c.l.b16 %v4896
  %v4961 = vunpack.c.l.b16 %v4897
  %v4962 = vunpack.c.l.b16 %v4898
  %v4963 = vunpack.c.l.b16 %v4899
  %v4964 = vunpack.c.l.b16 %v4900
  %v4965 = vunpack.c.l.b16 %v4901
  %v4966 = vunpack.c.l.b16 %v4902
  %v4967 = vunpack.c.l.b16 %v4903
  %v4968 = vunpack.c.l.b16 %v4904
  %v4969 = vunpack.c.l.b16 %v4905
  %v4970 = vunpack.c.l.b16 %v4906
  %v4971 = vunpack.c.l.b16 %v4907
  %v4972 = vunpack.c.l.b16 %v4908
  %v4973 = vunpack.c.l.b16 %v4909
  %v4974 = vunpack.c.l.b16 %v4910
  %v4975 = vunpack.c.l.b16 %v4911
  %v4976 = vunpack.c.l.b16 %v4912
  %v4977 = vunpack.c.l.b16 %v4913
  %v4978 = vpack.c.b16 %v4947, %v4946
  %v4979 = vpack.c.b16 %v4949, %v4948
  %v4980 = vpack.c.b16 %v4951, %v4950
  %v4981 = vpack.c.b16 %v4953, %v4952
  %v4982 = vpack.c.b16 %v4955, %v4954
  %v4983 = vpack.c.b16 %v4957, %v4956
  %v4984 = vpack.c.b16 %v4959, %v4958
  %v4985 = vpack.c.b16 %v4961, %v4960
  %v4986 = vpack.c.b16 %v4963, %v4962
  %v4987 = vpack.c.b16 %v4965, %v4964
  %v4988 = vpack.c.b16 %v4967, %v4966
  %v4989 = vpack.c.b16 %v4969, %v4968
  %v4990 = vpack.c.b16 %v4971, %v4970
  %v4991 = vpack.c.b16 %v4973, %v4972
  %v4992 = vpack.c.b16 %v4975, %v4974
  %v4993 = vpack.c.b16 %v4977, %v4976
  %v4994 = vunpack.c.l.b16 %v4978
  %v4995 = vunpack.c.h.b16 %v4978
  %v4996 = vunpack.c.l.b16 %v4979
  %v4997 = vunpack.c.h.b16 %v4979
  %v4998 = vunpack.c.l.b16 %v4980
  %v4999 = vunpack.c.h.b16 %v4980
  %v5000 = vunpack.c.l.b16 %v4981
  %v5001 = vunpack.c.h.b16 %v4981
  %v5002 = vunpack.c.l.b16 %v4982
  %v5003 = vunpack.c.h.b16 %v4982
  %v5004 = vunpack.c.l.b16 %v4983
  %v5005 = vunpack.c.h.b16 %v4983
  %v5006 = vunpack.c.l.b16 %v4984
  %v5007 = vunpack.c.h.b16 %v4984
  %v5008 = vunpack.c.l.b16 %v4985
  %v5009 = vunpack.c.h.b16 %v4985
  %v5010 = vunpack.c.l.b16 %v4986
  %v5011 = vunpack.c.h.b16 %v4986
  %v5012 = vunpack.c.l.b16 %v4987
  %v5013 = vunpack.c.h.b16 %v4987
  %v5014 = vunpack.c.l.b16 %v4988
  %v5015 = vunpack.c.h.b16 %v4988
  %v5016 = vunpack.c.l.b16 %v4989
  %v5017 = vunpack.c.h.b16 %v4989
  %v5018 = vunpack.c.l.b16 %v4990
  %v5019 = vunpack.c.h.b16 %v4990
  %v5020 = vunpack.c.l.b16 %v4991
  %v5021 = vunpack.c.h.b16 %v4991
  %v5022 = vunpack.c.l.b16 %v4992
  %v5023 = vunpack.c.h.b16 %v4992
  %v5024 = vunpack.c.l.b16 %v4993
  %v5025 = vunpack.c.h.b16 %v4993
  %v5026 = vsel %vm3770, %v4998, %v4994
  %v5027 = vsel %vm3772, %v5002, %v5026
  %v5028 = vsel %vm3774, %v5006, %v5027
  %v5029 = vsel %vm3776, %v5010, %v5028
  %v5030 = vsel %vm3778, %v5014, %v5029
  %v5031 = vsel %vm3780, %v5018, %v5030
  %v5032 = vsel %vm3782, %v5022, %v5031
  %v5033 = vsel %vm3770, %v4999, %v4995
  %v5034 = vsel %vm3772, %v5003, %v5033
  %v5035 = vsel %vm3774, %v5007, %v5034
  %v5036 = vsel %vm3776, %v5011, %v5035
  %v5037 = vsel %vm3778, %v5015, %v5036
  %v5038 = vsel %vm3780, %v5019, %v5037
  %v5039 = vsel %vm3782, %v5023, %v5038
  %v5040 = vsel %vm3770, %v5000, %v4996
  %v5041 = vsel %vm3772, %v5004, %v5040
  %v5042 = vsel %vm3774, %v5008, %v5041
  %v5043 = vsel %vm3776, %v5012, %v5042
  %v5044 = vsel %vm3778, %v5016, %v5043
  %v5045 = vsel %vm3780, %v5020, %v5044
  %v5046 = vsel %vm3782, %v5024, %v5045
  %v5047 = vsel %vm3770, %v5001, %v4997
  %v5048 = vsel %vm3772, %v5005, %v5047
  %v5049 = vsel %vm3774, %v5009, %v5048
  %v5050 = vsel %vm3776, %v5013, %v5049
  %v5051 = vsel %vm3778, %v5017, %v5050
  %v5052 = vsel %vm3780, %v5021, %v5051
  %v5053 = vsel %vm3782, %v5025, %v5052
  %v5054 = vpack.c.b16 %v5039, %v5032
  %v5055 = vpack.c.b16 %v5053, %v5046
  %5058 = vst [vmem:[%s4879 + $0x10] sm:$0xff] %v5054
  %5059 = vst [vmem:[%s4879 + $0x18] sm:$0xff] %v5055
  %v5060 = vpack.c.bf16 %v973, %v973
  %v5061 = vpack.c.bf16 %v979, %v979
  %v5062 = vpack.c.bf16 %v985, %v985
  %v5063 = vpack.c.bf16 %v991, %v991
  %v5064 = vpack.c.bf16 %v997, %v997
  %v5065 = vpack.c.bf16 %v1003, %v1003
  %v5066 = vpack.c.bf16 %v1009, %v1009
  %v5067 = vpack.c.bf16 %v1015, %v1015
  %v5068 = vpack.c.bf16 %v1021, %v1021
  %v5069 = vpack.c.bf16 %v1027, %v1027
  %v5070 = vpack.c.bf16 %v1033, %v1033
  %v5071 = vpack.c.bf16 %v1039, %v1039
  %v5072 = vpack.c.bf16 %v1045, %v1045
  %v5073 = vpack.c.bf16 %v1051, %v1051
  %v5074 = vpack.c.bf16 %v1057, %v1057
  %v5075 = vpack.c.bf16 %v1063, %v1063
  %v5076 = vpack.c.bf16 %v1069, %v1069
  %v5077 = vpack.c.bf16 %v1075, %v1075
  %v5078 = vpack.c.bf16 %v1081, %v1081
  %v5079 = vpack.c.bf16 %v1087, %v1087
  %v5080 = vpack.c.bf16 %v1093, %v1093
  %v5081 = vpack.c.bf16 %v1099, %v1099
  %v5082 = vpack.c.bf16 %v1105, %v1105
  %v5083 = vpack.c.bf16 %v1111, %v1111
  %v5084 = vpack.c.bf16 %v1117, %v1117
  %v5085 = vpack.c.bf16 %v1123, %v1123
  %v5086 = vpack.c.bf16 %v1129, %v1129
  %v5087 = vpack.c.bf16 %v1135, %v1135
  %v5088 = vpack.c.bf16 %v1141, %v1141
  %v5089 = vpack.c.bf16 %v1147, %v1147
  %v5090 = vpack.c.bf16 %v1153, %v1153
  %v5091 = vpack.c.bf16 %v1159, %v1159
  %v5124 = vunpack.c.l.b16 %v5060
  %v5125 = vunpack.c.l.b16 %v5061
  %v5126 = vunpack.c.l.b16 %v5062
  %v5127 = vunpack.c.l.b16 %v5063
  %v5128 = vunpack.c.l.b16 %v5064
  %v5129 = vunpack.c.l.b16 %v5065
  %v5130 = vunpack.c.l.b16 %v5066
  %v5131 = vunpack.c.l.b16 %v5067
  %v5132 = vunpack.c.l.b16 %v5068
  %v5133 = vunpack.c.l.b16 %v5069
  %v5134 = vunpack.c.l.b16 %v5070
  %v5135 = vunpack.c.l.b16 %v5071
  %v5136 = vunpack.c.l.b16 %v5072
  %v5137 = vunpack.c.l.b16 %v5073
  %v5138 = vunpack.c.l.b16 %v5074
  %v5139 = vunpack.c.l.b16 %v5075
  %v5140 = vunpack.c.l.b16 %v5076
  %v5141 = vunpack.c.l.b16 %v5077
  %v5142 = vunpack.c.l.b16 %v5078
  %v5143 = vunpack.c.l.b16 %v5079
  %v5144 = vunpack.c.l.b16 %v5080
  %v5145 = vunpack.c.l.b16 %v5081
  %v5146 = vunpack.c.l.b16 %v5082
  %v5147 = vunpack.c.l.b16 %v5083
  %v5148 = vunpack.c.l.b16 %v5084
  %v5149 = vunpack.c.l.b16 %v5085
  %v5150 = vunpack.c.l.b16 %v5086
  %v5151 = vunpack.c.l.b16 %v5087
  %v5152 = vunpack.c.l.b16 %v5088
  %v5153 = vunpack.c.l.b16 %v5089
  %v5154 = vunpack.c.l.b16 %v5090
  %v5155 = vunpack.c.l.b16 %v5091
  %v5156 = vpack.c.b16 %v5125, %v5124
  %v5157 = vpack.c.b16 %v5127, %v5126
  %v5158 = vpack.c.b16 %v5129, %v5128
  %v5159 = vpack.c.b16 %v5131, %v5130
  %v5160 = vpack.c.b16 %v5133, %v5132
  %v5161 = vpack.c.b16 %v5135, %v5134
  %v5162 = vpack.c.b16 %v5137, %v5136
  %v5163 = vpack.c.b16 %v5139, %v5138
  %v5164 = vpack.c.b16 %v5141, %v5140
  %v5165 = vpack.c.b16 %v5143, %v5142
  %v5166 = vpack.c.b16 %v5145, %v5144
  %v5167 = vpack.c.b16 %v5147, %v5146
  %v5168 = vpack.c.b16 %v5149, %v5148
  %v5169 = vpack.c.b16 %v5151, %v5150
  %v5170 = vpack.c.b16 %v5153, %v5152
  %v5171 = vpack.c.b16 %v5155, %v5154
  %v5172 = vunpack.c.l.b16 %v5156
  %v5173 = vunpack.c.h.b16 %v5156
  %v5174 = vunpack.c.l.b16 %v5157
  %v5175 = vunpack.c.h.b16 %v5157
  %v5176 = vunpack.c.l.b16 %v5158
  %v5177 = vunpack.c.h.b16 %v5158
  %v5178 = vunpack.c.l.b16 %v5159
  %v5179 = vunpack.c.h.b16 %v5159
  %v5180 = vunpack.c.l.b16 %v5160
  %v5181 = vunpack.c.h.b16 %v5160
  %v5182 = vunpack.c.l.b16 %v5161
  %v5183 = vunpack.c.h.b16 %v5161
  %v5184 = vunpack.c.l.b16 %v5162
  %v5185 = vunpack.c.h.b16 %v5162
  %v5186 = vunpack.c.l.b16 %v5163
  %v5187 = vunpack.c.h.b16 %v5163
  %v5188 = vunpack.c.l.b16 %v5164
  %v5189 = vunpack.c.h.b16 %v5164
  %v5190 = vunpack.c.l.b16 %v5165
  %v5191 = vunpack.c.h.b16 %v5165
  %v5192 = vunpack.c.l.b16 %v5166
  %v5193 = vunpack.c.h.b16 %v5166
  %v5194 = vunpack.c.l.b16 %v5167
  %v5195 = vunpack.c.h.b16 %v5167
  %v5196 = vunpack.c.l.b16 %v5168
  %v5197 = vunpack.c.h.b16 %v5168
  %v5198 = vunpack.c.l.b16 %v5169
  %v5199 = vunpack.c.h.b16 %v5169
  %v5200 = vunpack.c.l.b16 %v5170
  %v5201 = vunpack.c.h.b16 %v5170
  %v5202 = vunpack.c.l.b16 %v5171
  %v5203 = vunpack.c.h.b16 %v5171
  %v5204 = vsel %vm3770, %v5176, %v5172
  %v5205 = vsel %vm3772, %v5180, %v5204
  %v5206 = vsel %vm3774, %v5184, %v5205
  %v5207 = vsel %vm3776, %v5188, %v5206
  %v5208 = vsel %vm3778, %v5192, %v5207
  %v5209 = vsel %vm3780, %v5196, %v5208
  %v5210 = vsel %vm3782, %v5200, %v5209
  %v5211 = vsel %vm3770, %v5177, %v5173
  %v5212 = vsel %vm3772, %v5181, %v5211
  %v5213 = vsel %vm3774, %v5185, %v5212
  %v5214 = vsel %vm3776, %v5189, %v5213
  %v5215 = vsel %vm3778, %v5193, %v5214
  %v5216 = vsel %vm3780, %v5197, %v5215
  %v5217 = vsel %vm3782, %v5201, %v5216
  %v5218 = vsel %vm3770, %v5178, %v5174
  %v5219 = vsel %vm3772, %v5182, %v5218
  %v5220 = vsel %vm3774, %v5186, %v5219
  %v5221 = vsel %vm3776, %v5190, %v5220
  %v5222 = vsel %vm3778, %v5194, %v5221
  %v5223 = vsel %vm3780, %v5198, %v5222
  %v5224 = vsel %vm3782, %v5202, %v5223
  %v5225 = vsel %vm3770, %v5179, %v5175
  %v5226 = vsel %vm3772, %v5183, %v5225
  %v5227 = vsel %vm3774, %v5187, %v5226
  %v5228 = vsel %vm3776, %v5191, %v5227
  %v5229 = vsel %vm3778, %v5195, %v5228
  %v5230 = vsel %vm3780, %v5199, %v5229
  %v5231 = vsel %vm3782, %v5203, %v5230
  %v5232 = vpack.c.b16 %v5217, %v5210
  %v5233 = vpack.c.b16 %v5231, %v5224
  %s5236 = scalar_lea.vmem %s1, 128
  %5237 = vst [vmem:[%s5236] sm:$0xff] %v5232
  %5238 = vst [vmem:[%s5236 + $0x8] sm:$0xff] %v5233
  %v5239 = vpack.c.bf16 %v3082, %v3082
  %v5240 = vpack.c.bf16 %v3083, %v3083
  %v5241 = vpack.c.bf16 %v3084, %v3084
  %v5242 = vpack.c.bf16 %v3085, %v3085
  %v5243 = vpack.c.bf16 %v3086, %v3086
  %v5244 = vpack.c.bf16 %v3087, %v3087
  %v5245 = vpack.c.bf16 %v3088, %v3088
  %v5246 = vpack.c.bf16 %v3089, %v3089
  %v5247 = vpack.c.bf16 %v3090, %v3090
  %v5248 = vpack.c.bf16 %v3091, %v3091
  %v5249 = vpack.c.bf16 %v3092, %v3092
  %v5250 = vpack.c.bf16 %v3093, %v3093
  %v5251 = vpack.c.bf16 %v3094, %v3094
  %v5252 = vpack.c.bf16 %v3095, %v3095
  %v5253 = vpack.c.bf16 %v3096, %v3096
  %v5254 = vpack.c.bf16 %v3097, %v3097
  %v5255 = vpack.c.bf16 %v3098, %v3098
  %v5256 = vpack.c.bf16 %v3099, %v3099
  %v5257 = vpack.c.bf16 %v3100, %v3100
  %v5258 = vpack.c.bf16 %v3101, %v3101
  %v5259 = vpack.c.bf16 %v3102, %v3102
  %v5260 = vpack.c.bf16 %v3103, %v3103
  %v5261 = vpack.c.bf16 %v3104, %v3104
  %v5262 = vpack.c.bf16 %v3105, %v3105
  %v5263 = vpack.c.bf16 %v3106, %v3106
  %v5264 = vpack.c.bf16 %v3107, %v3107
  %v5265 = vpack.c.bf16 %v3108, %v3108
  %v5266 = vpack.c.bf16 %v3109, %v3109
  %v5267 = vpack.c.bf16 %v3110, %v3110
  %v5268 = vpack.c.bf16 %v3111, %v3111
  %v5269 = vpack.c.bf16 %v3112, %v3112
  %v5270 = vpack.c.bf16 %v3113, %v3113
  %v5303 = vunpack.c.l.b16 %v5239
  %v5304 = vunpack.c.l.b16 %v5240
  %v5305 = vunpack.c.l.b16 %v5241
  %v5306 = vunpack.c.l.b16 %v5242
  %v5307 = vunpack.c.l.b16 %v5243
  %v5308 = vunpack.c.l.b16 %v5244
  %v5309 = vunpack.c.l.b16 %v5245
  %v5310 = vunpack.c.l.b16 %v5246
  %v5311 = vunpack.c.l.b16 %v5247
  %v5312 = vunpack.c.l.b16 %v5248
  %v5313 = vunpack.c.l.b16 %v5249
  %v5314 = vunpack.c.l.b16 %v5250
  %v5315 = vunpack.c.l.b16 %v5251
  %v5316 = vunpack.c.l.b16 %v5252
  %v5317 = vunpack.c.l.b16 %v5253
  %v5318 = vunpack.c.l.b16 %v5254
  %v5319 = vunpack.c.l.b16 %v5255
  %v5320 = vunpack.c.l.b16 %v5256
  %v5321 = vunpack.c.l.b16 %v5257
  %v5322 = vunpack.c.l.b16 %v5258
  %v5323 = vunpack.c.l.b16 %v5259
  %v5324 = vunpack.c.l.b16 %v5260
  %v5325 = vunpack.c.l.b16 %v5261
  %v5326 = vunpack.c.l.b16 %v5262
  %v5327 = vunpack.c.l.b16 %v5263
  %v5328 = vunpack.c.l.b16 %v5264
  %v5329 = vunpack.c.l.b16 %v5265
  %v5330 = vunpack.c.l.b16 %v5266
  %v5331 = vunpack.c.l.b16 %v5267
  %v5332 = vunpack.c.l.b16 %v5268
  %v5333 = vunpack.c.l.b16 %v5269
  %v5334 = vunpack.c.l.b16 %v5270
  %v5335 = vpack.c.b16 %v5304, %v5303
  %v5336 = vpack.c.b16 %v5306, %v5305
  %v5337 = vpack.c.b16 %v5308, %v5307
  %v5338 = vpack.c.b16 %v5310, %v5309
  %v5339 = vpack.c.b16 %v5312, %v5311
  %v5340 = vpack.c.b16 %v5314, %v5313
  %v5341 = vpack.c.b16 %v5316, %v5315
  %v5342 = vpack.c.b16 %v5318, %v5317
  %v5343 = vpack.c.b16 %v5320, %v5319
  %v5344 = vpack.c.b16 %v5322, %v5321
  %v5345 = vpack.c.b16 %v5324, %v5323
  %v5346 = vpack.c.b16 %v5326, %v5325
  %v5347 = vpack.c.b16 %v5328, %v5327
  %v5348 = vpack.c.b16 %v5330, %v5329
  %v5349 = vpack.c.b16 %v5332, %v5331
  %v5350 = vpack.c.b16 %v5334, %v5333
  %v5351 = vunpack.c.l.b16 %v5335
  %v5352 = vunpack.c.h.b16 %v5335
  %v5353 = vunpack.c.l.b16 %v5336
  %v5354 = vunpack.c.h.b16 %v5336
  %v5355 = vunpack.c.l.b16 %v5337
  %v5356 = vunpack.c.h.b16 %v5337
  %v5357 = vunpack.c.l.b16 %v5338
  %v5358 = vunpack.c.h.b16 %v5338
  %v5359 = vunpack.c.l.b16 %v5339
  %v5360 = vunpack.c.h.b16 %v5339
  %v5361 = vunpack.c.l.b16 %v5340
  %v5362 = vunpack.c.h.b16 %v5340
  %v5363 = vunpack.c.l.b16 %v5341
  %v5364 = vunpack.c.h.b16 %v5341
  %v5365 = vunpack.c.l.b16 %v5342
  %v5366 = vunpack.c.h.b16 %v5342
  %v5367 = vunpack.c.l.b16 %v5343
  %v5368 = vunpack.c.h.b16 %v5343
  %v5369 = vunpack.c.l.b16 %v5344
  %v5370 = vunpack.c.h.b16 %v5344
  %v5371 = vunpack.c.l.b16 %v5345
  %v5372 = vunpack.c.h.b16 %v5345
  %v5373 = vunpack.c.l.b16 %v5346
  %v5374 = vunpack.c.h.b16 %v5346
  %v5375 = vunpack.c.l.b16 %v5347
  %v5376 = vunpack.c.h.b16 %v5347
  %v5377 = vunpack.c.l.b16 %v5348
  %v5378 = vunpack.c.h.b16 %v5348
  %v5379 = vunpack.c.l.b16 %v5349
  %v5380 = vunpack.c.h.b16 %v5349
  %v5381 = vunpack.c.l.b16 %v5350
  %v5382 = vunpack.c.h.b16 %v5350
  %v5383 = vsel %vm3770, %v5355, %v5351
  %v5384 = vsel %vm3772, %v5359, %v5383
  %v5385 = vsel %vm3774, %v5363, %v5384
  %v5386 = vsel %vm3776, %v5367, %v5385
  %v5387 = vsel %vm3778, %v5371, %v5386
  %v5388 = vsel %vm3780, %v5375, %v5387
  %v5389 = vsel %vm3782, %v5379, %v5388
  %v5390 = vsel %vm3770, %v5356, %v5352
  %v5391 = vsel %vm3772, %v5360, %v5390
  %v5392 = vsel %vm3774, %v5364, %v5391
  %v5393 = vsel %vm3776, %v5368, %v5392
  %v5394 = vsel %vm3778, %v5372, %v5393
  %v5395 = vsel %vm3780, %v5376, %v5394
  %v5396 = vsel %vm3782, %v5380, %v5395
  %v5397 = vsel %vm3770, %v5357, %v5353
  %v5398 = vsel %vm3772, %v5361, %v5397
  %v5399 = vsel %vm3774, %v5365, %v5398
  %v5400 = vsel %vm3776, %v5369, %v5399
  %v5401 = vsel %vm3778, %v5373, %v5400
  %v5402 = vsel %vm3780, %v5377, %v5401
  %v5403 = vsel %vm3782, %v5381, %v5402
  %v5404 = vsel %vm3770, %v5358, %v5354
  %v5405 = vsel %vm3772, %v5362, %v5404
  %v5406 = vsel %vm3774, %v5366, %v5405
  %v5407 = vsel %vm3776, %v5370, %v5406
  %v5408 = vsel %vm3778, %v5374, %v5407
  %v5409 = vsel %vm3780, %v5378, %v5408
  %v5410 = vsel %vm3782, %v5382, %v5409
  %v5411 = vpack.c.b16 %v5396, %v5389
  %v5412 = vpack.c.b16 %v5410, %v5403
  %5415 = vst [vmem:[%s5236 + $0x10] sm:$0xff] %v5411
  %5416 = vst [vmem:[%s5236 + $0x18] sm:$0xff] %v5412
  %v5417 = vpack.c.bf16 %v1165, %v1165
  %v5418 = vpack.c.bf16 %v1171, %v1171
  %v5419 = vpack.c.bf16 %v1177, %v1177
  %v5420 = vpack.c.bf16 %v1183, %v1183
  %v5421 = vpack.c.bf16 %v1189, %v1189
  %v5422 = vpack.c.bf16 %v1195, %v1195
  %v5423 = vpack.c.bf16 %v1201, %v1201
  %v5424 = vpack.c.bf16 %v1207, %v1207
  %v5425 = vpack.c.bf16 %v1213, %v1213
  %v5426 = vpack.c.bf16 %v1219, %v1219
  %v5427 = vpack.c.bf16 %v1225, %v1225
  %v5428 = vpack.c.bf16 %v1231, %v1231
  %v5429 = vpack.c.bf16 %v1237, %v1237
  %v5430 = vpack.c.bf16 %v1243, %v1243
  %v5431 = vpack.c.bf16 %v1249, %v1249
  %v5432 = vpack.c.bf16 %v1255, %v1255
  %v5433 = vpack.c.bf16 %v1261, %v1261
  %v5434 = vpack.c.bf16 %v1267, %v1267
  %v5435 = vpack.c.bf16 %v1273, %v1273
  %v5436 = vpack.c.bf16 %v1279, %v1279
  %v5437 = vpack.c.bf16 %v1285, %v1285
  %v5438 = vpack.c.bf16 %v1291, %v1291
  %v5439 = vpack.c.bf16 %v1297, %v1297
  %v5440 = vpack.c.bf16 %v1303, %v1303
  %v5441 = vpack.c.bf16 %v1309, %v1309
  %v5442 = vpack.c.bf16 %v1315, %v1315
  %v5443 = vpack.c.bf16 %v1321, %v1321
  %v5444 = vpack.c.bf16 %v1327, %v1327
  %v5445 = vpack.c.bf16 %v1333, %v1333
  %v5446 = vpack.c.bf16 %v1339, %v1339
  %v5447 = vpack.c.bf16 %v1345, %v1345
  %v5448 = vpack.c.bf16 %v1351, %v1351
  %v5481 = vunpack.c.l.b16 %v5417
  %v5482 = vunpack.c.l.b16 %v5418
  %v5483 = vunpack.c.l.b16 %v5419
  %v5484 = vunpack.c.l.b16 %v5420
  %v5485 = vunpack.c.l.b16 %v5421
  %v5486 = vunpack.c.l.b16 %v5422
  %v5487 = vunpack.c.l.b16 %v5423
  %v5488 = vunpack.c.l.b16 %v5424
  %v5489 = vunpack.c.l.b16 %v5425
  %v5490 = vunpack.c.l.b16 %v5426
  %v5491 = vunpack.c.l.b16 %v5427
  %v5492 = vunpack.c.l.b16 %v5428
  %v5493 = vunpack.c.l.b16 %v5429
  %v5494 = vunpack.c.l.b16 %v5430
  %v5495 = vunpack.c.l.b16 %v5431
  %v5496 = vunpack.c.l.b16 %v5432
  %v5497 = vunpack.c.l.b16 %v5433
  %v5498 = vunpack.c.l.b16 %v5434
  %v5499 = vunpack.c.l.b16 %v5435
  %v5500 = vunpack.c.l.b16 %v5436
  %v5501 = vunpack.c.l.b16 %v5437
  %v5502 = vunpack.c.l.b16 %v5438
  %v5503 = vunpack.c.l.b16 %v5439
  %v5504 = vunpack.c.l.b16 %v5440
  %v5505 = vunpack.c.l.b16 %v5441
  %v5506 = vunpack.c.l.b16 %v5442
  %v5507 = vunpack.c.l.b16 %v5443
  %v5508 = vunpack.c.l.b16 %v5444
  %v5509 = vunpack.c.l.b16 %v5445
  %v5510 = vunpack.c.l.b16 %v5446
  %v5511 = vunpack.c.l.b16 %v5447
  %v5512 = vunpack.c.l.b16 %v5448
  %v5513 = vpack.c.b16 %v5482, %v5481
  %v5514 = vpack.c.b16 %v5484, %v5483
  %v5515 = vpack.c.b16 %v5486, %v5485
  %v5516 = vpack.c.b16 %v5488, %v5487
  %v5517 = vpack.c.b16 %v5490, %v5489
  %v5518 = vpack.c.b16 %v5492, %v5491
  %v5519 = vpack.c.b16 %v5494, %v5493
  %v5520 = vpack.c.b16 %v5496, %v5495
  %v5521 = vpack.c.b16 %v5498, %v5497
  %v5522 = vpack.c.b16 %v5500, %v5499
  %v5523 = vpack.c.b16 %v5502, %v5501
  %v5524 = vpack.c.b16 %v5504, %v5503
  %v5525 = vpack.c.b16 %v5506, %v5505
  %v5526 = vpack.c.b16 %v5508, %v5507
  %v5527 = vpack.c.b16 %v5510, %v5509
  %v5528 = vpack.c.b16 %v5512, %v5511
  %v5529 = vunpack.c.l.b16 %v5513
  %v5530 = vunpack.c.h.b16 %v5513
  %v5531 = vunpack.c.l.b16 %v5514
  %v5532 = vunpack.c.h.b16 %v5514
  %v5533 = vunpack.c.l.b16 %v5515
  %v5534 = vunpack.c.h.b16 %v5515
  %v5535 = vunpack.c.l.b16 %v5516
  %v5536 = vunpack.c.h.b16 %v5516
  %v5537 = vunpack.c.l.b16 %v5517
  %v5538 = vunpack.c.h.b16 %v5517
  %v5539 = vunpack.c.l.b16 %v5518
  %v5540 = vunpack.c.h.b16 %v5518
  %v5541 = vunpack.c.l.b16 %v5519
  %v5542 = vunpack.c.h.b16 %v5519
  %v5543 = vunpack.c.l.b16 %v5520
  %v5544 = vunpack.c.h.b16 %v5520
  %v5545 = vunpack.c.l.b16 %v5521
  %v5546 = vunpack.c.h.b16 %v5521
  %v5547 = vunpack.c.l.b16 %v5522
  %v5548 = vunpack.c.h.b16 %v5522
  %v5549 = vunpack.c.l.b16 %v5523
  %v5550 = vunpack.c.h.b16 %v5523
  %v5551 = vunpack.c.l.b16 %v5524
  %v5552 = vunpack.c.h.b16 %v5524
  %v5553 = vunpack.c.l.b16 %v5525
  %v5554 = vunpack.c.h.b16 %v5525
  %v5555 = vunpack.c.l.b16 %v5526
  %v5556 = vunpack.c.h.b16 %v5526
  %v5557 = vunpack.c.l.b16 %v5527
  %v5558 = vunpack.c.h.b16 %v5527
  %v5559 = vunpack.c.l.b16 %v5528
  %v5560 = vunpack.c.h.b16 %v5528
  %v5561 = vsel %vm3770, %v5533, %v5529
  %v5562 = vsel %vm3772, %v5537, %v5561
  %v5563 = vsel %vm3774, %v5541, %v5562
  %v5564 = vsel %vm3776, %v5545, %v5563
  %v5565 = vsel %vm3778, %v5549, %v5564
  %v5566 = vsel %vm3780, %v5553, %v5565
  %v5567 = vsel %vm3782, %v5557, %v5566
  %v5568 = vsel %vm3770, %v5534, %v5530
  %v5569 = vsel %vm3772, %v5538, %v5568
  %v5570 = vsel %vm3774, %v5542, %v5569
  %v5571 = vsel %vm3776, %v5546, %v5570
  %v5572 = vsel %vm3778, %v5550, %v5571
  %v5573 = vsel %vm3780, %v5554, %v5572
  %v5574 = vsel %vm3782, %v5558, %v5573
  %v5575 = vsel %vm3770, %v5535, %v5531
  %v5576 = vsel %vm3772, %v5539, %v5575
  %v5577 = vsel %vm3774, %v5543, %v5576
  %v5578 = vsel %vm3776, %v5547, %v5577
  %v5579 = vsel %vm3778, %v5551, %v5578
  %v5580 = vsel %vm3780, %v5555, %v5579
  %v5581 = vsel %vm3782, %v5559, %v5580
  %v5582 = vsel %vm3770, %v5536, %v5532
  %v5583 = vsel %vm3772, %v5540, %v5582
  %v5584 = vsel %vm3774, %v5544, %v5583
  %v5585 = vsel %vm3776, %v5548, %v5584
  %v5586 = vsel %vm3778, %v5552, %v5585
  %v5587 = vsel %vm3780, %v5556, %v5586
  %v5588 = vsel %vm3782, %v5560, %v5587
  %v5589 = vpack.c.b16 %v5574, %v5567
  %v5590 = vpack.c.b16 %v5588, %v5581
  %s5593 = scalar_lea.vmem %s1, 160
  %5594 = vst [vmem:[%s5593] sm:$0xff] %v5589
  %5595 = vst [vmem:[%s5593 + $0x8] sm:$0xff] %v5590
  %v5596 = vpack.c.bf16 %v3146, %v3146
  %v5597 = vpack.c.bf16 %v3147, %v3147
  %v5598 = vpack.c.bf16 %v3148, %v3148
  %v5599 = vpack.c.bf16 %v3149, %v3149
  %v5600 = vpack.c.bf16 %v3150, %v3150
  %v5601 = vpack.c.bf16 %v3151, %v3151
  %v5602 = vpack.c.bf16 %v3152, %v3152
  %v5603 = vpack.c.bf16 %v3153, %v3153
  %v5604 = vpack.c.bf16 %v3154, %v3154
  %v5605 = vpack.c.bf16 %v3155, %v3155
  %v5606 = vpack.c.bf16 %v3156, %v3156
  %v5607 = vpack.c.bf16 %v3157, %v3157
  %v5608 = vpack.c.bf16 %v3158, %v3158
  %v5609 = vpack.c.bf16 %v3159, %v3159
  %v5610 = vpack.c.bf16 %v3160, %v3160
  %v5611 = vpack.c.bf16 %v3161, %v3161
  %v5612 = vpack.c.bf16 %v3162, %v3162
  %v5613 = vpack.c.bf16 %v3163, %v3163
  %v5614 = vpack.c.bf16 %v3164, %v3164
  %v5615 = vpack.c.bf16 %v3165, %v3165
  %v5616 = vpack.c.bf16 %v3166, %v3166
  %v5617 = vpack.c.bf16 %v3167, %v3167
  %v5618 = vpack.c.bf16 %v3168, %v3168
  %v5619 = vpack.c.bf16 %v3169, %v3169
  %v5620 = vpack.c.bf16 %v3170, %v3170
  %v5621 = vpack.c.bf16 %v3171, %v3171
  %v5622 = vpack.c.bf16 %v3172, %v3172
  %v5623 = vpack.c.bf16 %v3173, %v3173
  %v5624 = vpack.c.bf16 %v3174, %v3174
  %v5625 = vpack.c.bf16 %v3175, %v3175
  %v5626 = vpack.c.bf16 %v3176, %v3176
  %v5627 = vpack.c.bf16 %v3177, %v3177
  %v5660 = vunpack.c.l.b16 %v5596
  %v5661 = vunpack.c.l.b16 %v5597
  %v5662 = vunpack.c.l.b16 %v5598
  %v5663 = vunpack.c.l.b16 %v5599
  %v5664 = vunpack.c.l.b16 %v5600
  %v5665 = vunpack.c.l.b16 %v5601
  %v5666 = vunpack.c.l.b16 %v5602
  %v5667 = vunpack.c.l.b16 %v5603
  %v5668 = vunpack.c.l.b16 %v5604
  %v5669 = vunpack.c.l.b16 %v5605
  %v5670 = vunpack.c.l.b16 %v5606
  %v5671 = vunpack.c.l.b16 %v5607
  %v5672 = vunpack.c.l.b16 %v5608
  %v5673 = vunpack.c.l.b16 %v5609
  %v5674 = vunpack.c.l.b16 %v5610
  %v5675 = vunpack.c.l.b16 %v5611
  %v5676 = vunpack.c.l.b16 %v5612
  %v5677 = vunpack.c.l.b16 %v5613
  %v5678 = vunpack.c.l.b16 %v5614
  %v5679 = vunpack.c.l.b16 %v5615
  %v5680 = vunpack.c.l.b16 %v5616
  %v5681 = vunpack.c.l.b16 %v5617
  %v5682 = vunpack.c.l.b16 %v5618
  %v5683 = vunpack.c.l.b16 %v5619
  %v5684 = vunpack.c.l.b16 %v5620
  %v5685 = vunpack.c.l.b16 %v5621
  %v5686 = vunpack.c.l.b16 %v5622
  %v5687 = vunpack.c.l.b16 %v5623
  %v5688 = vunpack.c.l.b16 %v5624
  %v5689 = vunpack.c.l.b16 %v5625
  %v5690 = vunpack.c.l.b16 %v5626
  %v5691 = vunpack.c.l.b16 %v5627
  %v5692 = vpack.c.b16 %v5661, %v5660
  %v5693 = vpack.c.b16 %v5663, %v5662
  %v5694 = vpack.c.b16 %v5665, %v5664
  %v5695 = vpack.c.b16 %v5667, %v5666
  %v5696 = vpack.c.b16 %v5669, %v5668
  %v5697 = vpack.c.b16 %v5671, %v5670
  %v5698 = vpack.c.b16 %v5673, %v5672
  %v5699 = vpack.c.b16 %v5675, %v5674
  %v5700 = vpack.c.b16 %v5677, %v5676
  %v5701 = vpack.c.b16 %v5679, %v5678
  %v5702 = vpack.c.b16 %v5681, %v5680
  %v5703 = vpack.c.b16 %v5683, %v5682
  %v5704 = vpack.c.b16 %v5685, %v5684
  %v5705 = vpack.c.b16 %v5687, %v5686
  %v5706 = vpack.c.b16 %v5689, %v5688
  %v5707 = vpack.c.b16 %v5691, %v5690
  %v5708 = vunpack.c.l.b16 %v5692
  %v5709 = vunpack.c.h.b16 %v5692
  %v5710 = vunpack.c.l.b16 %v5693
  %v5711 = vunpack.c.h.b16 %v5693
  %v5712 = vunpack.c.l.b16 %v5694
  %v5713 = vunpack.c.h.b16 %v5694
  %v5714 = vunpack.c.l.b16 %v5695
  %v5715 = vunpack.c.h.b16 %v5695
  %v5716 = vunpack.c.l.b16 %v5696
  %v5717 = vunpack.c.h.b16 %v5696
  %v5718 = vunpack.c.l.b16 %v5697
  %v5719 = vunpack.c.h.b16 %v5697
  %v5720 = vunpack.c.l.b16 %v5698
  %v5721 = vunpack.c.h.b16 %v5698
  %v5722 = vunpack.c.l.b16 %v5699
  %v5723 = vunpack.c.h.b16 %v5699
  %v5724 = vunpack.c.l.b16 %v5700
  %v5725 = vunpack.c.h.b16 %v5700
  %v5726 = vunpack.c.l.b16 %v5701
  %v5727 = vunpack.c.h.b16 %v5701
  %v5728 = vunpack.c.l.b16 %v5702
  %v5729 = vunpack.c.h.b16 %v5702
  %v5730 = vunpack.c.l.b16 %v5703
  %v5731 = vunpack.c.h.b16 %v5703
  %v5732 = vunpack.c.l.b16 %v5704
  %v5733 = vunpack.c.h.b16 %v5704
  %v5734 = vunpack.c.l.b16 %v5705
  %v5735 = vunpack.c.h.b16 %v5705
  %v5736 = vunpack.c.l.b16 %v5706
  %v5737 = vunpack.c.h.b16 %v5706
  %v5738 = vunpack.c.l.b16 %v5707
  %v5739 = vunpack.c.h.b16 %v5707
  %v5740 = vsel %vm3770, %v5712, %v5708
  %v5741 = vsel %vm3772, %v5716, %v5740
  %v5742 = vsel %vm3774, %v5720, %v5741
  %v5743 = vsel %vm3776, %v5724, %v5742
  %v5744 = vsel %vm3778, %v5728, %v5743
  %v5745 = vsel %vm3780, %v5732, %v5744
  %v5746 = vsel %vm3782, %v5736, %v5745
  %v5747 = vsel %vm3770, %v5713, %v5709
  %v5748 = vsel %vm3772, %v5717, %v5747
  %v5749 = vsel %vm3774, %v5721, %v5748
  %v5750 = vsel %vm3776, %v5725, %v5749
  %v5751 = vsel %vm3778, %v5729, %v5750
  %v5752 = vsel %vm3780, %v5733, %v5751
  %v5753 = vsel %vm3782, %v5737, %v5752
  %v5754 = vsel %vm3770, %v5714, %v5710
  %v5755 = vsel %vm3772, %v5718, %v5754
  %v5756 = vsel %vm3774, %v5722, %v5755
  %v5757 = vsel %vm3776, %v5726, %v5756
  %v5758 = vsel %vm3778, %v5730, %v5757
  %v5759 = vsel %vm3780, %v5734, %v5758
  %v5760 = vsel %vm3782, %v5738, %v5759
  %v5761 = vsel %vm3770, %v5715, %v5711
  %v5762 = vsel %vm3772, %v5719, %v5761
  %v5763 = vsel %vm3774, %v5723, %v5762
  %v5764 = vsel %vm3776, %v5727, %v5763
  %v5765 = vsel %vm3778, %v5731, %v5764
  %v5766 = vsel %vm3780, %v5735, %v5765
  %v5767 = vsel %vm3782, %v5739, %v5766
  %v5768 = vpack.c.b16 %v5753, %v5746
  %v5769 = vpack.c.b16 %v5767, %v5760
  %5772 = vst [vmem:[%s5593 + $0x10] sm:$0xff] %v5768
  %5773 = vst [vmem:[%s5593 + $0x18] sm:$0xff] %v5769
  %v5774 = vpack.c.bf16 %v1360, %v1360
  %v5775 = vpack.c.bf16 %v1368, %v1368
  %v5776 = vpack.c.bf16 %v1376, %v1376
  %v5777 = vpack.c.bf16 %v1384, %v1384
  %v5778 = vpack.c.bf16 %v1392, %v1392
  %v5779 = vpack.c.bf16 %v1400, %v1400
  %v5780 = vpack.c.bf16 %v1408, %v1408
  %v5781 = vpack.c.bf16 %v1416, %v1416
  %v5782 = vpack.c.bf16 %v1424, %v1424
  %v5783 = vpack.c.bf16 %v1432, %v1432
  %v5784 = vpack.c.bf16 %v1440, %v1440
  %v5785 = vpack.c.bf16 %v1448, %v1448
  %v5786 = vpack.c.bf16 %v1456, %v1456
  %v5787 = vpack.c.bf16 %v1464, %v1464
  %v5788 = vpack.c.bf16 %v1472, %v1472
  %v5789 = vpack.c.bf16 %v1480, %v1480
  %v5790 = vpack.c.bf16 %v1488, %v1488
  %v5791 = vpack.c.bf16 %v1496, %v1496
  %v5792 = vpack.c.bf16 %v1504, %v1504
  %v5793 = vpack.c.bf16 %v1512, %v1512
  %v5794 = vpack.c.bf16 %v1520, %v1520
  %v5795 = vpack.c.bf16 %v1528, %v1528
  %v5796 = vpack.c.bf16 %v1536, %v1536
  %v5797 = vpack.c.bf16 %v1544, %v1544
  %v5798 = vpack.c.bf16 %v1552, %v1552
  %v5799 = vpack.c.bf16 %v1560, %v1560
  %v5800 = vpack.c.bf16 %v1568, %v1568
  %v5801 = vpack.c.bf16 %v1576, %v1576
  %v5802 = vpack.c.bf16 %v1584, %v1584
  %v5803 = vpack.c.bf16 %v1592, %v1592
  %v5804 = vpack.c.bf16 %v1600, %v1600
  %v5805 = vpack.c.bf16 %v1608, %v1608
  %v5838 = vunpack.c.l.b16 %v5774
  %v5839 = vunpack.c.l.b16 %v5775
  %v5840 = vunpack.c.l.b16 %v5776
  %v5841 = vunpack.c.l.b16 %v5777
  %v5842 = vunpack.c.l.b16 %v5778
  %v5843 = vunpack.c.l.b16 %v5779
  %v5844 = vunpack.c.l.b16 %v5780
  %v5845 = vunpack.c.l.b16 %v5781
  %v5846 = vunpack.c.l.b16 %v5782
  %v5847 = vunpack.c.l.b16 %v5783
  %v5848 = vunpack.c.l.b16 %v5784
  %v5849 = vunpack.c.l.b16 %v5785
  %v5850 = vunpack.c.l.b16 %v5786
  %v5851 = vunpack.c.l.b16 %v5787
  %v5852 = vunpack.c.l.b16 %v5788
  %v5853 = vunpack.c.l.b16 %v5789
  %v5854 = vunpack.c.l.b16 %v5790
  %v5855 = vunpack.c.l.b16 %v5791
  %v5856 = vunpack.c.l.b16 %v5792
  %v5857 = vunpack.c.l.b16 %v5793
  %v5858 = vunpack.c.l.b16 %v5794
  %v5859 = vunpack.c.l.b16 %v5795
  %v5860 = vunpack.c.l.b16 %v5796
  %v5861 = vunpack.c.l.b16 %v5797
  %v5862 = vunpack.c.l.b16 %v5798
  %v5863 = vunpack.c.l.b16 %v5799
  %v5864 = vunpack.c.l.b16 %v5800
  %v5865 = vunpack.c.l.b16 %v5801
  %v5866 = vunpack.c.l.b16 %v5802
  %v5867 = vunpack.c.l.b16 %v5803
  %v5868 = vunpack.c.l.b16 %v5804
  %v5869 = vunpack.c.l.b16 %v5805
  %v5870 = vpack.c.b16 %v5839, %v5838
  %v5871 = vpack.c.b16 %v5841, %v5840
  %v5872 = vpack.c.b16 %v5843, %v5842
  %v5873 = vpack.c.b16 %v5845, %v5844
  %v5874 = vpack.c.b16 %v5847, %v5846
  %v5875 = vpack.c.b16 %v5849, %v5848
  %v5876 = vpack.c.b16 %v5851, %v5850
  %v5877 = vpack.c.b16 %v5853, %v5852
  %v5878 = vpack.c.b16 %v5855, %v5854
  %v5879 = vpack.c.b16 %v5857, %v5856
  %v5880 = vpack.c.b16 %v5859, %v5858
  %v5881 = vpack.c.b16 %v5861, %v5860
  %v5882 = vpack.c.b16 %v5863, %v5862
  %v5883 = vpack.c.b16 %v5865, %v5864
  %v5884 = vpack.c.b16 %v5867, %v5866
  %v5885 = vpack.c.b16 %v5869, %v5868
  %v5886 = vunpack.c.l.b16 %v5870
  %v5887 = vunpack.c.h.b16 %v5870
  %v5888 = vunpack.c.l.b16 %v5871
  %v5889 = vunpack.c.h.b16 %v5871
  %v5890 = vunpack.c.l.b16 %v5872
  %v5891 = vunpack.c.h.b16 %v5872
  %v5892 = vunpack.c.l.b16 %v5873
  %v5893 = vunpack.c.h.b16 %v5873
  %v5894 = vunpack.c.l.b16 %v5874
  %v5895 = vunpack.c.h.b16 %v5874
  %v5896 = vunpack.c.l.b16 %v5875
  %v5897 = vunpack.c.h.b16 %v5875
  %v5898 = vunpack.c.l.b16 %v5876
  %v5899 = vunpack.c.h.b16 %v5876
  %v5900 = vunpack.c.l.b16 %v5877
  %v5901 = vunpack.c.h.b16 %v5877
  %v5902 = vunpack.c.l.b16 %v5878
  %v5903 = vunpack.c.h.b16 %v5878
  %v5904 = vunpack.c.l.b16 %v5879
  %v5905 = vunpack.c.h.b16 %v5879
  %v5906 = vunpack.c.l.b16 %v5880
  %v5907 = vunpack.c.h.b16 %v5880
  %v5908 = vunpack.c.l.b16 %v5881
  %v5909 = vunpack.c.h.b16 %v5881
  %v5910 = vunpack.c.l.b16 %v5882
  %v5911 = vunpack.c.h.b16 %v5882
  %v5912 = vunpack.c.l.b16 %v5883
  %v5913 = vunpack.c.h.b16 %v5883
  %v5914 = vunpack.c.l.b16 %v5884
  %v5915 = vunpack.c.h.b16 %v5884
  %v5916 = vunpack.c.l.b16 %v5885
  %v5917 = vunpack.c.h.b16 %v5885
  %v5918 = vsel %vm3770, %v5890, %v5886
  %v5919 = vsel %vm3772, %v5894, %v5918
  %v5920 = vsel %vm3774, %v5898, %v5919
  %v5921 = vsel %vm3776, %v5902, %v5920
  %v5922 = vsel %vm3778, %v5906, %v5921
  %v5923 = vsel %vm3780, %v5910, %v5922
  %v5924 = vsel %vm3782, %v5914, %v5923
  %v5925 = vsel %vm3770, %v5891, %v5887
  %v5926 = vsel %vm3772, %v5895, %v5925
  %v5927 = vsel %vm3774, %v5899, %v5926
  %v5928 = vsel %vm3776, %v5903, %v5927
  %v5929 = vsel %vm3778, %v5907, %v5928
  %v5930 = vsel %vm3780, %v5911, %v5929
  %v5931 = vsel %vm3782, %v5915, %v5930
  %v5932 = vsel %vm3770, %v5892, %v5888
  %v5933 = vsel %vm3772, %v5896, %v5932
  %v5934 = vsel %vm3774, %v5900, %v5933
  %v5935 = vsel %vm3776, %v5904, %v5934
  %v5936 = vsel %vm3778, %v5908, %v5935
  %v5937 = vsel %vm3780, %v5912, %v5936
  %v5938 = vsel %vm3782, %v5916, %v5937
  %v5939 = vsel %vm3770, %v5893, %v5889
  %v5940 = vsel %vm3772, %v5897, %v5939
  %v5941 = vsel %vm3774, %v5901, %v5940
  %v5942 = vsel %vm3776, %v5905, %v5941
  %v5943 = vsel %vm3778, %v5909, %v5942
  %v5944 = vsel %vm3780, %v5913, %v5943
  %v5945 = vsel %vm3782, %v5917, %v5944
  %v5946 = vpack.c.b16 %v5931, %v5924
  %v5947 = vpack.c.b16 %v5945, %v5938
  %s5950 = scalar_lea.vmem %s1, 192
  %5951 = vst [vmem:[%s5950] sm:$0xff] %v5946
  %5952 = vst [vmem:[%s5950 + $0x8] sm:$0xff] %v5947
  %v5953 = vpack.c.bf16 %v3210, %v3210
  %v5954 = vpack.c.bf16 %v3211, %v3211
  %v5955 = vpack.c.bf16 %v3212, %v3212
  %v5956 = vpack.c.bf16 %v3213, %v3213
  %v5957 = vpack.c.bf16 %v3214, %v3214
  %v5958 = vpack.c.bf16 %v3215, %v3215
  %v5959 = vpack.c.bf16 %v3216, %v3216
  %v5960 = vpack.c.bf16 %v3217, %v3217
  %v5961 = vpack.c.bf16 %v3218, %v3218
  %v5962 = vpack.c.bf16 %v3219, %v3219
  %v5963 = vpack.c.bf16 %v3220, %v3220
  %v5964 = vpack.c.bf16 %v3221, %v3221
  %v5965 = vpack.c.bf16 %v3222, %v3222
  %v5966 = vpack.c.bf16 %v3223, %v3223
  %v5967 = vpack.c.bf16 %v3224, %v3224
  %v5968 = vpack.c.bf16 %v3225, %v3225
  %v5969 = vpack.c.bf16 %v3226, %v3226
  %v5970 = vpack.c.bf16 %v3227, %v3227
  %v5971 = vpack.c.bf16 %v3228, %v3228
  %v5972 = vpack.c.bf16 %v3229, %v3229
  %v5973 = vpack.c.bf16 %v3230, %v3230
  %v5974 = vpack.c.bf16 %v3231, %v3231
  %v5975 = vpack.c.bf16 %v3232, %v3232
  %v5976 = vpack.c.bf16 %v3233, %v3233
  %v5977 = vpack.c.bf16 %v3234, %v3234
  %v5978 = vpack.c.bf16 %v3235, %v3235
  %v5979 = vpack.c.bf16 %v3236, %v3236
  %v5980 = vpack.c.bf16 %v3237, %v3237
  %v5981 = vpack.c.bf16 %v3238, %v3238
  %v5982 = vpack.c.bf16 %v3239, %v3239
  %v5983 = vpack.c.bf16 %v3240, %v3240
  %v5984 = vpack.c.bf16 %v3241, %v3241
  %v6017 = vunpack.c.l.b16 %v5953
  %v6018 = vunpack.c.l.b16 %v5954
  %v6019 = vunpack.c.l.b16 %v5955
  %v6020 = vunpack.c.l.b16 %v5956
  %v6021 = vunpack.c.l.b16 %v5957
  %v6022 = vunpack.c.l.b16 %v5958
  %v6023 = vunpack.c.l.b16 %v5959
  %v6024 = vunpack.c.l.b16 %v5960
  %v6025 = vunpack.c.l.b16 %v5961
  %v6026 = vunpack.c.l.b16 %v5962
  %v6027 = vunpack.c.l.b16 %v5963
  %v6028 = vunpack.c.l.b16 %v5964
  %v6029 = vunpack.c.l.b16 %v5965
  %v6030 = vunpack.c.l.b16 %v5966
  %v6031 = vunpack.c.l.b16 %v5967
  %v6032 = vunpack.c.l.b16 %v5968
  %v6033 = vunpack.c.l.b16 %v5969
  %v6034 = vunpack.c.l.b16 %v5970
  %v6035 = vunpack.c.l.b16 %v5971
  %v6036 = vunpack.c.l.b16 %v5972
  %v6037 = vunpack.c.l.b16 %v5973
  %v6038 = vunpack.c.l.b16 %v5974
  %v6039 = vunpack.c.l.b16 %v5975
  %v6040 = vunpack.c.l.b16 %v5976
  %v6041 = vunpack.c.l.b16 %v5977
  %v6042 = vunpack.c.l.b16 %v5978
  %v6043 = vunpack.c.l.b16 %v5979
  %v6044 = vunpack.c.l.b16 %v5980
  %v6045 = vunpack.c.l.b16 %v5981
  %v6046 = vunpack.c.l.b16 %v5982
  %v6047 = vunpack.c.l.b16 %v5983
  %v6048 = vunpack.c.l.b16 %v5984
  %v6049 = vpack.c.b16 %v6018, %v6017
  %v6050 = vpack.c.b16 %v6020, %v6019
  %v6051 = vpack.c.b16 %v6022, %v6021
  %v6052 = vpack.c.b16 %v6024, %v6023
  %v6053 = vpack.c.b16 %v6026, %v6025
  %v6054 = vpack.c.b16 %v6028, %v6027
  %v6055 = vpack.c.b16 %v6030, %v6029
  %v6056 = vpack.c.b16 %v6032, %v6031
  %v6057 = vpack.c.b16 %v6034, %v6033
  %v6058 = vpack.c.b16 %v6036, %v6035
  %v6059 = vpack.c.b16 %v6038, %v6037
  %v6060 = vpack.c.b16 %v6040, %v6039
  %v6061 = vpack.c.b16 %v6042, %v6041
  %v6062 = vpack.c.b16 %v6044, %v6043
  %v6063 = vpack.c.b16 %v6046, %v6045
  %v6064 = vpack.c.b16 %v6048, %v6047
  %v6065 = vunpack.c.l.b16 %v6049
  %v6066 = vunpack.c.h.b16 %v6049
  %v6067 = vunpack.c.l.b16 %v6050
  %v6068 = vunpack.c.h.b16 %v6050
  %v6069 = vunpack.c.l.b16 %v6051
  %v6070 = vunpack.c.h.b16 %v6051
  %v6071 = vunpack.c.l.b16 %v6052
  %v6072 = vunpack.c.h.b16 %v6052
  %v6073 = vunpack.c.l.b16 %v6053
  %v6074 = vunpack.c.h.b16 %v6053
  %v6075 = vunpack.c.l.b16 %v6054
  %v6076 = vunpack.c.h.b16 %v6054
  %v6077 = vunpack.c.l.b16 %v6055
  %v6078 = vunpack.c.h.b16 %v6055
  %v6079 = vunpack.c.l.b16 %v6056
  %v6080 = vunpack.c.h.b16 %v6056
  %v6081 = vunpack.c.l.b16 %v6057
  %v6082 = vunpack.c.h.b16 %v6057
  %v6083 = vunpack.c.l.b16 %v6058
  %v6084 = vunpack.c.h.b16 %v6058
  %v6085 = vunpack.c.l.b16 %v6059
  %v6086 = vunpack.c.h.b16 %v6059
  %v6087 = vunpack.c.l.b16 %v6060
  %v6088 = vunpack.c.h.b16 %v6060
  %v6089 = vunpack.c.l.b16 %v6061
  %v6090 = vunpack.c.h.b16 %v6061
  %v6091 = vunpack.c.l.b16 %v6062
  %v6092 = vunpack.c.h.b16 %v6062
  %v6093 = vunpack.c.l.b16 %v6063
  %v6094 = vunpack.c.h.b16 %v6063
  %v6095 = vunpack.c.l.b16 %v6064
  %v6096 = vunpack.c.h.b16 %v6064
  %v6097 = vsel %vm3770, %v6069, %v6065
  %v6098 = vsel %vm3772, %v6073, %v6097
  %v6099 = vsel %vm3774, %v6077, %v6098
  %v6100 = vsel %vm3776, %v6081, %v6099
  %v6101 = vsel %vm3778, %v6085, %v6100
  %v6102 = vsel %vm3780, %v6089, %v6101
  %v6103 = vsel %vm3782, %v6093, %v6102
  %v6104 = vsel %vm3770, %v6070, %v6066
  %v6105 = vsel %vm3772, %v6074, %v6104
  %v6106 = vsel %vm3774, %v6078, %v6105
  %v6107 = vsel %vm3776, %v6082, %v6106
  %v6108 = vsel %vm3778, %v6086, %v6107
  %v6109 = vsel %vm3780, %v6090, %v6108
  %v6110 = vsel %vm3782, %v6094, %v6109
  %v6111 = vsel %vm3770, %v6071, %v6067
  %v6112 = vsel %vm3772, %v6075, %v6111
  %v6113 = vsel %vm3774, %v6079, %v6112
  %v6114 = vsel %vm3776, %v6083, %v6113
  %v6115 = vsel %vm3778, %v6087, %v6114
  %v6116 = vsel %vm3780, %v6091, %v6115
  %v6117 = vsel %vm3782, %v6095, %v6116
  %v6118 = vsel %vm3770, %v6072, %v6068
  %v6119 = vsel %vm3772, %v6076, %v6118
  %v6120 = vsel %vm3774, %v6080, %v6119
  %v6121 = vsel %vm3776, %v6084, %v6120
  %v6122 = vsel %vm3778, %v6088, %v6121
  %v6123 = vsel %vm3780, %v6092, %v6122
  %v6124 = vsel %vm3782, %v6096, %v6123
  %v6125 = vpack.c.b16 %v6110, %v6103
  %v6126 = vpack.c.b16 %v6124, %v6117
  %6129 = vst [vmem:[%s5950 + $0x10] sm:$0xff] %v6125
  %6130 = vst [vmem:[%s5950 + $0x18] sm:$0xff] %v6126
  %v6131 = vpack.c.bf16 %v1617, %v1617
  %v6132 = vpack.c.bf16 %v1625, %v1625
  %v6133 = vpack.c.bf16 %v1633, %v1633
  %v6134 = vpack.c.bf16 %v1641, %v1641
  %v6135 = vpack.c.bf16 %v1649, %v1649
  %v6136 = vpack.c.bf16 %v1657, %v1657
  %v6137 = vpack.c.bf16 %v1665, %v1665
  %v6138 = vpack.c.bf16 %v1673, %v1673
  %v6139 = vpack.c.bf16 %v1681, %v1681
  %v6140 = vpack.c.bf16 %v1689, %v1689
  %v6141 = vpack.c.bf16 %v1697, %v1697
  %v6142 = vpack.c.bf16 %v1705, %v1705
  %v6143 = vpack.c.bf16 %v1713, %v1713
  %v6144 = vpack.c.bf16 %v1721, %v1721
  %v6145 = vpack.c.bf16 %v1729, %v1729
  %v6146 = vpack.c.bf16 %v1737, %v1737
  %v6147 = vpack.c.bf16 %v1745, %v1745
  %v6148 = vpack.c.bf16 %v1753, %v1753
  %v6149 = vpack.c.bf16 %v1761, %v1761
  %v6150 = vpack.c.bf16 %v1769, %v1769
  %v6151 = vpack.c.bf16 %v1777, %v1777
  %v6152 = vpack.c.bf16 %v1785, %v1785
  %v6153 = vpack.c.bf16 %v1793, %v1793
  %v6154 = vpack.c.bf16 %v1801, %v1801
  %v6155 = vpack.c.bf16 %v1809, %v1809
  %v6156 = vpack.c.bf16 %v1817, %v1817
  %v6157 = vpack.c.bf16 %v1825, %v1825
  %v6158 = vpack.c.bf16 %v1833, %v1833
  %v6159 = vpack.c.bf16 %v1841, %v1841
  %v6160 = vpack.c.bf16 %v1849, %v1849
  %v6161 = vpack.c.bf16 %v1857, %v1857
  %v6162 = vpack.c.bf16 %v1865, %v1865
  %v6195 = vunpack.c.l.b16 %v6131
  %v6196 = vunpack.c.l.b16 %v6132
  %v6197 = vunpack.c.l.b16 %v6133
  %v6198 = vunpack.c.l.b16 %v6134
  %v6199 = vunpack.c.l.b16 %v6135
  %v6200 = vunpack.c.l.b16 %v6136
  %v6201 = vunpack.c.l.b16 %v6137
  %v6202 = vunpack.c.l.b16 %v6138
  %v6203 = vunpack.c.l.b16 %v6139
  %v6204 = vunpack.c.l.b16 %v6140
  %v6205 = vunpack.c.l.b16 %v6141
  %v6206 = vunpack.c.l.b16 %v6142
  %v6207 = vunpack.c.l.b16 %v6143
  %v6208 = vunpack.c.l.b16 %v6144
  %v6209 = vunpack.c.l.b16 %v6145
  %v6210 = vunpack.c.l.b16 %v6146
  %v6211 = vunpack.c.l.b16 %v6147
  %v6212 = vunpack.c.l.b16 %v6148
  %v6213 = vunpack.c.l.b16 %v6149
  %v6214 = vunpack.c.l.b16 %v6150
  %v6215 = vunpack.c.l.b16 %v6151
  %v6216 = vunpack.c.l.b16 %v6152
  %v6217 = vunpack.c.l.b16 %v6153
  %v6218 = vunpack.c.l.b16 %v6154
  %v6219 = vunpack.c.l.b16 %v6155
  %v6220 = vunpack.c.l.b16 %v6156
  %v6221 = vunpack.c.l.b16 %v6157
  %v6222 = vunpack.c.l.b16 %v6158
  %v6223 = vunpack.c.l.b16 %v6159
  %v6224 = vunpack.c.l.b16 %v6160
  %v6225 = vunpack.c.l.b16 %v6161
  %v6226 = vunpack.c.l.b16 %v6162
  %v6227 = vpack.c.b16 %v6196, %v6195
  %v6228 = vpack.c.b16 %v6198, %v6197
  %v6229 = vpack.c.b16 %v6200, %v6199
  %v6230 = vpack.c.b16 %v6202, %v6201
  %v6231 = vpack.c.b16 %v6204, %v6203
  %v6232 = vpack.c.b16 %v6206, %v6205
  %v6233 = vpack.c.b16 %v6208, %v6207
  %v6234 = vpack.c.b16 %v6210, %v6209
  %v6235 = vpack.c.b16 %v6212, %v6211
  %v6236 = vpack.c.b16 %v6214, %v6213
  %v6237 = vpack.c.b16 %v6216, %v6215
  %v6238 = vpack.c.b16 %v6218, %v6217
  %v6239 = vpack.c.b16 %v6220, %v6219
  %v6240 = vpack.c.b16 %v6222, %v6221
  %v6241 = vpack.c.b16 %v6224, %v6223
  %v6242 = vpack.c.b16 %v6226, %v6225
  %v6243 = vunpack.c.l.b16 %v6227
  %v6244 = vunpack.c.h.b16 %v6227
  %v6245 = vunpack.c.l.b16 %v6228
  %v6246 = vunpack.c.h.b16 %v6228
  %v6247 = vunpack.c.l.b16 %v6229
  %v6248 = vunpack.c.h.b16 %v6229
  %v6249 = vunpack.c.l.b16 %v6230
  %v6250 = vunpack.c.h.b16 %v6230
  %v6251 = vunpack.c.l.b16 %v6231
  %v6252 = vunpack.c.h.b16 %v6231
  %v6253 = vunpack.c.l.b16 %v6232
  %v6254 = vunpack.c.h.b16 %v6232
  %v6255 = vunpack.c.l.b16 %v6233
  %v6256 = vunpack.c.h.b16 %v6233
  %v6257 = vunpack.c.l.b16 %v6234
  %v6258 = vunpack.c.h.b16 %v6234
  %v6259 = vunpack.c.l.b16 %v6235
  %v6260 = vunpack.c.h.b16 %v6235
  %v6261 = vunpack.c.l.b16 %v6236
  %v6262 = vunpack.c.h.b16 %v6236
  %v6263 = vunpack.c.l.b16 %v6237
  %v6264 = vunpack.c.h.b16 %v6237
  %v6265 = vunpack.c.l.b16 %v6238
  %v6266 = vunpack.c.h.b16 %v6238
  %v6267 = vunpack.c.l.b16 %v6239
  %v6268 = vunpack.c.h.b16 %v6239
  %v6269 = vunpack.c.l.b16 %v6240
  %v6270 = vunpack.c.h.b16 %v6240
  %v6271 = vunpack.c.l.b16 %v6241
  %v6272 = vunpack.c.h.b16 %v6241
  %v6273 = vunpack.c.l.b16 %v6242
  %v6274 = vunpack.c.h.b16 %v6242
  %v6275 = vsel %vm3770, %v6247, %v6243
  %v6276 = vsel %vm3772, %v6251, %v6275
  %v6277 = vsel %vm3774, %v6255, %v6276
  %v6278 = vsel %vm3776, %v6259, %v6277
  %v6279 = vsel %vm3778, %v6263, %v6278
  %v6280 = vsel %vm3780, %v6267, %v6279
  %v6281 = vsel %vm3782, %v6271, %v6280
  %v6282 = vsel %vm3770, %v6248, %v6244
  %v6283 = vsel %vm3772, %v6252, %v6282
  %v6284 = vsel %vm3774, %v6256, %v6283
  %v6285 = vsel %vm3776, %v6260, %v6284
  %v6286 = vsel %vm3778, %v6264, %v6285
  %v6287 = vsel %vm3780, %v6268, %v6286
  %v6288 = vsel %vm3782, %v6272, %v6287
  %v6289 = vsel %vm3770, %v6249, %v6245
  %v6290 = vsel %vm3772, %v6253, %v6289
  %v6291 = vsel %vm3774, %v6257, %v6290
  %v6292 = vsel %vm3776, %v6261, %v6291
  %v6293 = vsel %vm3778, %v6265, %v6292
  %v6294 = vsel %vm3780, %v6269, %v6293
  %v6295 = vsel %vm3782, %v6273, %v6294
  %v6296 = vsel %vm3770, %v6250, %v6246
  %v6297 = vsel %vm3772, %v6254, %v6296
  %v6298 = vsel %vm3774, %v6258, %v6297
  %v6299 = vsel %vm3776, %v6262, %v6298
  %v6300 = vsel %vm3778, %v6266, %v6299
  %v6301 = vsel %vm3780, %v6270, %v6300
  %v6302 = vsel %vm3782, %v6274, %v6301
  %v6303 = vpack.c.b16 %v6288, %v6281
  %v6304 = vpack.c.b16 %v6302, %v6295
  %s6307 = scalar_lea.vmem %s1, 224
  %6308 = vst [vmem:[%s6307] sm:$0xff] %v6303
  %6309 = vst [vmem:[%s6307 + $0x8] sm:$0xff] %v6304
  %v6310 = vpack.c.bf16 %v3274, %v3274
  %v6311 = vpack.c.bf16 %v3275, %v3275
  %v6312 = vpack.c.bf16 %v3276, %v3276
  %v6313 = vpack.c.bf16 %v3277, %v3277
  %v6314 = vpack.c.bf16 %v3278, %v3278
  %v6315 = vpack.c.bf16 %v3279, %v3279
  %v6316 = vpack.c.bf16 %v3280, %v3280
  %v6317 = vpack.c.bf16 %v3281, %v3281
  %v6318 = vpack.c.bf16 %v3282, %v3282
  %v6319 = vpack.c.bf16 %v3283, %v3283
  %v6320 = vpack.c.bf16 %v3284, %v3284
  %v6321 = vpack.c.bf16 %v3285, %v3285
  %v6322 = vpack.c.bf16 %v3286, %v3286
  %v6323 = vpack.c.bf16 %v3287, %v3287
  %v6324 = vpack.c.bf16 %v3288, %v3288
  %v6325 = vpack.c.bf16 %v3289, %v3289
  %v6326 = vpack.c.bf16 %v3290, %v3290
  %v6327 = vpack.c.bf16 %v3291, %v3291
  %v6328 = vpack.c.bf16 %v3292, %v3292
  %v6329 = vpack.c.bf16 %v3293, %v3293
  %v6330 = vpack.c.bf16 %v3294, %v3294
  %v6331 = vpack.c.bf16 %v3295, %v3295
  %v6332 = vpack.c.bf16 %v3296, %v3296
  %v6333 = vpack.c.bf16 %v3297, %v3297
  %v6334 = vpack.c.bf16 %v3298, %v3298
  %v6335 = vpack.c.bf16 %v3299, %v3299
  %v6336 = vpack.c.bf16 %v3300, %v3300
  %v6337 = vpack.c.bf16 %v3301, %v3301
  %v6338 = vpack.c.bf16 %v3302, %v3302
  %v6339 = vpack.c.bf16 %v3303, %v3303
  %v6340 = vpack.c.bf16 %v3304, %v3304
  %v6341 = vpack.c.bf16 %v3305, %v3305
  %v6374 = vunpack.c.l.b16 %v6310
  %v6375 = vunpack.c.l.b16 %v6311
  %v6376 = vunpack.c.l.b16 %v6312
  %v6377 = vunpack.c.l.b16 %v6313
  %v6378 = vunpack.c.l.b16 %v6314
  %v6379 = vunpack.c.l.b16 %v6315
  %v6380 = vunpack.c.l.b16 %v6316
  %v6381 = vunpack.c.l.b16 %v6317
  %v6382 = vunpack.c.l.b16 %v6318
  %v6383 = vunpack.c.l.b16 %v6319
  %v6384 = vunpack.c.l.b16 %v6320
  %v6385 = vunpack.c.l.b16 %v6321
  %v6386 = vunpack.c.l.b16 %v6322
  %v6387 = vunpack.c.l.b16 %v6323
  %v6388 = vunpack.c.l.b16 %v6324
  %v6389 = vunpack.c.l.b16 %v6325
  %v6390 = vunpack.c.l.b16 %v6326
  %v6391 = vunpack.c.l.b16 %v6327
  %v6392 = vunpack.c.l.b16 %v6328
  %v6393 = vunpack.c.l.b16 %v6329
  %v6394 = vunpack.c.l.b16 %v6330
  %v6395 = vunpack.c.l.b16 %v6331
  %v6396 = vunpack.c.l.b16 %v6332
  %v6397 = vunpack.c.l.b16 %v6333
  %v6398 = vunpack.c.l.b16 %v6334
  %v6399 = vunpack.c.l.b16 %v6335
  %v6400 = vunpack.c.l.b16 %v6336
  %v6401 = vunpack.c.l.b16 %v6337
  %v6402 = vunpack.c.l.b16 %v6338
  %v6403 = vunpack.c.l.b16 %v6339
  %v6404 = vunpack.c.l.b16 %v6340
  %v6405 = vunpack.c.l.b16 %v6341
  %v6406 = vpack.c.b16 %v6375, %v6374
  %v6407 = vpack.c.b16 %v6377, %v6376
  %v6408 = vpack.c.b16 %v6379, %v6378
  %v6409 = vpack.c.b16 %v6381, %v6380
  %v6410 = vpack.c.b16 %v6383, %v6382
  %v6411 = vpack.c.b16 %v6385, %v6384
  %v6412 = vpack.c.b16 %v6387, %v6386
  %v6413 = vpack.c.b16 %v6389, %v6388
  %v6414 = vpack.c.b16 %v6391, %v6390
  %v6415 = vpack.c.b16 %v6393, %v6392
  %v6416 = vpack.c.b16 %v6395, %v6394
  %v6417 = vpack.c.b16 %v6397, %v6396
  %v6418 = vpack.c.b16 %v6399, %v6398
  %v6419 = vpack.c.b16 %v6401, %v6400
  %v6420 = vpack.c.b16 %v6403, %v6402
  %v6421 = vpack.c.b16 %v6405, %v6404
  %v6422 = vunpack.c.l.b16 %v6406
  %v6423 = vunpack.c.h.b16 %v6406
  %v6424 = vunpack.c.l.b16 %v6407
  %v6425 = vunpack.c.h.b16 %v6407
  %v6426 = vunpack.c.l.b16 %v6408
  %v6427 = vunpack.c.h.b16 %v6408
  %v6428 = vunpack.c.l.b16 %v6409
  %v6429 = vunpack.c.h.b16 %v6409
  %v6430 = vunpack.c.l.b16 %v6410
  %v6431 = vunpack.c.h.b16 %v6410
  %v6432 = vunpack.c.l.b16 %v6411
  %v6433 = vunpack.c.h.b16 %v6411
  %v6434 = vunpack.c.l.b16 %v6412
  %v6435 = vunpack.c.h.b16 %v6412
  %v6436 = vunpack.c.l.b16 %v6413
  %v6437 = vunpack.c.h.b16 %v6413
  %v6438 = vunpack.c.l.b16 %v6414
  %v6439 = vunpack.c.h.b16 %v6414
  %v6440 = vunpack.c.l.b16 %v6415
  %v6441 = vunpack.c.h.b16 %v6415
  %v6442 = vunpack.c.l.b16 %v6416
  %v6443 = vunpack.c.h.b16 %v6416
  %v6444 = vunpack.c.l.b16 %v6417
  %v6445 = vunpack.c.h.b16 %v6417
  %v6446 = vunpack.c.l.b16 %v6418
  %v6447 = vunpack.c.h.b16 %v6418
  %v6448 = vunpack.c.l.b16 %v6419
  %v6449 = vunpack.c.h.b16 %v6419
  %v6450 = vunpack.c.l.b16 %v6420
  %v6451 = vunpack.c.h.b16 %v6420
  %v6452 = vunpack.c.l.b16 %v6421
  %v6453 = vunpack.c.h.b16 %v6421
  %v6454 = vsel %vm3770, %v6426, %v6422
  %v6455 = vsel %vm3772, %v6430, %v6454
  %v6456 = vsel %vm3774, %v6434, %v6455
  %v6457 = vsel %vm3776, %v6438, %v6456
  %v6458 = vsel %vm3778, %v6442, %v6457
  %v6459 = vsel %vm3780, %v6446, %v6458
  %v6460 = vsel %vm3782, %v6450, %v6459
  %v6461 = vsel %vm3770, %v6427, %v6423
  %v6462 = vsel %vm3772, %v6431, %v6461
  %v6463 = vsel %vm3774, %v6435, %v6462
  %v6464 = vsel %vm3776, %v6439, %v6463
  %v6465 = vsel %vm3778, %v6443, %v6464
  %v6466 = vsel %vm3780, %v6447, %v6465
  %v6467 = vsel %vm3782, %v6451, %v6466
  %v6468 = vsel %vm3770, %v6428, %v6424
  %v6469 = vsel %vm3772, %v6432, %v6468
  %v6470 = vsel %vm3774, %v6436, %v6469
  %v6471 = vsel %vm3776, %v6440, %v6470
  %v6472 = vsel %vm3778, %v6444, %v6471
  %v6473 = vsel %vm3780, %v6448, %v6472
  %v6474 = vsel %vm3782, %v6452, %v6473
  %v6475 = vsel %vm3770, %v6429, %v6425
  %v6476 = vsel %vm3772, %v6433, %v6475
  %v6477 = vsel %vm3774, %v6437, %v6476
  %v6478 = vsel %vm3776, %v6441, %v6477
  %v6479 = vsel %vm3778, %v6445, %v6478
  %v6480 = vsel %vm3780, %v6449, %v6479
  %v6481 = vsel %vm3782, %v6453, %v6480
  %v6482 = vpack.c.b16 %v6467, %v6460
  %v6483 = vpack.c.b16 %v6481, %v6474
  %6486 = vst [vmem:[%s6307 + $0x10] sm:$0xff] %v6482
  %6487 = vst [vmem:[%s6307 + $0x18] sm:$0xff] %v6483
  %v6488 = vpack.c.bf16 %v1873, %v1873
  %v6489 = vpack.c.bf16 %v1881, %v1881
  %v6490 = vpack.c.bf16 %v1889, %v1889
  %v6491 = vpack.c.bf16 %v1897, %v1897
  %v6492 = vpack.c.bf16 %v1905, %v1905
  %v6493 = vpack.c.bf16 %v1913, %v1913
  %v6494 = vpack.c.bf16 %v1921, %v1921
  %v6495 = vpack.c.bf16 %v1929, %v1929
  %v6496 = vpack.c.bf16 %v1937, %v1937
  %v6497 = vpack.c.bf16 %v1945, %v1945
  %v6498 = vpack.c.bf16 %v1953, %v1953
  %v6499 = vpack.c.bf16 %v1961, %v1961
  %v6500 = vpack.c.bf16 %v1969, %v1969
  %v6501 = vpack.c.bf16 %v1977, %v1977
  %v6502 = vpack.c.bf16 %v1985, %v1985
  %v6503 = vpack.c.bf16 %v1993, %v1993
  %v6504 = vpack.c.bf16 %v2001, %v2001
  %v6505 = vpack.c.bf16 %v2009, %v2009
  %v6506 = vpack.c.bf16 %v2017, %v2017
  %v6507 = vpack.c.bf16 %v2025, %v2025
  %v6508 = vpack.c.bf16 %v2033, %v2033
  %v6509 = vpack.c.bf16 %v2041, %v2041
  %v6510 = vpack.c.bf16 %v2049, %v2049
  %v6511 = vpack.c.bf16 %v2057, %v2057
  %v6512 = vpack.c.bf16 %v2065, %v2065
  %v6513 = vpack.c.bf16 %v2073, %v2073
  %v6514 = vpack.c.bf16 %v2081, %v2081
  %v6515 = vpack.c.bf16 %v2089, %v2089
  %v6516 = vpack.c.bf16 %v2097, %v2097
  %v6517 = vpack.c.bf16 %v2105, %v2105
  %v6518 = vpack.c.bf16 %v2113, %v2113
  %v6519 = vpack.c.bf16 %v2121, %v2121
  %v6552 = vunpack.c.l.b16 %v6488
  %v6553 = vunpack.c.l.b16 %v6489
  %v6554 = vunpack.c.l.b16 %v6490
  %v6555 = vunpack.c.l.b16 %v6491
  %v6556 = vunpack.c.l.b16 %v6492
  %v6557 = vunpack.c.l.b16 %v6493
  %v6558 = vunpack.c.l.b16 %v6494
  %v6559 = vunpack.c.l.b16 %v6495
  %v6560 = vunpack.c.l.b16 %v6496
  %v6561 = vunpack.c.l.b16 %v6497
  %v6562 = vunpack.c.l.b16 %v6498
  %v6563 = vunpack.c.l.b16 %v6499
  %v6564 = vunpack.c.l.b16 %v6500
  %v6565 = vunpack.c.l.b16 %v6501
  %v6566 = vunpack.c.l.b16 %v6502
  %v6567 = vunpack.c.l.b16 %v6503
  %v6568 = vunpack.c.l.b16 %v6504
  %v6569 = vunpack.c.l.b16 %v6505
  %v6570 = vunpack.c.l.b16 %v6506
  %v6571 = vunpack.c.l.b16 %v6507
  %v6572 = vunpack.c.l.b16 %v6508
  %v6573 = vunpack.c.l.b16 %v6509
  %v6574 = vunpack.c.l.b16 %v6510
  %v6575 = vunpack.c.l.b16 %v6511
  %v6576 = vunpack.c.l.b16 %v6512
  %v6577 = vunpack.c.l.b16 %v6513
  %v6578 = vunpack.c.l.b16 %v6514
  %v6579 = vunpack.c.l.b16 %v6515
  %v6580 = vunpack.c.l.b16 %v6516
  %v6581 = vunpack.c.l.b16 %v6517
  %v6582 = vunpack.c.l.b16 %v6518
  %v6583 = vunpack.c.l.b16 %v6519
  %v6584 = vpack.c.b16 %v6553, %v6552
  %v6585 = vpack.c.b16 %v6555, %v6554
  %v6586 = vpack.c.b16 %v6557, %v6556
  %v6587 = vpack.c.b16 %v6559, %v6558
  %v6588 = vpack.c.b16 %v6561, %v6560
  %v6589 = vpack.c.b16 %v6563, %v6562
  %v6590 = vpack.c.b16 %v6565, %v6564
  %v6591 = vpack.c.b16 %v6567, %v6566
  %v6592 = vpack.c.b16 %v6569, %v6568
  %v6593 = vpack.c.b16 %v6571, %v6570
  %v6594 = vpack.c.b16 %v6573, %v6572
  %v6595 = vpack.c.b16 %v6575, %v6574
  %v6596 = vpack.c.b16 %v6577, %v6576
  %v6597 = vpack.c.b16 %v6579, %v6578
  %v6598 = vpack.c.b16 %v6581, %v6580
  %v6599 = vpack.c.b16 %v6583, %v6582
  %v6600 = vunpack.c.l.b16 %v6584
  %v6601 = vunpack.c.h.b16 %v6584
  %v6602 = vunpack.c.l.b16 %v6585
  %v6603 = vunpack.c.h.b16 %v6585
  %v6604 = vunpack.c.l.b16 %v6586
  %v6605 = vunpack.c.h.b16 %v6586
  %v6606 = vunpack.c.l.b16 %v6587
  %v6607 = vunpack.c.h.b16 %v6587
  %v6608 = vunpack.c.l.b16 %v6588
  %v6609 = vunpack.c.h.b16 %v6588
  %v6610 = vunpack.c.l.b16 %v6589
  %v6611 = vunpack.c.h.b16 %v6589
  %v6612 = vunpack.c.l.b16 %v6590
  %v6613 = vunpack.c.h.b16 %v6590
  %v6614 = vunpack.c.l.b16 %v6591
  %v6615 = vunpack.c.h.b16 %v6591
  %v6616 = vunpack.c.l.b16 %v6592
  %v6617 = vunpack.c.h.b16 %v6592
  %v6618 = vunpack.c.l.b16 %v6593
  %v6619 = vunpack.c.h.b16 %v6593
  %v6620 = vunpack.c.l.b16 %v6594
  %v6621 = vunpack.c.h.b16 %v6594
  %v6622 = vunpack.c.l.b16 %v6595
  %v6623 = vunpack.c.h.b16 %v6595
  %v6624 = vunpack.c.l.b16 %v6596
  %v6625 = vunpack.c.h.b16 %v6596
  %v6626 = vunpack.c.l.b16 %v6597
  %v6627 = vunpack.c.h.b16 %v6597
  %v6628 = vunpack.c.l.b16 %v6598
  %v6629 = vunpack.c.h.b16 %v6598
  %v6630 = vunpack.c.l.b16 %v6599
  %v6631 = vunpack.c.h.b16 %v6599
  %v6632 = vsel %vm3770, %v6604, %v6600
  %v6633 = vsel %vm3772, %v6608, %v6632
  %v6634 = vsel %vm3774, %v6612, %v6633
  %v6635 = vsel %vm3776, %v6616, %v6634
  %v6636 = vsel %vm3778, %v6620, %v6635
  %v6637 = vsel %vm3780, %v6624, %v6636
  %v6638 = vsel %vm3782, %v6628, %v6637
  %v6639 = vsel %vm3770, %v6605, %v6601
  %v6640 = vsel %vm3772, %v6609, %v6639
  %v6641 = vsel %vm3774, %v6613, %v6640
  %v6642 = vsel %vm3776, %v6617, %v6641
  %v6643 = vsel %vm3778, %v6621, %v6642
  %v6644 = vsel %vm3780, %v6625, %v6643
  %v6645 = vsel %vm3782, %v6629, %v6644
  %v6646 = vsel %vm3770, %v6606, %v6602
  %v6647 = vsel %vm3772, %v6610, %v6646
  %v6648 = vsel %vm3774, %v6614, %v6647
  %v6649 = vsel %vm3776, %v6618, %v6648
  %v6650 = vsel %vm3778, %v6622, %v6649
  %v6651 = vsel %vm3780, %v6626, %v6650
  %v6652 = vsel %vm3782, %v6630, %v6651
  %v6653 = vsel %vm3770, %v6607, %v6603
  %v6654 = vsel %vm3772, %v6611, %v6653
  %v6655 = vsel %vm3774, %v6615, %v6654
  %v6656 = vsel %vm3776, %v6619, %v6655
  %v6657 = vsel %vm3778, %v6623, %v6656
  %v6658 = vsel %vm3780, %v6627, %v6657
  %v6659 = vsel %vm3782, %v6631, %v6658
  %v6660 = vpack.c.b16 %v6645, %v6638
  %v6661 = vpack.c.b16 %v6659, %v6652
  %s6664 = scalar_lea.vmem %s1, 256
  %6665 = vst [vmem:[%s6664] sm:$0xff] %v6660
  %6666 = vst [vmem:[%s6664 + $0x8] sm:$0xff] %v6661
  %v6667 = vpack.c.bf16 %v3338, %v3338
  %v6668 = vpack.c.bf16 %v3339, %v3339
  %v6669 = vpack.c.bf16 %v3340, %v3340
  %v6670 = vpack.c.bf16 %v3341, %v3341
  %v6671 = vpack.c.bf16 %v3342, %v3342
  %v6672 = vpack.c.bf16 %v3343, %v3343
  %v6673 = vpack.c.bf16 %v3344, %v3344
  %v6674 = vpack.c.bf16 %v3345, %v3345
  %v6675 = vpack.c.bf16 %v3346, %v3346
  %v6676 = vpack.c.bf16 %v3347, %v3347
  %v6677 = vpack.c.bf16 %v3348, %v3348
  %v6678 = vpack.c.bf16 %v3349, %v3349
  %v6679 = vpack.c.bf16 %v3350, %v3350
  %v6680 = vpack.c.bf16 %v3351, %v3351
  %v6681 = vpack.c.bf16 %v3352, %v3352
  %v6682 = vpack.c.bf16 %v3353, %v3353
  %v6683 = vpack.c.bf16 %v3354, %v3354
  %v6684 = vpack.c.bf16 %v3355, %v3355
  %v6685 = vpack.c.bf16 %v3356, %v3356
  %v6686 = vpack.c.bf16 %v3357, %v3357
  %v6687 = vpack.c.bf16 %v3358, %v3358
  %v6688 = vpack.c.bf16 %v3359, %v3359
  %v6689 = vpack.c.bf16 %v3360, %v3360
  %v6690 = vpack.c.bf16 %v3361, %v3361
  %v6691 = vpack.c.bf16 %v3362, %v3362
  %v6692 = vpack.c.bf16 %v3363, %v3363
  %v6693 = vpack.c.bf16 %v3364, %v3364
  %v6694 = vpack.c.bf16 %v3365, %v3365
  %v6695 = vpack.c.bf16 %v3366, %v3366
  %v6696 = vpack.c.bf16 %v3367, %v3367
  %v6697 = vpack.c.bf16 %v3368, %v3368
  %v6698 = vpack.c.bf16 %v3369, %v3369
  %v6731 = vunpack.c.l.b16 %v6667
  %v6732 = vunpack.c.l.b16 %v6668
  %v6733 = vunpack.c.l.b16 %v6669
  %v6734 = vunpack.c.l.b16 %v6670
  %v6735 = vunpack.c.l.b16 %v6671
  %v6736 = vunpack.c.l.b16 %v6672
  %v6737 = vunpack.c.l.b16 %v6673
  %v6738 = vunpack.c.l.b16 %v6674
  %v6739 = vunpack.c.l.b16 %v6675
  %v6740 = vunpack.c.l.b16 %v6676
  %v6741 = vunpack.c.l.b16 %v6677
  %v6742 = vunpack.c.l.b16 %v6678
  %v6743 = vunpack.c.l.b16 %v6679
  %v6744 = vunpack.c.l.b16 %v6680
  %v6745 = vunpack.c.l.b16 %v6681
  %v6746 = vunpack.c.l.b16 %v6682
  %v6747 = vunpack.c.l.b16 %v6683
  %v6748 = vunpack.c.l.b16 %v6684
  %v6749 = vunpack.c.l.b16 %v6685
  %v6750 = vunpack.c.l.b16 %v6686
  %v6751 = vunpack.c.l.b16 %v6687
  %v6752 = vunpack.c.l.b16 %v6688
  %v6753 = vunpack.c.l.b16 %v6689
  %v6754 = vunpack.c.l.b16 %v6690
  %v6755 = vunpack.c.l.b16 %v6691
  %v6756 = vunpack.c.l.b16 %v6692
  %v6757 = vunpack.c.l.b16 %v6693
  %v6758 = vunpack.c.l.b16 %v6694
  %v6759 = vunpack.c.l.b16 %v6695
  %v6760 = vunpack.c.l.b16 %v6696
  %v6761 = vunpack.c.l.b16 %v6697
  %v6762 = vunpack.c.l.b16 %v6698
  %v6763 = vpack.c.b16 %v6732, %v6731
  %v6764 = vpack.c.b16 %v6734, %v6733
  %v6765 = vpack.c.b16 %v6736, %v6735
  %v6766 = vpack.c.b16 %v6738, %v6737
  %v6767 = vpack.c.b16 %v6740, %v6739
  %v6768 = vpack.c.b16 %v6742, %v6741
  %v6769 = vpack.c.b16 %v6744, %v6743
  %v6770 = vpack.c.b16 %v6746, %v6745
  %v6771 = vpack.c.b16 %v6748, %v6747
  %v6772 = vpack.c.b16 %v6750, %v6749
  %v6773 = vpack.c.b16 %v6752, %v6751
  %v6774 = vpack.c.b16 %v6754, %v6753
  %v6775 = vpack.c.b16 %v6756, %v6755
  %v6776 = vpack.c.b16 %v6758, %v6757
  %v6777 = vpack.c.b16 %v6760, %v6759
  %v6778 = vpack.c.b16 %v6762, %v6761
  %v6779 = vunpack.c.l.b16 %v6763
  %v6780 = vunpack.c.h.b16 %v6763
  %v6781 = vunpack.c.l.b16 %v6764
  %v6782 = vunpack.c.h.b16 %v6764
  %v6783 = vunpack.c.l.b16 %v6765
  %v6784 = vunpack.c.h.b16 %v6765
  %v6785 = vunpack.c.l.b16 %v6766
  %v6786 = vunpack.c.h.b16 %v6766
  %v6787 = vunpack.c.l.b16 %v6767
  %v6788 = vunpack.c.h.b16 %v6767
  %v6789 = vunpack.c.l.b16 %v6768
  %v6790 = vunpack.c.h.b16 %v6768
  %v6791 = vunpack.c.l.b16 %v6769
  %v6792 = vunpack.c.h.b16 %v6769
  %v6793 = vunpack.c.l.b16 %v6770
  %v6794 = vunpack.c.h.b16 %v6770
  %v6795 = vunpack.c.l.b16 %v6771
  %v6796 = vunpack.c.h.b16 %v6771
  %v6797 = vunpack.c.l.b16 %v6772
  %v6798 = vunpack.c.h.b16 %v6772
  %v6799 = vunpack.c.l.b16 %v6773
  %v6800 = vunpack.c.h.b16 %v6773
  %v6801 = vunpack.c.l.b16 %v6774
  %v6802 = vunpack.c.h.b16 %v6774
  %v6803 = vunpack.c.l.b16 %v6775
  %v6804 = vunpack.c.h.b16 %v6775
  %v6805 = vunpack.c.l.b16 %v6776
  %v6806 = vunpack.c.h.b16 %v6776
  %v6807 = vunpack.c.l.b16 %v6777
  %v6808 = vunpack.c.h.b16 %v6777
  %v6809 = vunpack.c.l.b16 %v6778
  %v6810 = vunpack.c.h.b16 %v6778
  %v6811 = vsel %vm3770, %v6783, %v6779
  %v6812 = vsel %vm3772, %v6787, %v6811
  %v6813 = vsel %vm3774, %v6791, %v6812
  %v6814 = vsel %vm3776, %v6795, %v6813
  %v6815 = vsel %vm3778, %v6799, %v6814
  %v6816 = vsel %vm3780, %v6803, %v6815
  %v6817 = vsel %vm3782, %v6807, %v6816
  %v6818 = vsel %vm3770, %v6784, %v6780
  %v6819 = vsel %vm3772, %v6788, %v6818
  %v6820 = vsel %vm3774, %v6792, %v6819
  %v6821 = vsel %vm3776, %v6796, %v6820
  %v6822 = vsel %vm3778, %v6800, %v6821
  %v6823 = vsel %vm3780, %v6804, %v6822
  %v6824 = vsel %vm3782, %v6808, %v6823
  %v6825 = vsel %vm3770, %v6785, %v6781
  %v6826 = vsel %vm3772, %v6789, %v6825
  %v6827 = vsel %vm3774, %v6793, %v6826
  %v6828 = vsel %vm3776, %v6797, %v6827
  %v6829 = vsel %vm3778, %v6801, %v6828
  %v6830 = vsel %vm3780, %v6805, %v6829
  %v6831 = vsel %vm3782, %v6809, %v6830
  %v6832 = vsel %vm3770, %v6786, %v6782
  %v6833 = vsel %vm3772, %v6790, %v6832
  %v6834 = vsel %vm3774, %v6794, %v6833
  %v6835 = vsel %vm3776, %v6798, %v6834
  %v6836 = vsel %vm3778, %v6802, %v6835
  %v6837 = vsel %vm3780, %v6806, %v6836
  %v6838 = vsel %vm3782, %v6810, %v6837
  %v6839 = vpack.c.b16 %v6824, %v6817
  %v6840 = vpack.c.b16 %v6838, %v6831
  %6843 = vst [vmem:[%s6664 + $0x10] sm:$0xff] %v6839
  %6844 = vst [vmem:[%s6664 + $0x18] sm:$0xff] %v6840
  %v6845 = vpack.c.bf16 %v2129, %v2129
  %v6846 = vpack.c.bf16 %v2137, %v2137
  %v6847 = vpack.c.bf16 %v2145, %v2145
  %v6848 = vpack.c.bf16 %v2153, %v2153
  %v6849 = vpack.c.bf16 %v2161, %v2161
  %v6850 = vpack.c.bf16 %v2169, %v2169
  %v6851 = vpack.c.bf16 %v2177, %v2177
  %v6852 = vpack.c.bf16 %v2185, %v2185
  %v6853 = vpack.c.bf16 %v2193, %v2193
  %v6854 = vpack.c.bf16 %v2201, %v2201
  %v6855 = vpack.c.bf16 %v2209, %v2209
  %v6856 = vpack.c.bf16 %v2217, %v2217
  %v6857 = vpack.c.bf16 %v2225, %v2225
  %v6858 = vpack.c.bf16 %v2233, %v2233
  %v6859 = vpack.c.bf16 %v2241, %v2241
  %v6860 = vpack.c.bf16 %v2249, %v2249
  %v6861 = vpack.c.bf16 %v2257, %v2257
  %v6862 = vpack.c.bf16 %v2265, %v2265
  %v6863 = vpack.c.bf16 %v2273, %v2273
  %v6864 = vpack.c.bf16 %v2281, %v2281
  %v6865 = vpack.c.bf16 %v2289, %v2289
  %v6866 = vpack.c.bf16 %v2297, %v2297
  %v6867 = vpack.c.bf16 %v2305, %v2305
  %v6868 = vpack.c.bf16 %v2313, %v2313
  %v6869 = vpack.c.bf16 %v2321, %v2321
  %v6870 = vpack.c.bf16 %v2329, %v2329
  %v6871 = vpack.c.bf16 %v2337, %v2337
  %v6872 = vpack.c.bf16 %v2345, %v2345
  %v6873 = vpack.c.bf16 %v2353, %v2353
  %v6874 = vpack.c.bf16 %v2361, %v2361
  %v6875 = vpack.c.bf16 %v2369, %v2369
  %v6876 = vpack.c.bf16 %v2377, %v2377
  %v6909 = vunpack.c.l.b16 %v6845
  %v6910 = vunpack.c.l.b16 %v6846
  %v6911 = vunpack.c.l.b16 %v6847
  %v6912 = vunpack.c.l.b16 %v6848
  %v6913 = vunpack.c.l.b16 %v6849
  %v6914 = vunpack.c.l.b16 %v6850
  %v6915 = vunpack.c.l.b16 %v6851
  %v6916 = vunpack.c.l.b16 %v6852
  %v6917 = vunpack.c.l.b16 %v6853
  %v6918 = vunpack.c.l.b16 %v6854
  %v6919 = vunpack.c.l.b16 %v6855
  %v6920 = vunpack.c.l.b16 %v6856
  %v6921 = vunpack.c.l.b16 %v6857
  %v6922 = vunpack.c.l.b16 %v6858
  %v6923 = vunpack.c.l.b16 %v6859
  %v6924 = vunpack.c.l.b16 %v6860
  %v6925 = vunpack.c.l.b16 %v6861
  %v6926 = vunpack.c.l.b16 %v6862
  %v6927 = vunpack.c.l.b16 %v6863
  %v6928 = vunpack.c.l.b16 %v6864
  %v6929 = vunpack.c.l.b16 %v6865
  %v6930 = vunpack.c.l.b16 %v6866
  %v6931 = vunpack.c.l.b16 %v6867
  %v6932 = vunpack.c.l.b16 %v6868
  %v6933 = vunpack.c.l.b16 %v6869
  %v6934 = vunpack.c.l.b16 %v6870
  %v6935 = vunpack.c.l.b16 %v6871
  %v6936 = vunpack.c.l.b16 %v6872
  %v6937 = vunpack.c.l.b16 %v6873
  %v6938 = vunpack.c.l.b16 %v6874
  %v6939 = vunpack.c.l.b16 %v6875
  %v6940 = vunpack.c.l.b16 %v6876
  %v6941 = vpack.c.b16 %v6910, %v6909
  %v6942 = vpack.c.b16 %v6912, %v6911
  %v6943 = vpack.c.b16 %v6914, %v6913
  %v6944 = vpack.c.b16 %v6916, %v6915
  %v6945 = vpack.c.b16 %v6918, %v6917
  %v6946 = vpack.c.b16 %v6920, %v6919
  %v6947 = vpack.c.b16 %v6922, %v6921
  %v6948 = vpack.c.b16 %v6924, %v6923
  %v6949 = vpack.c.b16 %v6926, %v6925
  %v6950 = vpack.c.b16 %v6928, %v6927
  %v6951 = vpack.c.b16 %v6930, %v6929
  %v6952 = vpack.c.b16 %v6932, %v6931
  %v6953 = vpack.c.b16 %v6934, %v6933
  %v6954 = vpack.c.b16 %v6936, %v6935
  %v6955 = vpack.c.b16 %v6938, %v6937
  %v6956 = vpack.c.b16 %v6940, %v6939
  %v6957 = vunpack.c.l.b16 %v6941
  %v6958 = vunpack.c.h.b16 %v6941
  %v6959 = vunpack.c.l.b16 %v6942
  %v6960 = vunpack.c.h.b16 %v6942
  %v6961 = vunpack.c.l.b16 %v6943
  %v6962 = vunpack.c.h.b16 %v6943
  %v6963 = vunpack.c.l.b16 %v6944
  %v6964 = vunpack.c.h.b16 %v6944
  %v6965 = vunpack.c.l.b16 %v6945
  %v6966 = vunpack.c.h.b16 %v6945
  %v6967 = vunpack.c.l.b16 %v6946
  %v6968 = vunpack.c.h.b16 %v6946
  %v6969 = vunpack.c.l.b16 %v6947
  %v6970 = vunpack.c.h.b16 %v6947
  %v6971 = vunpack.c.l.b16 %v6948
  %v6972 = vunpack.c.h.b16 %v6948
  %v6973 = vunpack.c.l.b16 %v6949
  %v6974 = vunpack.c.h.b16 %v6949
  %v6975 = vunpack.c.l.b16 %v6950
  %v6976 = vunpack.c.h.b16 %v6950
  %v6977 = vunpack.c.l.b16 %v6951
  %v6978 = vunpack.c.h.b16 %v6951
  %v6979 = vunpack.c.l.b16 %v6952
  %v6980 = vunpack.c.h.b16 %v6952
  %v6981 = vunpack.c.l.b16 %v6953
  %v6982 = vunpack.c.h.b16 %v6953
  %v6983 = vunpack.c.l.b16 %v6954
  %v6984 = vunpack.c.h.b16 %v6954
  %v6985 = vunpack.c.l.b16 %v6955
  %v6986 = vunpack.c.h.b16 %v6955
  %v6987 = vunpack.c.l.b16 %v6956
  %v6988 = vunpack.c.h.b16 %v6956
  %v6989 = vsel %vm3770, %v6961, %v6957
  %v6990 = vsel %vm3772, %v6965, %v6989
  %v6991 = vsel %vm3774, %v6969, %v6990
  %v6992 = vsel %vm3776, %v6973, %v6991
  %v6993 = vsel %vm3778, %v6977, %v6992
  %v6994 = vsel %vm3780, %v6981, %v6993
  %v6995 = vsel %vm3782, %v6985, %v6994
  %v6996 = vsel %vm3770, %v6962, %v6958
  %v6997 = vsel %vm3772, %v6966, %v6996
  %v6998 = vsel %vm3774, %v6970, %v6997
  %v6999 = vsel %vm3776, %v6974, %v6998
  %v7000 = vsel %vm3778, %v6978, %v6999
  %v7001 = vsel %vm3780, %v6982, %v7000
  %v7002 = vsel %vm3782, %v6986, %v7001
  %v7003 = vsel %vm3770, %v6963, %v6959
  %v7004 = vsel %vm3772, %v6967, %v7003
  %v7005 = vsel %vm3774, %v6971, %v7004
  %v7006 = vsel %vm3776, %v6975, %v7005
  %v7007 = vsel %vm3778, %v6979, %v7006
  %v7008 = vsel %vm3780, %v6983, %v7007
  %v7009 = vsel %vm3782, %v6987, %v7008
  %v7010 = vsel %vm3770, %v6964, %v6960
  %v7011 = vsel %vm3772, %v6968, %v7010
  %v7012 = vsel %vm3774, %v6972, %v7011
  %v7013 = vsel %vm3776, %v6976, %v7012
  %v7014 = vsel %vm3778, %v6980, %v7013
  %v7015 = vsel %vm3780, %v6984, %v7014
  %v7016 = vsel %vm3782, %v6988, %v7015
  %v7017 = vpack.c.b16 %v7002, %v6995
  %v7018 = vpack.c.b16 %v7016, %v7009
  %s7021 = scalar_lea.vmem %s1, 288
  %7022 = vst [vmem:[%s7021] sm:$0xff] %v7017
  %7023 = vst [vmem:[%s7021 + $0x8] sm:$0xff] %v7018
  %v7024 = vpack.c.bf16 %v3402, %v3402
  %v7025 = vpack.c.bf16 %v3403, %v3403
  %v7026 = vpack.c.bf16 %v3404, %v3404
  %v7027 = vpack.c.bf16 %v3405, %v3405
  %v7028 = vpack.c.bf16 %v3406, %v3406
  %v7029 = vpack.c.bf16 %v3407, %v3407
  %v7030 = vpack.c.bf16 %v3408, %v3408
  %v7031 = vpack.c.bf16 %v3409, %v3409
  %v7032 = vpack.c.bf16 %v3410, %v3410
  %v7033 = vpack.c.bf16 %v3411, %v3411
  %v7034 = vpack.c.bf16 %v3412, %v3412
  %v7035 = vpack.c.bf16 %v3413, %v3413
  %v7036 = vpack.c.bf16 %v3414, %v3414
  %v7037 = vpack.c.bf16 %v3415, %v3415
  %v7038 = vpack.c.bf16 %v3416, %v3416
  %v7039 = vpack.c.bf16 %v3417, %v3417
  %v7040 = vpack.c.bf16 %v3418, %v3418
  %v7041 = vpack.c.bf16 %v3419, %v3419
  %v7042 = vpack.c.bf16 %v3420, %v3420
  %v7043 = vpack.c.bf16 %v3421, %v3421
  %v7044 = vpack.c.bf16 %v3422, %v3422
  %v7045 = vpack.c.bf16 %v3423, %v3423
  %v7046 = vpack.c.bf16 %v3424, %v3424
  %v7047 = vpack.c.bf16 %v3425, %v3425
  %v7048 = vpack.c.bf16 %v3426, %v3426
  %v7049 = vpack.c.bf16 %v3427, %v3427
  %v7050 = vpack.c.bf16 %v3428, %v3428
  %v7051 = vpack.c.bf16 %v3429, %v3429
  %v7052 = vpack.c.bf16 %v3430, %v3430
  %v7053 = vpack.c.bf16 %v3431, %v3431
  %v7054 = vpack.c.bf16 %v3432, %v3432
  %v7055 = vpack.c.bf16 %v3433, %v3433
  %v7088 = vunpack.c.l.b16 %v7024
  %v7089 = vunpack.c.l.b16 %v7025
  %v7090 = vunpack.c.l.b16 %v7026
  %v7091 = vunpack.c.l.b16 %v7027
  %v7092 = vunpack.c.l.b16 %v7028
  %v7093 = vunpack.c.l.b16 %v7029
  %v7094 = vunpack.c.l.b16 %v7030
  %v7095 = vunpack.c.l.b16 %v7031
  %v7096 = vunpack.c.l.b16 %v7032
  %v7097 = vunpack.c.l.b16 %v7033
  %v7098 = vunpack.c.l.b16 %v7034
  %v7099 = vunpack.c.l.b16 %v7035
  %v7100 = vunpack.c.l.b16 %v7036
  %v7101 = vunpack.c.l.b16 %v7037
  %v7102 = vunpack.c.l.b16 %v7038
  %v7103 = vunpack.c.l.b16 %v7039
  %v7104 = vunpack.c.l.b16 %v7040
  %v7105 = vunpack.c.l.b16 %v7041
  %v7106 = vunpack.c.l.b16 %v7042
  %v7107 = vunpack.c.l.b16 %v7043
  %v7108 = vunpack.c.l.b16 %v7044
  %v7109 = vunpack.c.l.b16 %v7045
  %v7110 = vunpack.c.l.b16 %v7046
  %v7111 = vunpack.c.l.b16 %v7047
  %v7112 = vunpack.c.l.b16 %v7048
  %v7113 = vunpack.c.l.b16 %v7049
  %v7114 = vunpack.c.l.b16 %v7050
  %v7115 = vunpack.c.l.b16 %v7051
  %v7116 = vunpack.c.l.b16 %v7052
  %v7117 = vunpack.c.l.b16 %v7053
  %v7118 = vunpack.c.l.b16 %v7054
  %v7119 = vunpack.c.l.b16 %v7055
  %v7120 = vpack.c.b16 %v7089, %v7088
  %v7121 = vpack.c.b16 %v7091, %v7090
  %v7122 = vpack.c.b16 %v7093, %v7092
  %v7123 = vpack.c.b16 %v7095, %v7094
  %v7124 = vpack.c.b16 %v7097, %v7096
  %v7125 = vpack.c.b16 %v7099, %v7098
  %v7126 = vpack.c.b16 %v7101, %v7100
  %v7127 = vpack.c.b16 %v7103, %v7102
  %v7128 = vpack.c.b16 %v7105, %v7104
  %v7129 = vpack.c.b16 %v7107, %v7106
  %v7130 = vpack.c.b16 %v7109, %v7108
  %v7131 = vpack.c.b16 %v7111, %v7110
  %v7132 = vpack.c.b16 %v7113, %v7112
  %v7133 = vpack.c.b16 %v7115, %v7114
  %v7134 = vpack.c.b16 %v7117, %v7116
  %v7135 = vpack.c.b16 %v7119, %v7118
  %v7136 = vunpack.c.l.b16 %v7120
  %v7137 = vunpack.c.h.b16 %v7120
  %v7138 = vunpack.c.l.b16 %v7121
  %v7139 = vunpack.c.h.b16 %v7121
  %v7140 = vunpack.c.l.b16 %v7122
  %v7141 = vunpack.c.h.b16 %v7122
  %v7142 = vunpack.c.l.b16 %v7123
  %v7143 = vunpack.c.h.b16 %v7123
  %v7144 = vunpack.c.l.b16 %v7124
  %v7145 = vunpack.c.h.b16 %v7124
  %v7146 = vunpack.c.l.b16 %v7125
  %v7147 = vunpack.c.h.b16 %v7125
  %v7148 = vunpack.c.l.b16 %v7126
  %v7149 = vunpack.c.h.b16 %v7126
  %v7150 = vunpack.c.l.b16 %v7127
  %v7151 = vunpack.c.h.b16 %v7127
  %v7152 = vunpack.c.l.b16 %v7128
  %v7153 = vunpack.c.h.b16 %v7128
  %v7154 = vunpack.c.l.b16 %v7129
  %v7155 = vunpack.c.h.b16 %v7129
  %v7156 = vunpack.c.l.b16 %v7130
  %v7157 = vunpack.c.h.b16 %v7130
  %v7158 = vunpack.c.l.b16 %v7131
  %v7159 = vunpack.c.h.b16 %v7131
  %v7160 = vunpack.c.l.b16 %v7132
  %v7161 = vunpack.c.h.b16 %v7132
  %v7162 = vunpack.c.l.b16 %v7133
  %v7163 = vunpack.c.h.b16 %v7133
  %v7164 = vunpack.c.l.b16 %v7134
  %v7165 = vunpack.c.h.b16 %v7134
  %v7166 = vunpack.c.l.b16 %v7135
  %v7167 = vunpack.c.h.b16 %v7135
  %v7168 = vsel %vm3770, %v7140, %v7136
  %v7169 = vsel %vm3772, %v7144, %v7168
  %v7170 = vsel %vm3774, %v7148, %v7169
  %v7171 = vsel %vm3776, %v7152, %v7170
  %v7172 = vsel %vm3778, %v7156, %v7171
  %v7173 = vsel %vm3780, %v7160, %v7172
  %v7174 = vsel %vm3782, %v7164, %v7173
  %v7175 = vsel %vm3770, %v7141, %v7137
  %v7176 = vsel %vm3772, %v7145, %v7175
  %v7177 = vsel %vm3774, %v7149, %v7176
  %v7178 = vsel %vm3776, %v7153, %v7177
  %v7179 = vsel %vm3778, %v7157, %v7178
  %v7180 = vsel %vm3780, %v7161, %v7179
  %v7181 = vsel %vm3782, %v7165, %v7180
  %v7182 = vsel %vm3770, %v7142, %v7138
  %v7183 = vsel %vm3772, %v7146, %v7182
  %v7184 = vsel %vm3774, %v7150, %v7183
  %v7185 = vsel %vm3776, %v7154, %v7184
  %v7186 = vsel %vm3778, %v7158, %v7185
  %v7187 = vsel %vm3780, %v7162, %v7186
  %v7188 = vsel %vm3782, %v7166, %v7187
  %v7189 = vsel %vm3770, %v7143, %v7139
  %v7190 = vsel %vm3772, %v7147, %v7189
  %v7191 = vsel %vm3774, %v7151, %v7190
  %v7192 = vsel %vm3776, %v7155, %v7191
  %v7193 = vsel %vm3778, %v7159, %v7192
  %v7194 = vsel %vm3780, %v7163, %v7193
  %v7195 = vsel %vm3782, %v7167, %v7194
  %v7196 = vpack.c.b16 %v7181, %v7174
  %v7197 = vpack.c.b16 %v7195, %v7188
  %7200 = vst [vmem:[%s7021 + $0x10] sm:$0xff] %v7196
  %7201 = vst [vmem:[%s7021 + $0x18] sm:$0xff] %v7197
  %v7202 = vpack.c.bf16 %v2410, %v2410
  %v7203 = vpack.c.bf16 %v2411, %v2411
  %v7204 = vpack.c.bf16 %v2412, %v2412
  %v7205 = vpack.c.bf16 %v2413, %v2413
  %v7206 = vpack.c.bf16 %v2414, %v2414
  %v7207 = vpack.c.bf16 %v2415, %v2415
  %v7208 = vpack.c.bf16 %v2416, %v2416
  %v7209 = vpack.c.bf16 %v2417, %v2417
  %v7210 = vpack.c.bf16 %v2418, %v2418
  %v7211 = vpack.c.bf16 %v2419, %v2419
  %v7212 = vpack.c.bf16 %v2420, %v2420
  %v7213 = vpack.c.bf16 %v2421, %v2421
  %v7214 = vpack.c.bf16 %v2422, %v2422
  %v7215 = vpack.c.bf16 %v2423, %v2423
  %v7216 = vpack.c.bf16 %v2424, %v2424
  %v7217 = vpack.c.bf16 %v2425, %v2425
  %v7218 = vpack.c.bf16 %v2426, %v2426
  %v7219 = vpack.c.bf16 %v2427, %v2427
  %v7220 = vpack.c.bf16 %v2428, %v2428
  %v7221 = vpack.c.bf16 %v2429, %v2429
  %v7222 = vpack.c.bf16 %v2430, %v2430
  %v7223 = vpack.c.bf16 %v2431, %v2431
  %v7224 = vpack.c.bf16 %v2432, %v2432
  %v7225 = vpack.c.bf16 %v2433, %v2433
  %v7226 = vpack.c.bf16 %v2434, %v2434
  %v7227 = vpack.c.bf16 %v2435, %v2435
  %v7228 = vpack.c.bf16 %v2436, %v2436
  %v7229 = vpack.c.bf16 %v2437, %v2437
  %v7230 = vpack.c.bf16 %v2438, %v2438
  %v7231 = vpack.c.bf16 %v2439, %v2439
  %v7232 = vpack.c.bf16 %v2440, %v2440
  %v7233 = vpack.c.bf16 %v2441, %v2441
  %v7266 = vunpack.c.l.b16 %v7202
  %v7267 = vunpack.c.l.b16 %v7203
  %v7268 = vunpack.c.l.b16 %v7204
  %v7269 = vunpack.c.l.b16 %v7205
  %v7270 = vunpack.c.l.b16 %v7206
  %v7271 = vunpack.c.l.b16 %v7207
  %v7272 = vunpack.c.l.b16 %v7208
  %v7273 = vunpack.c.l.b16 %v7209
  %v7274 = vunpack.c.l.b16 %v7210
  %v7275 = vunpack.c.l.b16 %v7211
  %v7276 = vunpack.c.l.b16 %v7212
  %v7277 = vunpack.c.l.b16 %v7213
  %v7278 = vunpack.c.l.b16 %v7214
  %v7279 = vunpack.c.l.b16 %v7215
  %v7280 = vunpack.c.l.b16 %v7216
  %v7281 = vunpack.c.l.b16 %v7217
  %v7282 = vunpack.c.l.b16 %v7218
  %v7283 = vunpack.c.l.b16 %v7219
  %v7284 = vunpack.c.l.b16 %v7220
  %v7285 = vunpack.c.l.b16 %v7221
  %v7286 = vunpack.c.l.b16 %v7222
  %v7287 = vunpack.c.l.b16 %v7223
  %v7288 = vunpack.c.l.b16 %v7224
  %v7289 = vunpack.c.l.b16 %v7225
  %v7290 = vunpack.c.l.b16 %v7226
  %v7291 = vunpack.c.l.b16 %v7227
  %v7292 = vunpack.c.l.b16 %v7228
  %v7293 = vunpack.c.l.b16 %v7229
  %v7294 = vunpack.c.l.b16 %v7230
  %v7295 = vunpack.c.l.b16 %v7231
  %v7296 = vunpack.c.l.b16 %v7232
  %v7297 = vunpack.c.l.b16 %v7233
  %v7298 = vpack.c.b16 %v7267, %v7266
  %v7299 = vpack.c.b16 %v7269, %v7268
  %v7300 = vpack.c.b16 %v7271, %v7270
  %v7301 = vpack.c.b16 %v7273, %v7272
  %v7302 = vpack.c.b16 %v7275, %v7274
  %v7303 = vpack.c.b16 %v7277, %v7276
  %v7304 = vpack.c.b16 %v7279, %v7278
  %v7305 = vpack.c.b16 %v7281, %v7280
  %v7306 = vpack.c.b16 %v7283, %v7282
  %v7307 = vpack.c.b16 %v7285, %v7284
  %v7308 = vpack.c.b16 %v7287, %v7286
  %v7309 = vpack.c.b16 %v7289, %v7288
  %v7310 = vpack.c.b16 %v7291, %v7290
  %v7311 = vpack.c.b16 %v7293, %v7292
  %v7312 = vpack.c.b16 %v7295, %v7294
  %v7313 = vpack.c.b16 %v7297, %v7296
  %v7314 = vunpack.c.l.b16 %v7298
  %v7315 = vunpack.c.h.b16 %v7298
  %v7316 = vunpack.c.l.b16 %v7299
  %v7317 = vunpack.c.h.b16 %v7299
  %v7318 = vunpack.c.l.b16 %v7300
  %v7319 = vunpack.c.h.b16 %v7300
  %v7320 = vunpack.c.l.b16 %v7301
  %v7321 = vunpack.c.h.b16 %v7301
  %v7322 = vunpack.c.l.b16 %v7302
  %v7323 = vunpack.c.h.b16 %v7302
  %v7324 = vunpack.c.l.b16 %v7303
  %v7325 = vunpack.c.h.b16 %v7303
  %v7326 = vunpack.c.l.b16 %v7304
  %v7327 = vunpack.c.h.b16 %v7304
  %v7328 = vunpack.c.l.b16 %v7305
  %v7329 = vunpack.c.h.b16 %v7305
  %v7330 = vunpack.c.l.b16 %v7306
  %v7331 = vunpack.c.h.b16 %v7306
  %v7332 = vunpack.c.l.b16 %v7307
  %v7333 = vunpack.c.h.b16 %v7307
  %v7334 = vunpack.c.l.b16 %v7308
  %v7335 = vunpack.c.h.b16 %v7308
  %v7336 = vunpack.c.l.b16 %v7309
  %v7337 = vunpack.c.h.b16 %v7309
  %v7338 = vunpack.c.l.b16 %v7310
  %v7339 = vunpack.c.h.b16 %v7310
  %v7340 = vunpack.c.l.b16 %v7311
  %v7341 = vunpack.c.h.b16 %v7311
  %v7342 = vunpack.c.l.b16 %v7312
  %v7343 = vunpack.c.h.b16 %v7312
  %v7344 = vunpack.c.l.b16 %v7313
  %v7345 = vunpack.c.h.b16 %v7313
  %v7346 = vsel %vm3770, %v7318, %v7314
  %v7347 = vsel %vm3772, %v7322, %v7346
  %v7348 = vsel %vm3774, %v7326, %v7347
  %v7349 = vsel %vm3776, %v7330, %v7348
  %v7350 = vsel %vm3778, %v7334, %v7349
  %v7351 = vsel %vm3780, %v7338, %v7350
  %v7352 = vsel %vm3782, %v7342, %v7351
  %v7353 = vsel %vm3770, %v7319, %v7315
  %v7354 = vsel %vm3772, %v7323, %v7353
  %v7355 = vsel %vm3774, %v7327, %v7354
  %v7356 = vsel %vm3776, %v7331, %v7355
  %v7357 = vsel %vm3778, %v7335, %v7356
  %v7358 = vsel %vm3780, %v7339, %v7357
  %v7359 = vsel %vm3782, %v7343, %v7358
  %v7360 = vsel %vm3770, %v7320, %v7316
  %v7361 = vsel %vm3772, %v7324, %v7360
  %v7362 = vsel %vm3774, %v7328, %v7361
  %v7363 = vsel %vm3776, %v7332, %v7362
  %v7364 = vsel %vm3778, %v7336, %v7363
  %v7365 = vsel %vm3780, %v7340, %v7364
  %v7366 = vsel %vm3782, %v7344, %v7365
  %v7367 = vsel %vm3770, %v7321, %v7317
  %v7368 = vsel %vm3772, %v7325, %v7367
  %v7369 = vsel %vm3774, %v7329, %v7368
  %v7370 = vsel %vm3776, %v7333, %v7369
  %v7371 = vsel %vm3778, %v7337, %v7370
  %v7372 = vsel %vm3780, %v7341, %v7371
  %v7373 = vsel %vm3782, %v7345, %v7372
  %v7374 = vpack.c.b16 %v7359, %v7352
  %v7375 = vpack.c.b16 %v7373, %v7366
  %s7378 = scalar_lea.vmem %s1, 320
  %7379 = vst [vmem:[%s7378] sm:$0xff] %v7374
  %7380 = vst [vmem:[%s7378 + $0x8] sm:$0xff] %v7375
  %v7381 = vpack.c.bf16 %v2474, %v2474
  %v7382 = vpack.c.bf16 %v2475, %v2475
  %v7383 = vpack.c.bf16 %v2476, %v2476
  %v7384 = vpack.c.bf16 %v2477, %v2477
  %v7385 = vpack.c.bf16 %v2478, %v2478
  %v7386 = vpack.c.bf16 %v2479, %v2479
  %v7387 = vpack.c.bf16 %v2480, %v2480
  %v7388 = vpack.c.bf16 %v2481, %v2481
  %v7389 = vpack.c.bf16 %v2482, %v2482
  %v7390 = vpack.c.bf16 %v2483, %v2483
  %v7391 = vpack.c.bf16 %v2484, %v2484
  %v7392 = vpack.c.bf16 %v2485, %v2485
  %v7393 = vpack.c.bf16 %v2486, %v2486
  %v7394 = vpack.c.bf16 %v2487, %v2487
  %v7395 = vpack.c.bf16 %v2488, %v2488
  %v7396 = vpack.c.bf16 %v2489, %v2489
  %v7397 = vpack.c.bf16 %v2490, %v2490
  %v7398 = vpack.c.bf16 %v2491, %v2491
  %v7399 = vpack.c.bf16 %v2492, %v2492
  %v7400 = vpack.c.bf16 %v2493, %v2493
  %v7401 = vpack.c.bf16 %v2494, %v2494
  %v7402 = vpack.c.bf16 %v2495, %v2495
  %v7403 = vpack.c.bf16 %v2496, %v2496
  %v7404 = vpack.c.bf16 %v2497, %v2497
  %v7405 = vpack.c.bf16 %v2498, %v2498
  %v7406 = vpack.c.bf16 %v2499, %v2499
  %v7407 = vpack.c.bf16 %v2500, %v2500
  %v7408 = vpack.c.bf16 %v2501, %v2501
  %v7409 = vpack.c.bf16 %v2502, %v2502
  %v7410 = vpack.c.bf16 %v2503, %v2503
  %v7411 = vpack.c.bf16 %v2504, %v2504
  %v7412 = vpack.c.bf16 %v2505, %v2505
  %v7445 = vunpack.c.l.b16 %v7381
  %v7446 = vunpack.c.l.b16 %v7382
  %v7447 = vunpack.c.l.b16 %v7383
  %v7448 = vunpack.c.l.b16 %v7384
  %v7449 = vunpack.c.l.b16 %v7385
  %v7450 = vunpack.c.l.b16 %v7386
  %v7451 = vunpack.c.l.b16 %v7387
  %v7452 = vunpack.c.l.b16 %v7388
  %v7453 = vunpack.c.l.b16 %v7389
  %v7454 = vunpack.c.l.b16 %v7390
  %v7455 = vunpack.c.l.b16 %v7391
  %v7456 = vunpack.c.l.b16 %v7392
  %v7457 = vunpack.c.l.b16 %v7393
  %v7458 = vunpack.c.l.b16 %v7394
  %v7459 = vunpack.c.l.b16 %v7395
  %v7460 = vunpack.c.l.b16 %v7396
  %v7461 = vunpack.c.l.b16 %v7397
  %v7462 = vunpack.c.l.b16 %v7398
  %v7463 = vunpack.c.l.b16 %v7399
  %v7464 = vunpack.c.l.b16 %v7400
  %v7465 = vunpack.c.l.b16 %v7401
  %v7466 = vunpack.c.l.b16 %v7402
  %v7467 = vunpack.c.l.b16 %v7403
  %v7468 = vunpack.c.l.b16 %v7404
  %v7469 = vunpack.c.l.b16 %v7405
  %v7470 = vunpack.c.l.b16 %v7406
  %v7471 = vunpack.c.l.b16 %v7407
  %v7472 = vunpack.c.l.b16 %v7408
  %v7473 = vunpack.c.l.b16 %v7409
  %v7474 = vunpack.c.l.b16 %v7410
  %v7475 = vunpack.c.l.b16 %v7411
  %v7476 = vunpack.c.l.b16 %v7412
  %v7477 = vpack.c.b16 %v7446, %v7445
  %v7478 = vpack.c.b16 %v7448, %v7447
  %v7479 = vpack.c.b16 %v7450, %v7449
  %v7480 = vpack.c.b16 %v7452, %v7451
  %v7481 = vpack.c.b16 %v7454, %v7453
  %v7482 = vpack.c.b16 %v7456, %v7455
  %v7483 = vpack.c.b16 %v7458, %v7457
  %v7484 = vpack.c.b16 %v7460, %v7459
  %v7485 = vpack.c.b16 %v7462, %v7461
  %v7486 = vpack.c.b16 %v7464, %v7463
  %v7487 = vpack.c.b16 %v7466, %v7465
  %v7488 = vpack.c.b16 %v7468, %v7467
  %v7489 = vpack.c.b16 %v7470, %v7469
  %v7490 = vpack.c.b16 %v7472, %v7471
  %v7491 = vpack.c.b16 %v7474, %v7473
  %v7492 = vpack.c.b16 %v7476, %v7475
  %v7493 = vunpack.c.l.b16 %v7477
  %v7494 = vunpack.c.h.b16 %v7477
  %v7495 = vunpack.c.l.b16 %v7478
  %v7496 = vunpack.c.h.b16 %v7478
  %v7497 = vunpack.c.l.b16 %v7479
  %v7498 = vunpack.c.h.b16 %v7479
  %v7499 = vunpack.c.l.b16 %v7480
  %v7500 = vunpack.c.h.b16 %v7480
  %v7501 = vunpack.c.l.b16 %v7481
  %v7502 = vunpack.c.h.b16 %v7481
  %v7503 = vunpack.c.l.b16 %v7482
  %v7504 = vunpack.c.h.b16 %v7482
  %v7505 = vunpack.c.l.b16 %v7483
  %v7506 = vunpack.c.h.b16 %v7483
  %v7507 = vunpack.c.l.b16 %v7484
  %v7508 = vunpack.c.h.b16 %v7484
  %v7509 = vunpack.c.l.b16 %v7485
  %v7510 = vunpack.c.h.b16 %v7485
  %v7511 = vunpack.c.l.b16 %v7486
  %v7512 = vunpack.c.h.b16 %v7486
  %v7513 = vunpack.c.l.b16 %v7487
  %v7514 = vunpack.c.h.b16 %v7487
  %v7515 = vunpack.c.l.b16 %v7488
  %v7516 = vunpack.c.h.b16 %v7488
  %v7517 = vunpack.c.l.b16 %v7489
  %v7518 = vunpack.c.h.b16 %v7489
  %v7519 = vunpack.c.l.b16 %v7490
  %v7520 = vunpack.c.h.b16 %v7490
  %v7521 = vunpack.c.l.b16 %v7491
  %v7522 = vunpack.c.h.b16 %v7491
  %v7523 = vunpack.c.l.b16 %v7492
  %v7524 = vunpack.c.h.b16 %v7492
  %v7525 = vsel %vm3770, %v7497, %v7493
  %v7526 = vsel %vm3772, %v7501, %v7525
  %v7527 = vsel %vm3774, %v7505, %v7526
  %v7528 = vsel %vm3776, %v7509, %v7527
  %v7529 = vsel %vm3778, %v7513, %v7528
  %v7530 = vsel %vm3780, %v7517, %v7529
  %v7531 = vsel %vm3782, %v7521, %v7530
  %v7532 = vsel %vm3770, %v7498, %v7494
  %v7533 = vsel %vm3772, %v7502, %v7532
  %v7534 = vsel %vm3774, %v7506, %v7533
  %v7535 = vsel %vm3776, %v7510, %v7534
  %v7536 = vsel %vm3778, %v7514, %v7535
  %v7537 = vsel %vm3780, %v7518, %v7536
  %v7538 = vsel %vm3782, %v7522, %v7537
  %v7539 = vsel %vm3770, %v7499, %v7495
  %v7540 = vsel %vm3772, %v7503, %v7539
  %v7541 = vsel %vm3774, %v7507, %v7540
  %v7542 = vsel %vm3776, %v7511, %v7541
  %v7543 = vsel %vm3778, %v7515, %v7542
  %v7544 = vsel %vm3780, %v7519, %v7543
  %v7545 = vsel %vm3782, %v7523, %v7544
  %v7546 = vsel %vm3770, %v7500, %v7496
  %v7547 = vsel %vm3772, %v7504, %v7546
  %v7548 = vsel %vm3774, %v7508, %v7547
  %v7549 = vsel %vm3776, %v7512, %v7548
  %v7550 = vsel %vm3778, %v7516, %v7549
  %v7551 = vsel %vm3780, %v7520, %v7550
  %v7552 = vsel %vm3782, %v7524, %v7551
  %v7553 = vpack.c.b16 %v7538, %v7531
  %v7554 = vpack.c.b16 %v7552, %v7545
  %7557 = vst [vmem:[%s7378 + $0x10] sm:$0xff] %v7553
  %7558 = vst [vmem:[%s7378 + $0x18] sm:$0xff] %v7554
  %s7559 = scalar_lea.vmem %s1, 352
  %7560 = vst [vmem:[%s7559] sm:$0xff] %v7553
  %7561 = vst [vmem:[%s7559 + $0x8] sm:$0xff] %v7554
  %7562 = vst [vmem:[%s7559 + $0x10] sm:$0xff] %v7374
  %7563 = vst [vmem:[%s7559 + $0x18] sm:$0xff] %v7375
  %v7564 = vpack.c.bf16 %v2506, %v2506
  %v7565 = vpack.c.bf16 %v2507, %v2507
  %v7566 = vpack.c.bf16 %v2508, %v2508
  %v7567 = vpack.c.bf16 %v2509, %v2509
  %v7568 = vpack.c.bf16 %v2510, %v2510
  %v7569 = vpack.c.bf16 %v2511, %v2511
  %v7570 = vpack.c.bf16 %v2512, %v2512
  %v7571 = vpack.c.bf16 %v2513, %v2513
  %v7572 = vpack.c.bf16 %v2514, %v2514
  %v7573 = vpack.c.bf16 %v2515, %v2515
  %v7574 = vpack.c.bf16 %v2516, %v2516
  %v7575 = vpack.c.bf16 %v2517, %v2517
  %v7576 = vpack.c.bf16 %v2518, %v2518
  %v7577 = vpack.c.bf16 %v2519, %v2519
  %v7578 = vpack.c.bf16 %v2520, %v2520
  %v7579 = vpack.c.bf16 %v2521, %v2521
  %v7580 = vpack.c.bf16 %v2522, %v2522
  %v7581 = vpack.c.bf16 %v2523, %v2523
  %v7582 = vpack.c.bf16 %v2524, %v2524
  %v7583 = vpack.c.bf16 %v2525, %v2525
  %v7584 = vpack.c.bf16 %v2526, %v2526
  %v7585 = vpack.c.bf16 %v2527, %v2527
  %v7586 = vpack.c.bf16 %v2528, %v2528
  %v7587 = vpack.c.bf16 %v2529, %v2529
  %v7588 = vpack.c.bf16 %v2530, %v2530
  %v7589 = vpack.c.bf16 %v2531, %v2531
  %v7590 = vpack.c.bf16 %v2532, %v2532
  %v7591 = vpack.c.bf16 %v2533, %v2533
  %v7592 = vpack.c.bf16 %v2534, %v2534
  %v7593 = vpack.c.bf16 %v2535, %v2535
  %v7594 = vpack.c.bf16 %v2536, %v2536
  %v7595 = vpack.c.bf16 %v2537, %v2537
  %v7628 = vunpack.c.l.b16 %v7564
  %v7629 = vunpack.c.l.b16 %v7565
  %v7630 = vunpack.c.l.b16 %v7566
  %v7631 = vunpack.c.l.b16 %v7567
  %v7632 = vunpack.c.l.b16 %v7568
  %v7633 = vunpack.c.l.b16 %v7569
  %v7634 = vunpack.c.l.b16 %v7570
  %v7635 = vunpack.c.l.b16 %v7571
  %v7636 = vunpack.c.l.b16 %v7572
  %v7637 = vunpack.c.l.b16 %v7573
  %v7638 = vunpack.c.l.b16 %v7574
  %v7639 = vunpack.c.l.b16 %v7575
  %v7640 = vunpack.c.l.b16 %v7576
  %v7641 = vunpack.c.l.b16 %v7577
  %v7642 = vunpack.c.l.b16 %v7578
  %v7643 = vunpack.c.l.b16 %v7579
  %v7644 = vunpack.c.l.b16 %v7580
  %v7645 = vunpack.c.l.b16 %v7581
  %v7646 = vunpack.c.l.b16 %v7582
  %v7647 = vunpack.c.l.b16 %v7583
  %v7648 = vunpack.c.l.b16 %v7584
  %v7649 = vunpack.c.l.b16 %v7585
  %v7650 = vunpack.c.l.b16 %v7586
  %v7651 = vunpack.c.l.b16 %v7587
  %v7652 = vunpack.c.l.b16 %v7588
  %v7653 = vunpack.c.l.b16 %v7589
  %v7654 = vunpack.c.l.b16 %v7590
  %v7655 = vunpack.c.l.b16 %v7591
  %v7656 = vunpack.c.l.b16 %v7592
  %v7657 = vunpack.c.l.b16 %v7593
  %v7658 = vunpack.c.l.b16 %v7594
  %v7659 = vunpack.c.l.b16 %v7595
  %v7660 = vpack.c.b16 %v7629, %v7628
  %v7661 = vpack.c.b16 %v7631, %v7630
  %v7662 = vpack.c.b16 %v7633, %v7632
  %v7663 = vpack.c.b16 %v7635, %v7634
  %v7664 = vpack.c.b16 %v7637, %v7636
  %v7665 = vpack.c.b16 %v7639, %v7638
  %v7666 = vpack.c.b16 %v7641, %v7640
  %v7667 = vpack.c.b16 %v7643, %v7642
  %v7668 = vpack.c.b16 %v7645, %v7644
  %v7669 = vpack.c.b16 %v7647, %v7646
  %v7670 = vpack.c.b16 %v7649, %v7648
  %v7671 = vpack.c.b16 %v7651, %v7650
  %v7672 = vpack.c.b16 %v7653, %v7652
  %v7673 = vpack.c.b16 %v7655, %v7654
  %v7674 = vpack.c.b16 %v7657, %v7656
  %v7675 = vpack.c.b16 %v7659, %v7658
  %v7676 = vunpack.c.l.b16 %v7660
  %v7677 = vunpack.c.h.b16 %v7660
  %v7678 = vunpack.c.l.b16 %v7661
  %v7679 = vunpack.c.h.b16 %v7661
  %v7680 = vunpack.c.l.b16 %v7662
  %v7681 = vunpack.c.h.b16 %v7662
  %v7682 = vunpack.c.l.b16 %v7663
  %v7683 = vunpack.c.h.b16 %v7663
  %v7684 = vunpack.c.l.b16 %v7664
  %v7685 = vunpack.c.h.b16 %v7664
  %v7686 = vunpack.c.l.b16 %v7665
  %v7687 = vunpack.c.h.b16 %v7665
  %v7688 = vunpack.c.l.b16 %v7666
  %v7689 = vunpack.c.h.b16 %v7666
  %v7690 = vunpack.c.l.b16 %v7667
  %v7691 = vunpack.c.h.b16 %v7667
  %v7692 = vunpack.c.l.b16 %v7668
  %v7693 = vunpack.c.h.b16 %v7668
  %v7694 = vunpack.c.l.b16 %v7669
  %v7695 = vunpack.c.h.b16 %v7669
  %v7696 = vunpack.c.l.b16 %v7670
  %v7697 = vunpack.c.h.b16 %v7670
  %v7698 = vunpack.c.l.b16 %v7671
  %v7699 = vunpack.c.h.b16 %v7671
  %v7700 = vunpack.c.l.b16 %v7672
  %v7701 = vunpack.c.h.b16 %v7672
  %v7702 = vunpack.c.l.b16 %v7673
  %v7703 = vunpack.c.h.b16 %v7673
  %v7704 = vunpack.c.l.b16 %v7674
  %v7705 = vunpack.c.h.b16 %v7674
  %v7706 = vunpack.c.l.b16 %v7675
  %v7707 = vunpack.c.h.b16 %v7675
  %v7708 = vsel %vm3770, %v7680, %v7676
  %v7709 = vsel %vm3772, %v7684, %v7708
  %v7710 = vsel %vm3774, %v7688, %v7709
  %v7711 = vsel %vm3776, %v7692, %v7710
  %v7712 = vsel %vm3778, %v7696, %v7711
  %v7713 = vsel %vm3780, %v7700, %v7712
  %v7714 = vsel %vm3782, %v7704, %v7713
  %v7715 = vsel %vm3770, %v7681, %v7677
  %v7716 = vsel %vm3772, %v7685, %v7715
  %v7717 = vsel %vm3774, %v7689, %v7716
  %v7718 = vsel %vm3776, %v7693, %v7717
  %v7719 = vsel %vm3778, %v7697, %v7718
  %v7720 = vsel %vm3780, %v7701, %v7719
  %v7721 = vsel %vm3782, %v7705, %v7720
  %v7722 = vsel %vm3770, %v7682, %v7678
  %v7723 = vsel %vm3772, %v7686, %v7722
  %v7724 = vsel %vm3774, %v7690, %v7723
  %v7725 = vsel %vm3776, %v7694, %v7724
  %v7726 = vsel %vm3778, %v7698, %v7725
  %v7727 = vsel %vm3780, %v7702, %v7726
  %v7728 = vsel %vm3782, %v7706, %v7727
  %v7729 = vsel %vm3770, %v7683, %v7679
  %v7730 = vsel %vm3772, %v7687, %v7729
  %v7731 = vsel %vm3774, %v7691, %v7730
  %v7732 = vsel %vm3776, %v7695, %v7731
  %v7733 = vsel %vm3778, %v7699, %v7732
  %v7734 = vsel %vm3780, %v7703, %v7733
  %v7735 = vsel %vm3782, %v7707, %v7734
  %v7736 = vpack.c.b16 %v7721, %v7714
  %v7737 = vpack.c.b16 %v7735, %v7728
  %s7740 = scalar_lea.vmem %s1, 384
  %7741 = vst [vmem:[%s7740] sm:$0xff] %v7736
  %7742 = vst [vmem:[%s7740 + $0x8] sm:$0xff] %v7737
  %v7743 = vpack.c.bf16 %v3466, %v3466
  %v7744 = vpack.c.bf16 %v3467, %v3467
  %v7745 = vpack.c.bf16 %v3468, %v3468
  %v7746 = vpack.c.bf16 %v3469, %v3469
  %v7747 = vpack.c.bf16 %v3470, %v3470
  %v7748 = vpack.c.bf16 %v3471, %v3471
  %v7749 = vpack.c.bf16 %v3472, %v3472
  %v7750 = vpack.c.bf16 %v3473, %v3473
  %v7751 = vpack.c.bf16 %v3474, %v3474
  %v7752 = vpack.c.bf16 %v3475, %v3475
  %v7753 = vpack.c.bf16 %v3476, %v3476
  %v7754 = vpack.c.bf16 %v3477, %v3477
  %v7755 = vpack.c.bf16 %v3478, %v3478
  %v7756 = vpack.c.bf16 %v3479, %v3479
  %v7757 = vpack.c.bf16 %v3480, %v3480
  %v7758 = vpack.c.bf16 %v3481, %v3481
  %v7759 = vpack.c.bf16 %v3482, %v3482
  %v7760 = vpack.c.bf16 %v3483, %v3483
  %v7761 = vpack.c.bf16 %v3484, %v3484
  %v7762 = vpack.c.bf16 %v3485, %v3485
  %v7763 = vpack.c.bf16 %v3486, %v3486
  %v7764 = vpack.c.bf16 %v3487, %v3487
  %v7765 = vpack.c.bf16 %v3488, %v3488
  %v7766 = vpack.c.bf16 %v3489, %v3489
  %v7767 = vpack.c.bf16 %v3490, %v3490
  %v7768 = vpack.c.bf16 %v3491, %v3491
  %v7769 = vpack.c.bf16 %v3492, %v3492
  %v7770 = vpack.c.bf16 %v3493, %v3493
  %v7771 = vpack.c.bf16 %v3494, %v3494
  %v7772 = vpack.c.bf16 %v3495, %v3495
  %v7773 = vpack.c.bf16 %v3496, %v3496
  %v7774 = vpack.c.bf16 %v3497, %v3497
  %v7807 = vunpack.c.l.b16 %v7743
  %v7808 = vunpack.c.l.b16 %v7744
  %v7809 = vunpack.c.l.b16 %v7745
  %v7810 = vunpack.c.l.b16 %v7746
  %v7811 = vunpack.c.l.b16 %v7747
  %v7812 = vunpack.c.l.b16 %v7748
  %v7813 = vunpack.c.l.b16 %v7749
  %v7814 = vunpack.c.l.b16 %v7750
  %v7815 = vunpack.c.l.b16 %v7751
  %v7816 = vunpack.c.l.b16 %v7752
  %v7817 = vunpack.c.l.b16 %v7753
  %v7818 = vunpack.c.l.b16 %v7754
  %v7819 = vunpack.c.l.b16 %v7755
  %v7820 = vunpack.c.l.b16 %v7756
  %v7821 = vunpack.c.l.b16 %v7757
  %v7822 = vunpack.c.l.b16 %v7758
  %v7823 = vunpack.c.l.b16 %v7759
  %v7824 = vunpack.c.l.b16 %v7760
  %v7825 = vunpack.c.l.b16 %v7761
  %v7826 = vunpack.c.l.b16 %v7762
  %v7827 = vunpack.c.l.b16 %v7763
  %v7828 = vunpack.c.l.b16 %v7764
  %v7829 = vunpack.c.l.b16 %v7765
  %v7830 = vunpack.c.l.b16 %v7766
  %v7831 = vunpack.c.l.b16 %v7767
  %v7832 = vunpack.c.l.b16 %v7768
  %v7833 = vunpack.c.l.b16 %v7769
  %v7834 = vunpack.c.l.b16 %v7770
  %v7835 = vunpack.c.l.b16 %v7771
  %v7836 = vunpack.c.l.b16 %v7772
  %v7837 = vunpack.c.l.b16 %v7773
  %v7838 = vunpack.c.l.b16 %v7774
  %v7839 = vpack.c.b16 %v7808, %v7807
  %v7840 = vpack.c.b16 %v7810, %v7809
  %v7841 = vpack.c.b16 %v7812, %v7811
  %v7842 = vpack.c.b16 %v7814, %v7813
  %v7843 = vpack.c.b16 %v7816, %v7815
  %v7844 = vpack.c.b16 %v7818, %v7817
  %v7845 = vpack.c.b16 %v7820, %v7819
  %v7846 = vpack.c.b16 %v7822, %v7821
  %v7847 = vpack.c.b16 %v7824, %v7823
  %v7848 = vpack.c.b16 %v7826, %v7825
  %v7849 = vpack.c.b16 %v7828, %v7827
  %v7850 = vpack.c.b16 %v7830, %v7829
  %v7851 = vpack.c.b16 %v7832, %v7831
  %v7852 = vpack.c.b16 %v7834, %v7833
  %v7853 = vpack.c.b16 %v7836, %v7835
  %v7854 = vpack.c.b16 %v7838, %v7837
  %v7855 = vunpack.c.l.b16 %v7839
  %v7856 = vunpack.c.h.b16 %v7839
  %v7857 = vunpack.c.l.b16 %v7840
  %v7858 = vunpack.c.h.b16 %v7840
  %v7859 = vunpack.c.l.b16 %v7841
  %v7860 = vunpack.c.h.b16 %v7841
  %v7861 = vunpack.c.l.b16 %v7842
  %v7862 = vunpack.c.h.b16 %v7842
  %v7863 = vunpack.c.l.b16 %v7843
  %v7864 = vunpack.c.h.b16 %v7843
  %v7865 = vunpack.c.l.b16 %v7844
  %v7866 = vunpack.c.h.b16 %v7844
  %v7867 = vunpack.c.l.b16 %v7845
  %v7868 = vunpack.c.h.b16 %v7845
  %v7869 = vunpack.c.l.b16 %v7846
  %v7870 = vunpack.c.h.b16 %v7846
  %v7871 = vunpack.c.l.b16 %v7847
  %v7872 = vunpack.c.h.b16 %v7847
  %v7873 = vunpack.c.l.b16 %v7848
  %v7874 = vunpack.c.h.b16 %v7848
  %v7875 = vunpack.c.l.b16 %v7849
  %v7876 = vunpack.c.h.b16 %v7849
  %v7877 = vunpack.c.l.b16 %v7850
  %v7878 = vunpack.c.h.b16 %v7850
  %v7879 = vunpack.c.l.b16 %v7851
  %v7880 = vunpack.c.h.b16 %v7851
  %v7881 = vunpack.c.l.b16 %v7852
  %v7882 = vunpack.c.h.b16 %v7852
  %v7883 = vunpack.c.l.b16 %v7853
  %v7884 = vunpack.c.h.b16 %v7853
  %v7885 = vunpack.c.l.b16 %v7854
  %v7886 = vunpack.c.h.b16 %v7854
  %v7887 = vsel %vm3770, %v7859, %v7855
  %v7888 = vsel %vm3772, %v7863, %v7887
  %v7889 = vsel %vm3774, %v7867, %v7888
  %v7890 = vsel %vm3776, %v7871, %v7889
  %v7891 = vsel %vm3778, %v7875, %v7890
  %v7892 = vsel %vm3780, %v7879, %v7891
  %v7893 = vsel %vm3782, %v7883, %v7892
  %v7894 = vsel %vm3770, %v7860, %v7856
  %v7895 = vsel %vm3772, %v7864, %v7894
  %v7896 = vsel %vm3774, %v7868, %v7895
  %v7897 = vsel %vm3776, %v7872, %v7896
  %v7898 = vsel %vm3778, %v7876, %v7897
  %v7899 = vsel %vm3780, %v7880, %v7898
  %v7900 = vsel %vm3782, %v7884, %v7899
  %v7901 = vsel %vm3770, %v7861, %v7857
  %v7902 = vsel %vm3772, %v7865, %v7901
  %v7903 = vsel %vm3774, %v7869, %v7902
  %v7904 = vsel %vm3776, %v7873, %v7903
  %v7905 = vsel %vm3778, %v7877, %v7904
  %v7906 = vsel %vm3780, %v7881, %v7905
  %v7907 = vsel %vm3782, %v7885, %v7906
  %v7908 = vsel %vm3770, %v7862, %v7858
  %v7909 = vsel %vm3772, %v7866, %v7908
  %v7910 = vsel %vm3774, %v7870, %v7909
  %v7911 = vsel %vm3776, %v7874, %v7910
  %v7912 = vsel %vm3778, %v7878, %v7911
  %v7913 = vsel %vm3780, %v7882, %v7912
  %v7914 = vsel %vm3782, %v7886, %v7913
  %v7915 = vpack.c.b16 %v7900, %v7893
  %v7916 = vpack.c.b16 %v7914, %v7907
  %7919 = vst [vmem:[%s7740 + $0x10] sm:$0xff] %v7915
  %7920 = vst [vmem:[%s7740 + $0x18] sm:$0xff] %v7916
  %s7921 = scalar_lea.vmem %s1, 416
  %7922 = vst [vmem:[%s7921] sm:$0xff] %v7736
  %7923 = vst [vmem:[%s7921 + $0x8] sm:$0xff] %v7737
  %v7924 = vpack.c.bf16 %v3530, %v3530
  %v7925 = vpack.c.bf16 %v3531, %v3531
  %v7926 = vpack.c.bf16 %v3532, %v3532
  %v7927 = vpack.c.bf16 %v3533, %v3533
  %v7928 = vpack.c.bf16 %v3534, %v3534
  %v7929 = vpack.c.bf16 %v3535, %v3535
  %v7930 = vpack.c.bf16 %v3536, %v3536
  %v7931 = vpack.c.bf16 %v3537, %v3537
  %v7932 = vpack.c.bf16 %v3538, %v3538
  %v7933 = vpack.c.bf16 %v3539, %v3539
  %v7934 = vpack.c.bf16 %v3540, %v3540
  %v7935 = vpack.c.bf16 %v3541, %v3541
  %v7936 = vpack.c.bf16 %v3542, %v3542
  %v7937 = vpack.c.bf16 %v3543, %v3543
  %v7938 = vpack.c.bf16 %v3544, %v3544
  %v7939 = vpack.c.bf16 %v3545, %v3545
  %v7940 = vpack.c.bf16 %v3546, %v3546
  %v7941 = vpack.c.bf16 %v3547, %v3547
  %v7942 = vpack.c.bf16 %v3548, %v3548
  %v7943 = vpack.c.bf16 %v3549, %v3549
  %v7944 = vpack.c.bf16 %v3550, %v3550
  %v7945 = vpack.c.bf16 %v3551, %v3551
  %v7946 = vpack.c.bf16 %v3552, %v3552
  %v7947 = vpack.c.bf16 %v3553, %v3553
  %v7948 = vpack.c.bf16 %v3554, %v3554
  %v7949 = vpack.c.bf16 %v3555, %v3555
  %v7950 = vpack.c.bf16 %v3556, %v3556
  %v7951 = vpack.c.bf16 %v3557, %v3557
  %v7952 = vpack.c.bf16 %v3558, %v3558
  %v7953 = vpack.c.bf16 %v3559, %v3559
  %v7954 = vpack.c.bf16 %v3560, %v3560
  %v7955 = vpack.c.bf16 %v3561, %v3561
  %v7988 = vunpack.c.l.b16 %v7924
  %v7989 = vunpack.c.l.b16 %v7925
  %v7990 = vunpack.c.l.b16 %v7926
  %v7991 = vunpack.c.l.b16 %v7927
  %v7992 = vunpack.c.l.b16 %v7928
  %v7993 = vunpack.c.l.b16 %v7929
  %v7994 = vunpack.c.l.b16 %v7930
  %v7995 = vunpack.c.l.b16 %v7931
  %v7996 = vunpack.c.l.b16 %v7932
  %v7997 = vunpack.c.l.b16 %v7933
  %v7998 = vunpack.c.l.b16 %v7934
  %v7999 = vunpack.c.l.b16 %v7935
  %v8000 = vunpack.c.l.b16 %v7936
  %v8001 = vunpack.c.l.b16 %v7937
  %v8002 = vunpack.c.l.b16 %v7938
  %v8003 = vunpack.c.l.b16 %v7939
  %v8004 = vunpack.c.l.b16 %v7940
  %v8005 = vunpack.c.l.b16 %v7941
  %v8006 = vunpack.c.l.b16 %v7942
  %v8007 = vunpack.c.l.b16 %v7943
  %v8008 = vunpack.c.l.b16 %v7944
  %v8009 = vunpack.c.l.b16 %v7945
  %v8010 = vunpack.c.l.b16 %v7946
  %v8011 = vunpack.c.l.b16 %v7947
  %v8012 = vunpack.c.l.b16 %v7948
  %v8013 = vunpack.c.l.b16 %v7949
  %v8014 = vunpack.c.l.b16 %v7950
  %v8015 = vunpack.c.l.b16 %v7951
  %v8016 = vunpack.c.l.b16 %v7952
  %v8017 = vunpack.c.l.b16 %v7953
  %v8018 = vunpack.c.l.b16 %v7954
  %v8019 = vunpack.c.l.b16 %v7955
  %v8020 = vpack.c.b16 %v7989, %v7988
  %v8021 = vpack.c.b16 %v7991, %v7990
  %v8022 = vpack.c.b16 %v7993, %v7992
  %v8023 = vpack.c.b16 %v7995, %v7994
  %v8024 = vpack.c.b16 %v7997, %v7996
  %v8025 = vpack.c.b16 %v7999, %v7998
  %v8026 = vpack.c.b16 %v8001, %v8000
  %v8027 = vpack.c.b16 %v8003, %v8002
  %v8028 = vpack.c.b16 %v8005, %v8004
  %v8029 = vpack.c.b16 %v8007, %v8006
  %v8030 = vpack.c.b16 %v8009, %v8008
  %v8031 = vpack.c.b16 %v8011, %v8010
  %v8032 = vpack.c.b16 %v8013, %v8012
  %v8033 = vpack.c.b16 %v8015, %v8014
  %v8034 = vpack.c.b16 %v8017, %v8016
  %v8035 = vpack.c.b16 %v8019, %v8018
  %v8036 = vunpack.c.l.b16 %v8020
  %v8037 = vunpack.c.h.b16 %v8020
  %v8038 = vunpack.c.l.b16 %v8021
  %v8039 = vunpack.c.h.b16 %v8021
  %v8040 = vunpack.c.l.b16 %v8022
  %v8041 = vunpack.c.h.b16 %v8022
  %v8042 = vunpack.c.l.b16 %v8023
  %v8043 = vunpack.c.h.b16 %v8023
  %v8044 = vunpack.c.l.b16 %v8024
  %v8045 = vunpack.c.h.b16 %v8024
  %v8046 = vunpack.c.l.b16 %v8025
  %v8047 = vunpack.c.h.b16 %v8025
  %v8048 = vunpack.c.l.b16 %v8026
  %v8049 = vunpack.c.h.b16 %v8026
  %v8050 = vunpack.c.l.b16 %v8027
  %v8051 = vunpack.c.h.b16 %v8027
  %v8052 = vunpack.c.l.b16 %v8028
  %v8053 = vunpack.c.h.b16 %v8028
  %v8054 = vunpack.c.l.b16 %v8029
  %v8055 = vunpack.c.h.b16 %v8029
  %v8056 = vunpack.c.l.b16 %v8030
  %v8057 = vunpack.c.h.b16 %v8030
  %v8058 = vunpack.c.l.b16 %v8031
  %v8059 = vunpack.c.h.b16 %v8031
  %v8060 = vunpack.c.l.b16 %v8032
  %v8061 = vunpack.c.h.b16 %v8032
  %v8062 = vunpack.c.l.b16 %v8033
  %v8063 = vunpack.c.h.b16 %v8033
  %v8064 = vunpack.c.l.b16 %v8034
  %v8065 = vunpack.c.h.b16 %v8034
  %v8066 = vunpack.c.l.b16 %v8035
  %v8067 = vunpack.c.h.b16 %v8035
  %v8068 = vsel %vm3770, %v8040, %v8036
  %v8069 = vsel %vm3772, %v8044, %v8068
  %v8070 = vsel %vm3774, %v8048, %v8069
  %v8071 = vsel %vm3776, %v8052, %v8070
  %v8072 = vsel %vm3778, %v8056, %v8071
  %v8073 = vsel %vm3780, %v8060, %v8072
  %v8074 = vsel %vm3782, %v8064, %v8073
  %v8075 = vsel %vm3770, %v8041, %v8037
  %v8076 = vsel %vm3772, %v8045, %v8075
  %v8077 = vsel %vm3774, %v8049, %v8076
  %v8078 = vsel %vm3776, %v8053, %v8077
  %v8079 = vsel %vm3778, %v8057, %v8078
  %v8080 = vsel %vm3780, %v8061, %v8079
  %v8081 = vsel %vm3782, %v8065, %v8080
  %v8082 = vsel %vm3770, %v8042, %v8038
  %v8083 = vsel %vm3772, %v8046, %v8082
  %v8084 = vsel %vm3774, %v8050, %v8083
  %v8085 = vsel %vm3776, %v8054, %v8084
  %v8086 = vsel %vm3778, %v8058, %v8085
  %v8087 = vsel %vm3780, %v8062, %v8086
  %v8088 = vsel %vm3782, %v8066, %v8087
  %v8089 = vsel %vm3770, %v8043, %v8039
  %v8090 = vsel %vm3772, %v8047, %v8089
  %v8091 = vsel %vm3774, %v8051, %v8090
  %v8092 = vsel %vm3776, %v8055, %v8091
  %v8093 = vsel %vm3778, %v8059, %v8092
  %v8094 = vsel %vm3780, %v8063, %v8093
  %v8095 = vsel %vm3782, %v8067, %v8094
  %v8096 = vpack.c.b16 %v8081, %v8074
  %v8097 = vpack.c.b16 %v8095, %v8088
  %8100 = vst [vmem:[%s7921 + $0x10] sm:$0xff] %v8096
  %8101 = vst [vmem:[%s7921 + $0x18] sm:$0xff] %v8097
  %s8102 = scalar_lea.vmem %s1, 448
  %8103 = vst [vmem:[%s8102] sm:$0xff] %v7736
  %8104 = vst [vmem:[%s8102 + $0x8] sm:$0xff] %v7737
  %v8105 = vpack.c.bf16 %v3594, %v3594
  %v8106 = vpack.c.bf16 %v3595, %v3595
  %v8107 = vpack.c.bf16 %v3596, %v3596
  %v8108 = vpack.c.bf16 %v3597, %v3597
  %v8109 = vpack.c.bf16 %v3598, %v3598
  %v8110 = vpack.c.bf16 %v3599, %v3599
  %v8111 = vpack.c.bf16 %v3600, %v3600
  %v8112 = vpack.c.bf16 %v3601, %v3601
  %v8113 = vpack.c.bf16 %v3602, %v3602
  %v8114 = vpack.c.bf16 %v3603, %v3603
  %v8115 = vpack.c.bf16 %v3604, %v3604
  %v8116 = vpack.c.bf16 %v3605, %v3605
  %v8117 = vpack.c.bf16 %v3606, %v3606
  %v8118 = vpack.c.bf16 %v3607, %v3607
  %v8119 = vpack.c.bf16 %v3608, %v3608
  %v8120 = vpack.c.bf16 %v3609, %v3609
  %v8121 = vpack.c.bf16 %v3610, %v3610
  %v8122 = vpack.c.bf16 %v3611, %v3611
  %v8123 = vpack.c.bf16 %v3612, %v3612
  %v8124 = vpack.c.bf16 %v3613, %v3613
  %v8125 = vpack.c.bf16 %v3614, %v3614
  %v8126 = vpack.c.bf16 %v3615, %v3615
  %v8127 = vpack.c.bf16 %v3616, %v3616
  %v8128 = vpack.c.bf16 %v3617, %v3617
  %v8129 = vpack.c.bf16 %v3618, %v3618
  %v8130 = vpack.c.bf16 %v3619, %v3619
  %v8131 = vpack.c.bf16 %v3620, %v3620
  %v8132 = vpack.c.bf16 %v3621, %v3621
  %v8133 = vpack.c.bf16 %v3622, %v3622
  %v8134 = vpack.c.bf16 %v3623, %v3623
  %v8135 = vpack.c.bf16 %v3624, %v3624
  %v8136 = vpack.c.bf16 %v3625, %v3625
  %v8169 = vunpack.c.l.b16 %v8105
  %v8170 = vunpack.c.l.b16 %v8106
  %v8171 = vunpack.c.l.b16 %v8107
  %v8172 = vunpack.c.l.b16 %v8108
  %v8173 = vunpack.c.l.b16 %v8109
  %v8174 = vunpack.c.l.b16 %v8110
  %v8175 = vunpack.c.l.b16 %v8111
  %v8176 = vunpack.c.l.b16 %v8112
  %v8177 = vunpack.c.l.b16 %v8113
  %v8178 = vunpack.c.l.b16 %v8114
  %v8179 = vunpack.c.l.b16 %v8115
  %v8180 = vunpack.c.l.b16 %v8116
  %v8181 = vunpack.c.l.b16 %v8117
  %v8182 = vunpack.c.l.b16 %v8118
  %v8183 = vunpack.c.l.b16 %v8119
  %v8184 = vunpack.c.l.b16 %v8120
  %v8185 = vunpack.c.l.b16 %v8121
  %v8186 = vunpack.c.l.b16 %v8122
  %v8187 = vunpack.c.l.b16 %v8123
  %v8188 = vunpack.c.l.b16 %v8124
  %v8189 = vunpack.c.l.b16 %v8125
  %v8190 = vunpack.c.l.b16 %v8126
  %v8191 = vunpack.c.l.b16 %v8127
  %v8192 = vunpack.c.l.b16 %v8128
  %v8193 = vunpack.c.l.b16 %v8129
  %v8194 = vunpack.c.l.b16 %v8130
  %v8195 = vunpack.c.l.b16 %v8131
  %v8196 = vunpack.c.l.b16 %v8132
  %v8197 = vunpack.c.l.b16 %v8133
  %v8198 = vunpack.c.l.b16 %v8134
  %v8199 = vunpack.c.l.b16 %v8135
  %v8200 = vunpack.c.l.b16 %v8136
  %v8201 = vpack.c.b16 %v8170, %v8169
  %v8202 = vpack.c.b16 %v8172, %v8171
  %v8203 = vpack.c.b16 %v8174, %v8173
  %v8204 = vpack.c.b16 %v8176, %v8175
  %v8205 = vpack.c.b16 %v8178, %v8177
  %v8206 = vpack.c.b16 %v8180, %v8179
  %v8207 = vpack.c.b16 %v8182, %v8181
  %v8208 = vpack.c.b16 %v8184, %v8183
  %v8209 = vpack.c.b16 %v8186, %v8185
  %v8210 = vpack.c.b16 %v8188, %v8187
  %v8211 = vpack.c.b16 %v8190, %v8189
  %v8212 = vpack.c.b16 %v8192, %v8191
  %v8213 = vpack.c.b16 %v8194, %v8193
  %v8214 = vpack.c.b16 %v8196, %v8195
  %v8215 = vpack.c.b16 %v8198, %v8197
  %v8216 = vpack.c.b16 %v8200, %v8199
  %v8217 = vunpack.c.l.b16 %v8201
  %v8218 = vunpack.c.h.b16 %v8201
  %v8219 = vunpack.c.l.b16 %v8202
  %v8220 = vunpack.c.h.b16 %v8202
  %v8221 = vunpack.c.l.b16 %v8203
  %v8222 = vunpack.c.h.b16 %v8203
  %v8223 = vunpack.c.l.b16 %v8204
  %v8224 = vunpack.c.h.b16 %v8204
  %v8225 = vunpack.c.l.b16 %v8205
  %v8226 = vunpack.c.h.b16 %v8205
  %v8227 = vunpack.c.l.b16 %v8206
  %v8228 = vunpack.c.h.b16 %v8206
  %v8229 = vunpack.c.l.b16 %v8207
  %v8230 = vunpack.c.h.b16 %v8207
  %v8231 = vunpack.c.l.b16 %v8208
  %v8232 = vunpack.c.h.b16 %v8208
  %v8233 = vunpack.c.l.b16 %v8209
  %v8234 = vunpack.c.h.b16 %v8209
  %v8235 = vunpack.c.l.b16 %v8210
  %v8236 = vunpack.c.h.b16 %v8210
  %v8237 = vunpack.c.l.b16 %v8211
  %v8238 = vunpack.c.h.b16 %v8211
  %v8239 = vunpack.c.l.b16 %v8212
  %v8240 = vunpack.c.h.b16 %v8212
  %v8241 = vunpack.c.l.b16 %v8213
  %v8242 = vunpack.c.h.b16 %v8213
  %v8243 = vunpack.c.l.b16 %v8214
  %v8244 = vunpack.c.h.b16 %v8214
  %v8245 = vunpack.c.l.b16 %v8215
  %v8246 = vunpack.c.h.b16 %v8215
  %v8247 = vunpack.c.l.b16 %v8216
  %v8248 = vunpack.c.h.b16 %v8216
  %v8249 = vsel %vm3770, %v8221, %v8217
  %v8250 = vsel %vm3772, %v8225, %v8249
  %v8251 = vsel %vm3774, %v8229, %v8250
  %v8252 = vsel %vm3776, %v8233, %v8251
  %v8253 = vsel %vm3778, %v8237, %v8252
  %v8254 = vsel %vm3780, %v8241, %v8253
  %v8255 = vsel %vm3782, %v8245, %v8254
  %v8256 = vsel %vm3770, %v8222, %v8218
  %v8257 = vsel %vm3772, %v8226, %v8256
  %v8258 = vsel %vm3774, %v8230, %v8257
  %v8259 = vsel %vm3776, %v8234, %v8258
  %v8260 = vsel %vm3778, %v8238, %v8259
  %v8261 = vsel %vm3780, %v8242, %v8260
  %v8262 = vsel %vm3782, %v8246, %v8261
  %v8263 = vsel %vm3770, %v8223, %v8219
  %v8264 = vsel %vm3772, %v8227, %v8263
  %v8265 = vsel %vm3774, %v8231, %v8264
  %v8266 = vsel %vm3776, %v8235, %v8265
  %v8267 = vsel %vm3778, %v8239, %v8266
  %v8268 = vsel %vm3780, %v8243, %v8267
  %v8269 = vsel %vm3782, %v8247, %v8268
  %v8270 = vsel %vm3770, %v8224, %v8220
  %v8271 = vsel %vm3772, %v8228, %v8270
  %v8272 = vsel %vm3774, %v8232, %v8271
  %v8273 = vsel %vm3776, %v8236, %v8272
  %v8274 = vsel %vm3778, %v8240, %v8273
  %v8275 = vsel %vm3780, %v8244, %v8274
  %v8276 = vsel %vm3782, %v8248, %v8275
  %v8277 = vpack.c.b16 %v8262, %v8255
  %v8278 = vpack.c.b16 %v8276, %v8269
  %8281 = vst [vmem:[%s8102 + $0x10] sm:$0xff] %v8277
  %8282 = vst [vmem:[%s8102 + $0x18] sm:$0xff] %v8278
  // Predicated region
  $region6: #{relation_model_forward.2} parent=0 // pred_check
    _
  $region7: #{relation_model_forward.2} parent=0 // pred_check_branch
    %8284 = sbr.rel (0) target = $region9
  $region8: #{relation_model_forward.2} parent=0 // pred_region
    _
  $region9: #{relation_model_forward.2} parent=0 // pred_fallthru
    _
  // Predicated region
  $region10: #{relation_model_forward.2} parent=0 // pred_check
    _
  $region11: #{relation_model_forward.2} parent=0 // pred_check_branch
    %8286 = sbr.rel (0) target = $region13
  $region12: #{relation_model_forward.2} parent=0 // pred_region
    _
  $region13: #{relation_model_forward.2} parent=0 // pred_fallthru
    _

</llo_original>
